<compile_context>
chip_gen: v5e
topology: v5e:2x2
jax: 0.10.0
libtpu: 0.0.40
codegen_flags: <defaults>
</compile_context>

<pallas_src>
import functools

import jax
import jax.numpy as jnp
from jax import lax
from jax.experimental import pallas as pl
from jax.experimental.pallas import tpu as pltpu


KSIZE = 4          # every conv in the module is 4x4
PAD = 1            # padding=1, padding_mode='reflect'
EPS = 1e-5         # InstanceNorm2d default eps
SLOPE = 0.2        # LeakyReLU slope
LANE = 128         # TPU lane width


@functools.lru_cache(maxsize=1)
def _vmem_limit_bytes():
    """3/4 of physical VMEM (capped); conservative fallback if query fails."""
    try:
        cap = int(pltpu.get_tpu_info().vmem_capacity_bytes)
        return min((cap * 3) // 4, 96 * 1024 * 1024)
    except Exception:
        return 64 * 1024 * 1024


def _pick_q_tile(q, target=2048):
    """Largest divisor of q that is <= target and a multiple of 8 (else q)."""
    if q <= target:
        return q
    t = (target // 8) * 8
    while t >= 8:
        if q % t == 0:
            return t
        t -= 8
    return q


# ----------------------------------------------------------------------------
# Kernel 1: im2col conv (first layer) -- one matmul per (sample, Q-tile)
# ----------------------------------------------------------------------------
def _im2col_layer_kernel(x_ref, w_ref, b_ref, o_ref, *, use_act):
    """x_ref: (1, TQ, K) bf16   w_ref: (K, Cout) bf16   b_ref: (1, Cout) f32
    o_ref: (1, TQ, Cout) bf16"""
    acc = jnp.dot(x_ref[0], w_ref[...], preferred_element_type=jnp.float32)
    acc = acc + b_ref[...]
    if use_act:
        acc = jnp.where(acc > 0, acc, SLOPE * acc)              # LeakyReLU(0.2)
    o_ref[0] = acc.astype(o_ref.dtype)


# ----------------------------------------------------------------------------
# Kernel 2: tap-accumulated conv [+ fused InstanceNorm] [+ LeakyReLU]
# ----------------------------------------------------------------------------
def _tap_layer_kernel(*refs, taps, use_norm, use_act, ws, ow, inv_count):
    """One grid step = one sample.

    refs (use_norm=True):  x_ref, w_ref, o_ref                 (bias is a no-op)
    refs (use_norm=False): x_ref, w_ref, b_ref, o_ref
    x_ref: (1, S2, L, Cin) bf16  phase-decomposed, flattened padded input
    w_ref: (KK, Cin, Cout) bf16  per-tap weight matrices
    o_ref: (1, Q, Cout)    bf16  rows over padded width (wrapper crops junk)
    """
    if use_norm:
        x_ref, w_ref, o_ref = refs
        b_ref = None
    else:
        x_ref, w_ref, b_ref, o_ref = refs
    q = o_ref.shape[1]
    cout = o_ref.shape[2]

    # Accumulate the KH*KW per-tap matmuls in f32 (bf16 MXU, f32 accumulate).
    acc = jnp.zeros((q, cout), dtype=jnp.float32)
    for kk, (ph, off) in enumerate(taps):
        lhs = x_ref[0, ph, pl.ds(off, q), :]                    # (Q, Cin) bf16
        acc = acc + jnp.dot(lhs, w_ref[kk],
                            preferred_element_type=jnp.float32)

    if use_norm:
        # InstanceNorm2d (affine=False, biased variance, eps=1e-5).
        # Pre-norm channel bias is cancelled by the mean subtraction: not added.
        # Validity mask built in-kernel (no (Q,1) HBM input, no lane padding);
        # masked statistics computed as MXU dots instead of VPU axis-0 sums.
        col = lax.broadcasted_iota(jnp.int32, (1, q), 1) % ws
        valid = (col < ow).astype(jnp.float32)                  # (1, Q)
        mean = jnp.dot(valid, acc,
                       preferred_element_type=jnp.float32) * inv_count
        ex2 = jnp.dot(valid, acc * acc,
                      preferred_element_type=jnp.float32) * inv_count
        var = jnp.maximum(ex2 - mean * mean, 0.0)
        acc = (acc - mean) * lax.rsqrt(var + EPS)
    else:
        acc = acc + b_ref[...]

    if use_act:
        acc = jnp.where(acc > 0, acc, SLOPE * acc)              # LeakyReLU(0.2)

    o_ref[0] = acc.astype(o_ref.dtype)


# ----------------------------------------------------------------------------
# Per-layer wrappers
# ----------------------------------------------------------------------------
def _conv_block_im2col(x_nhwc, w_mat, bias, *, stride, use_act):
    """First-layer path: wrapper-side im2col + one matmul per (sample, Q-tile)."""
    n, h, w, cin = x_nhwc.shape
    k_total, cout = w_mat.shape
    oh = (h + 2 * PAD - KSIZE) // stride + 1
    ow = (w + 2 * PAD - KSIZE) // stride + 1

    xp = jnp.pad(x_nhwc, ((0, 0), (PAD, PAD), (PAD, PAD), (0, 0)), mode="reflect")
    patches = jnp.stack(
        [xp[:, i:i + stride * (oh - 1) + 1:stride,
            j:j + stride * (ow - 1) + 1:stride, :]
         for i in range(KSIZE) for j in range(KSIZE)],
        axis=3)                                                 # (N, OH, OW, KK, Cin)
    q = oh * ow
    patches = patches.reshape(n, q, KSIZE * KSIZE * cin)        # (N, Q, KK*Cin)
    assert patches.shape[2] == k_total

    tq = _pick_q_tile(q)
    grid = (n, q // tq)

    flops = 2 * n * q * k_total * cout
    bytes_accessed = (patches.size * 2 + w_mat.size * 2
                      + bias.size * 4 + n * q * cout * 2)

    out = pl.pallas_call(
        functools.partial(_im2col_layer_kernel, use_act=use_act),
        out_shape=jax.ShapeDtypeStruct((n, q, cout), jnp.bfloat16),
        grid=grid,
        in_specs=[
            pl.BlockSpec((1, tq, k_total), lambda b, t: (b, t, 0)),
            pl.BlockSpec((k_total, cout), lambda b, t: (0, 0)),
            pl.BlockSpec((1, cout), lambda b, t: (0, 0)),
        ],
        out_specs=pl.BlockSpec((1, tq, cout), lambda b, t: (b, t, 0)),
        compiler_params=pltpu.CompilerParams(
            dimension_semantics=("parallel", "parallel"),
            vmem_limit_bytes=_vmem_limit_bytes()),
        cost_estimate=pl.CostEstimate(
            flops=flops, transcendentals=0, bytes_accessed=bytes_accessed),
    )(patches, w_mat, bias)

    return out.reshape(n, oh, ow, cout)


def _conv_block_taps(x_nhwc, w_taps, bias, *, stride, use_norm, use_act):
    """Tap-accumulated path (DBlocks + final conv): reflect pad + stride phase
    decomposition in the wrapper, 16 per-tap matmuls out of the resident sample."""
    n, h, w, cin = x_nhwc.shape
    kk, _, cout = w_taps.shape
    assert (h + 2 * PAD - KSIZE) % stride == 0 and (w + 2 * PAD - KSIZE) % stride == 0
    oh = (h + 2 * PAD - KSIZE) // stride + 1
    ow = (w + 2 * PAD - KSIZE) // stride + 1

    xp = jnp.pad(x_nhwc, ((0, 0), (PAD, PAD), (PAD, PAD), (0, 0)), mode="reflect")
    if stride == 1:
        phases = xp[:, None]                                    # (N,1,Hp,Wp,C)
    else:
        assert h % 2 == 0 and w % 2 == 0, "stride-2 layers need even spatial dims"
        phases = jnp.stack([xp[:, a::2, b::2, :] for a in (0, 1) for b in (0, 1)],
                           axis=1)                              # (N,4,Hs,Ws,C)
    s2, hs, ws = phases.shape[1], phases.shape[2], phases.shape[3]

    # Flatten spatial and append one zero row of slack so every tap's flat
    # window [off, off+Q) stays in bounds (overruns only touch junk columns).
    phases = phases.reshape(n, s2, hs * ws, cin)
    phases = jnp.pad(phases, ((0, 0), (0, 0), (0, ws), (0, 0)))
    flat_len = phases.shape[2]

    taps = []
    for i in range(KSIZE):
        for j in range(KSIZE):
            if stride == 1:
                taps.append((0, i * ws + j))
            else:
                taps.append(((i % 2) * 2 + (j % 2), (i // 2) * ws + (j // 2)))
    taps = tuple(taps)

    q = oh * ws                                                 # rows over padded width
    # Static safety check: worst-case tap window must be covered by the slack.
    assert max(off for _, off in taps) + q <= flat_len, "tap window out of bounds"

    kernel = functools.partial(
        _tap_layer_kernel, taps=taps, use_norm=use_norm, use_act=use_act,
        ws=ws, ow=ow, inv_count=1.0 / float(oh * ow))

    in_specs = [
        pl.BlockSpec((1, s2, flat_len, cin), lambda b: (b, 0, 0, 0)),
        pl.BlockSpec((kk, cin, cout), lambda b: (0, 0, 0)),
    ]
    args = [phases, w_taps]
    if not use_norm:
        in_specs.append(pl.BlockSpec((1, cout), lambda b: (0, 0)))
        args.append(bias)

    flops = 2 * n * q * kk * cin * cout + (4 * n * q * cout if use_norm else 0)
    bytes_accessed = (phases.size * 2 + w_taps.size * 2
                      + (0 if use_norm else bias.size * 4) + n * q * cout * 2)

    out = pl.pallas_call(
        kernel,
        out_shape=jax.ShapeDtypeStruct((n, q, cout), jnp.bfloat16),
        grid=(n,),
        in_specs=in_specs,
        out_specs=pl.BlockSpec((1, q, cout), lambda b: (b, 0, 0)),
        compiler_params=pltpu.CompilerParams(
            dimension_semantics=("parallel",),
            vmem_limit_bytes=_vmem_limit_bytes()),
        cost_estimate=pl.CostEstimate(
            flops=flops, transcendentals=(n * cout if use_norm else 0),
            bytes_accessed=bytes_accessed),
    )(*args)

    return out.reshape(n, oh, ws, cout)[:, :, :ow, :]           # crop junk columns


# ----------------------------------------------------------------------------
# Parameters: init (PyTorch-default-like) + packing into bf16 MXU matrices
# ----------------------------------------------------------------------------
def _init_conv(key, cin, cout, k=KSIZE):
    kw_key, kb_key = jax.random.split(key)
    fan_in = cin * k * k
    bound = 1.0 / (fan_in ** 0.5)
    w = jax.random.uniform(kw_key, (cout, cin, k, k), jnp.float32, -bound, bound)
    b = jax.random.uniform(kb_key, (cout,), jnp.float32, -bound, bound)
    return w, b


def discriminator_init(key, in_channels, features=(64, 128, 256, 512)):
    features = list(features)
    keys = jax.random.split(key, len(features) + 1)
    layers = []
    # initial block: Conv(in, f0, k4 s2 p1 reflect) + LeakyReLU (no norm)
    w, b = _init_conv(keys[0], in_channels, features[0])
    layers.append(dict(w=w, b=b, stride=2, use_norm=False, use_act=True))
    cin = features[0]
    # DBlocks: Conv + InstanceNorm + LeakyReLU
    for idx, feat in enumerate(features[1:]):
        stride = 1 if feat == features[-1] else 2
        w, b = _init_conv(keys[idx + 1], cin, feat)
        layers.append(dict(w=w, b=b, stride=stride, use_norm=True, use_act=True))
        cin = feat
    # final conv: Conv(cin, 1, k4 s1 p1 reflect), no norm, no activation
    w, b = _init_conv(keys[-1], cin, 1)
    layers.append(dict(w=w, b=b, stride=1, use_norm=False, use_act=False))
    return layers


def _pack_layer(layer, *, im2col=False, pad_lane_dense=False):
    w = layer["w"]                                              # (Cout, Cin, KH, KW)
    cout, cin, kh, kw = w.shape
    pad = LANE - cout if (pad_lane_dense and cout < LANE) else 0
    bias = layer["b"].reshape(1, cout).astype(jnp.float32)
    if pad:
        bias = jnp.pad(bias, ((0, 0), (0, pad)))

    packed = dict(cout=cout, stride=layer["stride"],
                  use_norm=layer["use_norm"], use_act=layer["use_act"])
    if im2col:
        # (KK*Cin, Cout): row index = (i*KW + j)*Cin + c, matching patch layout.
        w_mat = jnp.transpose(w, (2, 3, 1, 0)).reshape(kh * kw * cin, cout)
        if pad:
            w_mat = jnp.pad(w_mat, ((0, 0), (0, pad)))
        packed.update(kind="im2col", w_mat=w_mat.astype(jnp.bfloat16), bias=bias)
    else:
        w_taps = jnp.stack([w[:, :, i, j].T
                            for i in range(kh) for j in range(kw)], axis=0)
        if pad:
            w_taps = jnp.pad(w_taps, ((0, 0), (0, 0), (0, pad)))
        packed.update(kind="taps", w_taps=w_taps.astype(jnp.bfloat16))
        if not layer["use_norm"]:
            packed["bias"] = bias   # pre-norm bias is a no-op; only ship when used
    return packed


def pack_discriminator(layers):
    last = len(layers) - 1
    return [_pack_layer(layer, im2col=(i == 0), pad_lane_dense=(i == last))
            for i, layer in enumerate(layers)]


def discriminator_forward(packed_layers, x_nchw):
    x = jnp.transpose(x_nchw, (0, 2, 3, 1)).astype(jnp.bfloat16)  # NCHW -> NHWC bf16
    for layer in packed_layers:
        if layer["kind"] == "im2col":
            y = _conv_block_im2col(x, layer["w_mat"], layer["bias"],
                                   stride=layer["stride"], use_act=layer["use_act"])
        else:
            y = _conv_block_taps(x, layer["w_taps"], layer.get("bias"),
                                 stride=layer["stride"],
                                 use_norm=layer["use_norm"],
                                 use_act=layer["use_act"])
        x = y[..., :layer["cout"]]                              # drop lane padding
    return jnp.transpose(x.astype(jnp.float32), (0, 3, 1, 2))   # NHWC -> NCHW


# ----------------------------------------------------------------------------
# Pure-JAX reference (same precision choices) for a correctness check
# ----------------------------------------------------------------------------
def _reference_forward(layers, x_nchw):
    x = jnp.transpose(x_nchw, (0, 2, 3, 1)).astype(jnp.bfloat16)
    for layer in layers:
        w = layer["w"]
        xp = jnp.pad(x, ((0, 0), (PAD, PAD), (PAD, PAD), (0, 0)), mode="reflect")
        y = lax.conv_general_dilated(
            xp, jnp.transpose(w, (2, 3, 1, 0)).astype(jnp.bfloat16),
            window_strides=(layer["stride"],) * 2, padding="VALID",
            dimension_numbers=("NHWC", "HWIO", "NHWC"),
            preferred_element_type=jnp.float32)
        y = y + layer["b"][None, None, None, :]
        if layer["use_norm"]:
            mean = jnp.mean(y, axis=(1, 2), keepdims=True)
            var = jnp.mean((y - mean) ** 2, axis=(1, 2), keepdims=True)
            y = (y - mean) * lax.rsqrt(var + EPS)
        if layer["use_act"]:
            y = jnp.where(y > 0, y, SLOPE * y)
        x = y.astype(jnp.bfloat16)
    return jnp.transpose(x.astype(jnp.float32), (0, 3, 1, 2))


if __name__ == "__main__":
    key = jax.random.PRNGKey(0)
    k_param, k_x = jax.random.split(key)

    # Small shapes consistent with the module (features is a constructor arg,
    # so use a scaled-down feature list; spatial 32 keeps every conv valid).
    batch, in_channels, spatial = 2, 4, 32
    features = (8, 16, 32, 64)

    layers = discriminator_init(k_param, in_channels, features)
    packed = pack_discriminator(layers)
    x = jax.random.normal(k_x, (batch, in_channels, spatial, spatial), jnp.float32)

    fwd = jax.jit(functools.partial(discriminator_forward, packed))
    out = jax.block_until_ready(fwd(x))

    # Expected output shape for 32x32 input: (N, 1, 2, 2)
    assert out.shape == (batch, 1, 2, 2), out.shape
    assert bool(jnp.all(jnp.isfinite(out)))

    # Check against a pure-JAX reference using the same bf16/f32 precision.
    ref = _reference_forward(layers, x)
    max_diff = float(jnp.max(jnp.abs(out - ref)))
    assert bool(jnp.allclose(out, ref, atol=5e-2, rtol=5e-2)), max_diff

    print("KERNEL_OK")
</pallas_src>

<mosaic_0001>
module attributes {stable_mosaic.version = 11 : i64} {
  func.func @_im2col_layer_kernel(%arg0: i32, %arg1: i32, %arg2: memref<1x256x64xbf16, #tpu.memory_space<vmem>>, %arg3: memref<64x8xbf16, #tpu.memory_space<vmem>>, %arg4: memref<1x8xf32, #tpu.memory_space<vmem>>, %arg5: memref<1x256x8xbf16, #tpu.memory_space<vmem>>) attributes {dimension_semantics = [#tpu.dimension_semantics<parallel>, #tpu.dimension_semantics<parallel>], iteration_bounds = array<i64: 2, 1>, scalar_prefetch = 0 : i64, scratch_operands = 0 : i64, tpu.core_type = #tpu.core_type<tc>, window_params = [{transform_indices = @transform_0, window_bounds = array<i64: 1, 256, 64>}, {pipeline_mode = #tpu.pipeline_mode<synchronous>, transform_indices = @transform_1, window_bounds = array<i64: 64, 8>}, {pipeline_mode = #tpu.pipeline_mode<synchronous>, transform_indices = @transform_2, window_bounds = array<i64: 1, 8>}, {transform_indices = @transform_3, window_bounds = array<i64: 1, 256, 8>}]} {
    %c0 = arith.constant 0 : index
    %c0_0 = arith.constant 0 : index
    %c0_1 = arith.constant 0 : index
    %0 = vector.load %arg2[%c0, %c0_0, %c0_1] : memref<1x256x64xbf16, #tpu.memory_space<vmem>>, vector<1x256x64xbf16>
    %1 = vector.shape_cast %0 : vector<1x256x64xbf16> to vector<256x64xbf16>
    %c0_2 = arith.constant 0 : index
    %c0_3 = arith.constant 0 : index
    %2 = vector.load %arg3[%c0_2, %c0_3] : memref<64x8xbf16, #tpu.memory_space<vmem>>, vector<64x8xbf16>
    %cst = arith.constant dense<0.000000e+00> : vector<256x8xf32>
    %3 = tpu.matmul %1, %2, %cst {dimension_numbers = #tpu.dot_dimension_numbers<[1], [0], [0], [1], [0, 0, 1, 1], [], []>} : vector<256x64xbf16>, vector<64x8xbf16>, vector<256x8xf32> -> vector<256x8xf32>
    %c0_4 = arith.constant 0 : index
    %c0_5 = arith.constant 0 : index
    %4 = vector.load %arg4[%c0_4, %c0_5] : memref<1x8xf32, #tpu.memory_space<vmem>>, vector<1x8xf32>
    %5 = vector.broadcast %4 : vector<1x8xf32> to vector<256x8xf32>
    %6 = arith.addf %3, %5 : vector<256x8xf32>
    %cst_6 = arith.constant 0.000000e+00 : f32
    %7 = vector.broadcast %cst_6 : f32 to vector<256x8xf32>
    %8 = arith.cmpf ogt, %6, %7 : vector<256x8xf32>
    %cst_7 = arith.constant 2.000000e-01 : f32
    %9 = vector.broadcast %cst_7 : f32 to vector<256x8xf32>
    %10 = arith.mulf %9, %6 : vector<256x8xf32>
    %11 = arith.select %8, %6, %10 : vector<256x8xi1>, vector<256x8xf32>
    %12 = arith.truncf %11 : vector<256x8xf32> to vector<256x8xbf16>
    %c0_8 = arith.constant 0 : index
    %c0_9 = arith.constant 0 : index
    %c0_10 = arith.constant 0 : index
    %13 = vector.load %arg5[%c0_8, %c0_9, %c0_10] : memref<1x256x8xbf16, #tpu.memory_space<vmem>>, vector<1x256x8xbf16>
    %14 = vector.shape_cast %13 : vector<1x256x8xbf16> to vector<256x8xbf16>
    %15 = vector.shape_cast %12 : vector<256x8xbf16> to vector<1x256x8xbf16>
    tpu.vector_store %arg5[%c0_8, %c0_9, %c0_10], %15 {strides = array<i32>} : memref<1x256x8xbf16, #tpu.memory_space<vmem>>, vector<1x256x8xbf16>,
    return
  }
  func.func @transform_0(%arg0: i32, %arg1: i32) -> (i32, i32, i32) {
    %c0_i32 = arith.constant 0 : i32
    %c0_i32_0 = arith.constant 0 : i32
    return %arg0, %arg1, %c0_i32 : i32, i32, i32
  }
  func.func @transform_1(%arg0: i32, %arg1: i32) -> (i32, i32) {
    %c0_i32 = arith.constant 0 : i32
    %c0_i32_0 = arith.constant 0 : i32
    %c0_i32_1 = arith.constant 0 : i32
    return %c0_i32, %c0_i32_0 : i32, i32
  }
  func.func @transform_2(%arg0: i32, %arg1: i32) -> (i32, i32) {
    %c0_i32 = arith.constant 0 : i32
    %c0_i32_0 = arith.constant 0 : i32
    %c0_i32_1 = arith.constant 0 : i32
    return %c0_i32, %c0_i32_0 : i32, i32
  }
  func.func @transform_3(%arg0: i32, %arg1: i32) -> (i32, i32, i32) {
    %c0_i32 = arith.constant 0 : i32
    %c0_i32_0 = arith.constant 0 : i32
    return %arg0, %arg1, %c0_i32 : i32, i32, i32
  }
}

module attributes {stable_mosaic.version = 11 : i64} {
  func.func @_tap_layer_kernel(%arg0: i32, %arg1: memref<1x4x90x8xbf16, #tpu.memory_space<vmem>>, %arg2: memref<16x8x16xbf16, #tpu.memory_space<vmem>>, %arg3: memref<1x72x16xbf16, #tpu.memory_space<vmem>>) attributes {dimension_semantics = [#tpu.dimension_semantics<parallel>], iteration_bounds = array<i64: 2>, scalar_prefetch = 0 : i64, scratch_operands = 0 : i64, tpu.core_type = #tpu.core_type<tc>, window_params = [{transform_indices = @transform_0, window_bounds = array<i64: 1, 4, 90, 8>}, {pipeline_mode = #tpu.pipeline_mode<synchronous>, transform_indices = @transform_1, window_bounds = array<i64: 16, 8, 16>}, {transform_indices = @transform_2, window_bounds = array<i64: 1, 72, 16>}]} {
    %cst = arith.constant 0.000000e+00 : f32
    %0 = vector.broadcast %cst : f32 to vector<72x16xf32>
    %c0 = arith.constant 0 : index
    %c0_0 = arith.constant 0 : index
    %c0_1 = arith.constant 0 : index
    %c0_2 = arith.constant 0 : index
    %1 = vector.load %arg1[%c0, %c0_0, %c0_1, %c0_2] : memref<1x4x90x8xbf16, #tpu.memory_space<vmem>>, vector<1x1x72x8xbf16>
    %2 = vector.shape_cast %1 : vector<1x1x72x8xbf16> to vector<72x8xbf16>
    %c0_3 = arith.constant 0 : index
    %c0_4 = arith.constant 0 : index
    %c0_5 = arith.constant 0 : index
    %3 = vector.load %arg2[%c0_3, %c0_4, %c0_5] : memref<16x8x16xbf16, #tpu.memory_space<vmem>>, vector<1x8x16xbf16>
    %4 = vector.shape_cast %3 : vector<1x8x16xbf16> to vector<8x16xbf16>
    %cst_6 = arith.constant dense<0.000000e+00> : vector<72x16xf32>
    %5 = tpu.matmul %2, %4, %cst_6 {dimension_numbers = #tpu.dot_dimension_numbers<[1], [0], [0], [1], [0, 0, 1, 1], [], []>} : vector<72x8xbf16>, vector<8x16xbf16>, vector<72x16xf32> -> vector<72x16xf32>
    %6 = arith.addf %0, %5 : vector<72x16xf32>
    %c0_7 = arith.constant 0 : index
    %c1 = arith.constant 1 : index
    %c0_8 = arith.constant 0 : index
    %c0_9 = arith.constant 0 : index
    %7 = vector.load %arg1[%c0_7, %c1, %c0_8, %c0_9] : memref<1x4x90x8xbf16, #tpu.memory_space<vmem>>, vector<1x1x72x8xbf16>
    %8 = vector.shape_cast %7 : vector<1x1x72x8xbf16> to vector<72x8xbf16>
    %c1_10 = arith.constant 1 : index
    %c0_11 = arith.constant 0 : index
    %c0_12 = arith.constant 0 : index
    %9 = vector.load %arg2[%c1_10, %c0_11, %c0_12] : memref<16x8x16xbf16, #tpu.memory_space<vmem>>, vector<1x8x16xbf16>
    %10 = vector.shape_cast %9 : vector<1x8x16xbf16> to vector<8x16xbf16>
    %cst_13 = arith.constant dense<0.000000e+00> : vector<72x16xf32>
    %11 = tpu.matmul %8, %10, %cst_13 {dimension_numbers = #tpu.dot_dimension_numbers<[1], [0], [0], [1], [0, 0, 1, 1], [], []>} : vector<72x8xbf16>, vector<8x16xbf16>, vector<72x16xf32> -> vector<72x16xf32>
    %12 = arith.addf %6, %11 : vector<72x16xf32>
    %c0_14 = arith.constant 0 : index
    %c0_15 = arith.constant 0 : index
    %c1_16 = arith.constant 1 : index
    %c0_17 = arith.constant 0 : index
    %13 = vector.load %arg1[%c0_14, %c0_15, %c1_16, %c0_17] : memref<1x4x90x8xbf16, #tpu.memory_space<vmem>>, vector<1x1x72x8xbf16>
    %14 = vector.shape_cast %13 : vector<1x1x72x8xbf16> to vector<72x8xbf16>
    %c2 = arith.constant 2 : index
    %c0_18 = arith.constant 0 : index
    %c0_19 = arith.constant 0 : index
    %15 = vector.load %arg2[%c2, %c0_18, %c0_19] : memref<16x8x16xbf16, #tpu.memory_space<vmem>>, vector<1x8x16xbf16>
    %16 = vector.shape_cast %15 : vector<1x8x16xbf16> to vector<8x16xbf16>
    %cst_20 = arith.constant dense<0.000000e+00> : vector<72x16xf32>
    %17 = tpu.matmul %14, %16, %cst_20 {dimension_numbers = #tpu.dot_dimension_numbers<[1], [0], [0], [1], [0, 0, 1, 1], [], []>} : vector<72x8xbf16>, vector<8x16xbf16>, vector<72x16xf32> -> vector<72x16xf32>
    %18 = arith.addf %12, %17 : vector<72x16xf32>
    %c0_21 = arith.constant 0 : index
    %c1_22 = arith.constant 1 : index
    %c1_23 = arith.constant 1 : index
    %c0_24 = arith.constant 0 : index
    %19 = vector.load %arg1[%c0_21, %c1_22, %c1_23, %c0_24] : memref<1x4x90x8xbf16, #tpu.memory_space<vmem>>, vector<1x1x72x8xbf16>
    %20 = vector.shape_cast %19 : vector<1x1x72x8xbf16> to vector<72x8xbf16>
    %c3 = arith.constant 3 : index
    %c0_25 = arith.constant 0 : index
    %c0_26 = arith.constant 0 : index
    %21 = vector.load %arg2[%c3, %c0_25, %c0_26] : memref<16x8x16xbf16, #tpu.memory_space<vmem>>, vector<1x8x16xbf16>
    %22 = vector.shape_cast %21 : vector<1x8x16xbf16> to vector<8x16xbf16>
    %cst_27 = arith.constant dense<0.000000e+00> : vector<72x16xf32>
    %23 = tpu.matmul %20, %22, %cst_27 {dimension_numbers = #tpu.dot_dimension_numbers<[1], [0], [0], [1], [0, 0, 1, 1], [], []>} : vector<72x8xbf16>, vector<8x16xbf16>, vector<72x16xf32> -> vector<72x16xf32>
    %24 = arith.addf %18, %23 : vector<72x16xf32>
    %c0_28 = arith.constant 0 : index
    %c2_29 = arith.constant 2 : index
    %c0_30 = arith.constant 0 : index
    %c0_31 = arith.constant 0 : index
    %25 = vector.load %arg1[%c0_28, %c2_29, %c0_30, %c0_31] : memref<1x4x90x8xbf16, #tpu.memory_space<vmem>>, vector<1x1x72x8xbf16>
    %26 = vector.shape_cast %25 : vector<1x1x72x8xbf16> to vector<72x8xbf16>
    %c4 = arith.constant 4 : index
    %c0_32 = arith.constant 0 : index
    %c0_33 = arith.constant 0 : index
    %27 = vector.load %arg2[%c4, %c0_32, %c0_33] : memref<16x8x16xbf16, #tpu.memory_space<vmem>>, vector<1x8x16xbf16>
    %28 = vector.shape_cast %27 : vector<1x8x16xbf16> to vector<8x16xbf16>
    %cst_34 = arith.constant dense<0.000000e+00> : vector<72x16xf32>
    %29 = tpu.matmul %26, %28, %cst_34 {dimension_numbers = #tpu.dot_dimension_numbers<[1], [0], [0], [1], [0, 0, 1, 1], [], []>} : vector<72x8xbf16>, vector<8x16xbf16>, vector<72x16xf32> -> vector<72x16xf32>
    %30 = arith.addf %24, %29 : vector<72x16xf32>
    %c0_35 = arith.constant 0 : index
    %c3_36 = arith.constant 3 : index
    %c0_37 = arith.constant 0 : index
    %c0_38 = arith.constant 0 : index
    %31 = vector.load %arg1[%c0_35, %c3_36, %c0_37, %c0_38] : memref<1x4x90x8xbf16, #tpu.memory_space<vmem>>, vector<1x1x72x8xbf16>
    %32 = vector.shape_cast %31 : vector<1x1x72x8xbf16> to vector<72x8xbf16>
    %c5 = arith.constant 5 : index
    %c0_39 = arith.constant 0 : index
    %c0_40 = arith.constant 0 : index
    %33 = vector.load %arg2[%c5, %c0_39, %c0_40] : memref<16x8x16xbf16, #tpu.memory_space<vmem>>, vector<1x8x16xbf16>
    %34 = vector.shape_cast %33 : vector<1x8x16xbf16> to vector<8x16xbf16>
    %cst_41 = arith.constant dense<0.000000e+00> : vector<72x16xf32>
    %35 = tpu.matmul %32, %34, %cst_41 {dimension_numbers = #tpu.dot_dimension_numbers<[1], [0], [0], [1], [0, 0, 1, 1], [], []>} : vector<72x8xbf16>, vector<8x16xbf16>, vector<72x16xf32> -> vector<72x16xf32>
    %36 = arith.addf %30, %35 : vector<72x16xf32>
    %c0_42 = arith.constant 0 : index
    %c2_43 = arith.constant 2 : index
    %c1_44 = arith.constant 1 : index
    %c0_45 = arith.constant 0 : index
    %37 = vector.load %arg1[%c0_42, %c2_43, %c1_44, %c0_45] : memref<1x4x90x8xbf16, #tpu.memory_space<vmem>>, vector<1x1x72x8xbf16>
    %38 = vector.shape_cast %37 : vector<1x1x72x8xbf16> to vector<72x8xbf16>
    %c6 = arith.constant 6 : index
    %c0_46 = arith.constant 0 : index
    %c0_47 = arith.constant 0 : index
    %39 = vector.load %arg2[%c6, %c0_46, %c0_47] : memref<16x8x16xbf16, #tpu.memory_space<vmem>>, vector<1x8x16xbf16>
    %40 = vector.shape_cast %39 : vector<1x8x16xbf16> to vector<8x16xbf16>
    %cst_48 = arith.constant dense<0.000000e+00> : vector<72x16xf32>
    %41 = tpu.matmul %38, %40, %cst_48 {dimension_numbers = #tpu.dot_dimension_numbers<[1], [0], [0], [1], [0, 0, 1, 1], [], []>} : vector<72x8xbf16>, vector<8x16xbf16>, vector<72x16xf32> -> vector<72x16xf32>
    %42 = arith.addf %36, %41 : vector<72x16xf32>
    %c0_49 = arith.constant 0 : index
    %c3_50 = arith.constant 3 : index
    %c1_51 = arith.constant 1 : index
    %c0_52 = arith.constant 0 : index
    %43 = vector.load %arg1[%c0_49, %c3_50, %c1_51, %c0_52] : memref<1x4x90x8xbf16, #tpu.memory_space<vmem>>, vector<1x1x72x8xbf16>
    %44 = vector.shape_cast %43 : vector<1x1x72x8xbf16> to vector<72x8xbf16>
    %c7 = arith.constant 7 : index
    %c0_53 = arith.constant 0 : index
    %c0_54 = arith.constant 0 : index
    %45 = vector.load %arg2[%c7, %c0_53, %c0_54] : memref<16x8x16xbf16, #tpu.memory_space<vmem>>, vector<1x8x16xbf16>
    %46 = vector.shape_cast %45 : vector<1x8x16xbf16> to vector<8x16xbf16>
    %cst_55 = arith.constant dense<0.000000e+00> : vector<72x16xf32>
    %47 = tpu.matmul %44, %46, %cst_55 {dimension_numbers = #tpu.dot_dimension_numbers<[1], [0], [0], [1], [0, 0, 1, 1], [], []>} : vector<72x8xbf16>, vector<8x16xbf16>, vector<72x16xf32> -> vector<72x16xf32>
    %48 = arith.addf %42, %47 : vector<72x16xf32>
    %c0_56 = arith.constant 0 : index
    %c0_57 = arith.constant 0 : index
    %c9 = arith.constant 9 : index
    %c0_58 = arith.constant 0 : index
    %49 = vector.load %arg1[%c0_56, %c0_57, %c9, %c0_58] : memref<1x4x90x8xbf16, #tpu.memory_space<vmem>>, vector<1x1x72x8xbf16>
    %50 = vector.shape_cast %49 : vector<1x1x72x8xbf16> to vector<72x8xbf16>
    %c8 = arith.constant 8 : index
    %c0_59 = arith.constant 0 : index
    %c0_60 = arith.constant 0 : index
    %51 = vector.load %arg2[%c8, %c0_59, %c0_60] : memref<16x8x16xbf16, #tpu.memory_space<vmem>>, vector<1x8x16xbf16>
    %52 = vector.shape_cast %51 : vector<1x8x16xbf16> to vector<8x16xbf16>
    %cst_61 = arith.constant dense<0.000000e+00> : vector<72x16xf32>
    %53 = tpu.matmul %50, %52, %cst_61 {dimension_numbers = #tpu.dot_dimension_numbers<[1], [0], [0], [1], [0, 0, 1, 1], [], []>} : vector<72x8xbf16>, vector<8x16xbf16>, vector<72x16xf32> -> vector<72x16xf32>
    %54 = arith.addf %48, %53 : vector<72x16xf32>
    %c0_62 = arith.constant 0 : index
    %c1_63 = arith.constant 1 : index
    %c9_64 = arith.constant 9 : index
    %c0_65 = arith.constant 0 : index
    %55 = vector.load %arg1[%c0_62, %c1_63, %c9_64, %c0_65] : memref<1x4x90x8xbf16, #tpu.memory_space<vmem>>, vector<1x1x72x8xbf16>
    %56 = vector.shape_cast %55 : vector<1x1x72x8xbf16> to vector<72x8xbf16>
    %c9_66 = arith.constant 9 : index
    %c0_67 = arith.constant 0 : index
    %c0_68 = arith.constant 0 : index
    %57 = vector.load %arg2[%c9_66, %c0_67, %c0_68] : memref<16x8x16xbf16, #tpu.memory_space<vmem>>, vector<1x8x16xbf16>
    %58 = vector.shape_cast %57 : vector<1x8x16xbf16> to vector<8x16xbf16>
    %cst_69 = arith.constant dense<0.000000e+00> : vector<72x16xf32>
    %59 = tpu.matmul %56, %58, %cst_69 {dimension_numbers = #tpu.dot_dimension_numbers<[1], [0], [0], [1], [0, 0, 1, 1], [], []>} : vector<72x8xbf16>, vector<8x16xbf16>, vector<72x16xf32> -> vector<72x16xf32>
    %60 = arith.addf %54, %59 : vector<72x16xf32>
    %c0_70 = arith.constant 0 : index
    %c0_71 = arith.constant 0 : index
    %c10 = arith.constant 10 : index
    %c0_72 = arith.constant 0 : index
    %61 = vector.load %arg1[%c0_70, %c0_71, %c10, %c0_72] : memref<1x4x90x8xbf16, #tpu.memory_space<vmem>>, vector<1x1x72x8xbf16>
    %62 = vector.shape_cast %61 : vector<1x1x72x8xbf16> to vector<72x8xbf16>
    %c10_73 = arith.constant 10 : index
    %c0_74 = arith.constant 0 : index
    %c0_75 = arith.constant 0 : index
    %63 = vector.load %arg2[%c10_73, %c0_74, %c0_75] : memref<16x8x16xbf16, #tpu.memory_space<vmem>>, vector<1x8x16xbf16>
    %64 = vector.shape_cast %63 : vector<1x8x16xbf16> to vector<8x16xbf16>
    %cst_76 = arith.constant dense<0.000000e+00> : vector<72x16xf32>
    %65 = tpu.matmul %62, %64, %cst_76 {dimension_numbers = #tpu.dot_dimension_numbers<[1], [0], [0], [1], [0, 0, 1, 1], [], []>} : vector<72x8xbf16>, vector<8x16xbf16>, vector<72x16xf32> -> vector<72x16xf32>
    %66 = arith.addf %60, %65 : vector<72x16xf32>
    %c0_77 = arith.constant 0 : index
    %c1_78 = arith.constant 1 : index
    %c10_79 = arith.constant 10 : index
    %c0_80 = arith.constant 0 : index
    %67 = vector.load %arg1[%c0_77, %c1_78, %c10_79, %c0_80] : memref<1x4x90x8xbf16, #tpu.memory_space<vmem>>, vector<1x1x72x8xbf16>
    %68 = vector.shape_cast %67 : vector<1x1x72x8xbf16> to vector<72x8xbf16>
    %c11 = arith.constant 11 : index
    %c0_81 = arith.constant 0 : index
    %c0_82 = arith.constant 0 : index
    %69 = vector.load %arg2[%c11, %c0_81, %c0_82] : memref<16x8x16xbf16, #tpu.memory_space<vmem>>, vector<1x8x16xbf16>
    %70 = vector.shape_cast %69 : vector<1x8x16xbf16> to vector<8x16xbf16>
    %cst_83 = arith.constant dense<0.000000e+00> : vector<72x16xf32>
    %71 = tpu.matmul %68, %70, %cst_83 {dimension_numbers = #tpu.dot_dimension_numbers<[1], [0], [0], [1], [0, 0, 1, 1], [], []>} : vector<72x8xbf16>, vector<8x16xbf16>, vector<72x16xf32> -> vector<72x16xf32>
    %72 = arith.addf %66, %71 : vector<72x16xf32>
    %c0_84 = arith.constant 0 : index
    %c2_85 = arith.constant 2 : index
    %c9_86 = arith.constant 9 : index
    %c0_87 = arith.constant 0 : index
    %73 = vector.load %arg1[%c0_84, %c2_85, %c9_86, %c0_87] : memref<1x4x90x8xbf16, #tpu.memory_space<vmem>>, vector<1x1x72x8xbf16>
    %74 = vector.shape_cast %73 : vector<1x1x72x8xbf16> to vector<72x8xbf16>
    %c12 = arith.constant 12 : index
    %c0_88 = arith.constant 0 : index
    %c0_89 = arith.constant 0 : index
    %75 = vector.load %arg2[%c12, %c0_88, %c0_89] : memref<16x8x16xbf16, #tpu.memory_space<vmem>>, vector<1x8x16xbf16>
    %76 = vector.shape_cast %75 : vector<1x8x16xbf16> to vector<8x16xbf16>
    %cst_90 = arith.constant dense<0.000000e+00> : vector<72x16xf32>
    %77 = tpu.matmul %74, %76, %cst_90 {dimension_numbers = #tpu.dot_dimension_numbers<[1], [0], [0], [1], [0, 0, 1, 1], [], []>} : vector<72x8xbf16>, vector<8x16xbf16>, vector<72x16xf32> -> vector<72x16xf32>
    %78 = arith.addf %72, %77 : vector<72x16xf32>
    %c0_91 = arith.constant 0 : index
    %c3_92 = arith.constant 3 : index
    %c9_93 = arith.constant 9 : index
    %c0_94 = arith.constant 0 : index
    %79 = vector.load %arg1[%c0_91, %c3_92, %c9_93, %c0_94] : memref<1x4x90x8xbf16, #tpu.memory_space<vmem>>, vector<1x1x72x8xbf16>
    %80 = vector.shape_cast %79 : vector<1x1x72x8xbf16> to vector<72x8xbf16>
    %c13 = arith.constant 13 : index
    %c0_95 = arith.constant 0 : index
    %c0_96 = arith.constant 0 : index
    %81 = vector.load %arg2[%c13, %c0_95, %c0_96] : memref<16x8x16xbf16, #tpu.memory_space<vmem>>, vector<1x8x16xbf16>
    %82 = vector.shape_cast %81 : vector<1x8x16xbf16> to vector<8x16xbf16>
    %cst_97 = arith.constant dense<0.000000e+00> : vector<72x16xf32>
    %83 = tpu.matmul %80, %82, %cst_97 {dimension_numbers = #tpu.dot_dimension_numbers<[1], [0], [0], [1], [0, 0, 1, 1], [], []>} : vector<72x8xbf16>, vector<8x16xbf16>, vector<72x16xf32> -> vector<72x16xf32>
    %84 = arith.addf %78, %83 : vector<72x16xf32>
    %c0_98 = arith.constant 0 : index
    %c2_99 = arith.constant 2 : index
    %c10_100 = arith.constant 10 : index
    %c0_101 = arith.constant 0 : index
    %85 = vector.load %arg1[%c0_98, %c2_99, %c10_100, %c0_101] : memref<1x4x90x8xbf16, #tpu.memory_space<vmem>>, vector<1x1x72x8xbf16>
    %86 = vector.shape_cast %85 : vector<1x1x72x8xbf16> to vector<72x8xbf16>
    %c14 = arith.constant 14 : index
    %c0_102 = arith.constant 0 : index
    %c0_103 = arith.constant 0 : index
    %87 = vector.load %arg2[%c14, %c0_102, %c0_103] : memref<16x8x16xbf16, #tpu.memory_space<vmem>>, vector<1x8x16xbf16>
    %88 = vector.shape_cast %87 : vector<1x8x16xbf16> to vector<8x16xbf16>
    %cst_104 = arith.constant dense<0.000000e+00> : vector<72x16xf32>
    %89 = tpu.matmul %86, %88, %cst_104 {dimension_numbers = #tpu.dot_dimension_numbers<[1], [0], [0], [1], [0, 0, 1, 1], [], []>} : vector<72x8xbf16>, vector<8x16xbf16>, vector<72x16xf32> -> vector<72x16xf32>
    %90 = arith.addf %84, %89 : vector<72x16xf32>
    %c0_105 = arith.constant 0 : index
    %c3_106 = arith.constant 3 : index
    %c10_107 = arith.constant 10 : index
    %c0_108 = arith.constant 0 : index
    %91 = vector.load %arg1[%c0_105, %c3_106, %c10_107, %c0_108] : memref<1x4x90x8xbf16, #tpu.memory_space<vmem>>, vector<1x1x72x8xbf16>
    %92 = vector.shape_cast %91 : vector<1x1x72x8xbf16> to vector<72x8xbf16>
    %c15 = arith.constant 15 : index
    %c0_109 = arith.constant 0 : index
    %c0_110 = arith.constant 0 : index
    %93 = vector.load %arg2[%c15, %c0_109, %c0_110] : memref<16x8x16xbf16, #tpu.memory_space<vmem>>, vector<1x8x16xbf16>
    %94 = vector.shape_cast %93 : vector<1x8x16xbf16> to vector<8x16xbf16>
    %cst_111 = arith.constant dense<0.000000e+00> : vector<72x16xf32>
    %95 = tpu.matmul %92, %94, %cst_111 {dimension_numbers = #tpu.dot_dimension_numbers<[1], [0], [0], [1], [0, 0, 1, 1], [], []>} : vector<72x8xbf16>, vector<8x16xbf16>, vector<72x16xf32> -> vector<72x16xf32>
    %96 = arith.addf %90, %95 : vector<72x16xf32>
    %97 = tpu.iota {dimensions = array<i32: 1>} : vector<1x72xi32>
    %c9_i32 = arith.constant 9 : i32
    %c0_i32 = arith.constant 0 : i32
    %98 = arith.cmpi eq, %c9_i32, %c0_i32 : i32
    %c1_i32 = arith.constant 1 : i32
    %99 = arith.select %98, %c1_i32, %c9_i32 : i32
    %100 = vector.broadcast %99 : i32 to vector<1x72xi32>
    %101 = arith.remsi %97, %100 : vector<1x72xi32>
    %c0_i32_112 = arith.constant 0 : i32
    %102 = vector.broadcast %c0_i32_112 : i32 to vector<1x72xi32>
    %103 = arith.cmpi ne, %101, %102 : vector<1x72xi32>
    %c0_i32_113 = arith.constant 0 : i32
    %104 = vector.broadcast %c0_i32_113 : i32 to vector<1x72xi32>
    %105 = arith.cmpi slt, %101, %104 : vector<1x72xi32>
    %c0_i32_114 = arith.constant 0 : i32
    %106 = arith.cmpi slt, %99, %c0_i32_114 : i32
    %107 = vector.broadcast %106 : i1 to vector<1x72xi1>
    %108 = vector.broadcast %107 : vector<1x72xi1> to vector<1x72xi1>
    %109 = arith.xori %105, %108 : vector<1x72xi1>
    %110 = arith.andi %109, %103 : vector<1x72xi1>
    %111 = vector.broadcast %99 : i32 to vector<1x72xi32>
    %112 = arith.addi %101, %111 : vector<1x72xi32>
    %113 = arith.select %110, %112, %101 : vector<1x72xi1>, vector<1x72xi32>
    %c8_i32 = arith.constant 8 : i32
    %114 = vector.broadcast %c8_i32 : i32 to vector<1x72xi32>
    %115 = arith.cmpi slt, %113, %114 : vector<1x72xi32>
    %116 = arith.extui %115 : vector<1x72xi1> to vector<1x72xi32>
    %117 = arith.sitofp %116 : vector<1x72xi32> to vector<1x72xf32>
    %cst_115 = arith.constant dense<0.000000e+00> : vector<1x16xf32>
    %118 = tpu.matmul %117, %96, %cst_115 {dimension_numbers = #tpu.dot_dimension_numbers<[1], [0], [0], [1], [0, 0, 1, 1], [], []>} : vector<1x72xf32>, vector<72x16xf32>, vector<1x16xf32> -> vector<1x16xf32>
    %cst_116 = arith.constant 1.562500e-02 : f32
    %119 = vector.broadcast %cst_116 : f32 to vector<1x16xf32>
    %120 = arith.mulf %118, %119 : vector<1x16xf32>
    %121 = arith.mulf %96, %96 : vector<72x16xf32>
    %cst_117 = arith.constant dense<0.000000e+00> : vector<1x16xf32>
    %122 = tpu.matmul %117, %121, %cst_117 {dimension_numbers = #tpu.dot_dimension_numbers<[1], [0], [0], [1], [0, 0, 1, 1], [], []>} : vector<1x72xf32>, vector<72x16xf32>, vector<1x16xf32> -> vector<1x16xf32>
    %cst_118 = arith.constant 1.562500e-02 : f32
    %123 = vector.broadcast %cst_118 : f32 to vector<1x16xf32>
    %124 = arith.mulf %122, %123 : vector<1x16xf32>
    %125 = arith.mulf %120, %120 : vector<1x16xf32>
    %126 = arith.subf %124, %125 : vector<1x16xf32>
    %cst_119 = arith.constant 0.000000e+00 : f32
    %127 = vector.broadcast %cst_119 : f32 to vector<1x16xf32>
    %128 = arith.maximumf %126, %127 : vector<1x16xf32>
    %129 = vector.broadcast %120 : vector<1x16xf32> to vector<72x16xf32>
    %130 = arith.subf %96, %129 : vector<72x16xf32>
    %cst_120 = arith.constant 9.99999974E-6 : f32
    %131 = vector.broadcast %cst_120 : f32 to vector<1x16xf32>
    %132 = arith.addf %128, %131 : vector<1x16xf32>
    %133 = math.rsqrt %132 : vector<1x16xf32>
    %134 = vector.broadcast %133 : vector<1x16xf32> to vector<72x16xf32>
    %135 = arith.mulf %130, %134 : vector<72x16xf32>
    %cst_121 = arith.constant 0.000000e+00 : f32
    %136 = vector.broadcast %cst_121 : f32 to vector<72x16xf32>
    %137 = arith.cmpf ogt, %135, %136 : vector<72x16xf32>
    %cst_122 = arith.constant 2.000000e-01 : f32
    %138 = vector.broadcast %cst_122 : f32 to vector<72x16xf32>
    %139 = arith.mulf %138, %135 : vector<72x16xf32>
    %140 = arith.select %137, %135, %139 : vector<72x16xi1>, vector<72x16xf32>
    %141 = arith.truncf %140 : vector<72x16xf32> to vector<72x16xbf16>
    %c0_123 = arith.constant 0 : index
    %c0_124 = arith.constant 0 : index
    %c0_125 = arith.constant 0 : index
    %142 = vector.load %arg3[%c0_123, %c0_124, %c0_125] : memref<1x72x16xbf16, #tpu.memory_space<vmem>>, vector<1x72x16xbf16>
    %143 = vector.shape_cast %142 : vector<1x72x16xbf16> to vector<72x16xbf16>
    %144 = vector.shape_cast %141 : vector<72x16xbf16> to vector<1x72x16xbf16>
    tpu.vector_store %arg3[%c0_123, %c0_124, %c0_125], %144 {strides = array<i32>} : memref<1x72x16xbf16, #tpu.memory_space<vmem>>, vector<1x72x16xbf16>,
    return
  }
  func.func @transform_0(%arg0: i32) -> (i32, i32, i32, i32) {
    %c0_i32 = arith.constant 0 : i32
    %c0_i32_0 = arith.constant 0 : i32
    %c0_i32_1 = arith.constant 0 : i32
    %c0_i32_2 = arith.constant 0 : i32
    return %arg0, %c0_i32, %c0_i32_0, %c0_i32_1 : i32, i32, i32, i32
  }
  func.func @transform_1(%arg0: i32) -> (i32, i32, i32) {
    %c0_i32 = arith.constant 0 : i32
    %c0_i32_0 = arith.constant 0 : i32
    %c0_i32_1 = arith.constant 0 : i32
    %c0_i32_2 = arith.constant 0 : i32
    return %c0_i32, %c0_i32_0, %c0_i32_1 : i32, i32, i32
  }
  func.func @transform_2(%arg0: i32) -> (i32, i32, i32) {
    %c0_i32 = arith.constant 0 : i32
    %c0_i32_0 = arith.constant 0 : i32
    %c0_i32_1 = arith.constant 0 : i32
    return %arg0, %c0_i32, %c0_i32_0 : i32, i32, i32
  }
}

module attributes {stable_mosaic.version = 11 : i64} {
  func.func @_tap_layer_kernel(%arg0: i32, %arg1: memref<1x4x30x16xbf16, #tpu.memory_space<vmem>>, %arg2: memref<16x16x32xbf16, #tpu.memory_space<vmem>>, %arg3: memref<1x20x32xbf16, #tpu.memory_space<vmem>>) attributes {dimension_semantics = [#tpu.dimension_semantics<parallel>], iteration_bounds = array<i64: 2>, scalar_prefetch = 0 : i64, scratch_operands = 0 : i64, tpu.core_type = #tpu.core_type<tc>, window_params = [{transform_indices = @transform_0, window_bounds = array<i64: 1, 4, 30, 16>}, {pipeline_mode = #tpu.pipeline_mode<synchronous>, transform_indices = @transform_1, window_bounds = array<i64: 16, 16, 32>}, {transform_indices = @transform_2, window_bounds = array<i64: 1, 20, 32>}]} {
    %cst = arith.constant 0.000000e+00 : f32
    %0 = vector.broadcast %cst : f32 to vector<20x32xf32>
    %c0 = arith.constant 0 : index
    %c0_0 = arith.constant 0 : index
    %c0_1 = arith.constant 0 : index
    %c0_2 = arith.constant 0 : index
    %1 = vector.load %arg1[%c0, %c0_0, %c0_1, %c0_2] : memref<1x4x30x16xbf16, #tpu.memory_space<vmem>>, vector<1x1x20x16xbf16>
    %2 = vector.shape_cast %1 : vector<1x1x20x16xbf16> to vector<20x16xbf16>
    %c0_3 = arith.constant 0 : index
    %c0_4 = arith.constant 0 : index
    %c0_5 = arith.constant 0 : index
    %3 = vector.load %arg2[%c0_3, %c0_4, %c0_5] : memref<16x16x32xbf16, #tpu.memory_space<vmem>>, vector<1x16x32xbf16>
    %4 = vector.shape_cast %3 : vector<1x16x32xbf16> to vector<16x32xbf16>
    %cst_6 = arith.constant dense<0.000000e+00> : vector<20x32xf32>
    %5 = tpu.matmul %2, %4, %cst_6 {dimension_numbers = #tpu.dot_dimension_numbers<[1], [0], [0], [1], [0, 0, 1, 1], [], []>} : vector<20x16xbf16>, vector<16x32xbf16>, vector<20x32xf32> -> vector<20x32xf32>
    %6 = arith.addf %0, %5 : vector<20x32xf32>
    %c0_7 = arith.constant 0 : index
    %c1 = arith.constant 1 : index
    %c0_8 = arith.constant 0 : index
    %c0_9 = arith.constant 0 : index
    %7 = vector.load %arg1[%c0_7, %c1, %c0_8, %c0_9] : memref<1x4x30x16xbf16, #tpu.memory_space<vmem>>, vector<1x1x20x16xbf16>
    %8 = vector.shape_cast %7 : vector<1x1x20x16xbf16> to vector<20x16xbf16>
    %c1_10 = arith.constant 1 : index
    %c0_11 = arith.constant 0 : index
    %c0_12 = arith.constant 0 : index
    %9 = vector.load %arg2[%c1_10, %c0_11, %c0_12] : memref<16x16x32xbf16, #tpu.memory_space<vmem>>, vector<1x16x32xbf16>
    %10 = vector.shape_cast %9 : vector<1x16x32xbf16> to vector<16x32xbf16>
    %cst_13 = arith.constant dense<0.000000e+00> : vector<20x32xf32>
    %11 = tpu.matmul %8, %10, %cst_13 {dimension_numbers = #tpu.dot_dimension_numbers<[1], [0], [0], [1], [0, 0, 1, 1], [], []>} : vector<20x16xbf16>, vector<16x32xbf16>, vector<20x32xf32> -> vector<20x32xf32>
    %12 = arith.addf %6, %11 : vector<20x32xf32>
    %c0_14 = arith.constant 0 : index
    %c0_15 = arith.constant 0 : index
    %c1_16 = arith.constant 1 : index
    %c0_17 = arith.constant 0 : index
    %13 = vector.load %arg1[%c0_14, %c0_15, %c1_16, %c0_17] : memref<1x4x30x16xbf16, #tpu.memory_space<vmem>>, vector<1x1x20x16xbf16>
    %14 = vector.shape_cast %13 : vector<1x1x20x16xbf16> to vector<20x16xbf16>
    %c2 = arith.constant 2 : index
    %c0_18 = arith.constant 0 : index
    %c0_19 = arith.constant 0 : index
    %15 = vector.load %arg2[%c2, %c0_18, %c0_19] : memref<16x16x32xbf16, #tpu.memory_space<vmem>>, vector<1x16x32xbf16>
    %16 = vector.shape_cast %15 : vector<1x16x32xbf16> to vector<16x32xbf16>
    %cst_20 = arith.constant dense<0.000000e+00> : vector<20x32xf32>
    %17 = tpu.matmul %14, %16, %cst_20 {dimension_numbers = #tpu.dot_dimension_numbers<[1], [0], [0], [1], [0, 0, 1, 1], [], []>} : vector<20x16xbf16>, vector<16x32xbf16>, vector<20x32xf32> -> vector<20x32xf32>
    %18 = arith.addf %12, %17 : vector<20x32xf32>
    %c0_21 = arith.constant 0 : index
    %c1_22 = arith.constant 1 : index
    %c1_23 = arith.constant 1 : index
    %c0_24 = arith.constant 0 : index
    %19 = vector.load %arg1[%c0_21, %c1_22, %c1_23, %c0_24] : memref<1x4x30x16xbf16, #tpu.memory_space<vmem>>, vector<1x1x20x16xbf16>
    %20 = vector.shape_cast %19 : vector<1x1x20x16xbf16> to vector<20x16xbf16>
    %c3 = arith.constant 3 : index
    %c0_25 = arith.constant 0 : index
    %c0_26 = arith.constant 0 : index
    %21 = vector.load %arg2[%c3, %c0_25, %c0_26] : memref<16x16x32xbf16, #tpu.memory_space<vmem>>, vector<1x16x32xbf16>
    %22 = vector.shape_cast %21 : vector<1x16x32xbf16> to vector<16x32xbf16>
    %cst_27 = arith.constant dense<0.000000e+00> : vector<20x32xf32>
    %23 = tpu.matmul %20, %22, %cst_27 {dimension_numbers = #tpu.dot_dimension_numbers<[1], [0], [0], [1], [0, 0, 1, 1], [], []>} : vector<20x16xbf16>, vector<16x32xbf16>, vector<20x32xf32> -> vector<20x32xf32>
    %24 = arith.addf %18, %23 : vector<20x32xf32>
    %c0_28 = arith.constant 0 : index
    %c2_29 = arith.constant 2 : index
    %c0_30 = arith.constant 0 : index
    %c0_31 = arith.constant 0 : index
    %25 = vector.load %arg1[%c0_28, %c2_29, %c0_30, %c0_31] : memref<1x4x30x16xbf16, #tpu.memory_space<vmem>>, vector<1x1x20x16xbf16>
    %26 = vector.shape_cast %25 : vector<1x1x20x16xbf16> to vector<20x16xbf16>
    %c4 = arith.constant 4 : index
    %c0_32 = arith.constant 0 : index
    %c0_33 = arith.constant 0 : index
    %27 = vector.load %arg2[%c4, %c0_32, %c0_33] : memref<16x16x32xbf16, #tpu.memory_space<vmem>>, vector<1x16x32xbf16>
    %28 = vector.shape_cast %27 : vector<1x16x32xbf16> to vector<16x32xbf16>
    %cst_34 = arith.constant dense<0.000000e+00> : vector<20x32xf32>
    %29 = tpu.matmul %26, %28, %cst_34 {dimension_numbers = #tpu.dot_dimension_numbers<[1], [0], [0], [1], [0, 0, 1, 1], [], []>} : vector<20x16xbf16>, vector<16x32xbf16>, vector<20x32xf32> -> vector<20x32xf32>
    %30 = arith.addf %24, %29 : vector<20x32xf32>
    %c0_35 = arith.constant 0 : index
    %c3_36 = arith.constant 3 : index
    %c0_37 = arith.constant 0 : index
    %c0_38 = arith.constant 0 : index
    %31 = vector.load %arg1[%c0_35, %c3_36, %c0_37, %c0_38] : memref<1x4x30x16xbf16, #tpu.memory_space<vmem>>, vector<1x1x20x16xbf16>
    %32 = vector.shape_cast %31 : vector<1x1x20x16xbf16> to vector<20x16xbf16>
    %c5 = arith.constant 5 : index
    %c0_39 = arith.constant 0 : index
    %c0_40 = arith.constant 0 : index
    %33 = vector.load %arg2[%c5, %c0_39, %c0_40] : memref<16x16x32xbf16, #tpu.memory_space<vmem>>, vector<1x16x32xbf16>
    %34 = vector.shape_cast %33 : vector<1x16x32xbf16> to vector<16x32xbf16>
    %cst_41 = arith.constant dense<0.000000e+00> : vector<20x32xf32>
    %35 = tpu.matmul %32, %34, %cst_41 {dimension_numbers = #tpu.dot_dimension_numbers<[1], [0], [0], [1], [0, 0, 1, 1], [], []>} : vector<20x16xbf16>, vector<16x32xbf16>, vector<20x32xf32> -> vector<20x32xf32>
    %36 = arith.addf %30, %35 : vector<20x32xf32>
    %c0_42 = arith.constant 0 : index
    %c2_43 = arith.constant 2 : index
    %c1_44 = arith.constant 1 : index
    %c0_45 = arith.constant 0 : index
    %37 = vector.load %arg1[%c0_42, %c2_43, %c1_44, %c0_45] : memref<1x4x30x16xbf16, #tpu.memory_space<vmem>>, vector<1x1x20x16xbf16>
    %38 = vector.shape_cast %37 : vector<1x1x20x16xbf16> to vector<20x16xbf16>
    %c6 = arith.constant 6 : index
    %c0_46 = arith.constant 0 : index
    %c0_47 = arith.constant 0 : index
    %39 = vector.load %arg2[%c6, %c0_46, %c0_47] : memref<16x16x32xbf16, #tpu.memory_space<vmem>>, vector<1x16x32xbf16>
    %40 = vector.shape_cast %39 : vector<1x16x32xbf16> to vector<16x32xbf16>
    %cst_48 = arith.constant dense<0.000000e+00> : vector<20x32xf32>
    %41 = tpu.matmul %38, %40, %cst_48 {dimension_numbers = #tpu.dot_dimension_numbers<[1], [0], [0], [1], [0, 0, 1, 1], [], []>} : vector<20x16xbf16>, vector<16x32xbf16>, vector<20x32xf32> -> vector<20x32xf32>
    %42 = arith.addf %36, %41 : vector<20x32xf32>
    %c0_49 = arith.constant 0 : index
    %c3_50 = arith.constant 3 : index
    %c1_51 = arith.constant 1 : index
    %c0_52 = arith.constant 0 : index
    %43 = vector.load %arg1[%c0_49, %c3_50, %c1_51, %c0_52] : memref<1x4x30x16xbf16, #tpu.memory_space<vmem>>, vector<1x1x20x16xbf16>
    %44 = vector.shape_cast %43 : vector<1x1x20x16xbf16> to vector<20x16xbf16>
    %c7 = arith.constant 7 : index
    %c0_53 = arith.constant 0 : index
    %c0_54 = arith.constant 0 : index
    %45 = vector.load %arg2[%c7, %c0_53, %c0_54] : memref<16x16x32xbf16, #tpu.memory_space<vmem>>, vector<1x16x32xbf16>
    %46 = vector.shape_cast %45 : vector<1x16x32xbf16> to vector<16x32xbf16>
    %cst_55 = arith.constant dense<0.000000e+00> : vector<20x32xf32>
    %47 = tpu.matmul %44, %46, %cst_55 {dimension_numbers = #tpu.dot_dimension_numbers<[1], [0], [0], [1], [0, 0, 1, 1], [], []>} : vector<20x16xbf16>, vector<16x32xbf16>, vector<20x32xf32> -> vector<20x32xf32>
    %48 = arith.addf %42, %47 : vector<20x32xf32>
    %c0_56 = arith.constant 0 : index
    %c0_57 = arith.constant 0 : index
    %c5_58 = arith.constant 5 : index
    %c0_59 = arith.constant 0 : index
    %49 = vector.load %arg1[%c0_56, %c0_57, %c5_58, %c0_59] : memref<1x4x30x16xbf16, #tpu.memory_space<vmem>>, vector<1x1x20x16xbf16>
    %50 = vector.shape_cast %49 : vector<1x1x20x16xbf16> to vector<20x16xbf16>
    %c8 = arith.constant 8 : index
    %c0_60 = arith.constant 0 : index
    %c0_61 = arith.constant 0 : index
    %51 = vector.load %arg2[%c8, %c0_60, %c0_61] : memref<16x16x32xbf16, #tpu.memory_space<vmem>>, vector<1x16x32xbf16>
    %52 = vector.shape_cast %51 : vector<1x16x32xbf16> to vector<16x32xbf16>
    %cst_62 = arith.constant dense<0.000000e+00> : vector<20x32xf32>
    %53 = tpu.matmul %50, %52, %cst_62 {dimension_numbers = #tpu.dot_dimension_numbers<[1], [0], [0], [1], [0, 0, 1, 1], [], []>} : vector<20x16xbf16>, vector<16x32xbf16>, vector<20x32xf32> -> vector<20x32xf32>
    %54 = arith.addf %48, %53 : vector<20x32xf32>
    %c0_63 = arith.constant 0 : index
    %c1_64 = arith.constant 1 : index
    %c5_65 = arith.constant 5 : index
    %c0_66 = arith.constant 0 : index
    %55 = vector.load %arg1[%c0_63, %c1_64, %c5_65, %c0_66] : memref<1x4x30x16xbf16, #tpu.memory_space<vmem>>, vector<1x1x20x16xbf16>
    %56 = vector.shape_cast %55 : vector<1x1x20x16xbf16> to vector<20x16xbf16>
    %c9 = arith.constant 9 : index
    %c0_67 = arith.constant 0 : index
    %c0_68 = arith.constant 0 : index
    %57 = vector.load %arg2[%c9, %c0_67, %c0_68] : memref<16x16x32xbf16, #tpu.memory_space<vmem>>, vector<1x16x32xbf16>
    %58 = vector.shape_cast %57 : vector<1x16x32xbf16> to vector<16x32xbf16>
    %cst_69 = arith.constant dense<0.000000e+00> : vector<20x32xf32>
    %59 = tpu.matmul %56, %58, %cst_69 {dimension_numbers = #tpu.dot_dimension_numbers<[1], [0], [0], [1], [0, 0, 1, 1], [], []>} : vector<20x16xbf16>, vector<16x32xbf16>, vector<20x32xf32> -> vector<20x32xf32>
    %60 = arith.addf %54, %59 : vector<20x32xf32>
    %c0_70 = arith.constant 0 : index
    %c0_71 = arith.constant 0 : index
    %c6_72 = arith.constant 6 : index
    %c0_73 = arith.constant 0 : index
    %61 = vector.load %arg1[%c0_70, %c0_71, %c6_72, %c0_73] : memref<1x4x30x16xbf16, #tpu.memory_space<vmem>>, vector<1x1x20x16xbf16>
    %62 = vector.shape_cast %61 : vector<1x1x20x16xbf16> to vector<20x16xbf16>
    %c10 = arith.constant 10 : index
    %c0_74 = arith.constant 0 : index
    %c0_75 = arith.constant 0 : index
    %63 = vector.load %arg2[%c10, %c0_74, %c0_75] : memref<16x16x32xbf16, #tpu.memory_space<vmem>>, vector<1x16x32xbf16>
    %64 = vector.shape_cast %63 : vector<1x16x32xbf16> to vector<16x32xbf16>
    %cst_76 = arith.constant dense<0.000000e+00> : vector<20x32xf32>
    %65 = tpu.matmul %62, %64, %cst_76 {dimension_numbers = #tpu.dot_dimension_numbers<[1], [0], [0], [1], [0, 0, 1, 1], [], []>} : vector<20x16xbf16>, vector<16x32xbf16>, vector<20x32xf32> -> vector<20x32xf32>
    %66 = arith.addf %60, %65 : vector<20x32xf32>
    %c0_77 = arith.constant 0 : index
    %c1_78 = arith.constant 1 : index
    %c6_79 = arith.constant 6 : index
    %c0_80 = arith.constant 0 : index
    %67 = vector.load %arg1[%c0_77, %c1_78, %c6_79, %c0_80] : memref<1x4x30x16xbf16, #tpu.memory_space<vmem>>, vector<1x1x20x16xbf16>
    %68 = vector.shape_cast %67 : vector<1x1x20x16xbf16> to vector<20x16xbf16>
    %c11 = arith.constant 11 : index
    %c0_81 = arith.constant 0 : index
    %c0_82 = arith.constant 0 : index
    %69 = vector.load %arg2[%c11, %c0_81, %c0_82] : memref<16x16x32xbf16, #tpu.memory_space<vmem>>, vector<1x16x32xbf16>
    %70 = vector.shape_cast %69 : vector<1x16x32xbf16> to vector<16x32xbf16>
    %cst_83 = arith.constant dense<0.000000e+00> : vector<20x32xf32>
    %71 = tpu.matmul %68, %70, %cst_83 {dimension_numbers = #tpu.dot_dimension_numbers<[1], [0], [0], [1], [0, 0, 1, 1], [], []>} : vector<20x16xbf16>, vector<16x32xbf16>, vector<20x32xf32> -> vector<20x32xf32>
    %72 = arith.addf %66, %71 : vector<20x32xf32>
    %c0_84 = arith.constant 0 : index
    %c2_85 = arith.constant 2 : index
    %c5_86 = arith.constant 5 : index
    %c0_87 = arith.constant 0 : index
    %73 = vector.load %arg1[%c0_84, %c2_85, %c5_86, %c0_87] : memref<1x4x30x16xbf16, #tpu.memory_space<vmem>>, vector<1x1x20x16xbf16>
    %74 = vector.shape_cast %73 : vector<1x1x20x16xbf16> to vector<20x16xbf16>
    %c12 = arith.constant 12 : index
    %c0_88 = arith.constant 0 : index
    %c0_89 = arith.constant 0 : index
    %75 = vector.load %arg2[%c12, %c0_88, %c0_89] : memref<16x16x32xbf16, #tpu.memory_space<vmem>>, vector<1x16x32xbf16>
    %76 = vector.shape_cast %75 : vector<1x16x32xbf16> to vector<16x32xbf16>
    %cst_90 = arith.constant dense<0.000000e+00> : vector<20x32xf32>
    %77 = tpu.matmul %74, %76, %cst_90 {dimension_numbers = #tpu.dot_dimension_numbers<[1], [0], [0], [1], [0, 0, 1, 1], [], []>} : vector<20x16xbf16>, vector<16x32xbf16>, vector<20x32xf32> -> vector<20x32xf32>
    %78 = arith.addf %72, %77 : vector<20x32xf32>
    %c0_91 = arith.constant 0 : index
    %c3_92 = arith.constant 3 : index
    %c5_93 = arith.constant 5 : index
    %c0_94 = arith.constant 0 : index
    %79 = vector.load %arg1[%c0_91, %c3_92, %c5_93, %c0_94] : memref<1x4x30x16xbf16, #tpu.memory_space<vmem>>, vector<1x1x20x16xbf16>
    %80 = vector.shape_cast %79 : vector<1x1x20x16xbf16> to vector<20x16xbf16>
    %c13 = arith.constant 13 : index
    %c0_95 = arith.constant 0 : index
    %c0_96 = arith.constant 0 : index
    %81 = vector.load %arg2[%c13, %c0_95, %c0_96] : memref<16x16x32xbf16, #tpu.memory_space<vmem>>, vector<1x16x32xbf16>
    %82 = vector.shape_cast %81 : vector<1x16x32xbf16> to vector<16x32xbf16>
    %cst_97 = arith.constant dense<0.000000e+00> : vector<20x32xf32>
    %83 = tpu.matmul %80, %82, %cst_97 {dimension_numbers = #tpu.dot_dimension_numbers<[1], [0], [0], [1], [0, 0, 1, 1], [], []>} : vector<20x16xbf16>, vector<16x32xbf16>, vector<20x32xf32> -> vector<20x32xf32>
    %84 = arith.addf %78, %83 : vector<20x32xf32>
    %c0_98 = arith.constant 0 : index
    %c2_99 = arith.constant 2 : index
    %c6_100 = arith.constant 6 : index
    %c0_101 = arith.constant 0 : index
    %85 = vector.load %arg1[%c0_98, %c2_99, %c6_100, %c0_101] : memref<1x4x30x16xbf16, #tpu.memory_space<vmem>>, vector<1x1x20x16xbf16>
    %86 = vector.shape_cast %85 : vector<1x1x20x16xbf16> to vector<20x16xbf16>
    %c14 = arith.constant 14 : index
    %c0_102 = arith.constant 0 : index
    %c0_103 = arith.constant 0 : index
    %87 = vector.load %arg2[%c14, %c0_102, %c0_103] : memref<16x16x32xbf16, #tpu.memory_space<vmem>>, vector<1x16x32xbf16>
    %88 = vector.shape_cast %87 : vector<1x16x32xbf16> to vector<16x32xbf16>
    %cst_104 = arith.constant dense<0.000000e+00> : vector<20x32xf32>
    %89 = tpu.matmul %86, %88, %cst_104 {dimension_numbers = #tpu.dot_dimension_numbers<[1], [0], [0], [1], [0, 0, 1, 1], [], []>} : vector<20x16xbf16>, vector<16x32xbf16>, vector<20x32xf32> -> vector<20x32xf32>
    %90 = arith.addf %84, %89 : vector<20x32xf32>
    %c0_105 = arith.constant 0 : index
    %c3_106 = arith.constant 3 : index
    %c6_107 = arith.constant 6 : index
    %c0_108 = arith.constant 0 : index
    %91 = vector.load %arg1[%c0_105, %c3_106, %c6_107, %c0_108] : memref<1x4x30x16xbf16, #tpu.memory_space<vmem>>, vector<1x1x20x16xbf16>
    %92 = vector.shape_cast %91 : vector<1x1x20x16xbf16> to vector<20x16xbf16>
    %c15 = arith.constant 15 : index
    %c0_109 = arith.constant 0 : index
    %c0_110 = arith.constant 0 : index
    %93 = vector.load %arg2[%c15, %c0_109, %c0_110] : memref<16x16x32xbf16, #tpu.memory_space<vmem>>, vector<1x16x32xbf16>
    %94 = vector.shape_cast %93 : vector<1x16x32xbf16> to vector<16x32xbf16>
    %cst_111 = arith.constant dense<0.000000e+00> : vector<20x32xf32>
    %95 = tpu.matmul %92, %94, %cst_111 {dimension_numbers = #tpu.dot_dimension_numbers<[1], [0], [0], [1], [0, 0, 1, 1], [], []>} : vector<20x16xbf16>, vector<16x32xbf16>, vector<20x32xf32> -> vector<20x32xf32>
    %96 = arith.addf %90, %95 : vector<20x32xf32>
    %97 = tpu.iota {dimensions = array<i32: 1>} : vector<1x20xi32>
    %c5_i32 = arith.constant 5 : i32
    %c0_i32 = arith.constant 0 : i32
    %98 = arith.cmpi eq, %c5_i32, %c0_i32 : i32
    %c1_i32 = arith.constant 1 : i32
    %99 = arith.select %98, %c1_i32, %c5_i32 : i32
    %100 = vector.broadcast %99 : i32 to vector<1x20xi32>
    %101 = arith.remsi %97, %100 : vector<1x20xi32>
    %c0_i32_112 = arith.constant 0 : i32
    %102 = vector.broadcast %c0_i32_112 : i32 to vector<1x20xi32>
    %103 = arith.cmpi ne, %101, %102 : vector<1x20xi32>
    %c0_i32_113 = arith.constant 0 : i32
    %104 = vector.broadcast %c0_i32_113 : i32 to vector<1x20xi32>
    %105 = arith.cmpi slt, %101, %104 : vector<1x20xi32>
    %c0_i32_114 = arith.constant 0 : i32
    %106 = arith.cmpi slt, %99, %c0_i32_114 : i32
    %107 = vector.broadcast %106 : i1 to vector<1x20xi1>
    %108 = vector.broadcast %107 : vector<1x20xi1> to vector<1x20xi1>
    %109 = arith.xori %105, %108 : vector<1x20xi1>
    %110 = arith.andi %109, %103 : vector<1x20xi1>
    %111 = vector.broadcast %99 : i32 to vector<1x20xi32>
    %112 = arith.addi %101, %111 : vector<1x20xi32>
    %113 = arith.select %110, %112, %101 : vector<1x20xi1>, vector<1x20xi32>
    %c4_i32 = arith.constant 4 : i32
    %114 = vector.broadcast %c4_i32 : i32 to vector<1x20xi32>
    %115 = arith.cmpi slt, %113, %114 : vector<1x20xi32>
    %116 = arith.extui %115 : vector<1x20xi1> to vector<1x20xi32>
    %117 = arith.sitofp %116 : vector<1x20xi32> to vector<1x20xf32>
    %cst_115 = arith.constant dense<0.000000e+00> : vector<1x32xf32>
    %118 = tpu.matmul %117, %96, %cst_115 {dimension_numbers = #tpu.dot_dimension_numbers<[1], [0], [0], [1], [0, 0, 1, 1], [], []>} : vector<1x20xf32>, vector<20x32xf32>, vector<1x32xf32> -> vector<1x32xf32>
    %cst_116 = arith.constant 6.250000e-02 : f32
    %119 = vector.broadcast %cst_116 : f32 to vector<1x32xf32>
    %120 = arith.mulf %118, %119 : vector<1x32xf32>
    %121 = arith.mulf %96, %96 : vector<20x32xf32>
    %cst_117 = arith.constant dense<0.000000e+00> : vector<1x32xf32>
    %122 = tpu.matmul %117, %121, %cst_117 {dimension_numbers = #tpu.dot_dimension_numbers<[1], [0], [0], [1], [0, 0, 1, 1], [], []>} : vector<1x20xf32>, vector<20x32xf32>, vector<1x32xf32> -> vector<1x32xf32>
    %cst_118 = arith.constant 6.250000e-02 : f32
    %123 = vector.broadcast %cst_118 : f32 to vector<1x32xf32>
    %124 = arith.mulf %122, %123 : vector<1x32xf32>
    %125 = arith.mulf %120, %120 : vector<1x32xf32>
    %126 = arith.subf %124, %125 : vector<1x32xf32>
    %cst_119 = arith.constant 0.000000e+00 : f32
    %127 = vector.broadcast %cst_119 : f32 to vector<1x32xf32>
    %128 = arith.maximumf %126, %127 : vector<1x32xf32>
    %129 = vector.broadcast %120 : vector<1x32xf32> to vector<20x32xf32>
    %130 = arith.subf %96, %129 : vector<20x32xf32>
    %cst_120 = arith.constant 9.99999974E-6 : f32
    %131 = vector.broadcast %cst_120 : f32 to vector<1x32xf32>
    %132 = arith.addf %128, %131 : vector<1x32xf32>
    %133 = math.rsqrt %132 : vector<1x32xf32>
    %134 = vector.broadcast %133 : vector<1x32xf32> to vector<20x32xf32>
    %135 = arith.mulf %130, %134 : vector<20x32xf32>
    %cst_121 = arith.constant 0.000000e+00 : f32
    %136 = vector.broadcast %cst_121 : f32 to vector<20x32xf32>
    %137 = arith.cmpf ogt, %135, %136 : vector<20x32xf32>
    %cst_122 = arith.constant 2.000000e-01 : f32
    %138 = vector.broadcast %cst_122 : f32 to vector<20x32xf32>
    %139 = arith.mulf %138, %135 : vector<20x32xf32>
    %140 = arith.select %137, %135, %139 : vector<20x32xi1>, vector<20x32xf32>
    %141 = arith.truncf %140 : vector<20x32xf32> to vector<20x32xbf16>
    %c0_123 = arith.constant 0 : index
    %c0_124 = arith.constant 0 : index
    %c0_125 = arith.constant 0 : index
    %142 = vector.load %arg3[%c0_123, %c0_124, %c0_125] : memref<1x20x32xbf16, #tpu.memory_space<vmem>>, vector<1x20x32xbf16>
    %143 = vector.shape_cast %142 : vector<1x20x32xbf16> to vector<20x32xbf16>
    %144 = vector.shape_cast %141 : vector<20x32xbf16> to vector<1x20x32xbf16>
    tpu.vector_store %arg3[%c0_123, %c0_124, %c0_125], %144 {strides = array<i32>} : memref<1x20x32xbf16, #tpu.memory_space<vmem>>, vector<1x20x32xbf16>,
    return
  }
  func.func @transform_0(%arg0: i32) -> (i32, i32, i32, i32) {
    %c0_i32 = arith.constant 0 : i32
    %c0_i32_0 = arith.constant 0 : i32
    %c0_i32_1 = arith.constant 0 : i32
    %c0_i32_2 = arith.constant 0 : i32
    return %arg0, %c0_i32, %c0_i32_0, %c0_i32_1 : i32, i32, i32, i32
  }
  func.func @transform_1(%arg0: i32) -> (i32, i32, i32) {
    %c0_i32 = arith.constant 0 : i32
    %c0_i32_0 = arith.constant 0 : i32
    %c0_i32_1 = arith.constant 0 : i32
    %c0_i32_2 = arith.constant 0 : i32
    return %c0_i32, %c0_i32_0, %c0_i32_1 : i32, i32, i32
  }
  func.func @transform_2(%arg0: i32) -> (i32, i32, i32) {
    %c0_i32 = arith.constant 0 : i32
    %c0_i32_0 = arith.constant 0 : i32
    %c0_i32_1 = arith.constant 0 : i32
    return %arg0, %c0_i32, %c0_i32_0 : i32, i32, i32
  }
}

module attributes {stable_mosaic.version = 11 : i64} {
  func.func @_tap_layer_kernel(%arg0: i32, %arg1: memref<1x1x42x32xbf16, #tpu.memory_space<vmem>>, %arg2: memref<16x32x64xbf16, #tpu.memory_space<vmem>>, %arg3: memref<1x18x64xbf16, #tpu.memory_space<vmem>>) attributes {dimension_semantics = [#tpu.dimension_semantics<parallel>], iteration_bounds = array<i64: 2>, scalar_prefetch = 0 : i64, scratch_operands = 0 : i64, tpu.core_type = #tpu.core_type<tc>, window_params = [{transform_indices = @transform_0, window_bounds = array<i64: 1, 1, 42, 32>}, {pipeline_mode = #tpu.pipeline_mode<synchronous>, transform_indices = @transform_1, window_bounds = array<i64: 16, 32, 64>}, {transform_indices = @transform_2, window_bounds = array<i64: 1, 18, 64>}]} {
    %cst = arith.constant 0.000000e+00 : f32
    %0 = vector.broadcast %cst : f32 to vector<18x64xf32>
    %c0 = arith.constant 0 : index
    %c0_0 = arith.constant 0 : index
    %c0_1 = arith.constant 0 : index
    %c0_2 = arith.constant 0 : index
    %1 = vector.load %arg1[%c0, %c0_0, %c0_1, %c0_2] : memref<1x1x42x32xbf16, #tpu.memory_space<vmem>>, vector<1x1x18x32xbf16>
    %2 = vector.shape_cast %1 : vector<1x1x18x32xbf16> to vector<18x32xbf16>
    %c0_3 = arith.constant 0 : index
    %c0_4 = arith.constant 0 : index
    %c0_5 = arith.constant 0 : index
    %3 = vector.load %arg2[%c0_3, %c0_4, %c0_5] : memref<16x32x64xbf16, #tpu.memory_space<vmem>>, vector<1x32x64xbf16>
    %4 = vector.shape_cast %3 : vector<1x32x64xbf16> to vector<32x64xbf16>
    %cst_6 = arith.constant dense<0.000000e+00> : vector<18x64xf32>
    %5 = tpu.matmul %2, %4, %cst_6 {dimension_numbers = #tpu.dot_dimension_numbers<[1], [0], [0], [1], [0, 0, 1, 1], [], []>} : vector<18x32xbf16>, vector<32x64xbf16>, vector<18x64xf32> -> vector<18x64xf32>
    %6 = arith.addf %0, %5 : vector<18x64xf32>
    %c0_7 = arith.constant 0 : index
    %c0_8 = arith.constant 0 : index
    %c1 = arith.constant 1 : index
    %c0_9 = arith.constant 0 : index
    %7 = vector.load %arg1[%c0_7, %c0_8, %c1, %c0_9] : memref<1x1x42x32xbf16, #tpu.memory_space<vmem>>, vector<1x1x18x32xbf16>
    %8 = vector.shape_cast %7 : vector<1x1x18x32xbf16> to vector<18x32xbf16>
    %c1_10 = arith.constant 1 : index
    %c0_11 = arith.constant 0 : index
    %c0_12 = arith.constant 0 : index
    %9 = vector.load %arg2[%c1_10, %c0_11, %c0_12] : memref<16x32x64xbf16, #tpu.memory_space<vmem>>, vector<1x32x64xbf16>
    %10 = vector.shape_cast %9 : vector<1x32x64xbf16> to vector<32x64xbf16>
    %cst_13 = arith.constant dense<0.000000e+00> : vector<18x64xf32>
    %11 = tpu.matmul %8, %10, %cst_13 {dimension_numbers = #tpu.dot_dimension_numbers<[1], [0], [0], [1], [0, 0, 1, 1], [], []>} : vector<18x32xbf16>, vector<32x64xbf16>, vector<18x64xf32> -> vector<18x64xf32>
    %12 = arith.addf %6, %11 : vector<18x64xf32>
    %c0_14 = arith.constant 0 : index
    %c0_15 = arith.constant 0 : index
    %c2 = arith.constant 2 : index
    %c0_16 = arith.constant 0 : index
    %13 = vector.load %arg1[%c0_14, %c0_15, %c2, %c0_16] : memref<1x1x42x32xbf16, #tpu.memory_space<vmem>>, vector<1x1x18x32xbf16>
    %14 = vector.shape_cast %13 : vector<1x1x18x32xbf16> to vector<18x32xbf16>
    %c2_17 = arith.constant 2 : index
    %c0_18 = arith.constant 0 : index
    %c0_19 = arith.constant 0 : index
    %15 = vector.load %arg2[%c2_17, %c0_18, %c0_19] : memref<16x32x64xbf16, #tpu.memory_space<vmem>>, vector<1x32x64xbf16>
    %16 = vector.shape_cast %15 : vector<1x32x64xbf16> to vector<32x64xbf16>
    %cst_20 = arith.constant dense<0.000000e+00> : vector<18x64xf32>
    %17 = tpu.matmul %14, %16, %cst_20 {dimension_numbers = #tpu.dot_dimension_numbers<[1], [0], [0], [1], [0, 0, 1, 1], [], []>} : vector<18x32xbf16>, vector<32x64xbf16>, vector<18x64xf32> -> vector<18x64xf32>
    %18 = arith.addf %12, %17 : vector<18x64xf32>
    %c0_21 = arith.constant 0 : index
    %c0_22 = arith.constant 0 : index
    %c3 = arith.constant 3 : index
    %c0_23 = arith.constant 0 : index
    %19 = vector.load %arg1[%c0_21, %c0_22, %c3, %c0_23] : memref<1x1x42x32xbf16, #tpu.memory_space<vmem>>, vector<1x1x18x32xbf16>
    %20 = vector.shape_cast %19 : vector<1x1x18x32xbf16> to vector<18x32xbf16>
    %c3_24 = arith.constant 3 : index
    %c0_25 = arith.constant 0 : index
    %c0_26 = arith.constant 0 : index
    %21 = vector.load %arg2[%c3_24, %c0_25, %c0_26] : memref<16x32x64xbf16, #tpu.memory_space<vmem>>, vector<1x32x64xbf16>
    %22 = vector.shape_cast %21 : vector<1x32x64xbf16> to vector<32x64xbf16>
    %cst_27 = arith.constant dense<0.000000e+00> : vector<18x64xf32>
    %23 = tpu.matmul %20, %22, %cst_27 {dimension_numbers = #tpu.dot_dimension_numbers<[1], [0], [0], [1], [0, 0, 1, 1], [], []>} : vector<18x32xbf16>, vector<32x64xbf16>, vector<18x64xf32> -> vector<18x64xf32>
    %24 = arith.addf %18, %23 : vector<18x64xf32>
    %c0_28 = arith.constant 0 : index
    %c0_29 = arith.constant 0 : index
    %c6 = arith.constant 6 : index
    %c0_30 = arith.constant 0 : index
    %25 = vector.load %arg1[%c0_28, %c0_29, %c6, %c0_30] : memref<1x1x42x32xbf16, #tpu.memory_space<vmem>>, vector<1x1x18x32xbf16>
    %26 = vector.shape_cast %25 : vector<1x1x18x32xbf16> to vector<18x32xbf16>
    %c4 = arith.constant 4 : index
    %c0_31 = arith.constant 0 : index
    %c0_32 = arith.constant 0 : index
    %27 = vector.load %arg2[%c4, %c0_31, %c0_32] : memref<16x32x64xbf16, #tpu.memory_space<vmem>>, vector<1x32x64xbf16>
    %28 = vector.shape_cast %27 : vector<1x32x64xbf16> to vector<32x64xbf16>
    %cst_33 = arith.constant dense<0.000000e+00> : vector<18x64xf32>
    %29 = tpu.matmul %26, %28, %cst_33 {dimension_numbers = #tpu.dot_dimension_numbers<[1], [0], [0], [1], [0, 0, 1, 1], [], []>} : vector<18x32xbf16>, vector<32x64xbf16>, vector<18x64xf32> -> vector<18x64xf32>
    %30 = arith.addf %24, %29 : vector<18x64xf32>
    %c0_34 = arith.constant 0 : index
    %c0_35 = arith.constant 0 : index
    %c7 = arith.constant 7 : index
    %c0_36 = arith.constant 0 : index
    %31 = vector.load %arg1[%c0_34, %c0_35, %c7, %c0_36] : memref<1x1x42x32xbf16, #tpu.memory_space<vmem>>, vector<1x1x18x32xbf16>
    %32 = vector.shape_cast %31 : vector<1x1x18x32xbf16> to vector<18x32xbf16>
    %c5 = arith.constant 5 : index
    %c0_37 = arith.constant 0 : index
    %c0_38 = arith.constant 0 : index
    %33 = vector.load %arg2[%c5, %c0_37, %c0_38] : memref<16x32x64xbf16, #tpu.memory_space<vmem>>, vector<1x32x64xbf16>
    %34 = vector.shape_cast %33 : vector<1x32x64xbf16> to vector<32x64xbf16>
    %cst_39 = arith.constant dense<0.000000e+00> : vector<18x64xf32>
    %35 = tpu.matmul %32, %34, %cst_39 {dimension_numbers = #tpu.dot_dimension_numbers<[1], [0], [0], [1], [0, 0, 1, 1], [], []>} : vector<18x32xbf16>, vector<32x64xbf16>, vector<18x64xf32> -> vector<18x64xf32>
    %36 = arith.addf %30, %35 : vector<18x64xf32>
    %c0_40 = arith.constant 0 : index
    %c0_41 = arith.constant 0 : index
    %c8 = arith.constant 8 : index
    %c0_42 = arith.constant 0 : index
    %37 = vector.load %arg1[%c0_40, %c0_41, %c8, %c0_42] : memref<1x1x42x32xbf16, #tpu.memory_space<vmem>>, vector<1x1x18x32xbf16>
    %38 = vector.shape_cast %37 : vector<1x1x18x32xbf16> to vector<18x32xbf16>
    %c6_43 = arith.constant 6 : index
    %c0_44 = arith.constant 0 : index
    %c0_45 = arith.constant 0 : index
    %39 = vector.load %arg2[%c6_43, %c0_44, %c0_45] : memref<16x32x64xbf16, #tpu.memory_space<vmem>>, vector<1x32x64xbf16>
    %40 = vector.shape_cast %39 : vector<1x32x64xbf16> to vector<32x64xbf16>
    %cst_46 = arith.constant dense<0.000000e+00> : vector<18x64xf32>
    %41 = tpu.matmul %38, %40, %cst_46 {dimension_numbers = #tpu.dot_dimension_numbers<[1], [0], [0], [1], [0, 0, 1, 1], [], []>} : vector<18x32xbf16>, vector<32x64xbf16>, vector<18x64xf32> -> vector<18x64xf32>
    %42 = arith.addf %36, %41 : vector<18x64xf32>
    %c0_47 = arith.constant 0 : index
    %c0_48 = arith.constant 0 : index
    %c9 = arith.constant 9 : index
    %c0_49 = arith.constant 0 : index
    %43 = vector.load %arg1[%c0_47, %c0_48, %c9, %c0_49] : memref<1x1x42x32xbf16, #tpu.memory_space<vmem>>, vector<1x1x18x32xbf16>
    %44 = vector.shape_cast %43 : vector<1x1x18x32xbf16> to vector<18x32xbf16>
    %c7_50 = arith.constant 7 : index
    %c0_51 = arith.constant 0 : index
    %c0_52 = arith.constant 0 : index
    %45 = vector.load %arg2[%c7_50, %c0_51, %c0_52] : memref<16x32x64xbf16, #tpu.memory_space<vmem>>, vector<1x32x64xbf16>
    %46 = vector.shape_cast %45 : vector<1x32x64xbf16> to vector<32x64xbf16>
    %cst_53 = arith.constant dense<0.000000e+00> : vector<18x64xf32>
    %47 = tpu.matmul %44, %46, %cst_53 {dimension_numbers = #tpu.dot_dimension_numbers<[1], [0], [0], [1], [0, 0, 1, 1], [], []>} : vector<18x32xbf16>, vector<32x64xbf16>, vector<18x64xf32> -> vector<18x64xf32>
    %48 = arith.addf %42, %47 : vector<18x64xf32>
    %c0_54 = arith.constant 0 : index
    %c0_55 = arith.constant 0 : index
    %c12 = arith.constant 12 : index
    %c0_56 = arith.constant 0 : index
    %49 = vector.load %arg1[%c0_54, %c0_55, %c12, %c0_56] : memref<1x1x42x32xbf16, #tpu.memory_space<vmem>>, vector<1x1x18x32xbf16>
    %50 = vector.shape_cast %49 : vector<1x1x18x32xbf16> to vector<18x32xbf16>
    %c8_57 = arith.constant 8 : index
    %c0_58 = arith.constant 0 : index
    %c0_59 = arith.constant 0 : index
    %51 = vector.load %arg2[%c8_57, %c0_58, %c0_59] : memref<16x32x64xbf16, #tpu.memory_space<vmem>>, vector<1x32x64xbf16>
    %52 = vector.shape_cast %51 : vector<1x32x64xbf16> to vector<32x64xbf16>
    %cst_60 = arith.constant dense<0.000000e+00> : vector<18x64xf32>
    %53 = tpu.matmul %50, %52, %cst_60 {dimension_numbers = #tpu.dot_dimension_numbers<[1], [0], [0], [1], [0, 0, 1, 1], [], []>} : vector<18x32xbf16>, vector<32x64xbf16>, vector<18x64xf32> -> vector<18x64xf32>
    %54 = arith.addf %48, %53 : vector<18x64xf32>
    %c0_61 = arith.constant 0 : index
    %c0_62 = arith.constant 0 : index
    %c13 = arith.constant 13 : index
    %c0_63 = arith.constant 0 : index
    %55 = vector.load %arg1[%c0_61, %c0_62, %c13, %c0_63] : memref<1x1x42x32xbf16, #tpu.memory_space<vmem>>, vector<1x1x18x32xbf16>
    %56 = vector.shape_cast %55 : vector<1x1x18x32xbf16> to vector<18x32xbf16>
    %c9_64 = arith.constant 9 : index
    %c0_65 = arith.constant 0 : index
    %c0_66 = arith.constant 0 : index
    %57 = vector.load %arg2[%c9_64, %c0_65, %c0_66] : memref<16x32x64xbf16, #tpu.memory_space<vmem>>, vector<1x32x64xbf16>
    %58 = vector.shape_cast %57 : vector<1x32x64xbf16> to vector<32x64xbf16>
    %cst_67 = arith.constant dense<0.000000e+00> : vector<18x64xf32>
    %59 = tpu.matmul %56, %58, %cst_67 {dimension_numbers = #tpu.dot_dimension_numbers<[1], [0], [0], [1], [0, 0, 1, 1], [], []>} : vector<18x32xbf16>, vector<32x64xbf16>, vector<18x64xf32> -> vector<18x64xf32>
    %60 = arith.addf %54, %59 : vector<18x64xf32>
    %c0_68 = arith.constant 0 : index
    %c0_69 = arith.constant 0 : index
    %c14 = arith.constant 14 : index
    %c0_70 = arith.constant 0 : index
    %61 = vector.load %arg1[%c0_68, %c0_69, %c14, %c0_70] : memref<1x1x42x32xbf16, #tpu.memory_space<vmem>>, vector<1x1x18x32xbf16>
    %62 = vector.shape_cast %61 : vector<1x1x18x32xbf16> to vector<18x32xbf16>
    %c10 = arith.constant 10 : index
    %c0_71 = arith.constant 0 : index
    %c0_72 = arith.constant 0 : index
    %63 = vector.load %arg2[%c10, %c0_71, %c0_72] : memref<16x32x64xbf16, #tpu.memory_space<vmem>>, vector<1x32x64xbf16>
    %64 = vector.shape_cast %63 : vector<1x32x64xbf16> to vector<32x64xbf16>
    %cst_73 = arith.constant dense<0.000000e+00> : vector<18x64xf32>
    %65 = tpu.matmul %62, %64, %cst_73 {dimension_numbers = #tpu.dot_dimension_numbers<[1], [0], [0], [1], [0, 0, 1, 1], [], []>} : vector<18x32xbf16>, vector<32x64xbf16>, vector<18x64xf32> -> vector<18x64xf32>
    %66 = arith.addf %60, %65 : vector<18x64xf32>
    %c0_74 = arith.constant 0 : index
    %c0_75 = arith.constant 0 : index
    %c15 = arith.constant 15 : index
    %c0_76 = arith.constant 0 : index
    %67 = vector.load %arg1[%c0_74, %c0_75, %c15, %c0_76] : memref<1x1x42x32xbf16, #tpu.memory_space<vmem>>, vector<1x1x18x32xbf16>
    %68 = vector.shape_cast %67 : vector<1x1x18x32xbf16> to vector<18x32xbf16>
    %c11 = arith.constant 11 : index
    %c0_77 = arith.constant 0 : index
    %c0_78 = arith.constant 0 : index
    %69 = vector.load %arg2[%c11, %c0_77, %c0_78] : memref<16x32x64xbf16, #tpu.memory_space<vmem>>, vector<1x32x64xbf16>
    %70 = vector.shape_cast %69 : vector<1x32x64xbf16> to vector<32x64xbf16>
    %cst_79 = arith.constant dense<0.000000e+00> : vector<18x64xf32>
    %71 = tpu.matmul %68, %70, %cst_79 {dimension_numbers = #tpu.dot_dimension_numbers<[1], [0], [0], [1], [0, 0, 1, 1], [], []>} : vector<18x32xbf16>, vector<32x64xbf16>, vector<18x64xf32> -> vector<18x64xf32>
    %72 = arith.addf %66, %71 : vector<18x64xf32>
    %c0_80 = arith.constant 0 : index
    %c0_81 = arith.constant 0 : index
    %c18 = arith.constant 18 : index
    %c0_82 = arith.constant 0 : index
    %73 = vector.load %arg1[%c0_80, %c0_81, %c18, %c0_82] : memref<1x1x42x32xbf16, #tpu.memory_space<vmem>>, vector<1x1x18x32xbf16>
    %74 = vector.shape_cast %73 : vector<1x1x18x32xbf16> to vector<18x32xbf16>
    %c12_83 = arith.constant 12 : index
    %c0_84 = arith.constant 0 : index
    %c0_85 = arith.constant 0 : index
    %75 = vector.load %arg2[%c12_83, %c0_84, %c0_85] : memref<16x32x64xbf16, #tpu.memory_space<vmem>>, vector<1x32x64xbf16>
    %76 = vector.shape_cast %75 : vector<1x32x64xbf16> to vector<32x64xbf16>
    %cst_86 = arith.constant dense<0.000000e+00> : vector<18x64xf32>
    %77 = tpu.matmul %74, %76, %cst_86 {dimension_numbers = #tpu.dot_dimension_numbers<[1], [0], [0], [1], [0, 0, 1, 1], [], []>} : vector<18x32xbf16>, vector<32x64xbf16>, vector<18x64xf32> -> vector<18x64xf32>
    %78 = arith.addf %72, %77 : vector<18x64xf32>
    %c0_87 = arith.constant 0 : index
    %c0_88 = arith.constant 0 : index
    %c19 = arith.constant 19 : index
    %c0_89 = arith.constant 0 : index
    %79 = vector.load %arg1[%c0_87, %c0_88, %c19, %c0_89] : memref<1x1x42x32xbf16, #tpu.memory_space<vmem>>, vector<1x1x18x32xbf16>
    %80 = vector.shape_cast %79 : vector<1x1x18x32xbf16> to vector<18x32xbf16>
    %c13_90 = arith.constant 13 : index
    %c0_91 = arith.constant 0 : index
    %c0_92 = arith.constant 0 : index
    %81 = vector.load %arg2[%c13_90, %c0_91, %c0_92] : memref<16x32x64xbf16, #tpu.memory_space<vmem>>, vector<1x32x64xbf16>
    %82 = vector.shape_cast %81 : vector<1x32x64xbf16> to vector<32x64xbf16>
    %cst_93 = arith.constant dense<0.000000e+00> : vector<18x64xf32>
    %83 = tpu.matmul %80, %82, %cst_93 {dimension_numbers = #tpu.dot_dimension_numbers<[1], [0], [0], [1], [0, 0, 1, 1], [], []>} : vector<18x32xbf16>, vector<32x64xbf16>, vector<18x64xf32> -> vector<18x64xf32>
    %84 = arith.addf %78, %83 : vector<18x64xf32>
    %c0_94 = arith.constant 0 : index
    %c0_95 = arith.constant 0 : index
    %c20 = arith.constant 20 : index
    %c0_96 = arith.constant 0 : index
    %85 = vector.load %arg1[%c0_94, %c0_95, %c20, %c0_96] : memref<1x1x42x32xbf16, #tpu.memory_space<vmem>>, vector<1x1x18x32xbf16>
    %86 = vector.shape_cast %85 : vector<1x1x18x32xbf16> to vector<18x32xbf16>
    %c14_97 = arith.constant 14 : index
    %c0_98 = arith.constant 0 : index
    %c0_99 = arith.constant 0 : index
    %87 = vector.load %arg2[%c14_97, %c0_98, %c0_99] : memref<16x32x64xbf16, #tpu.memory_space<vmem>>, vector<1x32x64xbf16>
    %88 = vector.shape_cast %87 : vector<1x32x64xbf16> to vector<32x64xbf16>
    %cst_100 = arith.constant dense<0.000000e+00> : vector<18x64xf32>
    %89 = tpu.matmul %86, %88, %cst_100 {dimension_numbers = #tpu.dot_dimension_numbers<[1], [0], [0], [1], [0, 0, 1, 1], [], []>} : vector<18x32xbf16>, vector<32x64xbf16>, vector<18x64xf32> -> vector<18x64xf32>
    %90 = arith.addf %84, %89 : vector<18x64xf32>
    %c0_101 = arith.constant 0 : index
    %c0_102 = arith.constant 0 : index
    %c21 = arith.constant 21 : index
    %c0_103 = arith.constant 0 : index
    %91 = vector.load %arg1[%c0_101, %c0_102, %c21, %c0_103] : memref<1x1x42x32xbf16, #tpu.memory_space<vmem>>, vector<1x1x18x32xbf16>
    %92 = vector.shape_cast %91 : vector<1x1x18x32xbf16> to vector<18x32xbf16>
    %c15_104 = arith.constant 15 : index
    %c0_105 = arith.constant 0 : index
    %c0_106 = arith.constant 0 : index
    %93 = vector.load %arg2[%c15_104, %c0_105, %c0_106] : memref<16x32x64xbf16, #tpu.memory_space<vmem>>, vector<1x32x64xbf16>
    %94 = vector.shape_cast %93 : vector<1x32x64xbf16> to vector<32x64xbf16>
    %cst_107 = arith.constant dense<0.000000e+00> : vector<18x64xf32>
    %95 = tpu.matmul %92, %94, %cst_107 {dimension_numbers = #tpu.dot_dimension_numbers<[1], [0], [0], [1], [0, 0, 1, 1], [], []>} : vector<18x32xbf16>, vector<32x64xbf16>, vector<18x64xf32> -> vector<18x64xf32>
    %96 = arith.addf %90, %95 : vector<18x64xf32>
    %97 = tpu.iota {dimensions = array<i32: 1>} : vector<1x18xi32>
    %c6_i32 = arith.constant 6 : i32
    %c0_i32 = arith.constant 0 : i32
    %98 = arith.cmpi eq, %c6_i32, %c0_i32 : i32
    %c1_i32 = arith.constant 1 : i32
    %99 = arith.select %98, %c1_i32, %c6_i32 : i32
    %100 = vector.broadcast %99 : i32 to vector<1x18xi32>
    %101 = arith.remsi %97, %100 : vector<1x18xi32>
    %c0_i32_108 = arith.constant 0 : i32
    %102 = vector.broadcast %c0_i32_108 : i32 to vector<1x18xi32>
    %103 = arith.cmpi ne, %101, %102 : vector<1x18xi32>
    %c0_i32_109 = arith.constant 0 : i32
    %104 = vector.broadcast %c0_i32_109 : i32 to vector<1x18xi32>
    %105 = arith.cmpi slt, %101, %104 : vector<1x18xi32>
    %c0_i32_110 = arith.constant 0 : i32
    %106 = arith.cmpi slt, %99, %c0_i32_110 : i32
    %107 = vector.broadcast %106 : i1 to vector<1x18xi1>
    %108 = vector.broadcast %107 : vector<1x18xi1> to vector<1x18xi1>
    %109 = arith.xori %105, %108 : vector<1x18xi1>
    %110 = arith.andi %109, %103 : vector<1x18xi1>
    %111 = vector.broadcast %99 : i32 to vector<1x18xi32>
    %112 = arith.addi %101, %111 : vector<1x18xi32>
    %113 = arith.select %110, %112, %101 : vector<1x18xi1>, vector<1x18xi32>
    %c3_i32 = arith.constant 3 : i32
    %114 = vector.broadcast %c3_i32 : i32 to vector<1x18xi32>
    %115 = arith.cmpi slt, %113, %114 : vector<1x18xi32>
    %116 = arith.extui %115 : vector<1x18xi1> to vector<1x18xi32>
    %117 = arith.sitofp %116 : vector<1x18xi32> to vector<1x18xf32>
    %cst_111 = arith.constant dense<0.000000e+00> : vector<1x64xf32>
    %118 = tpu.matmul %117, %96, %cst_111 {dimension_numbers = #tpu.dot_dimension_numbers<[1], [0], [0], [1], [0, 0, 1, 1], [], []>} : vector<1x18xf32>, vector<18x64xf32>, vector<1x64xf32> -> vector<1x64xf32>
    %cst_112 = arith.constant 0.111111112 : f32
    %119 = vector.broadcast %cst_112 : f32 to vector<1x64xf32>
    %120 = arith.mulf %118, %119 : vector<1x64xf32>
    %121 = arith.mulf %96, %96 : vector<18x64xf32>
    %cst_113 = arith.constant dense<0.000000e+00> : vector<1x64xf32>
    %122 = tpu.matmul %117, %121, %cst_113 {dimension_numbers = #tpu.dot_dimension_numbers<[1], [0], [0], [1], [0, 0, 1, 1], [], []>} : vector<1x18xf32>, vector<18x64xf32>, vector<1x64xf32> -> vector<1x64xf32>
    %cst_114 = arith.constant 0.111111112 : f32
    %123 = vector.broadcast %cst_114 : f32 to vector<1x64xf32>
    %124 = arith.mulf %122, %123 : vector<1x64xf32>
    %125 = arith.mulf %120, %120 : vector<1x64xf32>
    %126 = arith.subf %124, %125 : vector<1x64xf32>
    %cst_115 = arith.constant 0.000000e+00 : f32
    %127 = vector.broadcast %cst_115 : f32 to vector<1x64xf32>
    %128 = arith.maximumf %126, %127 : vector<1x64xf32>
    %129 = vector.broadcast %120 : vector<1x64xf32> to vector<18x64xf32>
    %130 = arith.subf %96, %129 : vector<18x64xf32>
    %cst_116 = arith.constant 9.99999974E-6 : f32
    %131 = vector.broadcast %cst_116 : f32 to vector<1x64xf32>
    %132 = arith.addf %128, %131 : vector<1x64xf32>
    %133 = math.rsqrt %132 : vector<1x64xf32>
    %134 = vector.broadcast %133 : vector<1x64xf32> to vector<18x64xf32>
    %135 = arith.mulf %130, %134 : vector<18x64xf32>
    %cst_117 = arith.constant 0.000000e+00 : f32
    %136 = vector.broadcast %cst_117 : f32 to vector<18x64xf32>
    %137 = arith.cmpf ogt, %135, %136 : vector<18x64xf32>
    %cst_118 = arith.constant 2.000000e-01 : f32
    %138 = vector.broadcast %cst_118 : f32 to vector<18x64xf32>
    %139 = arith.mulf %138, %135 : vector<18x64xf32>
    %140 = arith.select %137, %135, %139 : vector<18x64xi1>, vector<18x64xf32>
    %141 = arith.truncf %140 : vector<18x64xf32> to vector<18x64xbf16>
    %c0_119 = arith.constant 0 : index
    %c0_120 = arith.constant 0 : index
    %c0_121 = arith.constant 0 : index
    %142 = vector.load %arg3[%c0_119, %c0_120, %c0_121] : memref<1x18x64xbf16, #tpu.memory_space<vmem>>, vector<1x18x64xbf16>
    %143 = vector.shape_cast %142 : vector<1x18x64xbf16> to vector<18x64xbf16>
    %144 = vector.shape_cast %141 : vector<18x64xbf16> to vector<1x18x64xbf16>
    tpu.vector_store %arg3[%c0_119, %c0_120, %c0_121], %144 {strides = array<i32>} : memref<1x18x64xbf16, #tpu.memory_space<vmem>>, vector<1x18x64xbf16>,
    return
  }
  func.func @transform_0(%arg0: i32) -> (i32, i32, i32, i32) {
    %c0_i32 = arith.constant 0 : i32
    %c0_i32_0 = arith.constant 0 : i32
    %c0_i32_1 = arith.constant 0 : i32
    %c0_i32_2 = arith.constant 0 : i32
    return %arg0, %c0_i32, %c0_i32_0, %c0_i32_1 : i32, i32, i32, i32
  }
  func.func @transform_1(%arg0: i32) -> (i32, i32, i32) {
    %c0_i32 = arith.constant 0 : i32
    %c0_i32_0 = arith.constant 0 : i32
    %c0_i32_1 = arith.constant 0 : i32
    %c0_i32_2 = arith.constant 0 : i32
    return %c0_i32, %c0_i32_0, %c0_i32_1 : i32, i32, i32
  }
  func.func @transform_2(%arg0: i32) -> (i32, i32, i32) {
    %c0_i32 = arith.constant 0 : i32
    %c0_i32_0 = arith.constant 0 : i32
    %c0_i32_1 = arith.constant 0 : i32
    return %arg0, %c0_i32, %c0_i32_0 : i32, i32, i32
  }
}

module attributes {stable_mosaic.version = 11 : i64} {
  func.func @_tap_layer_kernel(%arg0: i32, %arg1: memref<1x1x30x64xbf16, #tpu.memory_space<vmem>>, %arg2: memref<16x64x128xbf16, #tpu.memory_space<vmem>>, %arg3: memref<1x128xf32, #tpu.memory_space<vmem>>, %arg4: memref<1x10x128xbf16, #tpu.memory_space<vmem>>) attributes {dimension_semantics = [#tpu.dimension_semantics<parallel>], iteration_bounds = array<i64: 2>, scalar_prefetch = 0 : i64, scratch_operands = 0 : i64, tpu.core_type = #tpu.core_type<tc>, window_params = [{transform_indices = @transform_0, window_bounds = array<i64: 1, 1, 30, 64>}, {pipeline_mode = #tpu.pipeline_mode<synchronous>, transform_indices = @transform_1, window_bounds = array<i64: 16, 64, 128>}, {pipeline_mode = #tpu.pipeline_mode<synchronous>, transform_indices = @transform_2, window_bounds = array<i64: 1, 128>}, {transform_indices = @transform_3, window_bounds = array<i64: 1, 10, 128>}]} {
    %cst = arith.constant 0.000000e+00 : f32
    %0 = vector.broadcast %cst : f32 to vector<10x128xf32>
    %c0 = arith.constant 0 : index
    %c0_0 = arith.constant 0 : index
    %c0_1 = arith.constant 0 : index
    %c0_2 = arith.constant 0 : index
    %1 = vector.load %arg1[%c0, %c0_0, %c0_1, %c0_2] : memref<1x1x30x64xbf16, #tpu.memory_space<vmem>>, vector<1x1x10x64xbf16>
    %2 = vector.shape_cast %1 : vector<1x1x10x64xbf16> to vector<10x64xbf16>
    %c0_3 = arith.constant 0 : index
    %c0_4 = arith.constant 0 : index
    %c0_5 = arith.constant 0 : index
    %3 = vector.load %arg2[%c0_3, %c0_4, %c0_5] : memref<16x64x128xbf16, #tpu.memory_space<vmem>>, vector<1x64x128xbf16>
    %4 = vector.shape_cast %3 : vector<1x64x128xbf16> to vector<64x128xbf16>
    %cst_6 = arith.constant dense<0.000000e+00> : vector<10x128xf32>
    %5 = tpu.matmul %2, %4, %cst_6 {dimension_numbers = #tpu.dot_dimension_numbers<[1], [0], [0], [1], [0, 0, 1, 1], [], []>} : vector<10x64xbf16>, vector<64x128xbf16>, vector<10x128xf32> -> vector<10x128xf32>
    %6 = arith.addf %0, %5 : vector<10x128xf32>
    %c0_7 = arith.constant 0 : index
    %c0_8 = arith.constant 0 : index
    %c1 = arith.constant 1 : index
    %c0_9 = arith.constant 0 : index
    %7 = vector.load %arg1[%c0_7, %c0_8, %c1, %c0_9] : memref<1x1x30x64xbf16, #tpu.memory_space<vmem>>, vector<1x1x10x64xbf16>
    %8 = vector.shape_cast %7 : vector<1x1x10x64xbf16> to vector<10x64xbf16>
    %c1_10 = arith.constant 1 : index
    %c0_11 = arith.constant 0 : index
    %c0_12 = arith.constant 0 : index
    %9 = vector.load %arg2[%c1_10, %c0_11, %c0_12] : memref<16x64x128xbf16, #tpu.memory_space<vmem>>, vector<1x64x128xbf16>
    %10 = vector.shape_cast %9 : vector<1x64x128xbf16> to vector<64x128xbf16>
    %cst_13 = arith.constant dense<0.000000e+00> : vector<10x128xf32>
    %11 = tpu.matmul %8, %10, %cst_13 {dimension_numbers = #tpu.dot_dimension_numbers<[1], [0], [0], [1], [0, 0, 1, 1], [], []>} : vector<10x64xbf16>, vector<64x128xbf16>, vector<10x128xf32> -> vector<10x128xf32>
    %12 = arith.addf %6, %11 : vector<10x128xf32>
    %c0_14 = arith.constant 0 : index
    %c0_15 = arith.constant 0 : index
    %c2 = arith.constant 2 : index
    %c0_16 = arith.constant 0 : index
    %13 = vector.load %arg1[%c0_14, %c0_15, %c2, %c0_16] : memref<1x1x30x64xbf16, #tpu.memory_space<vmem>>, vector<1x1x10x64xbf16>
    %14 = vector.shape_cast %13 : vector<1x1x10x64xbf16> to vector<10x64xbf16>
    %c2_17 = arith.constant 2 : index
    %c0_18 = arith.constant 0 : index
    %c0_19 = arith.constant 0 : index
    %15 = vector.load %arg2[%c2_17, %c0_18, %c0_19] : memref<16x64x128xbf16, #tpu.memory_space<vmem>>, vector<1x64x128xbf16>
    %16 = vector.shape_cast %15 : vector<1x64x128xbf16> to vector<64x128xbf16>
    %cst_20 = arith.constant dense<0.000000e+00> : vector<10x128xf32>
    %17 = tpu.matmul %14, %16, %cst_20 {dimension_numbers = #tpu.dot_dimension_numbers<[1], [0], [0], [1], [0, 0, 1, 1], [], []>} : vector<10x64xbf16>, vector<64x128xbf16>, vector<10x128xf32> -> vector<10x128xf32>
    %18 = arith.addf %12, %17 : vector<10x128xf32>
    %c0_21 = arith.constant 0 : index
    %c0_22 = arith.constant 0 : index
    %c3 = arith.constant 3 : index
    %c0_23 = arith.constant 0 : index
    %19 = vector.load %arg1[%c0_21, %c0_22, %c3, %c0_23] : memref<1x1x30x64xbf16, #tpu.memory_space<vmem>>, vector<1x1x10x64xbf16>
    %20 = vector.shape_cast %19 : vector<1x1x10x64xbf16> to vector<10x64xbf16>
    %c3_24 = arith.constant 3 : index
    %c0_25 = arith.constant 0 : index
    %c0_26 = arith.constant 0 : index
    %21 = vector.load %arg2[%c3_24, %c0_25, %c0_26] : memref<16x64x128xbf16, #tpu.memory_space<vmem>>, vector<1x64x128xbf16>
    %22 = vector.shape_cast %21 : vector<1x64x128xbf16> to vector<64x128xbf16>
    %cst_27 = arith.constant dense<0.000000e+00> : vector<10x128xf32>
    %23 = tpu.matmul %20, %22, %cst_27 {dimension_numbers = #tpu.dot_dimension_numbers<[1], [0], [0], [1], [0, 0, 1, 1], [], []>} : vector<10x64xbf16>, vector<64x128xbf16>, vector<10x128xf32> -> vector<10x128xf32>
    %24 = arith.addf %18, %23 : vector<10x128xf32>
    %c0_28 = arith.constant 0 : index
    %c0_29 = arith.constant 0 : index
    %c5 = arith.constant 5 : index
    %c0_30 = arith.constant 0 : index
    %25 = vector.load %arg1[%c0_28, %c0_29, %c5, %c0_30] : memref<1x1x30x64xbf16, #tpu.memory_space<vmem>>, vector<1x1x10x64xbf16>
    %26 = vector.shape_cast %25 : vector<1x1x10x64xbf16> to vector<10x64xbf16>
    %c4 = arith.constant 4 : index
    %c0_31 = arith.constant 0 : index
    %c0_32 = arith.constant 0 : index
    %27 = vector.load %arg2[%c4, %c0_31, %c0_32] : memref<16x64x128xbf16, #tpu.memory_space<vmem>>, vector<1x64x128xbf16>
    %28 = vector.shape_cast %27 : vector<1x64x128xbf16> to vector<64x128xbf16>
    %cst_33 = arith.constant dense<0.000000e+00> : vector<10x128xf32>
    %29 = tpu.matmul %26, %28, %cst_33 {dimension_numbers = #tpu.dot_dimension_numbers<[1], [0], [0], [1], [0, 0, 1, 1], [], []>} : vector<10x64xbf16>, vector<64x128xbf16>, vector<10x128xf32> -> vector<10x128xf32>
    %30 = arith.addf %24, %29 : vector<10x128xf32>
    %c0_34 = arith.constant 0 : index
    %c0_35 = arith.constant 0 : index
    %c6 = arith.constant 6 : index
    %c0_36 = arith.constant 0 : index
    %31 = vector.load %arg1[%c0_34, %c0_35, %c6, %c0_36] : memref<1x1x30x64xbf16, #tpu.memory_space<vmem>>, vector<1x1x10x64xbf16>
    %32 = vector.shape_cast %31 : vector<1x1x10x64xbf16> to vector<10x64xbf16>
    %c5_37 = arith.constant 5 : index
    %c0_38 = arith.constant 0 : index
    %c0_39 = arith.constant 0 : index
    %33 = vector.load %arg2[%c5_37, %c0_38, %c0_39] : memref<16x64x128xbf16, #tpu.memory_space<vmem>>, vector<1x64x128xbf16>
    %34 = vector.shape_cast %33 : vector<1x64x128xbf16> to vector<64x128xbf16>
    %cst_40 = arith.constant dense<0.000000e+00> : vector<10x128xf32>
    %35 = tpu.matmul %32, %34, %cst_40 {dimension_numbers = #tpu.dot_dimension_numbers<[1], [0], [0], [1], [0, 0, 1, 1], [], []>} : vector<10x64xbf16>, vector<64x128xbf16>, vector<10x128xf32> -> vector<10x128xf32>
    %36 = arith.addf %30, %35 : vector<10x128xf32>
    %c0_41 = arith.constant 0 : index
    %c0_42 = arith.constant 0 : index
    %c7 = arith.constant 7 : index
    %c0_43 = arith.constant 0 : index
    %37 = vector.load %arg1[%c0_41, %c0_42, %c7, %c0_43] : memref<1x1x30x64xbf16, #tpu.memory_space<vmem>>, vector<1x1x10x64xbf16>
    %38 = vector.shape_cast %37 : vector<1x1x10x64xbf16> to vector<10x64xbf16>
    %c6_44 = arith.constant 6 : index
    %c0_45 = arith.constant 0 : index
    %c0_46 = arith.constant 0 : index
    %39 = vector.load %arg2[%c6_44, %c0_45, %c0_46] : memref<16x64x128xbf16, #tpu.memory_space<vmem>>, vector<1x64x128xbf16>
    %40 = vector.shape_cast %39 : vector<1x64x128xbf16> to vector<64x128xbf16>
    %cst_47 = arith.constant dense<0.000000e+00> : vector<10x128xf32>
    %41 = tpu.matmul %38, %40, %cst_47 {dimension_numbers = #tpu.dot_dimension_numbers<[1], [0], [0], [1], [0, 0, 1, 1], [], []>} : vector<10x64xbf16>, vector<64x128xbf16>, vector<10x128xf32> -> vector<10x128xf32>
    %42 = arith.addf %36, %41 : vector<10x128xf32>
    %c0_48 = arith.constant 0 : index
    %c0_49 = arith.constant 0 : index
    %c8 = arith.constant 8 : index
    %c0_50 = arith.constant 0 : index
    %43 = vector.load %arg1[%c0_48, %c0_49, %c8, %c0_50] : memref<1x1x30x64xbf16, #tpu.memory_space<vmem>>, vector<1x1x10x64xbf16>
    %44 = vector.shape_cast %43 : vector<1x1x10x64xbf16> to vector<10x64xbf16>
    %c7_51 = arith.constant 7 : index
    %c0_52 = arith.constant 0 : index
    %c0_53 = arith.constant 0 : index
    %45 = vector.load %arg2[%c7_51, %c0_52, %c0_53] : memref<16x64x128xbf16, #tpu.memory_space<vmem>>, vector<1x64x128xbf16>
    %46 = vector.shape_cast %45 : vector<1x64x128xbf16> to vector<64x128xbf16>
    %cst_54 = arith.constant dense<0.000000e+00> : vector<10x128xf32>
    %47 = tpu.matmul %44, %46, %cst_54 {dimension_numbers = #tpu.dot_dimension_numbers<[1], [0], [0], [1], [0, 0, 1, 1], [], []>} : vector<10x64xbf16>, vector<64x128xbf16>, vector<10x128xf32> -> vector<10x128xf32>
    %48 = arith.addf %42, %47 : vector<10x128xf32>
    %c0_55 = arith.constant 0 : index
    %c0_56 = arith.constant 0 : index
    %c10 = arith.constant 10 : index
    %c0_57 = arith.constant 0 : index
    %49 = vector.load %arg1[%c0_55, %c0_56, %c10, %c0_57] : memref<1x1x30x64xbf16, #tpu.memory_space<vmem>>, vector<1x1x10x64xbf16>
    %50 = vector.shape_cast %49 : vector<1x1x10x64xbf16> to vector<10x64xbf16>
    %c8_58 = arith.constant 8 : index
    %c0_59 = arith.constant 0 : index
    %c0_60 = arith.constant 0 : index
    %51 = vector.load %arg2[%c8_58, %c0_59, %c0_60] : memref<16x64x128xbf16, #tpu.memory_space<vmem>>, vector<1x64x128xbf16>
    %52 = vector.shape_cast %51 : vector<1x64x128xbf16> to vector<64x128xbf16>
    %cst_61 = arith.constant dense<0.000000e+00> : vector<10x128xf32>
    %53 = tpu.matmul %50, %52, %cst_61 {dimension_numbers = #tpu.dot_dimension_numbers<[1], [0], [0], [1], [0, 0, 1, 1], [], []>} : vector<10x64xbf16>, vector<64x128xbf16>, vector<10x128xf32> -> vector<10x128xf32>
    %54 = arith.addf %48, %53 : vector<10x128xf32>
    %c0_62 = arith.constant 0 : index
    %c0_63 = arith.constant 0 : index
    %c11 = arith.constant 11 : index
    %c0_64 = arith.constant 0 : index
    %55 = vector.load %arg1[%c0_62, %c0_63, %c11, %c0_64] : memref<1x1x30x64xbf16, #tpu.memory_space<vmem>>, vector<1x1x10x64xbf16>
    %56 = vector.shape_cast %55 : vector<1x1x10x64xbf16> to vector<10x64xbf16>
    %c9 = arith.constant 9 : index
    %c0_65 = arith.constant 0 : index
    %c0_66 = arith.constant 0 : index
    %57 = vector.load %arg2[%c9, %c0_65, %c0_66] : memref<16x64x128xbf16, #tpu.memory_space<vmem>>, vector<1x64x128xbf16>
    %58 = vector.shape_cast %57 : vector<1x64x128xbf16> to vector<64x128xbf16>
    %cst_67 = arith.constant dense<0.000000e+00> : vector<10x128xf32>
    %59 = tpu.matmul %56, %58, %cst_67 {dimension_numbers = #tpu.dot_dimension_numbers<[1], [0], [0], [1], [0, 0, 1, 1], [], []>} : vector<10x64xbf16>, vector<64x128xbf16>, vector<10x128xf32> -> vector<10x128xf32>
    %60 = arith.addf %54, %59 : vector<10x128xf32>
    %c0_68 = arith.constant 0 : index
    %c0_69 = arith.constant 0 : index
    %c12 = arith.constant 12 : index
    %c0_70 = arith.constant 0 : index
    %61 = vector.load %arg1[%c0_68, %c0_69, %c12, %c0_70] : memref<1x1x30x64xbf16, #tpu.memory_space<vmem>>, vector<1x1x10x64xbf16>
    %62 = vector.shape_cast %61 : vector<1x1x10x64xbf16> to vector<10x64xbf16>
    %c10_71 = arith.constant 10 : index
    %c0_72 = arith.constant 0 : index
    %c0_73 = arith.constant 0 : index
    %63 = vector.load %arg2[%c10_71, %c0_72, %c0_73] : memref<16x64x128xbf16, #tpu.memory_space<vmem>>, vector<1x64x128xbf16>
    %64 = vector.shape_cast %63 : vector<1x64x128xbf16> to vector<64x128xbf16>
    %cst_74 = arith.constant dense<0.000000e+00> : vector<10x128xf32>
    %65 = tpu.matmul %62, %64, %cst_74 {dimension_numbers = #tpu.dot_dimension_numbers<[1], [0], [0], [1], [0, 0, 1, 1], [], []>} : vector<10x64xbf16>, vector<64x128xbf16>, vector<10x128xf32> -> vector<10x128xf32>
    %66 = arith.addf %60, %65 : vector<10x128xf32>
    %c0_75 = arith.constant 0 : index
    %c0_76 = arith.constant 0 : index
    %c13 = arith.constant 13 : index
    %c0_77 = arith.constant 0 : index
    %67 = vector.load %arg1[%c0_75, %c0_76, %c13, %c0_77] : memref<1x1x30x64xbf16, #tpu.memory_space<vmem>>, vector<1x1x10x64xbf16>
    %68 = vector.shape_cast %67 : vector<1x1x10x64xbf16> to vector<10x64xbf16>
    %c11_78 = arith.constant 11 : index
    %c0_79 = arith.constant 0 : index
    %c0_80 = arith.constant 0 : index
    %69 = vector.load %arg2[%c11_78, %c0_79, %c0_80] : memref<16x64x128xbf16, #tpu.memory_space<vmem>>, vector<1x64x128xbf16>
    %70 = vector.shape_cast %69 : vector<1x64x128xbf16> to vector<64x128xbf16>
    %cst_81 = arith.constant dense<0.000000e+00> : vector<10x128xf32>
    %71 = tpu.matmul %68, %70, %cst_81 {dimension_numbers = #tpu.dot_dimension_numbers<[1], [0], [0], [1], [0, 0, 1, 1], [], []>} : vector<10x64xbf16>, vector<64x128xbf16>, vector<10x128xf32> -> vector<10x128xf32>
    %72 = arith.addf %66, %71 : vector<10x128xf32>
    %c0_82 = arith.constant 0 : index
    %c0_83 = arith.constant 0 : index
    %c15 = arith.constant 15 : index
    %c0_84 = arith.constant 0 : index
    %73 = vector.load %arg1[%c0_82, %c0_83, %c15, %c0_84] : memref<1x1x30x64xbf16, #tpu.memory_space<vmem>>, vector<1x1x10x64xbf16>
    %74 = vector.shape_cast %73 : vector<1x1x10x64xbf16> to vector<10x64xbf16>
    %c12_85 = arith.constant 12 : index
    %c0_86 = arith.constant 0 : index
    %c0_87 = arith.constant 0 : index
    %75 = vector.load %arg2[%c12_85, %c0_86, %c0_87] : memref<16x64x128xbf16, #tpu.memory_space<vmem>>, vector<1x64x128xbf16>
    %76 = vector.shape_cast %75 : vector<1x64x128xbf16> to vector<64x128xbf16>
    %cst_88 = arith.constant dense<0.000000e+00> : vector<10x128xf32>
    %77 = tpu.matmul %74, %76, %cst_88 {dimension_numbers = #tpu.dot_dimension_numbers<[1], [0], [0], [1], [0, 0, 1, 1], [], []>} : vector<10x64xbf16>, vector<64x128xbf16>, vector<10x128xf32> -> vector<10x128xf32>
    %78 = arith.addf %72, %77 : vector<10x128xf32>
    %c0_89 = arith.constant 0 : index
    %c0_90 = arith.constant 0 : index
    %c16 = arith.constant 16 : index
    %c0_91 = arith.constant 0 : index
    %79 = vector.load %arg1[%c0_89, %c0_90, %c16, %c0_91] : memref<1x1x30x64xbf16, #tpu.memory_space<vmem>>, vector<1x1x10x64xbf16>
    %80 = vector.shape_cast %79 : vector<1x1x10x64xbf16> to vector<10x64xbf16>
    %c13_92 = arith.constant 13 : index
    %c0_93 = arith.constant 0 : index
    %c0_94 = arith.constant 0 : index
    %81 = vector.load %arg2[%c13_92, %c0_93, %c0_94] : memref<16x64x128xbf16, #tpu.memory_space<vmem>>, vector<1x64x128xbf16>
    %82 = vector.shape_cast %81 : vector<1x64x128xbf16> to vector<64x128xbf16>
    %cst_95 = arith.constant dense<0.000000e+00> : vector<10x128xf32>
    %83 = tpu.matmul %80, %82, %cst_95 {dimension_numbers = #tpu.dot_dimension_numbers<[1], [0], [0], [1], [0, 0, 1, 1], [], []>} : vector<10x64xbf16>, vector<64x128xbf16>, vector<10x128xf32> -> vector<10x128xf32>
    %84 = arith.addf %78, %83 : vector<10x128xf32>
    %c0_96 = arith.constant 0 : index
    %c0_97 = arith.constant 0 : index
    %c17 = arith.constant 17 : index
    %c0_98 = arith.constant 0 : index
    %85 = vector.load %arg1[%c0_96, %c0_97, %c17, %c0_98] : memref<1x1x30x64xbf16, #tpu.memory_space<vmem>>, vector<1x1x10x64xbf16>
    %86 = vector.shape_cast %85 : vector<1x1x10x64xbf16> to vector<10x64xbf16>
    %c14 = arith.constant 14 : index
    %c0_99 = arith.constant 0 : index
    %c0_100 = arith.constant 0 : index
    %87 = vector.load %arg2[%c14, %c0_99, %c0_100] : memref<16x64x128xbf16, #tpu.memory_space<vmem>>, vector<1x64x128xbf16>
    %88 = vector.shape_cast %87 : vector<1x64x128xbf16> to vector<64x128xbf16>
    %cst_101 = arith.constant dense<0.000000e+00> : vector<10x128xf32>
    %89 = tpu.matmul %86, %88, %cst_101 {dimension_numbers = #tpu.dot_dimension_numbers<[1], [0], [0], [1], [0, 0, 1, 1], [], []>} : vector<10x64xbf16>, vector<64x128xbf16>, vector<10x128xf32> -> vector<10x128xf32>
    %90 = arith.addf %84, %89 : vector<10x128xf32>
    %c0_102 = arith.constant 0 : index
    %c0_103 = arith.constant 0 : index
    %c18 = arith.constant 18 : index
    %c0_104 = arith.constant 0 : index
    %91 = vector.load %arg1[%c0_102, %c0_103, %c18, %c0_104] : memref<1x1x30x64xbf16, #tpu.memory_space<vmem>>, vector<1x1x10x64xbf16>
    %92 = vector.shape_cast %91 : vector<1x1x10x64xbf16> to vector<10x64xbf16>
    %c15_105 = arith.constant 15 : index
    %c0_106 = arith.constant 0 : index
    %c0_107 = arith.constant 0 : index
    %93 = vector.load %arg2[%c15_105, %c0_106, %c0_107] : memref<16x64x128xbf16, #tpu.memory_space<vmem>>, vector<1x64x128xbf16>
    %94 = vector.shape_cast %93 : vector<1x64x128xbf16> to vector<64x128xbf16>
    %cst_108 = arith.constant dense<0.000000e+00> : vector<10x128xf32>
    %95 = tpu.matmul %92, %94, %cst_108 {dimension_numbers = #tpu.dot_dimension_numbers<[1], [0], [0], [1], [0, 0, 1, 1], [], []>} : vector<10x64xbf16>, vector<64x128xbf16>, vector<10x128xf32> -> vector<10x128xf32>
    %96 = arith.addf %90, %95 : vector<10x128xf32>
    %c0_109 = arith.constant 0 : index
    %c0_110 = arith.constant 0 : index
    %97 = vector.load %arg3[%c0_109, %c0_110] : memref<1x128xf32, #tpu.memory_space<vmem>>, vector<1x128xf32>
    %98 = vector.broadcast %97 : vector<1x128xf32> to vector<10x128xf32>
    %99 = arith.addf %96, %98 : vector<10x128xf32>
    %100 = arith.truncf %99 : vector<10x128xf32> to vector<10x128xbf16>
    %c0_111 = arith.constant 0 : index
    %c0_112 = arith.constant 0 : index
    %c0_113 = arith.constant 0 : index
    %101 = vector.load %arg4[%c0_111, %c0_112, %c0_113] : memref<1x10x128xbf16, #tpu.memory_space<vmem>>, vector<1x10x128xbf16>
    %102 = vector.shape_cast %101 : vector<1x10x128xbf16> to vector<10x128xbf16>
    %103 = vector.shape_cast %100 : vector<10x128xbf16> to vector<1x10x128xbf16>
    tpu.vector_store %arg4[%c0_111, %c0_112, %c0_113], %103 {strides = array<i32>} : memref<1x10x128xbf16, #tpu.memory_space<vmem>>, vector<1x10x128xbf16>,
    return
  }
  func.func @transform_0(%arg0: i32) -> (i32, i32, i32, i32) {
    %c0_i32 = arith.constant 0 : i32
    %c0_i32_0 = arith.constant 0 : i32
    %c0_i32_1 = arith.constant 0 : i32
    %c0_i32_2 = arith.constant 0 : i32
    return %arg0, %c0_i32, %c0_i32_0, %c0_i32_1 : i32, i32, i32, i32
  }
  func.func @transform_1(%arg0: i32) -> (i32, i32, i32) {
    %c0_i32 = arith.constant 0 : i32
    %c0_i32_0 = arith.constant 0 : i32
    %c0_i32_1 = arith.constant 0 : i32
    %c0_i32_2 = arith.constant 0 : i32
    return %c0_i32, %c0_i32_0, %c0_i32_1 : i32, i32, i32
  }
  func.func @transform_2(%arg0: i32) -> (i32, i32) {
    %c0_i32 = arith.constant 0 : i32
    %c0_i32_0 = arith.constant 0 : i32
    %c0_i32_1 = arith.constant 0 : i32
    return %c0_i32, %c0_i32_0 : i32, i32
  }
  func.func @transform_3(%arg0: i32) -> (i32, i32, i32) {
    %c0_i32 = arith.constant 0 : i32
    %c0_i32_0 = arith.constant 0 : i32
    %c0_i32_1 = arith.constant 0 : i32
    return %arg0, %c0_i32, %c0_i32_0 : i32, i32, i32
  }
}

</mosaic_0001>

<llo_original>
// kernel: discriminator_forward.5
$region0: #{discriminator_forward.5}
  #allocation0 [shape = 'u32[]', space=smem, size = 0x4, offset = 0x4, fixed_abs, tag = 'smem constant byte address 0x4 - core index']
  #allocation1 [shape = 'u32[72,128]{1,0:T(1,128)}', space=vmem, size = 0x9000, scoped, tag = 'internal scratch']
  %s0 = inlined_call_operand.vmem [shape: bf16[2,256,64], index: 0, kind: input, shape index: {}]
  %s1 = inlined_call_operand.vmem [shape: bf16[64,8], index: 1, kind: input, shape index: {}]
  %s2 = inlined_call_operand.vmem [shape: f32[1,8], index: 2, kind: input, shape index: {}]
  %s3 = inlined_call_operand.vmem [shape: bf16[2,256,8], index: 3, kind: output, shape index: {}]
  %s4 = sld [smem:[#allocation0]]
  $region45: #{discriminator_forward.5} parent=0
    _
  %s6 = ssub.s32 1, %s4
  %s7 = scalar_select 0, %s6, %s4
  loop: start=0, step=1, limit=4
  $region2: #{discriminator_forward.5} parent=0 // loop_pre_header
    _
  $region3: #{discriminator_forward.5} parent=0 // loop_header
    %s9 = sphi 0, %s13
    %p10 = scmp.ge.s32.totalorder %s9, 4
    %s16 = sphi 0, %s28
    %s17 = sphi 0, %s24
    %s18 = sphi 0, %s16
    %s19 = sphi 0, %s17
    %s20 = sphi 0, %s18
    %s21 = sphi 0, %s19
    %s33 = sphi 0, %s35
    %s36 = sphi 0, %s33
    %s37 = sphi 0, %s36
    %s53 = sphi 0, %s37
    %s57 = sphi 0, %s57
    %s59 = sphi 0, %s57
    %s60 = sphi 0, %s59
    %s74 = sphi 0, %s60
    %s78 = sphi 0, %s78
    %s80 = sphi 0, %s78
    %s81 = sphi 0, %s80
    %s95 = sphi 0, %s81
    %s103 = sphi 0, %s105
    %s106 = sphi 0, %s103
    %s107 = sphi 0, %s106
    %s123 = sphi 0, %s107
  $region4: #{discriminator_forward.5} parent=0 // loop_header_branch
    %12 = sbr.rel (%p10) target = $region8
  $region5: #{discriminator_forward.5} parent=0 // loop_body
    %s14 = ssub.s32 %s9, 1
    %s15 = ssub.s32 %s9, 2
    %s22 = sadd.s32 1, %s17
    %p23 = scmp.ge.s32.totalorder %s22, 1
    %s24 = scalar_select %p23, 0, %s22
    %s25 = sadd.s32 1, %s16
    %s26 = scalar_select %p23, %s25, %s16
    %p27 = scmp.ge.s32.totalorder %s26, 2
    %s28 = scalar_select %p27, 0, %s26
    %s29 = ssub.s32 %s16, %s28
    %s30 = ssub.s32 %s17, %s24
    %s31 = sor.u32 %s29, %s30
    %p32 = scmp.eq.s32.totalorder %s31, 0
    %s34 = sadd.s32 %s33, 1
    %s35 = scalar_select %p32, %s33, %s34
    %p38 = pneg %p32
    %p39 = scmp.eq.s32.totalorder %s9, 1
    %p40 = por %p38, %p39
    %p41 = scmp.ne.s32.totalorder %s33, %s36
    %p42 = scmp.eq.s32.totalorder %s9, 0
    %p43 = por %p41, %p42
    %p44 = scmp.ne.s32.totalorder %s33, %s36
    %p45 = scmp.eq.s32.totalorder %s14, 1
    %p46 = por %p44, %p45
    %p47 = scmp.ne.s32.totalorder %s36, %s37
    %p48 = scmp.eq.s32.totalorder %s14, 0
    %p49 = por %p47, %p48
    %p50 = scmp.ne.s32.totalorder %s36, %s37
    %p51 = scmp.eq.s32.totalorder %s15, 1
    %p52 = por %p50, %p51
    %p54 = scmp.ne.s32.totalorder %s37, %s53
    %p55 = scmp.eq.s32.totalorder %s15, 0
    %p56 = por %p54, %p55
    %s58 = sadd.s32 %s57, 1
    %p61 = scmp.eq.s32.totalorder %s9, 1
    %p62 = scmp.ne.s32.totalorder %s57, %s59
    %p63 = scmp.eq.s32.totalorder %s9, 0
    %p64 = por %p62, %p63
    %p65 = scmp.ne.s32.totalorder %s57, %s59
    %p66 = scmp.eq.s32.totalorder %s14, 1
    %p67 = por %p65, %p66
    %p68 = scmp.ne.s32.totalorder %s59, %s60
    %p69 = scmp.eq.s32.totalorder %s14, 0
    %p70 = por %p68, %p69
    %p71 = scmp.ne.s32.totalorder %s59, %s60
    %p72 = scmp.eq.s32.totalorder %s15, 1
    %p73 = por %p71, %p72
    %p75 = scmp.ne.s32.totalorder %s60, %s74
    %p76 = scmp.eq.s32.totalorder %s15, 0
    %p77 = por %p75, %p76
    %s79 = sadd.s32 %s78, 1
    %p82 = scmp.eq.s32.totalorder %s9, 1
    %p83 = scmp.ne.s32.totalorder %s78, %s80
    %p84 = scmp.eq.s32.totalorder %s9, 0
    %p85 = por %p83, %p84
    %p86 = scmp.ne.s32.totalorder %s78, %s80
    %p87 = scmp.eq.s32.totalorder %s14, 1
    %p88 = por %p86, %p87
    %p89 = scmp.ne.s32.totalorder %s80, %s81
    %p90 = scmp.eq.s32.totalorder %s14, 0
    %p91 = por %p89, %p90
    %p92 = scmp.ne.s32.totalorder %s80, %s81
    %p93 = scmp.eq.s32.totalorder %s15, 1
    %p94 = por %p92, %p93
    %p96 = scmp.ne.s32.totalorder %s81, %s95
    %p97 = scmp.eq.s32.totalorder %s15, 0
    %p98 = por %p96, %p97
    %s99 = ssub.s32 %s16, %s28
    %s100 = ssub.s32 %s17, %s24
    %s101 = sor.u32 %s99, %s100
    %p102 = scmp.eq.s32.totalorder %s101, 0
    %s104 = sadd.s32 %s103, 1
    %s105 = scalar_select %p102, %s103, %s104
    %p108 = pneg %p102
    %p109 = scmp.eq.s32.totalorder %s9, 1
    %p110 = por %p108, %p109
    %p111 = scmp.ne.s32.totalorder %s103, %s106
    %p112 = scmp.eq.s32.totalorder %s9, 0
    %p113 = por %p111, %p112
    %p114 = scmp.ne.s32.totalorder %s103, %s106
    %p115 = scmp.eq.s32.totalorder %s14, 1
    %p116 = por %p114, %p115
    %p117 = scmp.ne.s32.totalorder %s106, %s107
    %p118 = scmp.eq.s32.totalorder %s14, 0
    %p119 = por %p117, %p118
    %p120 = scmp.ne.s32.totalorder %s106, %s107
    %p121 = scmp.eq.s32.totalorder %s15, 1
    %p122 = por %p120, %p121
    %p124 = scmp.ne.s32.totalorder %s107, %s123
    %p125 = scmp.eq.s32.totalorder %s15, 0
    %p126 = por %p124, %p125
    %p127 = scmp.le.s32.totalorder 1, %s9
    %p128 = scmp.lt.s32.totalorder %s9, 3
    %p129 = pnand %p127, %p128
    %p130 = pneg %p129
    // Predicated region
    $region9: #{discriminator_forward.5} parent=5 // pred_check
      _
    $region10: #{discriminator_forward.5} parent=5 // pred_check_branch
      %132 = sbr.rel (%p129) target = $region12
    $region11: #{discriminator_forward.5} parent=5 // pred_region
      %s133 = ssub.s32 %s9, 1
      // Predicated region
      $region13: #{discriminator_forward.5} parent=11 // pred_check
        %p134 = pneg %p70
      $region14: #{discriminator_forward.5} parent=11 // pred_check_branch
        %136 = sbr.rel (%p134) target = $region16
      $region15: #{discriminator_forward.5} parent=11 // pred_region
        _
      $region16: #{discriminator_forward.5} parent=11 // pred_fallthru
        _
      // Predicated region
      $region17: #{discriminator_forward.5} parent=11 // pred_check
        %p137 = pneg %p91
      $region18: #{discriminator_forward.5} parent=11 // pred_check_branch
        %139 = sbr.rel (%p137) target = $region20
      $region19: #{discriminator_forward.5} parent=11 // pred_region
        _
      $region20: #{discriminator_forward.5} parent=11 // pred_fallthru
        _
    $region12: #{discriminator_forward.5} parent=5 // pred_fallthru
      _
    %p140 = scmp.lt.s32.totalorder %s9, 2
    // Predicated region
    $region21: #{discriminator_forward.5} parent=5 // pred_check
      %p141 = pneg %p140
    $region22: #{discriminator_forward.5} parent=5 // pred_check_branch
      %143 = sbr.rel (%p141) target = $region24
    $region23: #{discriminator_forward.5} parent=5 // pred_region
      // Predicated region
      $region25: #{discriminator_forward.5} parent=23 // pred_check
        %p144 = pneg %p43
      $region26: #{discriminator_forward.5} parent=23 // pred_check_branch
        %146 = sbr.rel (%p144) target = $region28
      $region27: #{discriminator_forward.5} parent=23 // pred_region
        %s147 = smul.u32 32, %s17
        %p148 = scmp.lt.s32.totalorder %s16, 1
        %s149 = scalar_select %p148, %s16, 1
        %p150 = scmp.lt.s32.totalorder %s147, 31
        %s151 = scalar_select %p150, %s147, 31
        %s152 = smul.addr %s149, 32
        %s153 = sadd.s32 %s151, %s152
        %s154 = smul.addr %s153, 4
        %s155 = scalar_lea.vmem %s0, %s154
        %s156 = smul.u32 32, %s17
      $region28: #{discriminator_forward.5} parent=23 // pred_fallthru
        _
    $region24: #{discriminator_forward.5} parent=5 // pred_fallthru
      _
    %p157 = scmp.le.s32.totalorder 1, %s9
    %p158 = scmp.lt.s32.totalorder %s9, 3
    %p159 = pnand %p157, %p158
    %p160 = pneg %p159
    // Predicated region
    $region29: #{discriminator_forward.5} parent=5 // pred_check
      _
    $region30: #{discriminator_forward.5} parent=5 // pred_check_branch
      %162 = sbr.rel (%p159) target = $region32
    $region31: #{discriminator_forward.5} parent=5 // pred_region
      %s163 = ssub.s32 %s9, 1
      %s164 = smul.u32 32, %s19
      %p165 = scmp.lt.s32.totalorder %s18, 1
      %s166 = scalar_select %p165, %s18, 1
      %p167 = scmp.lt.s32.totalorder %s164, 31
      %s168 = scalar_select %p167, %s164, 31
      %s169 = smul.addr %s166, 32
      %s170 = sadd.s32 %s168, %s169
      %s171 = smul.addr %s170, 4
      %s172 = scalar_lea.vmem %s0, %s171
      %p173 = pneg %p49
      %p174 = pneg %p46
      %p175 = pneg %p70
      %p176 = pneg %p67
      %p177 = pneg %p91
      %p178 = pneg %p88
      %p179 = pneg %p119
      %p180 = pneg %p116
      %s181 = smul.u32 32, %s19
      %p182 = scmp.lt.s32.totalorder %s18, 1
      %s183 = scalar_select %p182, %s18, 1
      %p184 = scmp.lt.s32.totalorder %s181, 31
      %s185 = scalar_select %p184, %s181, 31
      %s186 = smul.addr %s183, 32
      %s187 = sadd.s32 %s185, %s186
      %s188 = smul.addr %s187, 4
      %s189 = scalar_lea.vmem %s3, %s188
      %s190 = smul.u32 32, %s19
      %p191 = scmp.lt.s32.totalorder %s18, 1
      %s192 = scalar_select %p191, %s18, 1
      %p193 = scmp.lt.s32.totalorder %s190, 31
      %s194 = scalar_select %p193, %s190, 31
      %s195 = smul.addr %s192, 32
      %s196 = sadd.s32 %s194, %s195
      %s197 = smul.addr %s196, 4
      %s198 = scalar_lea.vmem %s0, %s197
      %s199 = smul.u32 32, %s19
      %s200 = smul.u32 32, %s19
      %p201 = scmp.lt.s32.totalorder %s18, 1
      %s202 = scalar_select %p201, %s18, 1
      %p203 = scmp.lt.s32.totalorder %s200, 31
      %s204 = scalar_select %p203, %s200, 31
      %s205 = smul.addr %s202, 32
      %s206 = sadd.s32 %s204, %s205
      %s207 = smul.addr %s206, 4
      %s208 = scalar_lea.vmem %s3, %s207
      %s209 = smul.u32 32, %s19
      %v211 = vld [vmem:[%s198] sm:$0xf]
      %v212 = vld [vmem:[%s198 + $0x4] sm:$0xf]
      %v213 = vld [vmem:[%s198 + $0x8] sm:$0xf]
      %v214 = vld [vmem:[%s198 + $0xc] sm:$0xf]
      %v215 = vld [vmem:[%s198 + $0x10] sm:$0xf]
      %v216 = vld [vmem:[%s198 + $0x14] sm:$0xf]
      %v217 = vld [vmem:[%s198 + $0x18] sm:$0xf]
      %v218 = vld [vmem:[%s198 + $0x1c] sm:$0xf]
      %v219 = vld [vmem:[%s198 + $0x20] sm:$0xf]
      %v220 = vld [vmem:[%s198 + $0x24] sm:$0xf]
      %v221 = vld [vmem:[%s198 + $0x28] sm:$0xf]
      %v222 = vld [vmem:[%s198 + $0x2c] sm:$0xf]
      %v223 = vld [vmem:[%s198 + $0x30] sm:$0xf]
      %v224 = vld [vmem:[%s198 + $0x34] sm:$0xf]
      %v225 = vld [vmem:[%s198 + $0x38] sm:$0xf]
      %v226 = vld [vmem:[%s198 + $0x3c] sm:$0xf]
      %v227 = vld [vmem:[%s198 + $0x40] sm:$0xf]
      %v228 = vld [vmem:[%s198 + $0x44] sm:$0xf]
      %v229 = vld [vmem:[%s198 + $0x48] sm:$0xf]
      %v230 = vld [vmem:[%s198 + $0x4c] sm:$0xf]
      %v231 = vld [vmem:[%s198 + $0x50] sm:$0xf]
      %v232 = vld [vmem:[%s198 + $0x54] sm:$0xf]
      %v233 = vld [vmem:[%s198 + $0x58] sm:$0xf]
      %v234 = vld [vmem:[%s198 + $0x5c] sm:$0xf]
      %v235 = vld [vmem:[%s198 + $0x60] sm:$0xf]
      %v236 = vld [vmem:[%s198 + $0x64] sm:$0xf]
      %v237 = vld [vmem:[%s198 + $0x68] sm:$0xf]
      %v238 = vld [vmem:[%s198 + $0x6c] sm:$0xf]
      %v239 = vld [vmem:[%s198 + $0x70] sm:$0xf]
      %v240 = vld [vmem:[%s198 + $0x74] sm:$0xf]
      %v241 = vld [vmem:[%s198 + $0x78] sm:$0xf]
      %v242 = vld [vmem:[%s198 + $0x7c] sm:$0xf]
      %v243 = vld [vmem:[%s1] sm:$0xf]
      %v244 = vld [vmem:[%s1 + $0x4] sm:$0xf]
      %v245 = vld [vmem:[%s1 + $0x8] sm:$0xf]
      %v246 = vld [vmem:[%s1 + $0xc] sm:$0xf]
      %v247 = vld [vmem:[%s1 + $0x10] sm:$0xf]
      %v248 = vld [vmem:[%s1 + $0x14] sm:$0xf]
      %v249 = vld [vmem:[%s1 + $0x18] sm:$0xf]
      %v250 = vld [vmem:[%s1 + $0x1c] sm:$0xf]
      %v251 = vld [vmem:[%s2] sm:$0x1]
      %v253 = vperm.slane %v251, 0
      %v287 = vunpack.c.l.b16 %v211
      %v288 = vunpack.c.l.b16 %v212
      %v289 = vunpack.c.l.b16 %v213
      %v290 = vunpack.c.l.b16 %v214
      %v291 = vunpack.c.l.b16 %v215
      %v292 = vunpack.c.l.b16 %v216
      %v293 = vunpack.c.l.b16 %v217
      %v294 = vunpack.c.l.b16 %v218
      %v295 = vunpack.c.l.b16 %v219
      %v296 = vunpack.c.l.b16 %v220
      %v297 = vunpack.c.l.b16 %v221
      %v298 = vunpack.c.l.b16 %v222
      %v299 = vunpack.c.l.b16 %v223
      %v300 = vunpack.c.l.b16 %v224
      %v301 = vunpack.c.l.b16 %v225
      %v302 = vunpack.c.l.b16 %v226
      %v303 = vunpack.c.l.b16 %v227
      %v304 = vunpack.c.l.b16 %v228
      %v305 = vunpack.c.l.b16 %v229
      %v306 = vunpack.c.l.b16 %v230
      %v307 = vunpack.c.l.b16 %v231
      %v308 = vunpack.c.l.b16 %v232
      %v309 = vunpack.c.l.b16 %v233
      %v310 = vunpack.c.l.b16 %v234
      %v311 = vunpack.c.l.b16 %v235
      %v312 = vunpack.c.l.b16 %v236
      %v313 = vunpack.c.l.b16 %v237
      %v314 = vunpack.c.l.b16 %v238
      %v315 = vunpack.c.l.b16 %v239
      %v316 = vunpack.c.l.b16 %v240
      %v317 = vunpack.c.l.b16 %v241
      %v318 = vunpack.c.l.b16 %v242
      %v319 = vpack.c.b16 %v288, %v287
      %v320 = vpack.c.b16 %v290, %v289
      %v321 = vpack.c.b16 %v292, %v291
      %v322 = vpack.c.b16 %v294, %v293
      %v323 = vpack.c.b16 %v296, %v295
      %v324 = vpack.c.b16 %v298, %v297
      %v325 = vpack.c.b16 %v300, %v299
      %v326 = vpack.c.b16 %v302, %v301
      %v327 = vpack.c.b16 %v304, %v303
      %v328 = vpack.c.b16 %v306, %v305
      %v329 = vpack.c.b16 %v308, %v307
      %v330 = vpack.c.b16 %v310, %v309
      %v331 = vpack.c.b16 %v312, %v311
      %v332 = vpack.c.b16 %v314, %v313
      %v333 = vpack.c.b16 %v316, %v315
      %v334 = vpack.c.b16 %v318, %v317
      %v343 = vunpack.c.l.b16 %v243
      %v344 = vunpack.c.l.b16 %v244
      %v345 = vunpack.c.l.b16 %v245
      %v346 = vunpack.c.l.b16 %v246
      %v347 = vunpack.c.l.b16 %v247
      %v348 = vunpack.c.l.b16 %v248
      %v349 = vunpack.c.l.b16 %v249
      %v350 = vunpack.c.l.b16 %v250
      %v351 = vpack.c.b16 %v344, %v343
      %v352 = vpack.c.b16 %v346, %v345
      %v353 = vpack.c.b16 %v348, %v347
      %v354 = vpack.c.b16 %v350, %v349
      %vm359 = vcmask 523264
      %v361 = vsel %vm359, %v319, 0
      %v364 = vsel %vm359, %v320, 0
      %v367 = vsel %vm359, %v321, 0
      %v370 = vsel %vm359, %v322, 0
      %v373 = vsel %vm359, %v323, 0
      %v376 = vsel %vm359, %v324, 0
      %v379 = vsel %vm359, %v325, 0
      %v382 = vsel %vm359, %v326, 0
      %v385 = vsel %vm359, %v327, 0
      %v388 = vsel %vm359, %v328, 0
      %v391 = vsel %vm359, %v329, 0
      %v394 = vsel %vm359, %v330, 0
      %v397 = vsel %vm359, %v331, 0
      %v400 = vsel %vm359, %v332, 0
      %v403 = vsel %vm359, %v333, 0
      %v406 = vsel %vm359, %v334, 0
      %408 = vmatpush.bf16.msra.mxu0 0
      %409 = vmatpush.bf16.msra.mxu0 0
      %410 = vmatpush.bf16.msra.mxu0 0
      %411 = vmatpush.bf16.msra.mxu0 0
      %412 = vmatpush.bf16.msra.mxu0 %v354
      %413 = vmatpush.bf16.msra.mxu0 %v353
      %414 = vmatpush.bf16.msra.mxu0 %v352
      %415 = vmatpush.bf16.msra.mxu0 %v351
      %416 = vmatmul.bf16.gmra.mxu0 %v361
      %v417 = vpop.f32.mrf.mxu0
      %v418 = vadd.f32 %v253, %v417
      %v419 = vpop.f32.mrf.mxu0
      %v420 = vadd.f32 %v253, %v419
      %421 = vmatmul.bf16.gmra.mxu0 %v364
      %v422 = vpop.f32.mrf.mxu0
      %v423 = vadd.f32 %v253, %v422
      %v424 = vpop.f32.mrf.mxu0
      %v425 = vadd.f32 %v253, %v424
      %426 = vmatmul.bf16.gmra.mxu0 %v367
      %v427 = vpop.f32.mrf.mxu0
      %v428 = vadd.f32 %v253, %v427
      %v429 = vpop.f32.mrf.mxu0
      %v430 = vadd.f32 %v253, %v429
      %431 = vmatmul.bf16.gmra.mxu0 %v370
      %v432 = vpop.f32.mrf.mxu0
      %v433 = vadd.f32 %v253, %v432
      %v434 = vpop.f32.mrf.mxu0
      %v435 = vadd.f32 %v253, %v434
      %436 = vmatmul.bf16.gmra.mxu0 %v373
      %v437 = vpop.f32.mrf.mxu0
      %v438 = vadd.f32 %v253, %v437
      %v439 = vpop.f32.mrf.mxu0
      %v440 = vadd.f32 %v253, %v439
      %441 = vmatmul.bf16.gmra.mxu0 %v376
      %v442 = vpop.f32.mrf.mxu0
      %v443 = vadd.f32 %v253, %v442
      %v444 = vpop.f32.mrf.mxu0
      %v445 = vadd.f32 %v253, %v444
      %446 = vmatmul.bf16.gmra.mxu0 %v379
      %v447 = vpop.f32.mrf.mxu0
      %v448 = vadd.f32 %v253, %v447
      %v449 = vpop.f32.mrf.mxu0
      %v450 = vadd.f32 %v253, %v449
      %451 = vmatmul.bf16.gmra.mxu0 %v382
      %v452 = vpop.f32.mrf.mxu0
      %v453 = vadd.f32 %v253, %v452
      %v454 = vpop.f32.mrf.mxu0
      %v455 = vadd.f32 %v253, %v454
      %456 = vmatmul.bf16.gmra.mxu0 %v385
      %v457 = vpop.f32.mrf.mxu0
      %v458 = vadd.f32 %v253, %v457
      %v459 = vpop.f32.mrf.mxu0
      %v460 = vadd.f32 %v253, %v459
      %461 = vmatmul.bf16.gmra.mxu0 %v388
      %v462 = vpop.f32.mrf.mxu0
      %v463 = vadd.f32 %v253, %v462
      %v464 = vpop.f32.mrf.mxu0
      %v465 = vadd.f32 %v253, %v464
      %466 = vmatmul.bf16.gmra.mxu0 %v391
      %v467 = vpop.f32.mrf.mxu0
      %v468 = vadd.f32 %v253, %v467
      %v469 = vpop.f32.mrf.mxu0
      %v470 = vadd.f32 %v253, %v469
      %471 = vmatmul.bf16.gmra.mxu0 %v394
      %v472 = vpop.f32.mrf.mxu0
      %v473 = vadd.f32 %v253, %v472
      %v474 = vpop.f32.mrf.mxu0
      %v475 = vadd.f32 %v253, %v474
      %476 = vmatmul.bf16.gmra.mxu0 %v397
      %v477 = vpop.f32.mrf.mxu0
      %v478 = vadd.f32 %v253, %v477
      %v479 = vpop.f32.mrf.mxu0
      %v480 = vadd.f32 %v253, %v479
      %481 = vmatmul.bf16.gmra.mxu0 %v400
      %v482 = vpop.f32.mrf.mxu0
      %v483 = vadd.f32 %v253, %v482
      %v484 = vpop.f32.mrf.mxu0
      %v485 = vadd.f32 %v253, %v484
      %486 = vmatmul.bf16.gmra.mxu0 %v403
      %v487 = vpop.f32.mrf.mxu0
      %v488 = vadd.f32 %v253, %v487
      %v489 = vpop.f32.mrf.mxu0
      %v490 = vadd.f32 %v253, %v489
      %491 = vmatmul.bf16.gmra.mxu0 %v406
      %v492 = vpop.f32.mrf.mxu0
      %v493 = vadd.f32 %v253, %v492
      %v494 = vpop.f32.mrf.mxu0
      %v495 = vadd.f32 %v253, %v494
      %496 = vdwg.mxu0
      %vm497 = vcmp.gt.f32.partialorder %v418, 0.0
      %vm498 = vcmp.gt.f32.partialorder %v420, 0.0
      %vm499 = vcmp.gt.f32.partialorder %v423, 0.0
      %vm500 = vcmp.gt.f32.partialorder %v425, 0.0
      %vm501 = vcmp.gt.f32.partialorder %v428, 0.0
      %vm502 = vcmp.gt.f32.partialorder %v430, 0.0
      %vm503 = vcmp.gt.f32.partialorder %v433, 0.0
      %vm504 = vcmp.gt.f32.partialorder %v435, 0.0
      %vm505 = vcmp.gt.f32.partialorder %v438, 0.0
      %vm506 = vcmp.gt.f32.partialorder %v440, 0.0
      %vm507 = vcmp.gt.f32.partialorder %v443, 0.0
      %vm508 = vcmp.gt.f32.partialorder %v445, 0.0
      %vm509 = vcmp.gt.f32.partialorder %v448, 0.0
      %vm510 = vcmp.gt.f32.partialorder %v450, 0.0
      %vm511 = vcmp.gt.f32.partialorder %v453, 0.0
      %vm512 = vcmp.gt.f32.partialorder %v455, 0.0
      %vm513 = vcmp.gt.f32.partialorder %v458, 0.0
      %vm514 = vcmp.gt.f32.partialorder %v460, 0.0
      %vm515 = vcmp.gt.f32.partialorder %v463, 0.0
      %vm516 = vcmp.gt.f32.partialorder %v465, 0.0
      %vm517 = vcmp.gt.f32.partialorder %v468, 0.0
      %vm518 = vcmp.gt.f32.partialorder %v470, 0.0
      %vm519 = vcmp.gt.f32.partialorder %v473, 0.0
      %vm520 = vcmp.gt.f32.partialorder %v475, 0.0
      %vm521 = vcmp.gt.f32.partialorder %v478, 0.0
      %vm522 = vcmp.gt.f32.partialorder %v480, 0.0
      %vm523 = vcmp.gt.f32.partialorder %v483, 0.0
      %vm524 = vcmp.gt.f32.partialorder %v485, 0.0
      %vm525 = vcmp.gt.f32.partialorder %v488, 0.0
      %vm526 = vcmp.gt.f32.partialorder %v490, 0.0
      %vm527 = vcmp.gt.f32.partialorder %v493, 0.0
      %vm528 = vcmp.gt.f32.partialorder %v495, 0.0
      %v529 = vmul.f32 %v418, 0.2
      %v530 = vmul.f32 %v420, 0.2
      %v531 = vmul.f32 %v423, 0.2
      %v532 = vmul.f32 %v425, 0.2
      %v533 = vmul.f32 %v428, 0.2
      %v534 = vmul.f32 %v430, 0.2
      %v535 = vmul.f32 %v433, 0.2
      %v536 = vmul.f32 %v435, 0.2
      %v537 = vmul.f32 %v438, 0.2
      %v538 = vmul.f32 %v440, 0.2
      %v539 = vmul.f32 %v443, 0.2
      %v540 = vmul.f32 %v445, 0.2
      %v541 = vmul.f32 %v448, 0.2
      %v542 = vmul.f32 %v450, 0.2
      %v543 = vmul.f32 %v453, 0.2
      %v544 = vmul.f32 %v455, 0.2
      %v545 = vmul.f32 %v458, 0.2
      %v546 = vmul.f32 %v460, 0.2
      %v547 = vmul.f32 %v463, 0.2
      %v548 = vmul.f32 %v465, 0.2
      %v549 = vmul.f32 %v468, 0.2
      %v550 = vmul.f32 %v470, 0.2
      %v551 = vmul.f32 %v473, 0.2
      %v552 = vmul.f32 %v475, 0.2
      %v553 = vmul.f32 %v478, 0.2
      %v554 = vmul.f32 %v480, 0.2
      %v555 = vmul.f32 %v483, 0.2
      %v556 = vmul.f32 %v485, 0.2
      %v557 = vmul.f32 %v488, 0.2
      %v558 = vmul.f32 %v490, 0.2
      %v559 = vmul.f32 %v493, 0.2
      %v560 = vmul.f32 %v495, 0.2
      %v561 = vsel %vm497, %v418, %v529
      %v562 = vsel %vm498, %v420, %v530
      %v563 = vsel %vm499, %v423, %v531
      %v564 = vsel %vm500, %v425, %v532
      %v565 = vsel %vm501, %v428, %v533
      %v566 = vsel %vm502, %v430, %v534
      %v567 = vsel %vm503, %v433, %v535
      %v568 = vsel %vm504, %v435, %v536
      %v569 = vsel %vm505, %v438, %v537
      %v570 = vsel %vm506, %v440, %v538
      %v571 = vsel %vm507, %v443, %v539
      %v572 = vsel %vm508, %v445, %v540
      %v573 = vsel %vm509, %v448, %v541
      %v574 = vsel %vm510, %v450, %v542
      %v575 = vsel %vm511, %v453, %v543
      %v576 = vsel %vm512, %v455, %v544
      %v577 = vsel %vm513, %v458, %v545
      %v578 = vsel %vm514, %v460, %v546
      %v579 = vsel %vm515, %v463, %v547
      %v580 = vsel %vm516, %v465, %v548
      %v581 = vsel %vm517, %v468, %v549
      %v582 = vsel %vm518, %v470, %v550
      %v583 = vsel %vm519, %v473, %v551
      %v584 = vsel %vm520, %v475, %v552
      %v585 = vsel %vm521, %v478, %v553
      %v586 = vsel %vm522, %v480, %v554
      %v587 = vsel %vm523, %v483, %v555
      %v588 = vsel %vm524, %v485, %v556
      %v589 = vsel %vm525, %v488, %v557
      %v590 = vsel %vm526, %v490, %v558
      %v591 = vsel %vm527, %v493, %v559
      %v592 = vsel %vm528, %v495, %v560
      %v593 = vpack.c.bf16 %v561, %v561
      %v594 = vpack.c.bf16 %v562, %v562
      %v595 = vpack.c.bf16 %v563, %v563
      %v596 = vpack.c.bf16 %v564, %v564
      %v597 = vpack.c.bf16 %v565, %v565
      %v598 = vpack.c.bf16 %v566, %v566
      %v599 = vpack.c.bf16 %v567, %v567
      %v600 = vpack.c.bf16 %v568, %v568
      %v601 = vpack.c.bf16 %v569, %v569
      %v602 = vpack.c.bf16 %v570, %v570
      %v603 = vpack.c.bf16 %v571, %v571
      %v604 = vpack.c.bf16 %v572, %v572
      %v605 = vpack.c.bf16 %v573, %v573
      %v606 = vpack.c.bf16 %v574, %v574
      %v607 = vpack.c.bf16 %v575, %v575
      %v608 = vpack.c.bf16 %v576, %v576
      %v609 = vpack.c.bf16 %v577, %v577
      %v610 = vpack.c.bf16 %v578, %v578
      %v611 = vpack.c.bf16 %v579, %v579
      %v612 = vpack.c.bf16 %v580, %v580
      %v613 = vpack.c.bf16 %v581, %v581
      %v614 = vpack.c.bf16 %v582, %v582
      %v615 = vpack.c.bf16 %v583, %v583
      %v616 = vpack.c.bf16 %v584, %v584
      %v617 = vpack.c.bf16 %v585, %v585
      %v618 = vpack.c.bf16 %v586, %v586
      %v619 = vpack.c.bf16 %v587, %v587
      %v620 = vpack.c.bf16 %v588, %v588
      %v621 = vpack.c.bf16 %v589, %v589
      %v622 = vpack.c.bf16 %v590, %v590
      %v623 = vpack.c.bf16 %v591, %v591
      %v624 = vpack.c.bf16 %v592, %v592
      %vm625 = vcmask 60416
      %626 = vst.msk [vmem:[%s208] sm:$0xf] %vm625, %v593
      %627 = vst.msk [vmem:[%s208 + $0x4] sm:$0xf] %vm625, %v594
      %628 = vst.msk [vmem:[%s208 + $0x8] sm:$0xf] %vm625, %v595
      %629 = vst.msk [vmem:[%s208 + $0xc] sm:$0xf] %vm625, %v596
      %630 = vst.msk [vmem:[%s208 + $0x10] sm:$0xf] %vm625, %v597
      %631 = vst.msk [vmem:[%s208 + $0x14] sm:$0xf] %vm625, %v598
      %632 = vst.msk [vmem:[%s208 + $0x18] sm:$0xf] %vm625, %v599
      %633 = vst.msk [vmem:[%s208 + $0x1c] sm:$0xf] %vm625, %v600
      %634 = vst.msk [vmem:[%s208 + $0x20] sm:$0xf] %vm625, %v601
      %635 = vst.msk [vmem:[%s208 + $0x24] sm:$0xf] %vm625, %v602
      %636 = vst.msk [vmem:[%s208 + $0x28] sm:$0xf] %vm625, %v603
      %637 = vst.msk [vmem:[%s208 + $0x2c] sm:$0xf] %vm625, %v604
      %638 = vst.msk [vmem:[%s208 + $0x30] sm:$0xf] %vm625, %v605
      %639 = vst.msk [vmem:[%s208 + $0x34] sm:$0xf] %vm625, %v606
      %640 = vst.msk [vmem:[%s208 + $0x38] sm:$0xf] %vm625, %v607
      %641 = vst.msk [vmem:[%s208 + $0x3c] sm:$0xf] %vm625, %v608
      %642 = vst.msk [vmem:[%s208 + $0x40] sm:$0xf] %vm625, %v609
      %643 = vst.msk [vmem:[%s208 + $0x44] sm:$0xf] %vm625, %v610
      %644 = vst.msk [vmem:[%s208 + $0x48] sm:$0xf] %vm625, %v611
      %645 = vst.msk [vmem:[%s208 + $0x4c] sm:$0xf] %vm625, %v612
      %646 = vst.msk [vmem:[%s208 + $0x50] sm:$0xf] %vm625, %v613
      %647 = vst.msk [vmem:[%s208 + $0x54] sm:$0xf] %vm625, %v614
      %648 = vst.msk [vmem:[%s208 + $0x58] sm:$0xf] %vm625, %v615
      %649 = vst.msk [vmem:[%s208 + $0x5c] sm:$0xf] %vm625, %v616
      %650 = vst.msk [vmem:[%s208 + $0x60] sm:$0xf] %vm625, %v617
      %651 = vst.msk [vmem:[%s208 + $0x64] sm:$0xf] %vm625, %v618
      %652 = vst.msk [vmem:[%s208 + $0x68] sm:$0xf] %vm625, %v619
      %653 = vst.msk [vmem:[%s208 + $0x6c] sm:$0xf] %vm625, %v620
      %654 = vst.msk [vmem:[%s208 + $0x70] sm:$0xf] %vm625, %v621
      %655 = vst.msk [vmem:[%s208 + $0x74] sm:$0xf] %vm625, %v622
      %656 = vst.msk [vmem:[%s208 + $0x78] sm:$0xf] %vm625, %v623
      %657 = vst.msk [vmem:[%s208 + $0x7c] sm:$0xf] %vm625, %v624
      %s658 = smul.u32 32, %s19
      %p659 = scmp.lt.s32.totalorder %s18, 1
      %s660 = scalar_select %p659, %s18, 1
      %p661 = scmp.lt.s32.totalorder %s658, 31
      %s662 = scalar_select %p661, %s658, 31
      %s663 = smul.addr %s660, 32
      %s664 = sadd.s32 %s662, %s663
      %s665 = smul.addr %s664, 4
      %s666 = scalar_lea.vmem %s3, %s665
      // Predicated region
      $region33: #{discriminator_forward.5} parent=31 // pred_check
        %p667 = pneg %p116
      $region34: #{discriminator_forward.5} parent=31 // pred_check_branch
        %669 = sbr.rel (%p667) target = $region36
      $region35: #{discriminator_forward.5} parent=31 // pred_region
        %s670 = smul.u32 32, %s19
      $region36: #{discriminator_forward.5} parent=31 // pred_fallthru
        _
    $region32: #{discriminator_forward.5} parent=5 // pred_fallthru
      _
    %p671 = scmp.le.s32.totalorder 2, %s9
    // Predicated region
    $region37: #{discriminator_forward.5} parent=5 // pred_check
      %p672 = pneg %p671
    $region38: #{discriminator_forward.5} parent=5 // pred_check_branch
      %674 = sbr.rel (%p672) target = $region40
    $region39: #{discriminator_forward.5} parent=5 // pred_region
      %s675 = ssub.s32 %s9, 2
      // Predicated region
      $region41: #{discriminator_forward.5} parent=39 // pred_check
        %p676 = pneg %p122
      $region42: #{discriminator_forward.5} parent=39 // pred_check_branch
        %678 = sbr.rel (%p676) target = $region44
      $region43: #{discriminator_forward.5} parent=39 // pred_region
        %s679 = smul.u32 32, %s21
        %p680 = scmp.lt.s32.totalorder %s20, 1
        %s681 = scalar_select %p680, %s20, 1
        %p682 = scmp.lt.s32.totalorder %s679, 31
        %s683 = scalar_select %p682, %s679, 31
        %s684 = smul.addr %s681, 32
        %s685 = sadd.s32 %s683, %s684
        %s686 = smul.addr %s685, 4
        %s687 = scalar_lea.vmem %s3, %s686
      $region44: #{discriminator_forward.5} parent=39 // pred_fallthru
        _
    $region40: #{discriminator_forward.5} parent=5 // pred_fallthru
      _
  $region6: #{discriminator_forward.5} parent=0 // loop_footer
    %s13 = sadd.s32 1, %s9
  $region7: #{discriminator_forward.5} parent=0 // loop_footer_branch
    %8 = sbr.rel target = $region3
  $region8: #{discriminator_forward.5} parent=0 // loop_exit
    _

// kernel: discriminator_forward.6
$region0: #{discriminator_forward.6}
  #allocation0 [shape = 'u32[]', space=smem, size = 0x4, offset = 0x4, fixed_abs, tag = 'smem constant byte address 0x4 - core index']
  #allocation1 [shape = 'u32[72,128]{1,0:T(1,128)}', space=vmem, size = 0x9000, scoped, tag = 'internal scratch']
  %s0 = inlined_call_operand.vmem [shape: bf16[2,4,90,8], index: 0, kind: input, shape index: {}]
  %s1 = inlined_call_operand.vmem [shape: bf16[16,8,16], index: 1, kind: input, shape index: {}]
  %s2 = inlined_call_operand.vmem [shape: bf16[2,72,16], index: 2, kind: output, shape index: {}]
  %s3 = sld [smem:[#allocation0]]
  $region41: #{discriminator_forward.6} parent=0
    _
  %s5 = ssub.s32 1, %s3
  %s6 = scalar_select 0, %s5, %s3
  loop: start=0, step=1, limit=4
  $region2: #{discriminator_forward.6} parent=0 // loop_pre_header
    _
  $region3: #{discriminator_forward.6} parent=0 // loop_header
    %s8 = sphi 0, %s12
    %p9 = scmp.ge.s32.totalorder %s8, 4
    %s18 = sphi 0, %s20
    %s21 = sphi 0, %s18
    %s22 = sphi 0, %s21
    %s38 = sphi 0, %s22
    %s42 = sphi 0, %s42
    %s44 = sphi 0, %s42
    %s45 = sphi 0, %s44
    %s59 = sphi 0, %s45
    %s65 = sphi 0, %s67
    %s68 = sphi 0, %s65
    %s69 = sphi 0, %s68
    %s85 = sphi 0, %s69
  $region4: #{discriminator_forward.6} parent=0 // loop_header_branch
    %11 = sbr.rel (%p9) target = $region8
  $region5: #{discriminator_forward.6} parent=0 // loop_body
    %s13 = ssub.s32 %s8, 1
    %s14 = ssub.s32 %s8, 2
    %s15 = sadd.s32 %s8, 1
    %s16 = ssub.s32 %s8, %s15
    %p17 = scmp.eq.s32.totalorder %s16, 0
    %s19 = sadd.s32 %s18, 1
    %s20 = scalar_select %p17, %s18, %s19
    %p23 = pneg %p17
    %p24 = scmp.eq.s32.totalorder %s8, 1
    %p25 = por %p23, %p24
    %p26 = scmp.ne.s32.totalorder %s18, %s21
    %p27 = scmp.eq.s32.totalorder %s8, 0
    %p28 = por %p26, %p27
    %p29 = scmp.ne.s32.totalorder %s18, %s21
    %p30 = scmp.eq.s32.totalorder %s13, 1
    %p31 = por %p29, %p30
    %p32 = scmp.ne.s32.totalorder %s21, %s22
    %p33 = scmp.eq.s32.totalorder %s13, 0
    %p34 = por %p32, %p33
    %p35 = scmp.ne.s32.totalorder %s21, %s22
    %p36 = scmp.eq.s32.totalorder %s14, 1
    %p37 = por %p35, %p36
    %p39 = scmp.ne.s32.totalorder %s22, %s38
    %p40 = scmp.eq.s32.totalorder %s14, 0
    %p41 = por %p39, %p40
    %s43 = sadd.s32 %s42, 1
    %p46 = scmp.eq.s32.totalorder %s8, 1
    %p47 = scmp.ne.s32.totalorder %s42, %s44
    %p48 = scmp.eq.s32.totalorder %s8, 0
    %p49 = por %p47, %p48
    %p50 = scmp.ne.s32.totalorder %s42, %s44
    %p51 = scmp.eq.s32.totalorder %s13, 1
    %p52 = por %p50, %p51
    %p53 = scmp.ne.s32.totalorder %s44, %s45
    %p54 = scmp.eq.s32.totalorder %s13, 0
    %p55 = por %p53, %p54
    %p56 = scmp.ne.s32.totalorder %s44, %s45
    %p57 = scmp.eq.s32.totalorder %s14, 1
    %p58 = por %p56, %p57
    %p60 = scmp.ne.s32.totalorder %s45, %s59
    %p61 = scmp.eq.s32.totalorder %s14, 0
    %p62 = por %p60, %p61
    %s63 = ssub.s32 %s8, %s15
    %p64 = scmp.eq.s32.totalorder %s63, 0
    %s66 = sadd.s32 %s65, 1
    %s67 = scalar_select %p64, %s65, %s66
    %p70 = pneg %p64
    %p71 = scmp.eq.s32.totalorder %s8, 1
    %p72 = por %p70, %p71
    %p73 = scmp.ne.s32.totalorder %s65, %s68
    %p74 = scmp.eq.s32.totalorder %s8, 0
    %p75 = por %p73, %p74
    %p76 = scmp.ne.s32.totalorder %s65, %s68
    %p77 = scmp.eq.s32.totalorder %s13, 1
    %p78 = por %p76, %p77
    %p79 = scmp.ne.s32.totalorder %s68, %s69
    %p80 = scmp.eq.s32.totalorder %s13, 0
    %p81 = por %p79, %p80
    %p82 = scmp.ne.s32.totalorder %s68, %s69
    %p83 = scmp.eq.s32.totalorder %s14, 1
    %p84 = por %p82, %p83
    %p86 = scmp.ne.s32.totalorder %s69, %s85
    %p87 = scmp.eq.s32.totalorder %s14, 0
    %p88 = por %p86, %p87
    %p89 = scmp.le.s32.totalorder 1, %s8
    %p90 = scmp.lt.s32.totalorder %s8, 3
    %p91 = pnand %p89, %p90
    %p92 = pneg %p91
    // Predicated region
    $region9: #{discriminator_forward.6} parent=5 // pred_check
      _
    $region10: #{discriminator_forward.6} parent=5 // pred_check_branch
      %94 = sbr.rel (%p91) target = $region12
    $region11: #{discriminator_forward.6} parent=5 // pred_region
      %s95 = ssub.s32 %s8, 1
      // Predicated region
      $region13: #{discriminator_forward.6} parent=11 // pred_check
        %p96 = pneg %p55
      $region14: #{discriminator_forward.6} parent=11 // pred_check_branch
        %98 = sbr.rel (%p96) target = $region16
      $region15: #{discriminator_forward.6} parent=11 // pred_region
        _
      $region16: #{discriminator_forward.6} parent=11 // pred_fallthru
        _
    $region12: #{discriminator_forward.6} parent=5 // pred_fallthru
      _
    %p99 = scmp.lt.s32.totalorder %s8, 2
    // Predicated region
    $region17: #{discriminator_forward.6} parent=5 // pred_check
      %p100 = pneg %p99
    $region18: #{discriminator_forward.6} parent=5 // pred_check_branch
      %102 = sbr.rel (%p100) target = $region20
    $region19: #{discriminator_forward.6} parent=5 // pred_region
      // Predicated region
      $region21: #{discriminator_forward.6} parent=19 // pred_check
        %p103 = pneg %p28
      $region22: #{discriminator_forward.6} parent=19 // pred_check_branch
        %105 = sbr.rel (%p103) target = $region24
      $region23: #{discriminator_forward.6} parent=19 // pred_region
        %p106 = scmp.lt.s32.totalorder %s8, 1
        %s107 = scalar_select %p106, %s8, 1
        %s108 = smul.addr %s107, 48
        %s109 = smul.addr %s108, 4
        %s110 = scalar_lea.vmem %s0, %s109
      $region24: #{discriminator_forward.6} parent=19 // pred_fallthru
        _
    $region20: #{discriminator_forward.6} parent=5 // pred_fallthru
      _
    %p111 = scmp.le.s32.totalorder 1, %s8
    %p112 = scmp.lt.s32.totalorder %s8, 3
    %p113 = pnand %p111, %p112
    %p114 = pneg %p113
    // Predicated region
    $region25: #{discriminator_forward.6} parent=5 // pred_check
      _
    $region26: #{discriminator_forward.6} parent=5 // pred_check_branch
      %116 = sbr.rel (%p113) target = $region28
    $region27: #{discriminator_forward.6} parent=5 // pred_region
      %s117 = ssub.s32 %s8, 1
      %p118 = scmp.lt.s32.totalorder %s13, 1
      %s119 = scalar_select %p118, %s13, 1
      %s120 = smul.addr %s119, 48
      %s121 = smul.addr %s120, 4
      %s122 = scalar_lea.vmem %s0, %s121
      %p123 = pneg %p34
      %p124 = pneg %p31
      %p125 = pneg %p55
      %p126 = pneg %p52
      %p127 = pneg %p81
      %p128 = pneg %p78
      %p129 = scmp.lt.s32.totalorder %s13, 1
      %s130 = scalar_select %p129, %s13, 1
      %s131 = smul.addr %s130, 9
      %s132 = smul.addr %s131, 4
      %s133 = scalar_lea.vmem %s2, %s132
      %p134 = scmp.lt.s32.totalorder %s13, 1
      %s135 = scalar_select %p134, %s13, 1
      %s136 = smul.addr %s135, 48
      %s137 = smul.addr %s136, 4
      %s138 = scalar_lea.vmem %s0, %s137
      %p139 = scmp.lt.s32.totalorder %s13, 1
      %s140 = scalar_select %p139, %s13, 1
      %s141 = smul.addr %s140, 9
      %s142 = smul.addr %s141, 4
      %s143 = scalar_lea.vmem %s2, %s142
      %v145 = vld [vmem:[%s138] sm:$0xf]
      %v146 = vld [vmem:[%s138 + $0x4] sm:$0xf]
      %v147 = vld [vmem:[%s138 + $0x8] sm:$0xf]
      %v148 = vld [vmem:[%s138 + $0xc] sm:$0xf]
      %v149 = vld [vmem:[%s138 + $0x10] sm:$0xf]
      %v150 = vld [vmem:[%s138 + $0x14] sm:$0xf]
      %v151 = vld [vmem:[%s138 + $0x18] sm:$0xf]
      %v152 = vld [vmem:[%s138 + $0x1c] sm:$0xf]
      %v153 = vld [vmem:[%s138 + $0x20] sm:$0xf]
      %v154 = vld [vmem:[%s1] sm:$0xf]
      %s155 = scalar_lea.vmem %s138, 48
      %v156 = vld [vmem:[%s155] sm:$0xf]
      %v157 = vld [vmem:[%s155 + $0x4] sm:$0xf]
      %v158 = vld [vmem:[%s155 + $0x8] sm:$0xf]
      %v159 = vld [vmem:[%s155 + $0xc] sm:$0xf]
      %v160 = vld [vmem:[%s155 + $0x10] sm:$0xf]
      %v161 = vld [vmem:[%s155 + $0x14] sm:$0xf]
      %v162 = vld [vmem:[%s155 + $0x18] sm:$0xf]
      %v163 = vld [vmem:[%s155 + $0x1c] sm:$0xf]
      %v164 = vld [vmem:[%s155 + $0x20] sm:$0xf]
      %s165 = scalar_lea.vmem %s1, 4
      %v166 = vld [vmem:[%s165] sm:$0xf]
      %v176 = vunpack.c.l.b16 %v156
      %v177 = vunpack.c.l.b16 %v157
      %v178 = vunpack.c.l.b16 %v158
      %v179 = vunpack.c.l.b16 %v159
      %v180 = vunpack.c.l.b16 %v160
      %v181 = vunpack.c.l.b16 %v161
      %v182 = vunpack.c.l.b16 %v162
      %v183 = vunpack.c.l.b16 %v163
      %v184 = vunpack.c.l.b16 %v164
      %v185 = vpack.c.b16 %v177, %v176
      %v186 = vpack.c.b16 %v179, %v178
      %v187 = vpack.c.b16 %v181, %v180
      %v188 = vpack.c.b16 %v183, %v182
      %v189 = vpack.c.b16 %v184, %v184
      %vm190 = vcmask 64512
      %v192 = vsel %vm190, %v185, 0
      %v195 = vsel %vm190, %v186, 0
      %v198 = vsel %vm190, %v187, 0
      %v201 = vsel %vm190, %v188, 0
      %v204 = vsel %vm190, %v189, 0
      %vm206 = vcmask 1043456
      %v208 = vsel %vm206, %v166, 0
      %210 = vmatpush.bf16.msra.mxu0 0
      %211 = vmatpush.bf16.msra.mxu0 0
      %212 = vmatpush.bf16.msra.mxu0 0
      %213 = vmatpush.bf16.msra.mxu0 0
      %214 = vmatpush.bf16.msra.mxu0 0
      %215 = vmatpush.bf16.msra.mxu0 0
      %216 = vmatpush.bf16.msra.mxu0 0
      %217 = vmatpush.bf16.msra.mxu0 %v208
      %218 = vmatmul.bf16.gmra.mxu0 %v192
      %v219 = vpop.f32.mrf.mxu0
      %v220 = vadd.f32 0.0, %v219
      %v221 = vpop.f32.mrf.mxu0
      %v222 = vadd.f32 0.0, %v221
      %223 = vmatmul.bf16.gmra.mxu0 %v195
      %v224 = vpop.f32.mrf.mxu0
      %v225 = vadd.f32 0.0, %v224
      %v226 = vpop.f32.mrf.mxu0
      %v227 = vadd.f32 0.0, %v226
      %228 = vmatmul.bf16.gmra.mxu0 %v198
      %v229 = vpop.f32.mrf.mxu0
      %v230 = vadd.f32 0.0, %v229
      %v231 = vpop.f32.mrf.mxu0
      %v232 = vadd.f32 0.0, %v231
      %233 = vmatmul.bf16.gmra.mxu0 %v201
      %v234 = vpop.f32.mrf.mxu0
      %v235 = vadd.f32 0.0, %v234
      %v236 = vpop.f32.mrf.mxu0
      %v237 = vadd.f32 0.0, %v236
      %238 = vmatmul.bf16.gmra.mxu0 %v204
      %v239 = vpop.f32.mrf.mxu0
      %v240 = vadd.f32 0.0, %v239
      %v241 = vpop.f32.mrf.mxu0
      %242 = vdwg.mxu0
      %v252 = vunpack.c.l.b16 %v145
      %v253 = vunpack.c.l.b16 %v146
      %v254 = vunpack.c.l.b16 %v147
      %v255 = vunpack.c.l.b16 %v148
      %v256 = vunpack.c.l.b16 %v149
      %v257 = vunpack.c.l.b16 %v150
      %v258 = vunpack.c.l.b16 %v151
      %v259 = vunpack.c.l.b16 %v152
      %v260 = vunpack.c.l.b16 %v153
      %v261 = vpack.c.b16 %v253, %v252
      %v262 = vpack.c.b16 %v255, %v254
      %v263 = vpack.c.b16 %v257, %v256
      %v264 = vpack.c.b16 %v259, %v258
      %v265 = vpack.c.b16 %v260, %v260
      %v267 = vsel %vm190, %v261, 0
      %v270 = vsel %vm190, %v262, 0
      %v273 = vsel %vm190, %v263, 0
      %v276 = vsel %vm190, %v264, 0
      %v279 = vsel %vm190, %v265, 0
      %v282 = vsel %vm206, %v154, 0
      %284 = vmatpush.bf16.msra.mxu0 0
      %285 = vmatpush.bf16.msra.mxu0 0
      %286 = vmatpush.bf16.msra.mxu0 0
      %287 = vmatpush.bf16.msra.mxu0 0
      %288 = vmatpush.bf16.msra.mxu0 0
      %289 = vmatpush.bf16.msra.mxu0 0
      %290 = vmatpush.bf16.msra.mxu0 0
      %291 = vmatpush.bf16.msra.mxu0 %v282
      %292 = vmatmul.bf16.gmra.mxu0 %v267
      %v293 = vpop.f32.mrf.mxu0
      %v294 = vadd.f32 %v220, %v293
      %v295 = vpop.f32.mrf.mxu0
      %v296 = vadd.f32 %v222, %v295
      %297 = vmatmul.bf16.gmra.mxu0 %v270
      %v298 = vpop.f32.mrf.mxu0
      %v299 = vadd.f32 %v225, %v298
      %v300 = vpop.f32.mrf.mxu0
      %v301 = vadd.f32 %v227, %v300
      %302 = vmatmul.bf16.gmra.mxu0 %v273
      %v303 = vpop.f32.mrf.mxu0
      %v304 = vadd.f32 %v230, %v303
      %v305 = vpop.f32.mrf.mxu0
      %v306 = vadd.f32 %v232, %v305
      %307 = vmatmul.bf16.gmra.mxu0 %v276
      %v308 = vpop.f32.mrf.mxu0
      %v309 = vadd.f32 %v235, %v308
      %v310 = vpop.f32.mrf.mxu0
      %v311 = vadd.f32 %v237, %v310
      %312 = vmatmul.bf16.gmra.mxu0 %v279
      %v313 = vpop.f32.mrf.mxu0
      %v314 = vadd.f32 %v240, %v313
      %v315 = vpop.f32.mrf.mxu0
      %316 = vdwg.mxu0
      %v317 = vld [vmem:[%s138] sm:$0xf]
      %v318 = vld [vmem:[%s138 + $0x4] sm:$0xf]
      %v319 = vld [vmem:[%s138 + $0x8] sm:$0xf]
      %v320 = vld [vmem:[%s138 + $0xc] sm:$0xf]
      %v321 = vld [vmem:[%s138 + $0x10] sm:$0xf]
      %v322 = vld [vmem:[%s138 + $0x14] sm:$0xf]
      %v323 = vld [vmem:[%s138 + $0x18] sm:$0xf]
      %v324 = vld [vmem:[%s138 + $0x1c] sm:$0xf]
      %v325 = vld [vmem:[%s138 + $0x20] sm:$0xf]
      %v326 = vld [vmem:[%s138 + $0x24] sm:$0x1]
      %s327 = scalar_lea.vmem %s1, 8
      %v328 = vld [vmem:[%s327] sm:$0xf]
      %v339 = vunpack.c.l.b16 %v317
      %v340 = vunpack.c.l.b16 %v318
      %v341 = vunpack.c.l.b16 %v319
      %v342 = vunpack.c.l.b16 %v320
      %v343 = vunpack.c.l.b16 %v321
      %v344 = vunpack.c.l.b16 %v322
      %v345 = vunpack.c.l.b16 %v323
      %v346 = vunpack.c.l.b16 %v324
      %v347 = vunpack.c.l.b16 %v325
      %v348 = vunpack.c.l.b16 %v326
      %v349 = vpack.c.b16 %v340, %v339
      %v350 = vpack.c.b16 %v342, %v341
      %v351 = vpack.c.b16 %v344, %v343
      %v352 = vpack.c.b16 %v346, %v345
      %v353 = vpack.c.b16 %v348, %v347
      %vm354 = vsmask.f32 7424
      %v356 = vshrl.u32 %v349, 16
      %v358 = vshll.u32 %v349, 16
      %v360 = vrot.slane %v358, 1
      %v361 = vor.u32 %v356, %v360
      %v363 = vshll.u32 %v350, 16
      %v365 = vrot.slane %v363, 1
      %v366 = vsel %vm354, %v361, %v365
      %v367 = vshrl.u32 %v350, 16
      %v369 = vor.u32 %v367, %v365
      %v371 = vshll.u32 %v351, 16
      %v373 = vrot.slane %v371, 1
      %v374 = vsel %vm354, %v369, %v373
      %v375 = vshrl.u32 %v351, 16
      %v377 = vor.u32 %v375, %v373
      %v379 = vshll.u32 %v352, 16
      %v381 = vrot.slane %v379, 1
      %v382 = vsel %vm354, %v377, %v381
      %v383 = vshrl.u32 %v352, 16
      %v385 = vor.u32 %v383, %v381
      %v387 = vshll.u32 %v353, 16
      %v389 = vrot.slane %v387, 1
      %v390 = vsel %vm354, %v385, %v389
      %v391 = vshrl.u32 %v353, 16
      %v393 = vor.u32 %v391, %v389
      %v395 = vsel %vm190, %v366, 0
      %v398 = vsel %vm190, %v374, 0
      %v401 = vsel %vm190, %v382, 0
      %v404 = vsel %vm190, %v390, 0
      %v407 = vsel %vm190, %v393, 0
      %v410 = vsel %vm206, %v328, 0
      %412 = vmatpush.bf16.msra.mxu0 0
      %413 = vmatpush.bf16.msra.mxu0 0
      %414 = vmatpush.bf16.msra.mxu0 0
      %415 = vmatpush.bf16.msra.mxu0 0
      %416 = vmatpush.bf16.msra.mxu0 0
      %417 = vmatpush.bf16.msra.mxu0 0
      %418 = vmatpush.bf16.msra.mxu0 0
      %419 = vmatpush.bf16.msra.mxu0 %v410
      %420 = vmatmul.bf16.gmra.mxu0 %v395
      %v421 = vpop.f32.mrf.mxu0
      %v422 = vadd.f32 0.0, %v421
      %v423 = vpop.f32.mrf.mxu0
      %v424 = vadd.f32 0.0, %v423
      %425 = vmatmul.bf16.gmra.mxu0 %v398
      %v426 = vpop.f32.mrf.mxu0
      %v427 = vadd.f32 0.0, %v426
      %v428 = vpop.f32.mrf.mxu0
      %v429 = vadd.f32 0.0, %v428
      %430 = vmatmul.bf16.gmra.mxu0 %v401
      %v431 = vpop.f32.mrf.mxu0
      %v432 = vadd.f32 0.0, %v431
      %v433 = vpop.f32.mrf.mxu0
      %v434 = vadd.f32 0.0, %v433
      %435 = vmatmul.bf16.gmra.mxu0 %v404
      %v436 = vpop.f32.mrf.mxu0
      %v437 = vadd.f32 0.0, %v436
      %v438 = vpop.f32.mrf.mxu0
      %v439 = vadd.f32 0.0, %v438
      %440 = vmatmul.bf16.gmra.mxu0 %v407
      %v441 = vpop.f32.mrf.mxu0
      %v442 = vadd.f32 0.0, %v441
      %v443 = vpop.f32.mrf.mxu0
      %444 = vdwg.mxu0
      %v445 = vadd.f32 %v294, %v422
      %v446 = vadd.f32 %v296, %v424
      %v447 = vadd.f32 %v299, %v427
      %v448 = vadd.f32 %v301, %v429
      %v449 = vadd.f32 %v304, %v432
      %v450 = vadd.f32 %v306, %v434
      %v451 = vadd.f32 %v309, %v437
      %v452 = vadd.f32 %v311, %v439
      %v453 = vadd.f32 %v314, %v442
      %v454 = vld [vmem:[%s155] sm:$0xf]
      %v455 = vld [vmem:[%s155 + $0x4] sm:$0xf]
      %v456 = vld [vmem:[%s155 + $0x8] sm:$0xf]
      %v457 = vld [vmem:[%s155 + $0xc] sm:$0xf]
      %v458 = vld [vmem:[%s155 + $0x10] sm:$0xf]
      %v459 = vld [vmem:[%s155 + $0x14] sm:$0xf]
      %v460 = vld [vmem:[%s155 + $0x18] sm:$0xf]
      %v461 = vld [vmem:[%s155 + $0x1c] sm:$0xf]
      %v462 = vld [vmem:[%s155 + $0x20] sm:$0xf]
      %v463 = vld [vmem:[%s155 + $0x24] sm:$0x1]
      %s464 = scalar_lea.vmem %s1, 12
      %v465 = vld [vmem:[%s464] sm:$0xf]
      %v476 = vunpack.c.l.b16 %v454
      %v477 = vunpack.c.l.b16 %v455
      %v478 = vunpack.c.l.b16 %v456
      %v479 = vunpack.c.l.b16 %v457
      %v480 = vunpack.c.l.b16 %v458
      %v481 = vunpack.c.l.b16 %v459
      %v482 = vunpack.c.l.b16 %v460
      %v483 = vunpack.c.l.b16 %v461
      %v484 = vunpack.c.l.b16 %v462
      %v485 = vunpack.c.l.b16 %v463
      %v486 = vpack.c.b16 %v477, %v476
      %v487 = vpack.c.b16 %v479, %v478
      %v488 = vpack.c.b16 %v481, %v480
      %v489 = vpack.c.b16 %v483, %v482
      %v490 = vpack.c.b16 %v485, %v484
      %v492 = vshrl.u32 %v486, 16
      %v494 = vshll.u32 %v486, 16
      %v496 = vrot.slane %v494, 1
      %v497 = vor.u32 %v492, %v496
      %v499 = vshll.u32 %v487, 16
      %v501 = vrot.slane %v499, 1
      %v502 = vsel %vm354, %v497, %v501
      %v503 = vshrl.u32 %v487, 16
      %v505 = vor.u32 %v503, %v501
      %v507 = vshll.u32 %v488, 16
      %v509 = vrot.slane %v507, 1
      %v510 = vsel %vm354, %v505, %v509
      %v511 = vshrl.u32 %v488, 16
      %v513 = vor.u32 %v511, %v509
      %v515 = vshll.u32 %v489, 16
      %v517 = vrot.slane %v515, 1
      %v518 = vsel %vm354, %v513, %v517
      %v519 = vshrl.u32 %v489, 16
      %v521 = vor.u32 %v519, %v517
      %v523 = vshll.u32 %v490, 16
      %v525 = vrot.slane %v523, 1
      %v526 = vsel %vm354, %v521, %v525
      %v527 = vshrl.u32 %v490, 16
      %v529 = vor.u32 %v527, %v525
      %v531 = vsel %vm190, %v502, 0
      %v534 = vsel %vm190, %v510, 0
      %v537 = vsel %vm190, %v518, 0
      %v540 = vsel %vm190, %v526, 0
      %v543 = vsel %vm190, %v529, 0
      %v546 = vsel %vm206, %v465, 0
      %548 = vmatpush.bf16.msra.mxu0 0
      %549 = vmatpush.bf16.msra.mxu0 0
      %550 = vmatpush.bf16.msra.mxu0 0
      %551 = vmatpush.bf16.msra.mxu0 0
      %552 = vmatpush.bf16.msra.mxu0 0
      %553 = vmatpush.bf16.msra.mxu0 0
      %554 = vmatpush.bf16.msra.mxu0 0
      %555 = vmatpush.bf16.msra.mxu0 %v546
      %556 = vmatmul.bf16.gmra.mxu0 %v531
      %v557 = vpop.f32.mrf.mxu0
      %v558 = vadd.f32 0.0, %v557
      %v559 = vpop.f32.mrf.mxu0
      %v560 = vadd.f32 0.0, %v559
      %561 = vmatmul.bf16.gmra.mxu0 %v534
      %v562 = vpop.f32.mrf.mxu0
      %v563 = vadd.f32 0.0, %v562
      %v564 = vpop.f32.mrf.mxu0
      %v565 = vadd.f32 0.0, %v564
      %566 = vmatmul.bf16.gmra.mxu0 %v537
      %v567 = vpop.f32.mrf.mxu0
      %v568 = vadd.f32 0.0, %v567
      %v569 = vpop.f32.mrf.mxu0
      %v570 = vadd.f32 0.0, %v569
      %571 = vmatmul.bf16.gmra.mxu0 %v540
      %v572 = vpop.f32.mrf.mxu0
      %v573 = vadd.f32 0.0, %v572
      %v574 = vpop.f32.mrf.mxu0
      %v575 = vadd.f32 0.0, %v574
      %576 = vmatmul.bf16.gmra.mxu0 %v543
      %v577 = vpop.f32.mrf.mxu0
      %v578 = vadd.f32 0.0, %v577
      %v579 = vpop.f32.mrf.mxu0
      %580 = vdwg.mxu0
      %v581 = vadd.f32 %v445, %v558
      %v582 = vadd.f32 %v446, %v560
      %v583 = vadd.f32 %v447, %v563
      %v584 = vadd.f32 %v448, %v565
      %v585 = vadd.f32 %v449, %v568
      %v586 = vadd.f32 %v450, %v570
      %v587 = vadd.f32 %v451, %v573
      %v588 = vadd.f32 %v452, %v575
      %v589 = vadd.f32 %v453, %v578
      %s590 = scalar_lea.vmem %s138, 96
      %v591 = vld [vmem:[%s590] sm:$0xf]
      %v592 = vld [vmem:[%s590 + $0x4] sm:$0xf]
      %v593 = vld [vmem:[%s590 + $0x8] sm:$0xf]
      %v594 = vld [vmem:[%s590 + $0xc] sm:$0xf]
      %v595 = vld [vmem:[%s590 + $0x10] sm:$0xf]
      %v596 = vld [vmem:[%s590 + $0x14] sm:$0xf]
      %v597 = vld [vmem:[%s590 + $0x18] sm:$0xf]
      %v598 = vld [vmem:[%s590 + $0x1c] sm:$0xf]
      %v599 = vld [vmem:[%s590 + $0x20] sm:$0xf]
      %s600 = scalar_lea.vmem %s1, 16
      %v601 = vld [vmem:[%s600] sm:$0xf]
      %v611 = vunpack.c.l.b16 %v591
      %v612 = vunpack.c.l.b16 %v592
      %v613 = vunpack.c.l.b16 %v593
      %v614 = vunpack.c.l.b16 %v594
      %v615 = vunpack.c.l.b16 %v595
      %v616 = vunpack.c.l.b16 %v596
      %v617 = vunpack.c.l.b16 %v597
      %v618 = vunpack.c.l.b16 %v598
      %v619 = vunpack.c.l.b16 %v599
      %v620 = vpack.c.b16 %v612, %v611
      %v621 = vpack.c.b16 %v614, %v613
      %v622 = vpack.c.b16 %v616, %v615
      %v623 = vpack.c.b16 %v618, %v617
      %v624 = vpack.c.b16 %v619, %v619
      %v626 = vsel %vm190, %v620, 0
      %v629 = vsel %vm190, %v621, 0
      %v632 = vsel %vm190, %v622, 0
      %v635 = vsel %vm190, %v623, 0
      %v638 = vsel %vm190, %v624, 0
      %v641 = vsel %vm206, %v601, 0
      %643 = vmatpush.bf16.msra.mxu0 0
      %644 = vmatpush.bf16.msra.mxu0 0
      %645 = vmatpush.bf16.msra.mxu0 0
      %646 = vmatpush.bf16.msra.mxu0 0
      %647 = vmatpush.bf16.msra.mxu0 0
      %648 = vmatpush.bf16.msra.mxu0 0
      %649 = vmatpush.bf16.msra.mxu0 0
      %650 = vmatpush.bf16.msra.mxu0 %v641
      %651 = vmatmul.bf16.gmra.mxu0 %v626
      %v652 = vpop.f32.mrf.mxu0
      %v653 = vadd.f32 0.0, %v652
      %v654 = vpop.f32.mrf.mxu0
      %v655 = vadd.f32 0.0, %v654
      %656 = vmatmul.bf16.gmra.mxu0 %v629
      %v657 = vpop.f32.mrf.mxu0
      %v658 = vadd.f32 0.0, %v657
      %v659 = vpop.f32.mrf.mxu0
      %v660 = vadd.f32 0.0, %v659
      %661 = vmatmul.bf16.gmra.mxu0 %v632
      %v662 = vpop.f32.mrf.mxu0
      %v663 = vadd.f32 0.0, %v662
      %v664 = vpop.f32.mrf.mxu0
      %v665 = vadd.f32 0.0, %v664
      %666 = vmatmul.bf16.gmra.mxu0 %v635
      %v667 = vpop.f32.mrf.mxu0
      %v668 = vadd.f32 0.0, %v667
      %v669 = vpop.f32.mrf.mxu0
      %v670 = vadd.f32 0.0, %v669
      %671 = vmatmul.bf16.gmra.mxu0 %v638
      %v672 = vpop.f32.mrf.mxu0
      %v673 = vadd.f32 0.0, %v672
      %v674 = vpop.f32.mrf.mxu0
      %675 = vdwg.mxu0
      %v676 = vadd.f32 %v581, %v653
      %v677 = vadd.f32 %v582, %v655
      %v678 = vadd.f32 %v583, %v658
      %v679 = vadd.f32 %v584, %v660
      %v680 = vadd.f32 %v585, %v663
      %v681 = vadd.f32 %v586, %v665
      %v682 = vadd.f32 %v587, %v668
      %v683 = vadd.f32 %v588, %v670
      %v684 = vadd.f32 %v589, %v673
      %s685 = scalar_lea.vmem %s138, 144
      %v686 = vld [vmem:[%s685] sm:$0xf]
      %v687 = vld [vmem:[%s685 + $0x4] sm:$0xf]
      %v688 = vld [vmem:[%s685 + $0x8] sm:$0xf]
      %v689 = vld [vmem:[%s685 + $0xc] sm:$0xf]
      %v690 = vld [vmem:[%s685 + $0x10] sm:$0xf]
      %v691 = vld [vmem:[%s685 + $0x14] sm:$0xf]
      %v692 = vld [vmem:[%s685 + $0x18] sm:$0xf]
      %v693 = vld [vmem:[%s685 + $0x1c] sm:$0xf]
      %v694 = vld [vmem:[%s685 + $0x20] sm:$0xf]
      %s695 = scalar_lea.vmem %s1, 20
      %v696 = vld [vmem:[%s695] sm:$0xf]
      %v706 = vunpack.c.l.b16 %v686
      %v707 = vunpack.c.l.b16 %v687
      %v708 = vunpack.c.l.b16 %v688
      %v709 = vunpack.c.l.b16 %v689
      %v710 = vunpack.c.l.b16 %v690
      %v711 = vunpack.c.l.b16 %v691
      %v712 = vunpack.c.l.b16 %v692
      %v713 = vunpack.c.l.b16 %v693
      %v714 = vunpack.c.l.b16 %v694
      %v715 = vpack.c.b16 %v707, %v706
      %v716 = vpack.c.b16 %v709, %v708
      %v717 = vpack.c.b16 %v711, %v710
      %v718 = vpack.c.b16 %v713, %v712
      %v719 = vpack.c.b16 %v714, %v714
      %v721 = vsel %vm190, %v715, 0
      %v724 = vsel %vm190, %v716, 0
      %v727 = vsel %vm190, %v717, 0
      %v730 = vsel %vm190, %v718, 0
      %v733 = vsel %vm190, %v719, 0
      %v736 = vsel %vm206, %v696, 0
      %738 = vmatpush.bf16.msra.mxu0 0
      %739 = vmatpush.bf16.msra.mxu0 0
      %740 = vmatpush.bf16.msra.mxu0 0
      %741 = vmatpush.bf16.msra.mxu0 0
      %742 = vmatpush.bf16.msra.mxu0 0
      %743 = vmatpush.bf16.msra.mxu0 0
      %744 = vmatpush.bf16.msra.mxu0 0
      %745 = vmatpush.bf16.msra.mxu0 %v736
      %746 = vmatmul.bf16.gmra.mxu0 %v721
      %v747 = vpop.f32.mrf.mxu0
      %v748 = vadd.f32 0.0, %v747
      %v749 = vpop.f32.mrf.mxu0
      %v750 = vadd.f32 0.0, %v749
      %751 = vmatmul.bf16.gmra.mxu0 %v724
      %v752 = vpop.f32.mrf.mxu0
      %v753 = vadd.f32 0.0, %v752
      %v754 = vpop.f32.mrf.mxu0
      %v755 = vadd.f32 0.0, %v754
      %756 = vmatmul.bf16.gmra.mxu0 %v727
      %v757 = vpop.f32.mrf.mxu0
      %v758 = vadd.f32 0.0, %v757
      %v759 = vpop.f32.mrf.mxu0
      %v760 = vadd.f32 0.0, %v759
      %761 = vmatmul.bf16.gmra.mxu0 %v730
      %v762 = vpop.f32.mrf.mxu0
      %v763 = vadd.f32 0.0, %v762
      %v764 = vpop.f32.mrf.mxu0
      %v765 = vadd.f32 0.0, %v764
      %766 = vmatmul.bf16.gmra.mxu0 %v733
      %v767 = vpop.f32.mrf.mxu0
      %v768 = vadd.f32 0.0, %v767
      %v769 = vpop.f32.mrf.mxu0
      %770 = vdwg.mxu0
      %v771 = vadd.f32 %v676, %v748
      %v772 = vadd.f32 %v677, %v750
      %v773 = vadd.f32 %v678, %v753
      %v774 = vadd.f32 %v679, %v755
      %v775 = vadd.f32 %v680, %v758
      %v776 = vadd.f32 %v681, %v760
      %v777 = vadd.f32 %v682, %v763
      %v778 = vadd.f32 %v683, %v765
      %v779 = vadd.f32 %v684, %v768
      %v780 = vld [vmem:[%s590] sm:$0xf]
      %v781 = vld [vmem:[%s590 + $0x4] sm:$0xf]
      %v782 = vld [vmem:[%s590 + $0x8] sm:$0xf]
      %v783 = vld [vmem:[%s590 + $0xc] sm:$0xf]
      %v784 = vld [vmem:[%s590 + $0x10] sm:$0xf]
      %v785 = vld [vmem:[%s590 + $0x14] sm:$0xf]
      %v786 = vld [vmem:[%s590 + $0x18] sm:$0xf]
      %v787 = vld [vmem:[%s590 + $0x1c] sm:$0xf]
      %v788 = vld [vmem:[%s590 + $0x20] sm:$0xf]
      %v789 = vld [vmem:[%s590 + $0x24] sm:$0x1]
      %s790 = scalar_lea.vmem %s1, 24
      %v791 = vld [vmem:[%s790] sm:$0xf]
      %v802 = vunpack.c.l.b16 %v780
      %v803 = vunpack.c.l.b16 %v781
      %v804 = vunpack.c.l.b16 %v782
      %v805 = vunpack.c.l.b16 %v783
      %v806 = vunpack.c.l.b16 %v784
      %v807 = vunpack.c.l.b16 %v785
      %v808 = vunpack.c.l.b16 %v786
      %v809 = vunpack.c.l.b16 %v787
      %v810 = vunpack.c.l.b16 %v788
      %v811 = vunpack.c.l.b16 %v789
      %v812 = vpack.c.b16 %v803, %v802
      %v813 = vpack.c.b16 %v805, %v804
      %v814 = vpack.c.b16 %v807, %v806
      %v815 = vpack.c.b16 %v809, %v808
      %v816 = vpack.c.b16 %v811, %v810
      %v818 = vshrl.u32 %v812, 16
      %v820 = vshll.u32 %v812, 16
      %v822 = vrot.slane %v820, 1
      %v823 = vor.u32 %v818, %v822
      %v825 = vshll.u32 %v813, 16
      %v827 = vrot.slane %v825, 1
      %v828 = vsel %vm354, %v823, %v827
      %v829 = vshrl.u32 %v813, 16
      %v831 = vor.u32 %v829, %v827
      %v833 = vshll.u32 %v814, 16
      %v835 = vrot.slane %v833, 1
      %v836 = vsel %vm354, %v831, %v835
      %v837 = vshrl.u32 %v814, 16
      %v839 = vor.u32 %v837, %v835
      %v841 = vshll.u32 %v815, 16
      %v843 = vrot.slane %v841, 1
      %v844 = vsel %vm354, %v839, %v843
      %v845 = vshrl.u32 %v815, 16
      %v847 = vor.u32 %v845, %v843
      %v849 = vshll.u32 %v816, 16
      %v851 = vrot.slane %v849, 1
      %v852 = vsel %vm354, %v847, %v851
      %v853 = vshrl.u32 %v816, 16
      %v855 = vor.u32 %v853, %v851
      %v857 = vsel %vm190, %v828, 0
      %v860 = vsel %vm190, %v836, 0
      %v863 = vsel %vm190, %v844, 0
      %v866 = vsel %vm190, %v852, 0
      %v869 = vsel %vm190, %v855, 0
      %v872 = vsel %vm206, %v791, 0
      %874 = vmatpush.bf16.msra.mxu0 0
      %875 = vmatpush.bf16.msra.mxu0 0
      %876 = vmatpush.bf16.msra.mxu0 0
      %877 = vmatpush.bf16.msra.mxu0 0
      %878 = vmatpush.bf16.msra.mxu0 0
      %879 = vmatpush.bf16.msra.mxu0 0
      %880 = vmatpush.bf16.msra.mxu0 0
      %881 = vmatpush.bf16.msra.mxu0 %v872
      %882 = vmatmul.bf16.gmra.mxu0 %v857
      %v883 = vpop.f32.mrf.mxu0
      %v884 = vadd.f32 0.0, %v883
      %v885 = vpop.f32.mrf.mxu0
      %v886 = vadd.f32 0.0, %v885
      %887 = vmatmul.bf16.gmra.mxu0 %v860
      %v888 = vpop.f32.mrf.mxu0
      %v889 = vadd.f32 0.0, %v888
      %v890 = vpop.f32.mrf.mxu0
      %v891 = vadd.f32 0.0, %v890
      %892 = vmatmul.bf16.gmra.mxu0 %v863
      %v893 = vpop.f32.mrf.mxu0
      %v894 = vadd.f32 0.0, %v893
      %v895 = vpop.f32.mrf.mxu0
      %v896 = vadd.f32 0.0, %v895
      %897 = vmatmul.bf16.gmra.mxu0 %v866
      %v898 = vpop.f32.mrf.mxu0
      %v899 = vadd.f32 0.0, %v898
      %v900 = vpop.f32.mrf.mxu0
      %v901 = vadd.f32 0.0, %v900
      %902 = vmatmul.bf16.gmra.mxu0 %v869
      %v903 = vpop.f32.mrf.mxu0
      %v904 = vadd.f32 0.0, %v903
      %v905 = vpop.f32.mrf.mxu0
      %906 = vdwg.mxu0
      %v907 = vadd.f32 %v771, %v884
      %v908 = vadd.f32 %v772, %v886
      %v909 = vadd.f32 %v773, %v889
      %v910 = vadd.f32 %v774, %v891
      %v911 = vadd.f32 %v775, %v894
      %v912 = vadd.f32 %v776, %v896
      %v913 = vadd.f32 %v777, %v899
      %v914 = vadd.f32 %v778, %v901
      %v915 = vadd.f32 %v779, %v904
      %v916 = vld [vmem:[%s685] sm:$0xf]
      %v917 = vld [vmem:[%s685 + $0x4] sm:$0xf]
      %v918 = vld [vmem:[%s685 + $0x8] sm:$0xf]
      %v919 = vld [vmem:[%s685 + $0xc] sm:$0xf]
      %v920 = vld [vmem:[%s685 + $0x10] sm:$0xf]
      %v921 = vld [vmem:[%s685 + $0x14] sm:$0xf]
      %v922 = vld [vmem:[%s685 + $0x18] sm:$0xf]
      %v923 = vld [vmem:[%s685 + $0x1c] sm:$0xf]
      %v924 = vld [vmem:[%s685 + $0x20] sm:$0xf]
      %v925 = vld [vmem:[%s685 + $0x24] sm:$0x1]
      %s926 = scalar_lea.vmem %s1, 28
      %v927 = vld [vmem:[%s926] sm:$0xf]
      %v938 = vunpack.c.l.b16 %v916
      %v939 = vunpack.c.l.b16 %v917
      %v940 = vunpack.c.l.b16 %v918
      %v941 = vunpack.c.l.b16 %v919
      %v942 = vunpack.c.l.b16 %v920
      %v943 = vunpack.c.l.b16 %v921
      %v944 = vunpack.c.l.b16 %v922
      %v945 = vunpack.c.l.b16 %v923
      %v946 = vunpack.c.l.b16 %v924
      %v947 = vunpack.c.l.b16 %v925
      %v948 = vpack.c.b16 %v939, %v938
      %v949 = vpack.c.b16 %v941, %v940
      %v950 = vpack.c.b16 %v943, %v942
      %v951 = vpack.c.b16 %v945, %v944
      %v952 = vpack.c.b16 %v947, %v946
      %v954 = vshrl.u32 %v948, 16
      %v956 = vshll.u32 %v948, 16
      %v958 = vrot.slane %v956, 1
      %v959 = vor.u32 %v954, %v958
      %v961 = vshll.u32 %v949, 16
      %v963 = vrot.slane %v961, 1
      %v964 = vsel %vm354, %v959, %v963
      %v965 = vshrl.u32 %v949, 16
      %v967 = vor.u32 %v965, %v963
      %v969 = vshll.u32 %v950, 16
      %v971 = vrot.slane %v969, 1
      %v972 = vsel %vm354, %v967, %v971
      %v973 = vshrl.u32 %v950, 16
      %v975 = vor.u32 %v973, %v971
      %v977 = vshll.u32 %v951, 16
      %v979 = vrot.slane %v977, 1
      %v980 = vsel %vm354, %v975, %v979
      %v981 = vshrl.u32 %v951, 16
      %v983 = vor.u32 %v981, %v979
      %v985 = vshll.u32 %v952, 16
      %v987 = vrot.slane %v985, 1
      %v988 = vsel %vm354, %v983, %v987
      %v989 = vshrl.u32 %v952, 16
      %v991 = vor.u32 %v989, %v987
      %v993 = vsel %vm190, %v964, 0
      %v996 = vsel %vm190, %v972, 0
      %v999 = vsel %vm190, %v980, 0
      %v1002 = vsel %vm190, %v988, 0
      %v1005 = vsel %vm190, %v991, 0
      %v1008 = vsel %vm206, %v927, 0
      %1010 = vmatpush.bf16.msra.mxu0 0
      %1011 = vmatpush.bf16.msra.mxu0 0
      %1012 = vmatpush.bf16.msra.mxu0 0
      %1013 = vmatpush.bf16.msra.mxu0 0
      %1014 = vmatpush.bf16.msra.mxu0 0
      %1015 = vmatpush.bf16.msra.mxu0 0
      %1016 = vmatpush.bf16.msra.mxu0 0
      %1017 = vmatpush.bf16.msra.mxu0 %v1008
      %1018 = vmatmul.bf16.gmra.mxu0 %v993
      %v1019 = vpop.f32.mrf.mxu0
      %v1020 = vadd.f32 0.0, %v1019
      %v1021 = vpop.f32.mrf.mxu0
      %v1022 = vadd.f32 0.0, %v1021
      %1023 = vmatmul.bf16.gmra.mxu0 %v996
      %v1024 = vpop.f32.mrf.mxu0
      %v1025 = vadd.f32 0.0, %v1024
      %v1026 = vpop.f32.mrf.mxu0
      %v1027 = vadd.f32 0.0, %v1026
      %1028 = vmatmul.bf16.gmra.mxu0 %v999
      %v1029 = vpop.f32.mrf.mxu0
      %v1030 = vadd.f32 0.0, %v1029
      %v1031 = vpop.f32.mrf.mxu0
      %v1032 = vadd.f32 0.0, %v1031
      %1033 = vmatmul.bf16.gmra.mxu0 %v1002
      %v1034 = vpop.f32.mrf.mxu0
      %v1035 = vadd.f32 0.0, %v1034
      %v1036 = vpop.f32.mrf.mxu0
      %v1037 = vadd.f32 0.0, %v1036
      %1038 = vmatmul.bf16.gmra.mxu0 %v1005
      %v1039 = vpop.f32.mrf.mxu0
      %v1040 = vadd.f32 0.0, %v1039
      %v1041 = vpop.f32.mrf.mxu0
      %1042 = vdwg.mxu0
      %v1043 = vadd.f32 %v907, %v1020
      %v1044 = vadd.f32 %v908, %v1022
      %v1045 = vadd.f32 %v909, %v1025
      %v1046 = vadd.f32 %v910, %v1027
      %v1047 = vadd.f32 %v911, %v1030
      %v1048 = vadd.f32 %v912, %v1032
      %v1049 = vadd.f32 %v913, %v1035
      %v1050 = vadd.f32 %v914, %v1037
      %v1051 = vadd.f32 %v915, %v1040
      %v1052 = vld [vmem:[%s138 + $0x4] sm:$0xf]
      %v1053 = vld [vmem:[%s138 + $0x8] sm:$0xf]
      %v1054 = vld [vmem:[%s138 + $0xc] sm:$0xf]
      %v1055 = vld [vmem:[%s138 + $0x10] sm:$0xf]
      %v1056 = vld [vmem:[%s138 + $0x14] sm:$0xf]
      %v1057 = vld [vmem:[%s138 + $0x18] sm:$0xf]
      %v1058 = vld [vmem:[%s138 + $0x1c] sm:$0xf]
      %v1059 = vld [vmem:[%s138 + $0x20] sm:$0xf]
      %v1060 = vld [vmem:[%s138 + $0x24] sm:$0xf]
      %v1061 = vld [vmem:[%s138 + $0x28] sm:$0x1]
      %s1062 = scalar_lea.vmem %s1, 32
      %v1063 = vld [vmem:[%s1062] sm:$0xf]
      %v1074 = vunpack.c.l.b16 %v1052
      %v1075 = vunpack.c.l.b16 %v1053
      %v1076 = vunpack.c.l.b16 %v1054
      %v1077 = vunpack.c.l.b16 %v1055
      %v1078 = vunpack.c.l.b16 %v1056
      %v1079 = vunpack.c.l.b16 %v1057
      %v1080 = vunpack.c.l.b16 %v1058
      %v1081 = vunpack.c.l.b16 %v1059
      %v1082 = vunpack.c.l.b16 %v1060
      %v1083 = vunpack.c.l.b16 %v1061
      %v1084 = vpack.c.b16 %v1075, %v1074
      %v1085 = vpack.c.b16 %v1077, %v1076
      %v1086 = vpack.c.b16 %v1079, %v1078
      %v1087 = vpack.c.b16 %v1081, %v1080
      %v1088 = vpack.c.b16 %v1083, %v1082
      %v1090 = vshrl.u32 %v1084, 16
      %v1092 = vshll.u32 %v1084, 16
      %v1094 = vrot.slane %v1092, 1
      %v1095 = vor.u32 %v1090, %v1094
      %v1097 = vshll.u32 %v1085, 16
      %v1099 = vrot.slane %v1097, 1
      %v1100 = vsel %vm354, %v1095, %v1099
      %v1101 = vshrl.u32 %v1085, 16
      %v1103 = vor.u32 %v1101, %v1099
      %v1105 = vshll.u32 %v1086, 16
      %v1107 = vrot.slane %v1105, 1
      %v1108 = vsel %vm354, %v1103, %v1107
      %v1109 = vshrl.u32 %v1086, 16
      %v1111 = vor.u32 %v1109, %v1107
      %v1113 = vshll.u32 %v1087, 16
      %v1115 = vrot.slane %v1113, 1
      %v1116 = vsel %vm354, %v1111, %v1115
      %v1117 = vshrl.u32 %v1087, 16
      %v1119 = vor.u32 %v1117, %v1115
      %v1121 = vshll.u32 %v1088, 16
      %v1123 = vrot.slane %v1121, 1
      %v1124 = vsel %vm354, %v1119, %v1123
      %v1125 = vshrl.u32 %v1088, 16
      %v1127 = vor.u32 %v1125, %v1123
      %v1129 = vsel %vm190, %v1100, 0
      %v1132 = vsel %vm190, %v1108, 0
      %v1135 = vsel %vm190, %v1116, 0
      %v1138 = vsel %vm190, %v1124, 0
      %v1141 = vsel %vm190, %v1127, 0
      %v1144 = vsel %vm206, %v1063, 0
      %1146 = vmatpush.bf16.msra.mxu0 0
      %1147 = vmatpush.bf16.msra.mxu0 0
      %1148 = vmatpush.bf16.msra.mxu0 0
      %1149 = vmatpush.bf16.msra.mxu0 0
      %1150 = vmatpush.bf16.msra.mxu0 0
      %1151 = vmatpush.bf16.msra.mxu0 0
      %1152 = vmatpush.bf16.msra.mxu0 0
      %1153 = vmatpush.bf16.msra.mxu0 %v1144
      %1154 = vmatmul.bf16.gmra.mxu0 %v1129
      %v1155 = vpop.f32.mrf.mxu0
      %v1156 = vadd.f32 0.0, %v1155
      %v1157 = vpop.f32.mrf.mxu0
      %v1158 = vadd.f32 0.0, %v1157
      %1159 = vmatmul.bf16.gmra.mxu0 %v1132
      %v1160 = vpop.f32.mrf.mxu0
      %v1161 = vadd.f32 0.0, %v1160
      %v1162 = vpop.f32.mrf.mxu0
      %v1163 = vadd.f32 0.0, %v1162
      %1164 = vmatmul.bf16.gmra.mxu0 %v1135
      %v1165 = vpop.f32.mrf.mxu0
      %v1166 = vadd.f32 0.0, %v1165
      %v1167 = vpop.f32.mrf.mxu0
      %v1168 = vadd.f32 0.0, %v1167
      %1169 = vmatmul.bf16.gmra.mxu0 %v1138
      %v1170 = vpop.f32.mrf.mxu0
      %v1171 = vadd.f32 0.0, %v1170
      %v1172 = vpop.f32.mrf.mxu0
      %v1173 = vadd.f32 0.0, %v1172
      %1174 = vmatmul.bf16.gmra.mxu0 %v1141
      %v1175 = vpop.f32.mrf.mxu0
      %v1176 = vadd.f32 0.0, %v1175
      %v1177 = vpop.f32.mrf.mxu0
      %1178 = vdwg.mxu0
      %v1179 = vadd.f32 %v1043, %v1156
      %v1180 = vadd.f32 %v1044, %v1158
      %v1181 = vadd.f32 %v1045, %v1161
      %v1182 = vadd.f32 %v1046, %v1163
      %v1183 = vadd.f32 %v1047, %v1166
      %v1184 = vadd.f32 %v1048, %v1168
      %v1185 = vadd.f32 %v1049, %v1171
      %v1186 = vadd.f32 %v1050, %v1173
      %v1187 = vadd.f32 %v1051, %v1176
      %v1188 = vld [vmem:[%s155 + $0x4] sm:$0xf]
      %v1189 = vld [vmem:[%s155 + $0x8] sm:$0xf]
      %v1190 = vld [vmem:[%s155 + $0xc] sm:$0xf]
      %v1191 = vld [vmem:[%s155 + $0x10] sm:$0xf]
      %v1192 = vld [vmem:[%s155 + $0x14] sm:$0xf]
      %v1193 = vld [vmem:[%s155 + $0x18] sm:$0xf]
      %v1194 = vld [vmem:[%s155 + $0x1c] sm:$0xf]
      %v1195 = vld [vmem:[%s155 + $0x20] sm:$0xf]
      %v1196 = vld [vmem:[%s155 + $0x24] sm:$0xf]
      %v1197 = vld [vmem:[%s155 + $0x28] sm:$0x1]
      %s1198 = scalar_lea.vmem %s1, 36
      %v1199 = vld [vmem:[%s1198] sm:$0xf]
      %v1210 = vunpack.c.l.b16 %v1188
      %v1211 = vunpack.c.l.b16 %v1189
      %v1212 = vunpack.c.l.b16 %v1190
      %v1213 = vunpack.c.l.b16 %v1191
      %v1214 = vunpack.c.l.b16 %v1192
      %v1215 = vunpack.c.l.b16 %v1193
      %v1216 = vunpack.c.l.b16 %v1194
      %v1217 = vunpack.c.l.b16 %v1195
      %v1218 = vunpack.c.l.b16 %v1196
      %v1219 = vunpack.c.l.b16 %v1197
      %v1220 = vpack.c.b16 %v1211, %v1210
      %v1221 = vpack.c.b16 %v1213, %v1212
      %v1222 = vpack.c.b16 %v1215, %v1214
      %v1223 = vpack.c.b16 %v1217, %v1216
      %v1224 = vpack.c.b16 %v1219, %v1218
      %v1226 = vshrl.u32 %v1220, 16
      %v1228 = vshll.u32 %v1220, 16
      %v1230 = vrot.slane %v1228, 1
      %v1231 = vor.u32 %v1226, %v1230
      %v1233 = vshll.u32 %v1221, 16
      %v1235 = vrot.slane %v1233, 1
      %v1236 = vsel %vm354, %v1231, %v1235
      %v1237 = vshrl.u32 %v1221, 16
      %v1239 = vor.u32 %v1237, %v1235
      %v1241 = vshll.u32 %v1222, 16
      %v1243 = vrot.slane %v1241, 1
      %v1244 = vsel %vm354, %v1239, %v1243
      %v1245 = vshrl.u32 %v1222, 16
      %v1247 = vor.u32 %v1245, %v1243
      %v1249 = vshll.u32 %v1223, 16
      %v1251 = vrot.slane %v1249, 1
      %v1252 = vsel %vm354, %v1247, %v1251
      %v1253 = vshrl.u32 %v1223, 16
      %v1255 = vor.u32 %v1253, %v1251
      %v1257 = vshll.u32 %v1224, 16
      %v1259 = vrot.slane %v1257, 1
      %v1260 = vsel %vm354, %v1255, %v1259
      %v1261 = vshrl.u32 %v1224, 16
      %v1263 = vor.u32 %v1261, %v1259
      %v1265 = vsel %vm190, %v1236, 0
      %v1268 = vsel %vm190, %v1244, 0
      %v1271 = vsel %vm190, %v1252, 0
      %v1274 = vsel %vm190, %v1260, 0
      %v1277 = vsel %vm190, %v1263, 0
      %v1280 = vsel %vm206, %v1199, 0
      %1282 = vmatpush.bf16.msra.mxu0 0
      %1283 = vmatpush.bf16.msra.mxu0 0
      %1284 = vmatpush.bf16.msra.mxu0 0
      %1285 = vmatpush.bf16.msra.mxu0 0
      %1286 = vmatpush.bf16.msra.mxu0 0
      %1287 = vmatpush.bf16.msra.mxu0 0
      %1288 = vmatpush.bf16.msra.mxu0 0
      %1289 = vmatpush.bf16.msra.mxu0 %v1280
      %1290 = vmatmul.bf16.gmra.mxu0 %v1265
      %v1291 = vpop.f32.mrf.mxu0
      %v1292 = vadd.f32 0.0, %v1291
      %v1293 = vpop.f32.mrf.mxu0
      %v1294 = vadd.f32 0.0, %v1293
      %1295 = vmatmul.bf16.gmra.mxu0 %v1268
      %v1296 = vpop.f32.mrf.mxu0
      %v1297 = vadd.f32 0.0, %v1296
      %v1298 = vpop.f32.mrf.mxu0
      %v1299 = vadd.f32 0.0, %v1298
      %1300 = vmatmul.bf16.gmra.mxu0 %v1271
      %v1301 = vpop.f32.mrf.mxu0
      %v1302 = vadd.f32 0.0, %v1301
      %v1303 = vpop.f32.mrf.mxu0
      %v1304 = vadd.f32 0.0, %v1303
      %1305 = vmatmul.bf16.gmra.mxu0 %v1274
      %v1306 = vpop.f32.mrf.mxu0
      %v1307 = vadd.f32 0.0, %v1306
      %v1308 = vpop.f32.mrf.mxu0
      %v1309 = vadd.f32 0.0, %v1308
      %1310 = vmatmul.bf16.gmra.mxu0 %v1277
      %v1311 = vpop.f32.mrf.mxu0
      %v1312 = vadd.f32 0.0, %v1311
      %v1313 = vpop.f32.mrf.mxu0
      %1314 = vdwg.mxu0
      %v1315 = vadd.f32 %v1179, %v1292
      %v1316 = vadd.f32 %v1180, %v1294
      %v1317 = vadd.f32 %v1181, %v1297
      %v1318 = vadd.f32 %v1182, %v1299
      %v1319 = vadd.f32 %v1183, %v1302
      %v1320 = vadd.f32 %v1184, %v1304
      %v1321 = vadd.f32 %v1185, %v1307
      %v1322 = vadd.f32 %v1186, %v1309
      %v1323 = vadd.f32 %v1187, %v1312
      %v1324 = vld [vmem:[%s138 + $0x4] sm:$0xe]
      %s1325 = scalar_lea.vmem %s1, 40
      %v1326 = vld [vmem:[%s1325] sm:$0xf]
      %v1328 = vunpack.c.l.b16 %v1324
      %v1329 = vpack.c.b16 %v1075, %v1328
      %vm1330 = vcmask 1046528
      %v1331 = vrot.slane %v1329, 1
      %v1332 = vrot.slane %v1085, 1
      %v1333 = vsel %vm1330, %v1331, %v1332
      %v1334 = vrot.slane %v1086, 1
      %v1335 = vsel %vm1330, %v1332, %v1334
      %v1336 = vrot.slane %v1087, 1
      %v1337 = vsel %vm1330, %v1334, %v1336
      %v1338 = vrot.slane %v1088, 1
      %v1339 = vsel %vm1330, %v1336, %v1338
      %v1341 = vsel %vm190, %v1333, 0
      %v1344 = vsel %vm190, %v1335, 0
      %v1347 = vsel %vm190, %v1337, 0
      %v1350 = vsel %vm190, %v1339, 0
      %v1353 = vsel %vm190, %v1338, 0
      %v1356 = vsel %vm206, %v1326, 0
      %1358 = vmatpush.bf16.msra.mxu0 0
      %1359 = vmatpush.bf16.msra.mxu0 0
      %1360 = vmatpush.bf16.msra.mxu0 0
      %1361 = vmatpush.bf16.msra.mxu0 0
      %1362 = vmatpush.bf16.msra.mxu0 0
      %1363 = vmatpush.bf16.msra.mxu0 0
      %1364 = vmatpush.bf16.msra.mxu0 0
      %1365 = vmatpush.bf16.msra.mxu0 %v1356
      %1366 = vmatmul.bf16.gmra.mxu0 %v1341
      %v1367 = vpop.f32.mrf.mxu0
      %v1368 = vadd.f32 0.0, %v1367
      %v1369 = vpop.f32.mrf.mxu0
      %v1370 = vadd.f32 0.0, %v1369
      %1371 = vmatmul.bf16.gmra.mxu0 %v1344
      %v1372 = vpop.f32.mrf.mxu0
      %v1373 = vadd.f32 0.0, %v1372
      %v1374 = vpop.f32.mrf.mxu0
      %v1375 = vadd.f32 0.0, %v1374
      %1376 = vmatmul.bf16.gmra.mxu0 %v1347
      %v1377 = vpop.f32.mrf.mxu0
      %v1378 = vadd.f32 0.0, %v1377
      %v1379 = vpop.f32.mrf.mxu0
      %v1380 = vadd.f32 0.0, %v1379
      %1381 = vmatmul.bf16.gmra.mxu0 %v1350
      %v1382 = vpop.f32.mrf.mxu0
      %v1383 = vadd.f32 0.0, %v1382
      %v1384 = vpop.f32.mrf.mxu0
      %v1385 = vadd.f32 0.0, %v1384
      %1386 = vmatmul.bf16.gmra.mxu0 %v1353
      %v1387 = vpop.f32.mrf.mxu0
      %v1388 = vadd.f32 0.0, %v1387
      %v1389 = vpop.f32.mrf.mxu0
      %1390 = vdwg.mxu0
      %v1391 = vadd.f32 %v1315, %v1368
      %v1392 = vadd.f32 %v1316, %v1370
      %v1393 = vadd.f32 %v1317, %v1373
      %v1394 = vadd.f32 %v1318, %v1375
      %v1395 = vadd.f32 %v1319, %v1378
      %v1396 = vadd.f32 %v1320, %v1380
      %v1397 = vadd.f32 %v1321, %v1383
      %v1398 = vadd.f32 %v1322, %v1385
      %v1399 = vadd.f32 %v1323, %v1388
      %v1400 = vld [vmem:[%s155 + $0x4] sm:$0xe]
      %s1401 = scalar_lea.vmem %s1, 44
      %v1402 = vld [vmem:[%s1401] sm:$0xf]
      %v1404 = vunpack.c.l.b16 %v1400
      %v1405 = vpack.c.b16 %v1211, %v1404
      %v1406 = vrot.slane %v1405, 1
      %v1407 = vrot.slane %v1221, 1
      %v1408 = vsel %vm1330, %v1406, %v1407
      %v1409 = vrot.slane %v1222, 1
      %v1410 = vsel %vm1330, %v1407, %v1409
      %v1411 = vrot.slane %v1223, 1
      %v1412 = vsel %vm1330, %v1409, %v1411
      %v1413 = vrot.slane %v1224, 1
      %v1414 = vsel %vm1330, %v1411, %v1413
      %v1416 = vsel %vm190, %v1408, 0
      %v1419 = vsel %vm190, %v1410, 0
      %v1422 = vsel %vm190, %v1412, 0
      %v1425 = vsel %vm190, %v1414, 0
      %v1428 = vsel %vm190, %v1413, 0
      %v1431 = vsel %vm206, %v1402, 0
      %1433 = vmatpush.bf16.msra.mxu0 0
      %1434 = vmatpush.bf16.msra.mxu0 0
      %1435 = vmatpush.bf16.msra.mxu0 0
      %1436 = vmatpush.bf16.msra.mxu0 0
      %1437 = vmatpush.bf16.msra.mxu0 0
      %1438 = vmatpush.bf16.msra.mxu0 0
      %1439 = vmatpush.bf16.msra.mxu0 0
      %1440 = vmatpush.bf16.msra.mxu0 %v1431
      %1441 = vmatmul.bf16.gmra.mxu0 %v1416
      %v1442 = vpop.f32.mrf.mxu0
      %v1443 = vadd.f32 0.0, %v1442
      %v1444 = vpop.f32.mrf.mxu0
      %v1445 = vadd.f32 0.0, %v1444
      %1446 = vmatmul.bf16.gmra.mxu0 %v1419
      %v1447 = vpop.f32.mrf.mxu0
      %v1448 = vadd.f32 0.0, %v1447
      %v1449 = vpop.f32.mrf.mxu0
      %v1450 = vadd.f32 0.0, %v1449
      %1451 = vmatmul.bf16.gmra.mxu0 %v1422
      %v1452 = vpop.f32.mrf.mxu0
      %v1453 = vadd.f32 0.0, %v1452
      %v1454 = vpop.f32.mrf.mxu0
      %v1455 = vadd.f32 0.0, %v1454
      %1456 = vmatmul.bf16.gmra.mxu0 %v1425
      %v1457 = vpop.f32.mrf.mxu0
      %v1458 = vadd.f32 0.0, %v1457
      %v1459 = vpop.f32.mrf.mxu0
      %v1460 = vadd.f32 0.0, %v1459
      %1461 = vmatmul.bf16.gmra.mxu0 %v1428
      %v1462 = vpop.f32.mrf.mxu0
      %v1463 = vadd.f32 0.0, %v1462
      %v1464 = vpop.f32.mrf.mxu0
      %1465 = vdwg.mxu0
      %v1466 = vadd.f32 %v1391, %v1443
      %v1467 = vadd.f32 %v1392, %v1445
      %v1468 = vadd.f32 %v1393, %v1448
      %v1469 = vadd.f32 %v1394, %v1450
      %v1470 = vadd.f32 %v1395, %v1453
      %v1471 = vadd.f32 %v1396, %v1455
      %v1472 = vadd.f32 %v1397, %v1458
      %v1473 = vadd.f32 %v1398, %v1460
      %v1474 = vadd.f32 %v1399, %v1463
      %v1475 = vld [vmem:[%s590 + $0x4] sm:$0xf]
      %v1476 = vld [vmem:[%s590 + $0x8] sm:$0xf]
      %v1477 = vld [vmem:[%s590 + $0xc] sm:$0xf]
      %v1478 = vld [vmem:[%s590 + $0x10] sm:$0xf]
      %v1479 = vld [vmem:[%s590 + $0x14] sm:$0xf]
      %v1480 = vld [vmem:[%s590 + $0x18] sm:$0xf]
      %v1481 = vld [vmem:[%s590 + $0x1c] sm:$0xf]
      %v1482 = vld [vmem:[%s590 + $0x20] sm:$0xf]
      %v1483 = vld [vmem:[%s590 + $0x24] sm:$0xf]
      %v1484 = vld [vmem:[%s590 + $0x28] sm:$0x1]
      %s1485 = scalar_lea.vmem %s1, 48
      %v1486 = vld [vmem:[%s1485] sm:$0xf]
      %v1497 = vunpack.c.l.b16 %v1475
      %v1498 = vunpack.c.l.b16 %v1476
      %v1499 = vunpack.c.l.b16 %v1477
      %v1500 = vunpack.c.l.b16 %v1478
      %v1501 = vunpack.c.l.b16 %v1479
      %v1502 = vunpack.c.l.b16 %v1480
      %v1503 = vunpack.c.l.b16 %v1481
      %v1504 = vunpack.c.l.b16 %v1482
      %v1505 = vunpack.c.l.b16 %v1483
      %v1506 = vunpack.c.l.b16 %v1484
      %v1507 = vpack.c.b16 %v1498, %v1497
      %v1508 = vpack.c.b16 %v1500, %v1499
      %v1509 = vpack.c.b16 %v1502, %v1501
      %v1510 = vpack.c.b16 %v1504, %v1503
      %v1511 = vpack.c.b16 %v1506, %v1505
      %v1513 = vshrl.u32 %v1507, 16
      %v1515 = vshll.u32 %v1507, 16
      %v1517 = vrot.slane %v1515, 1
      %v1518 = vor.u32 %v1513, %v1517
      %v1520 = vshll.u32 %v1508, 16
      %v1522 = vrot.slane %v1520, 1
      %v1523 = vsel %vm354, %v1518, %v1522
      %v1524 = vshrl.u32 %v1508, 16
      %v1526 = vor.u32 %v1524, %v1522
      %v1528 = vshll.u32 %v1509, 16
      %v1530 = vrot.slane %v1528, 1
      %v1531 = vsel %vm354, %v1526, %v1530
      %v1532 = vshrl.u32 %v1509, 16
      %v1534 = vor.u32 %v1532, %v1530
      %v1536 = vshll.u32 %v1510, 16
      %v1538 = vrot.slane %v1536, 1
      %v1539 = vsel %vm354, %v1534, %v1538
      %v1540 = vshrl.u32 %v1510, 16
      %v1542 = vor.u32 %v1540, %v1538
      %v1544 = vshll.u32 %v1511, 16
      %v1546 = vrot.slane %v1544, 1
      %v1547 = vsel %vm354, %v1542, %v1546
      %v1548 = vshrl.u32 %v1511, 16
      %v1550 = vor.u32 %v1548, %v1546
      %v1552 = vsel %vm190, %v1523, 0
      %v1555 = vsel %vm190, %v1531, 0
      %v1558 = vsel %vm190, %v1539, 0
      %v1561 = vsel %vm190, %v1547, 0
      %v1564 = vsel %vm190, %v1550, 0
      %v1567 = vsel %vm206, %v1486, 0
      %1569 = vmatpush.bf16.msra.mxu0 0
      %1570 = vmatpush.bf16.msra.mxu0 0
      %1571 = vmatpush.bf16.msra.mxu0 0
      %1572 = vmatpush.bf16.msra.mxu0 0
      %1573 = vmatpush.bf16.msra.mxu0 0
      %1574 = vmatpush.bf16.msra.mxu0 0
      %1575 = vmatpush.bf16.msra.mxu0 0
      %1576 = vmatpush.bf16.msra.mxu0 %v1567
      %1577 = vmatmul.bf16.gmra.mxu0 %v1552
      %v1578 = vpop.f32.mrf.mxu0
      %v1579 = vadd.f32 0.0, %v1578
      %v1580 = vpop.f32.mrf.mxu0
      %v1581 = vadd.f32 0.0, %v1580
      %1582 = vmatmul.bf16.gmra.mxu0 %v1555
      %v1583 = vpop.f32.mrf.mxu0
      %v1584 = vadd.f32 0.0, %v1583
      %v1585 = vpop.f32.mrf.mxu0
      %v1586 = vadd.f32 0.0, %v1585
      %1587 = vmatmul.bf16.gmra.mxu0 %v1558
      %v1588 = vpop.f32.mrf.mxu0
      %v1589 = vadd.f32 0.0, %v1588
      %v1590 = vpop.f32.mrf.mxu0
      %v1591 = vadd.f32 0.0, %v1590
      %1592 = vmatmul.bf16.gmra.mxu0 %v1561
      %v1593 = vpop.f32.mrf.mxu0
      %v1594 = vadd.f32 0.0, %v1593
      %v1595 = vpop.f32.mrf.mxu0
      %v1596 = vadd.f32 0.0, %v1595
      %1597 = vmatmul.bf16.gmra.mxu0 %v1564
      %v1598 = vpop.f32.mrf.mxu0
      %v1599 = vadd.f32 0.0, %v1598
      %v1600 = vpop.f32.mrf.mxu0
      %1601 = vdwg.mxu0
      %v1602 = vadd.f32 %v1466, %v1579
      %v1603 = vadd.f32 %v1467, %v1581
      %v1604 = vadd.f32 %v1468, %v1584
      %v1605 = vadd.f32 %v1469, %v1586
      %v1606 = vadd.f32 %v1470, %v1589
      %v1607 = vadd.f32 %v1471, %v1591
      %v1608 = vadd.f32 %v1472, %v1594
      %v1609 = vadd.f32 %v1473, %v1596
      %v1610 = vadd.f32 %v1474, %v1599
      %v1611 = vld [vmem:[%s685 + $0x4] sm:$0xf]
      %v1612 = vld [vmem:[%s685 + $0x8] sm:$0xf]
      %v1613 = vld [vmem:[%s685 + $0xc] sm:$0xf]
      %v1614 = vld [vmem:[%s685 + $0x10] sm:$0xf]
      %v1615 = vld [vmem:[%s685 + $0x14] sm:$0xf]
      %v1616 = vld [vmem:[%s685 + $0x18] sm:$0xf]
      %v1617 = vld [vmem:[%s685 + $0x1c] sm:$0xf]
      %v1618 = vld [vmem:[%s685 + $0x20] sm:$0xf]
      %v1619 = vld [vmem:[%s685 + $0x24] sm:$0xf]
      %v1620 = vld [vmem:[%s685 + $0x28] sm:$0x1]
      %s1621 = scalar_lea.vmem %s1, 52
      %v1622 = vld [vmem:[%s1621] sm:$0xf]
      %v1633 = vunpack.c.l.b16 %v1611
      %v1634 = vunpack.c.l.b16 %v1612
      %v1635 = vunpack.c.l.b16 %v1613
      %v1636 = vunpack.c.l.b16 %v1614
      %v1637 = vunpack.c.l.b16 %v1615
      %v1638 = vunpack.c.l.b16 %v1616
      %v1639 = vunpack.c.l.b16 %v1617
      %v1640 = vunpack.c.l.b16 %v1618
      %v1641 = vunpack.c.l.b16 %v1619
      %v1642 = vunpack.c.l.b16 %v1620
      %v1643 = vpack.c.b16 %v1634, %v1633
      %v1644 = vpack.c.b16 %v1636, %v1635
      %v1645 = vpack.c.b16 %v1638, %v1637
      %v1646 = vpack.c.b16 %v1640, %v1639
      %v1647 = vpack.c.b16 %v1642, %v1641
      %v1649 = vshrl.u32 %v1643, 16
      %v1651 = vshll.u32 %v1643, 16
      %v1653 = vrot.slane %v1651, 1
      %v1654 = vor.u32 %v1649, %v1653
      %v1656 = vshll.u32 %v1644, 16
      %v1658 = vrot.slane %v1656, 1
      %v1659 = vsel %vm354, %v1654, %v1658
      %v1660 = vshrl.u32 %v1644, 16
      %v1662 = vor.u32 %v1660, %v1658
      %v1664 = vshll.u32 %v1645, 16
      %v1666 = vrot.slane %v1664, 1
      %v1667 = vsel %vm354, %v1662, %v1666
      %v1668 = vshrl.u32 %v1645, 16
      %v1670 = vor.u32 %v1668, %v1666
      %v1672 = vshll.u32 %v1646, 16
      %v1674 = vrot.slane %v1672, 1
      %v1675 = vsel %vm354, %v1670, %v1674
      %v1676 = vshrl.u32 %v1646, 16
      %v1678 = vor.u32 %v1676, %v1674
      %v1680 = vshll.u32 %v1647, 16
      %v1682 = vrot.slane %v1680, 1
      %v1683 = vsel %vm354, %v1678, %v1682
      %v1684 = vshrl.u32 %v1647, 16
      %v1686 = vor.u32 %v1684, %v1682
      %v1688 = vsel %vm190, %v1659, 0
      %v1691 = vsel %vm190, %v1667, 0
      %v1694 = vsel %vm190, %v1675, 0
      %v1697 = vsel %vm190, %v1683, 0
      %v1700 = vsel %vm190, %v1686, 0
      %v1703 = vsel %vm206, %v1622, 0
      %1705 = vmatpush.bf16.msra.mxu0 0
      %1706 = vmatpush.bf16.msra.mxu0 0
      %1707 = vmatpush.bf16.msra.mxu0 0
      %1708 = vmatpush.bf16.msra.mxu0 0
      %1709 = vmatpush.bf16.msra.mxu0 0
      %1710 = vmatpush.bf16.msra.mxu0 0
      %1711 = vmatpush.bf16.msra.mxu0 0
      %1712 = vmatpush.bf16.msra.mxu0 %v1703
      %1713 = vmatmul.bf16.gmra.mxu0 %v1688
      %v1714 = vpop.f32.mrf.mxu0
      %v1715 = vadd.f32 0.0, %v1714
      %v1716 = vpop.f32.mrf.mxu0
      %v1717 = vadd.f32 0.0, %v1716
      %1718 = vmatmul.bf16.gmra.mxu0 %v1691
      %v1719 = vpop.f32.mrf.mxu0
      %v1720 = vadd.f32 0.0, %v1719
      %v1721 = vpop.f32.mrf.mxu0
      %v1722 = vadd.f32 0.0, %v1721
      %1723 = vmatmul.bf16.gmra.mxu0 %v1694
      %v1724 = vpop.f32.mrf.mxu0
      %v1725 = vadd.f32 0.0, %v1724
      %v1726 = vpop.f32.mrf.mxu0
      %v1727 = vadd.f32 0.0, %v1726
      %1728 = vmatmul.bf16.gmra.mxu0 %v1697
      %v1729 = vpop.f32.mrf.mxu0
      %v1730 = vadd.f32 0.0, %v1729
      %v1731 = vpop.f32.mrf.mxu0
      %v1732 = vadd.f32 0.0, %v1731
      %1733 = vmatmul.bf16.gmra.mxu0 %v1700
      %v1734 = vpop.f32.mrf.mxu0
      %v1735 = vadd.f32 0.0, %v1734
      %v1736 = vpop.f32.mrf.mxu0
      %1737 = vdwg.mxu0
      %v1738 = vadd.f32 %v1602, %v1715
      %v1739 = vadd.f32 %v1603, %v1717
      %v1740 = vadd.f32 %v1604, %v1720
      %v1741 = vadd.f32 %v1605, %v1722
      %v1742 = vadd.f32 %v1606, %v1725
      %v1743 = vadd.f32 %v1607, %v1727
      %v1744 = vadd.f32 %v1608, %v1730
      %v1745 = vadd.f32 %v1609, %v1732
      %v1746 = vadd.f32 %v1610, %v1735
      %v1747 = vld [vmem:[%s590 + $0x4] sm:$0xe]
      %s1748 = scalar_lea.vmem %s1, 56
      %v1749 = vld [vmem:[%s1748] sm:$0xf]
      %v1751 = vunpack.c.l.b16 %v1747
      %v1752 = vpack.c.b16 %v1498, %v1751
      %v1753 = vrot.slane %v1752, 1
      %v1754 = vrot.slane %v1508, 1
      %v1755 = vsel %vm1330, %v1753, %v1754
      %v1756 = vrot.slane %v1509, 1
      %v1757 = vsel %vm1330, %v1754, %v1756
      %v1758 = vrot.slane %v1510, 1
      %v1759 = vsel %vm1330, %v1756, %v1758
      %v1760 = vrot.slane %v1511, 1
      %v1761 = vsel %vm1330, %v1758, %v1760
      %v1763 = vsel %vm190, %v1755, 0
      %v1766 = vsel %vm190, %v1757, 0
      %v1769 = vsel %vm190, %v1759, 0
      %v1772 = vsel %vm190, %v1761, 0
      %v1775 = vsel %vm190, %v1760, 0
      %v1778 = vsel %vm206, %v1749, 0
      %1780 = vmatpush.bf16.msra.mxu0 0
      %1781 = vmatpush.bf16.msra.mxu0 0
      %1782 = vmatpush.bf16.msra.mxu0 0
      %1783 = vmatpush.bf16.msra.mxu0 0
      %1784 = vmatpush.bf16.msra.mxu0 0
      %1785 = vmatpush.bf16.msra.mxu0 0
      %1786 = vmatpush.bf16.msra.mxu0 0
      %1787 = vmatpush.bf16.msra.mxu0 %v1778
      %1788 = vmatmul.bf16.gmra.mxu0 %v1763
      %v1789 = vpop.f32.mrf.mxu0
      %v1790 = vadd.f32 0.0, %v1789
      %v1791 = vpop.f32.mrf.mxu0
      %v1792 = vadd.f32 0.0, %v1791
      %1793 = vmatmul.bf16.gmra.mxu0 %v1766
      %v1794 = vpop.f32.mrf.mxu0
      %v1795 = vadd.f32 0.0, %v1794
      %v1796 = vpop.f32.mrf.mxu0
      %v1797 = vadd.f32 0.0, %v1796
      %1798 = vmatmul.bf16.gmra.mxu0 %v1769
      %v1799 = vpop.f32.mrf.mxu0
      %v1800 = vadd.f32 0.0, %v1799
      %v1801 = vpop.f32.mrf.mxu0
      %v1802 = vadd.f32 0.0, %v1801
      %1803 = vmatmul.bf16.gmra.mxu0 %v1772
      %v1804 = vpop.f32.mrf.mxu0
      %v1805 = vadd.f32 0.0, %v1804
      %v1806 = vpop.f32.mrf.mxu0
      %v1807 = vadd.f32 0.0, %v1806
      %1808 = vmatmul.bf16.gmra.mxu0 %v1775
      %v1809 = vpop.f32.mrf.mxu0
      %v1810 = vadd.f32 0.0, %v1809
      %v1811 = vpop.f32.mrf.mxu0
      %1812 = vdwg.mxu0
      %v1813 = vadd.f32 %v1738, %v1790
      %v1814 = vadd.f32 %v1739, %v1792
      %v1815 = vadd.f32 %v1740, %v1795
      %v1816 = vadd.f32 %v1741, %v1797
      %v1817 = vadd.f32 %v1742, %v1800
      %v1818 = vadd.f32 %v1743, %v1802
      %v1819 = vadd.f32 %v1744, %v1805
      %v1820 = vadd.f32 %v1745, %v1807
      %v1821 = vadd.f32 %v1746, %v1810
      %v1822 = vld [vmem:[%s685 + $0x4] sm:$0xe]
      %s1823 = scalar_lea.vmem %s1, 60
      %v1824 = vld [vmem:[%s1823] sm:$0xf]
      %v1826 = vunpack.c.l.b16 %v1822
      %v1827 = vpack.c.b16 %v1634, %v1826
      %v1828 = vrot.slane %v1827, 1
      %v1829 = vrot.slane %v1644, 1
      %v1830 = vsel %vm1330, %v1828, %v1829
      %v1831 = vrot.slane %v1645, 1
      %v1832 = vsel %vm1330, %v1829, %v1831
      %v1833 = vrot.slane %v1646, 1
      %v1834 = vsel %vm1330, %v1831, %v1833
      %v1835 = vrot.slane %v1647, 1
      %v1836 = vsel %vm1330, %v1833, %v1835
      %v1838 = vsel %vm190, %v1830, 0
      %v1841 = vsel %vm190, %v1832, 0
      %v1844 = vsel %vm190, %v1834, 0
      %v1847 = vsel %vm190, %v1836, 0
      %v1850 = vsel %vm190, %v1835, 0
      %v1853 = vsel %vm206, %v1824, 0
      %1855 = vmatpush.bf16.msra.mxu0 0
      %1856 = vmatpush.bf16.msra.mxu0 0
      %1857 = vmatpush.bf16.msra.mxu0 0
      %1858 = vmatpush.bf16.msra.mxu0 0
      %1859 = vmatpush.bf16.msra.mxu0 0
      %1860 = vmatpush.bf16.msra.mxu0 0
      %1861 = vmatpush.bf16.msra.mxu0 0
      %1862 = vmatpush.bf16.msra.mxu0 %v1853
      %1863 = vmatmul.bf16.gmra.mxu0 %v1838
      %v1864 = vpop.f32.mrf.mxu0
      %v1865 = vadd.f32 0.0, %v1864
      %v1866 = vpop.f32.mrf.mxu0
      %v1867 = vadd.f32 0.0, %v1866
      %1868 = vmatmul.bf16.gmra.mxu0 %v1841
      %v1869 = vpop.f32.mrf.mxu0
      %v1870 = vadd.f32 0.0, %v1869
      %v1871 = vpop.f32.mrf.mxu0
      %v1872 = vadd.f32 0.0, %v1871
      %1873 = vmatmul.bf16.gmra.mxu0 %v1844
      %v1874 = vpop.f32.mrf.mxu0
      %v1875 = vadd.f32 0.0, %v1874
      %v1876 = vpop.f32.mrf.mxu0
      %v1877 = vadd.f32 0.0, %v1876
      %1878 = vmatmul.bf16.gmra.mxu0 %v1847
      %v1879 = vpop.f32.mrf.mxu0
      %v1880 = vadd.f32 0.0, %v1879
      %v1881 = vpop.f32.mrf.mxu0
      %v1882 = vadd.f32 0.0, %v1881
      %1883 = vmatmul.bf16.gmra.mxu0 %v1850
      %v1884 = vpop.f32.mrf.mxu0
      %v1885 = vadd.f32 0.0, %v1884
      %v1886 = vpop.f32.mrf.mxu0
      %1887 = vdwg.mxu0
      %v1888 = vadd.f32 %v1813, %v1865
      %v1889 = vadd.f32 %v1814, %v1867
      %v1890 = vadd.f32 %v1815, %v1870
      %v1891 = vadd.f32 %v1816, %v1872
      %v1892 = vadd.f32 %v1817, %v1875
      %v1893 = vadd.f32 %v1818, %v1877
      %v1894 = vadd.f32 %v1819, %v1880
      %v1895 = vadd.f32 %v1820, %v1882
      %v1896 = vadd.f32 %v1821, %v1885
      %v1897 = vlaneseq
      %v1898 = vand.u32 %v1897, 127
      %vm1899 = vcmp.lt.s32.totalorder %v1898, 0
      %v1900 = vsub.s32 0, %v1898
      %v1901 = vsel %vm1899, %v1900, %v1898
      %v1902 = vand.u32 %v1901, 65535
      %v1903 = vshrl.u32 %v1901, 16
      %v1905 = vmul.u32 %v1902, 14564
      %v1906 = vmul.u32 %v1902, 58254
      %v1907 = vmul.u32 %v1903, 14564
      %v1908 = vmul.u32 %v1903, 58254
      %v1909 = vshll.u32 %v1906, 16
      %v1910 = vshrl.u32 %v1906, 16
      %v1911 = vshll.u32 %v1907, 16
      %v1912 = vshrl.u32 %v1907, 16
      %vm1913 = vc.u32 %v1905, %v1909
      %v1914 = vsel %vm1913, 1, 0
      %v1915 = vadd.s32 %v1905, %v1909
      %v1916 = vadd.s32 %v1908, %v1914
      %vm1917 = vc.u32 %v1915, %v1911
      %v1918 = vsel %vm1917, 1, 0
      %v1919 = vadd.s32 %v1915, %v1911
      %v1920 = vadd.s32 %v1916, %v1918
      %v1921 = vadd.s32 %v1920, %v1910
      %v1922 = vadd.s32 %v1921, %v1912
      %v1923 = vshrl.u32 %v1922, 3
      %v1924 = vmul.u32 %v1923, 9
      %v1925 = vsub.s32 %v1901, %v1924
      %v1926 = vsub.s32 0, %v1925
      %v1927 = vsel %vm1899, %v1926, %v1925
      %vm1928 = vcmp.ne.s32.totalorder %v1927, 0
      %vm1929 = vcmp.lt.s32.totalorder %v1927, 0
      %vm1930 = vmand %vm1929, %vm1928
      %v1931 = vadd.s32 %v1927, 9
      %v1932 = vsel %vm1930, %v1931, %v1927
      %vm1933 = vcmp.lt.s32.totalorder %v1932, 8
      %v1934 = vsel %vm1933, 1, 0
      %v1935 = vcvt.s32.f32 %v1934
      %vm1936 = vcmask 588800
      %v1938 = vsel %vm1936, %v1935, 0
      %1940 = vmatpush.msra.mxu0 0.0
      %1941 = vmatpush.msra.mxu0 0.0
      %1942 = vmatpush.msra.mxu0 0.0
      %1943 = vmatpush.msra.mxu0 0.0
      %1944 = vmatpush.msra.mxu0 0.0
      %1945 = vmatpush.msra.mxu0 0.0
      %1946 = vmatpush.msra.mxu0 0.0
      %1947 = vmatpush.msra.mxu0 %v1896
      %1948 = vmatpush.msra.mxu0 %v1895
      %1949 = vmatpush.msra.mxu0 %v1894
      %1950 = vmatpush.msra.mxu0 %v1893
      %1951 = vmatpush.msra.mxu0 %v1892
      %1952 = vmatpush.msra.mxu0 %v1891
      %1953 = vmatpush.msra.mxu0 %v1890
      %1954 = vmatpush.msra.mxu0 %v1889
      %1955 = vmatpush.msra.mxu0 %v1888
      %1956 = vmatmul.f32.gmra.mxu0 %v1938
      %v1957 = vpop.f32.mrf.mxu0
      %v1958 = vadd.f32 0.0, %v1957
      %1959 = vdwg.mxu0
      %v1960 = vmul.f32 %v1958, 0.015625
      %v1961 = vmul.f32 %v1888, %v1888
      %v1962 = vmul.f32 %v1889, %v1889
      %v1963 = vmul.f32 %v1890, %v1890
      %v1964 = vmul.f32 %v1891, %v1891
      %v1965 = vmul.f32 %v1892, %v1892
      %v1966 = vmul.f32 %v1893, %v1893
      %v1967 = vmul.f32 %v1894, %v1894
      %v1968 = vmul.f32 %v1895, %v1895
      %v1969 = vmul.f32 %v1896, %v1896
      %1970 = vmatpush.msra.mxu0 0.0
      %1971 = vmatpush.msra.mxu0 0.0
      %1972 = vmatpush.msra.mxu0 0.0
      %1973 = vmatpush.msra.mxu0 0.0
      %1974 = vmatpush.msra.mxu0 0.0
      %1975 = vmatpush.msra.mxu0 0.0
      %1976 = vmatpush.msra.mxu0 0.0
      %1977 = vmatpush.msra.mxu0 %v1969
      %1978 = vmatpush.msra.mxu0 %v1968
      %1979 = vmatpush.msra.mxu0 %v1967
      %1980 = vmatpush.msra.mxu0 %v1966
      %1981 = vmatpush.msra.mxu0 %v1965
      %1982 = vmatpush.msra.mxu0 %v1964
      %1983 = vmatpush.msra.mxu0 %v1963
      %1984 = vmatpush.msra.mxu0 %v1962
      %1985 = vmatpush.msra.mxu0 %v1961
      %1986 = vmatmul.f32.gmra.mxu0 %v1938
      %v1987 = vpop.f32.mrf.mxu0
      %v1988 = vadd.f32 0.0, %v1987
      %1989 = vdwg.mxu0
      %v1990 = vmul.f32 %v1988, 0.015625
      %v1991 = vmul.f32 %v1960, %v1960
      %v1992 = vsub.f32 %v1990, %v1991
      %v1993 = vmax.f32 %v1992, 0.0
      %v1994 = vperm.slane %v1960, 0
      %v1995 = vsub.f32 %v1888, %v1994
      %v1996 = vsub.f32 %v1889, %v1994
      %v1997 = vsub.f32 %v1890, %v1994
      %v1998 = vsub.f32 %v1891, %v1994
      %v1999 = vsub.f32 %v1892, %v1994
      %v2000 = vsub.f32 %v1893, %v1994
      %v2001 = vsub.f32 %v1894, %v1994
      %v2002 = vsub.f32 %v1895, %v1994
      %v2003 = vsub.f32 %v1896, %v1994
      %v2004 = vadd.f32 %v1993, 1e-05
      %v2005 = vrsqrt.pop %v2004
      %v2006 = vmul.f32 %v2005, %v2004
      %v2007 = vmul.f32 %v2006, %v2005
      %v2008 = vmul.f32 0.5, %v2007
      %v2009 = vsub.f32 1.5, %v2008
      %v2010 = vmul.f32 %v2005, %v2009
      %vm2011 = vweird.f32 %v2004
      %vm2012 = vweird.f32 %v2005
      %vm2013 = vmor %vm2011, %vm2012
      %v2014 = vsel %vm2013, %v2005, %v2010
      %v2015 = vperm.slane %v2014, 0
      %v2016 = vmul.f32 %v1995, %v2015
      %v2017 = vmul.f32 %v1996, %v2015
      %v2018 = vmul.f32 %v1997, %v2015
      %v2019 = vmul.f32 %v1998, %v2015
      %v2020 = vmul.f32 %v1999, %v2015
      %v2021 = vmul.f32 %v2000, %v2015
      %v2022 = vmul.f32 %v2001, %v2015
      %v2023 = vmul.f32 %v2002, %v2015
      %v2024 = vmul.f32 %v2003, %v2015
      %vm2025 = vcmp.gt.f32.partialorder %v2016, 0.0
      %vm2026 = vcmp.gt.f32.partialorder %v2017, 0.0
      %vm2027 = vcmp.gt.f32.partialorder %v2018, 0.0
      %vm2028 = vcmp.gt.f32.partialorder %v2019, 0.0
      %vm2029 = vcmp.gt.f32.partialorder %v2020, 0.0
      %vm2030 = vcmp.gt.f32.partialorder %v2021, 0.0
      %vm2031 = vcmp.gt.f32.partialorder %v2022, 0.0
      %vm2032 = vcmp.gt.f32.partialorder %v2023, 0.0
      %vm2033 = vcmp.gt.f32.partialorder %v2024, 0.0
      %v2034 = vmul.f32 %v2016, 0.2
      %v2035 = vmul.f32 %v2017, 0.2
      %v2036 = vmul.f32 %v2018, 0.2
      %v2037 = vmul.f32 %v2019, 0.2
      %v2038 = vmul.f32 %v2020, 0.2
      %v2039 = vmul.f32 %v2021, 0.2
      %v2040 = vmul.f32 %v2022, 0.2
      %v2041 = vmul.f32 %v2023, 0.2
      %v2042 = vmul.f32 %v2024, 0.2
      %v2043 = vsel %vm2025, %v2016, %v2034
      %v2044 = vsel %vm2026, %v2017, %v2035
      %v2045 = vsel %vm2027, %v2018, %v2036
      %v2046 = vsel %vm2028, %v2019, %v2037
      %v2047 = vsel %vm2029, %v2020, %v2038
      %v2048 = vsel %vm2030, %v2021, %v2039
      %v2049 = vsel %vm2031, %v2022, %v2040
      %v2050 = vsel %vm2032, %v2023, %v2041
      %v2051 = vsel %vm2033, %v2024, %v2042
      %v2052 = vpack.c.bf16 %v2043, %v2043
      %v2053 = vpack.c.bf16 %v2044, %v2044
      %v2054 = vpack.c.bf16 %v2045, %v2045
      %v2055 = vpack.c.bf16 %v2046, %v2046
      %v2056 = vpack.c.bf16 %v2047, %v2047
      %v2057 = vpack.c.bf16 %v2048, %v2048
      %v2058 = vpack.c.bf16 %v2049, %v2049
      %v2059 = vpack.c.bf16 %v2050, %v2050
      %v2060 = vpack.c.bf16 %v2051, %v2051
      %vm2061 = vcmask 125952
      %2062 = vst.msk [vmem:[%s143] sm:$0xf] %vm2061, %v2052
      %2063 = vst.msk [vmem:[%s143 + $0x4] sm:$0xf] %vm2061, %v2053
      %2064 = vst.msk [vmem:[%s143 + $0x8] sm:$0xf] %vm2061, %v2054
      %2065 = vst.msk [vmem:[%s143 + $0xc] sm:$0xf] %vm2061, %v2055
      %2066 = vst.msk [vmem:[%s143 + $0x10] sm:$0xf] %vm2061, %v2056
      %2067 = vst.msk [vmem:[%s143 + $0x14] sm:$0xf] %vm2061, %v2057
      %2068 = vst.msk [vmem:[%s143 + $0x18] sm:$0xf] %vm2061, %v2058
      %2069 = vst.msk [vmem:[%s143 + $0x1c] sm:$0xf] %vm2061, %v2059
      %2070 = vst.msk [vmem:[%s143 + $0x20] sm:$0xf] %vm2061, %v2060
      %p2071 = scmp.lt.s32.totalorder %s13, 1
      %s2072 = scalar_select %p2071, %s13, 1
      %s2073 = smul.addr %s2072, 9
      %s2074 = smul.addr %s2073, 4
      %s2075 = scalar_lea.vmem %s2, %s2074
      // Predicated region
      $region29: #{discriminator_forward.6} parent=27 // pred_check
        %p2076 = pneg %p78
      $region30: #{discriminator_forward.6} parent=27 // pred_check_branch
        %2078 = sbr.rel (%p2076) target = $region32
      $region31: #{discriminator_forward.6} parent=27 // pred_region
        _
      $region32: #{discriminator_forward.6} parent=27 // pred_fallthru
        _
    $region28: #{discriminator_forward.6} parent=5 // pred_fallthru
      _
    %p2079 = scmp.le.s32.totalorder 2, %s8
    // Predicated region
    $region33: #{discriminator_forward.6} parent=5 // pred_check
      %p2080 = pneg %p2079
    $region34: #{discriminator_forward.6} parent=5 // pred_check_branch
      %2082 = sbr.rel (%p2080) target = $region36
    $region35: #{discriminator_forward.6} parent=5 // pred_region
      %s2083 = ssub.s32 %s8, 2
      // Predicated region
      $region37: #{discriminator_forward.6} parent=35 // pred_check
        %p2084 = pneg %p84
      $region38: #{discriminator_forward.6} parent=35 // pred_check_branch
        %2086 = sbr.rel (%p2084) target = $region40
      $region39: #{discriminator_forward.6} parent=35 // pred_region
        %p2087 = scmp.lt.s32.totalorder %s14, 1
        %s2088 = scalar_select %p2087, %s14, 1
        %s2089 = smul.addr %s2088, 9
        %s2090 = smul.addr %s2089, 4
        %s2091 = scalar_lea.vmem %s2, %s2090
      $region40: #{discriminator_forward.6} parent=35 // pred_fallthru
        _
    $region36: #{discriminator_forward.6} parent=5 // pred_fallthru
      _
  $region6: #{discriminator_forward.6} parent=0 // loop_footer
    %s12 = sadd.s32 1, %s8
  $region7: #{discriminator_forward.6} parent=0 // loop_footer_branch
    %7 = sbr.rel target = $region3
  $region8: #{discriminator_forward.6} parent=0 // loop_exit
    _

// kernel: discriminator_forward.7
$region0: #{discriminator_forward.7}
  #allocation0 [shape = 'u32[]', space=smem, size = 0x4, offset = 0x4, fixed_abs, tag = 'smem constant byte address 0x4 - core index']
  #allocation1 [shape = 'u32[72,128]{1,0:T(1,128)}', space=vmem, size = 0x9000, scoped, tag = 'internal scratch']
  %s0 = inlined_call_operand.vmem [shape: bf16[2,4,30,16], index: 0, kind: input, shape index: {}]
  %s1 = inlined_call_operand.vmem [shape: bf16[16,16,32], index: 1, kind: input, shape index: {}]
  %s2 = inlined_call_operand.vmem [shape: bf16[2,20,32], index: 2, kind: output, shape index: {}]
  %s3 = sld [smem:[#allocation0]]
  $region41: #{discriminator_forward.7} parent=0
    _
  %s5 = ssub.s32 1, %s3
  %s6 = scalar_select 0, %s5, %s3
  loop: start=0, step=1, limit=4
  $region2: #{discriminator_forward.7} parent=0 // loop_pre_header
    _
  $region3: #{discriminator_forward.7} parent=0 // loop_header
    %s8 = sphi 0, %s12
    %p9 = scmp.ge.s32.totalorder %s8, 4
    %s18 = sphi 0, %s20
    %s21 = sphi 0, %s18
    %s22 = sphi 0, %s21
    %s38 = sphi 0, %s22
    %s42 = sphi 0, %s42
    %s44 = sphi 0, %s42
    %s45 = sphi 0, %s44
    %s59 = sphi 0, %s45
    %s65 = sphi 0, %s67
    %s68 = sphi 0, %s65
    %s69 = sphi 0, %s68
    %s85 = sphi 0, %s69
  $region4: #{discriminator_forward.7} parent=0 // loop_header_branch
    %11 = sbr.rel (%p9) target = $region8
  $region5: #{discriminator_forward.7} parent=0 // loop_body
    %s13 = ssub.s32 %s8, 1
    %s14 = ssub.s32 %s8, 2
    %s15 = sadd.s32 %s8, 1
    %s16 = ssub.s32 %s8, %s15
    %p17 = scmp.eq.s32.totalorder %s16, 0
    %s19 = sadd.s32 %s18, 1
    %s20 = scalar_select %p17, %s18, %s19
    %p23 = pneg %p17
    %p24 = scmp.eq.s32.totalorder %s8, 1
    %p25 = por %p23, %p24
    %p26 = scmp.ne.s32.totalorder %s18, %s21
    %p27 = scmp.eq.s32.totalorder %s8, 0
    %p28 = por %p26, %p27
    %p29 = scmp.ne.s32.totalorder %s18, %s21
    %p30 = scmp.eq.s32.totalorder %s13, 1
    %p31 = por %p29, %p30
    %p32 = scmp.ne.s32.totalorder %s21, %s22
    %p33 = scmp.eq.s32.totalorder %s13, 0
    %p34 = por %p32, %p33
    %p35 = scmp.ne.s32.totalorder %s21, %s22
    %p36 = scmp.eq.s32.totalorder %s14, 1
    %p37 = por %p35, %p36
    %p39 = scmp.ne.s32.totalorder %s22, %s38
    %p40 = scmp.eq.s32.totalorder %s14, 0
    %p41 = por %p39, %p40
    %s43 = sadd.s32 %s42, 1
    %p46 = scmp.eq.s32.totalorder %s8, 1
    %p47 = scmp.ne.s32.totalorder %s42, %s44
    %p48 = scmp.eq.s32.totalorder %s8, 0
    %p49 = por %p47, %p48
    %p50 = scmp.ne.s32.totalorder %s42, %s44
    %p51 = scmp.eq.s32.totalorder %s13, 1
    %p52 = por %p50, %p51
    %p53 = scmp.ne.s32.totalorder %s44, %s45
    %p54 = scmp.eq.s32.totalorder %s13, 0
    %p55 = por %p53, %p54
    %p56 = scmp.ne.s32.totalorder %s44, %s45
    %p57 = scmp.eq.s32.totalorder %s14, 1
    %p58 = por %p56, %p57
    %p60 = scmp.ne.s32.totalorder %s45, %s59
    %p61 = scmp.eq.s32.totalorder %s14, 0
    %p62 = por %p60, %p61
    %s63 = ssub.s32 %s8, %s15
    %p64 = scmp.eq.s32.totalorder %s63, 0
    %s66 = sadd.s32 %s65, 1
    %s67 = scalar_select %p64, %s65, %s66
    %p70 = pneg %p64
    %p71 = scmp.eq.s32.totalorder %s8, 1
    %p72 = por %p70, %p71
    %p73 = scmp.ne.s32.totalorder %s65, %s68
    %p74 = scmp.eq.s32.totalorder %s8, 0
    %p75 = por %p73, %p74
    %p76 = scmp.ne.s32.totalorder %s65, %s68
    %p77 = scmp.eq.s32.totalorder %s13, 1
    %p78 = por %p76, %p77
    %p79 = scmp.ne.s32.totalorder %s68, %s69
    %p80 = scmp.eq.s32.totalorder %s13, 0
    %p81 = por %p79, %p80
    %p82 = scmp.ne.s32.totalorder %s68, %s69
    %p83 = scmp.eq.s32.totalorder %s14, 1
    %p84 = por %p82, %p83
    %p86 = scmp.ne.s32.totalorder %s69, %s85
    %p87 = scmp.eq.s32.totalorder %s14, 0
    %p88 = por %p86, %p87
    %p89 = scmp.le.s32.totalorder 1, %s8
    %p90 = scmp.lt.s32.totalorder %s8, 3
    %p91 = pnand %p89, %p90
    %p92 = pneg %p91
    // Predicated region
    $region9: #{discriminator_forward.7} parent=5 // pred_check
      _
    $region10: #{discriminator_forward.7} parent=5 // pred_check_branch
      %94 = sbr.rel (%p91) target = $region12
    $region11: #{discriminator_forward.7} parent=5 // pred_region
      %s95 = ssub.s32 %s8, 1
      // Predicated region
      $region13: #{discriminator_forward.7} parent=11 // pred_check
        %p96 = pneg %p55
      $region14: #{discriminator_forward.7} parent=11 // pred_check_branch
        %98 = sbr.rel (%p96) target = $region16
      $region15: #{discriminator_forward.7} parent=11 // pred_region
        _
      $region16: #{discriminator_forward.7} parent=11 // pred_fallthru
        _
    $region12: #{discriminator_forward.7} parent=5 // pred_fallthru
      _
    %p99 = scmp.lt.s32.totalorder %s8, 2
    // Predicated region
    $region17: #{discriminator_forward.7} parent=5 // pred_check
      %p100 = pneg %p99
    $region18: #{discriminator_forward.7} parent=5 // pred_check_branch
      %102 = sbr.rel (%p100) target = $region20
    $region19: #{discriminator_forward.7} parent=5 // pred_region
      // Predicated region
      $region21: #{discriminator_forward.7} parent=19 // pred_check
        %p103 = pneg %p28
      $region22: #{discriminator_forward.7} parent=19 // pred_check_branch
        %105 = sbr.rel (%p103) target = $region24
      $region23: #{discriminator_forward.7} parent=19 // pred_region
        %p106 = scmp.lt.s32.totalorder %s8, 1
        %s107 = scalar_select %p106, %s8, 1
        %s108 = smul.addr %s107, 16
        %s109 = smul.addr %s108, 4
        %s110 = scalar_lea.vmem %s0, %s109
      $region24: #{discriminator_forward.7} parent=19 // pred_fallthru
        _
    $region20: #{discriminator_forward.7} parent=5 // pred_fallthru
      _
    %p111 = scmp.le.s32.totalorder 1, %s8
    %p112 = scmp.lt.s32.totalorder %s8, 3
    %p113 = pnand %p111, %p112
    %p114 = pneg %p113
    // Predicated region
    $region25: #{discriminator_forward.7} parent=5 // pred_check
      _
    $region26: #{discriminator_forward.7} parent=5 // pred_check_branch
      %116 = sbr.rel (%p113) target = $region28
    $region27: #{discriminator_forward.7} parent=5 // pred_region
      %s117 = ssub.s32 %s8, 1
      %p118 = scmp.lt.s32.totalorder %s13, 1
      %s119 = scalar_select %p118, %s13, 1
      %s120 = smul.addr %s119, 16
      %s121 = smul.addr %s120, 4
      %s122 = scalar_lea.vmem %s0, %s121
      %p123 = pneg %p34
      %p124 = pneg %p31
      %p125 = pneg %p55
      %p126 = pneg %p52
      %p127 = pneg %p81
      %p128 = pneg %p78
      %p129 = scmp.lt.s32.totalorder %s13, 1
      %s130 = scalar_select %p129, %s13, 1
      %s131 = smul.addr %s130, 3
      %s132 = smul.addr %s131, 4
      %s133 = scalar_lea.vmem %s2, %s132
      %p134 = scmp.lt.s32.totalorder %s13, 1
      %s135 = scalar_select %p134, %s13, 1
      %s136 = smul.addr %s135, 16
      %s137 = smul.addr %s136, 4
      %s138 = scalar_lea.vmem %s0, %s137
      %p139 = scmp.lt.s32.totalorder %s13, 1
      %s140 = scalar_select %p139, %s13, 1
      %s141 = smul.addr %s140, 3
      %s142 = smul.addr %s141, 4
      %s143 = scalar_lea.vmem %s2, %s142
      %v145 = vld [vmem:[%s138] sm:$0xf]
      %v146 = vld [vmem:[%s138 + $0x4] sm:$0xf]
      %v147 = vld [vmem:[%s138 + $0x8] sm:$0x3]
      %v148 = vld [vmem:[%s1] sm:$0xf]
      %v149 = vld [vmem:[%s1 + $0x4] sm:$0xf]
      %s150 = scalar_lea.vmem %s138, 16
      %v151 = vld [vmem:[%s150] sm:$0xf]
      %v152 = vld [vmem:[%s150 + $0x4] sm:$0xf]
      %v153 = vld [vmem:[%s150 + $0x8] sm:$0x3]
      %s154 = scalar_lea.vmem %s1, 8
      %v155 = vld [vmem:[%s154] sm:$0xf]
      %v156 = vld [vmem:[%s154 + $0x4] sm:$0xf]
      %v160 = vunpack.c.l.b16 %v151
      %v161 = vunpack.c.l.b16 %v152
      %v162 = vunpack.c.l.b16 %v153
      %v163 = vpack.c.b16 %v161, %v160
      %v164 = vpack.c.b16 %v162, %v162
      %v167 = vunpack.c.l.b16 %v155
      %v168 = vunpack.c.l.b16 %v156
      %v169 = vpack.c.b16 %v168, %v167
      %vm171 = vcmask 130048
      %v173 = vsel %vm171, %v163, 0
      %v176 = vsel %vm171, %v164, 0
      %178 = vmatpush.bf16.msra.mxu0 0
      %179 = vmatpush.bf16.msra.mxu0 0
      %180 = vmatpush.bf16.msra.mxu0 0
      %181 = vmatpush.bf16.msra.mxu0 0
      %182 = vmatpush.bf16.msra.mxu0 0
      %183 = vmatpush.bf16.msra.mxu0 0
      %184 = vmatpush.bf16.msra.mxu0 0
      %185 = vmatpush.bf16.msra.mxu0 %v169
      %186 = vmatmul.bf16.gmra.mxu0 %v173
      %v187 = vpop.f32.mrf.mxu0
      %v188 = vadd.f32 0.0, %v187
      %v189 = vpop.f32.mrf.mxu0
      %v190 = vadd.f32 0.0, %v189
      %191 = vmatmul.bf16.gmra.mxu0 %v176
      %v192 = vpop.f32.mrf.mxu0
      %v193 = vadd.f32 0.0, %v192
      %v194 = vpop.f32.mrf.mxu0
      %195 = vdwg.mxu0
      %v199 = vunpack.c.l.b16 %v145
      %v200 = vunpack.c.l.b16 %v146
      %v201 = vunpack.c.l.b16 %v147
      %v202 = vpack.c.b16 %v200, %v199
      %v203 = vpack.c.b16 %v201, %v201
      %v206 = vunpack.c.l.b16 %v148
      %v207 = vunpack.c.l.b16 %v149
      %v208 = vpack.c.b16 %v207, %v206
      %v211 = vsel %vm171, %v202, 0
      %v214 = vsel %vm171, %v203, 0
      %216 = vmatpush.bf16.msra.mxu0 0
      %217 = vmatpush.bf16.msra.mxu0 0
      %218 = vmatpush.bf16.msra.mxu0 0
      %219 = vmatpush.bf16.msra.mxu0 0
      %220 = vmatpush.bf16.msra.mxu0 0
      %221 = vmatpush.bf16.msra.mxu0 0
      %222 = vmatpush.bf16.msra.mxu0 0
      %223 = vmatpush.bf16.msra.mxu0 %v208
      %224 = vmatmul.bf16.gmra.mxu0 %v211
      %v225 = vpop.f32.mrf.mxu0
      %v226 = vadd.f32 %v188, %v225
      %v227 = vpop.f32.mrf.mxu0
      %v228 = vadd.f32 %v190, %v227
      %229 = vmatmul.bf16.gmra.mxu0 %v214
      %v230 = vpop.f32.mrf.mxu0
      %v231 = vadd.f32 %v193, %v230
      %v232 = vpop.f32.mrf.mxu0
      %233 = vdwg.mxu0
      %v234 = vld [vmem:[%s138 + $0x8] sm:$0x7]
      %s235 = scalar_lea.vmem %s1, 16
      %v236 = vld [vmem:[%s235] sm:$0xf]
      %v237 = vld [vmem:[%s235 + $0x4] sm:$0xf]
      %v239 = vunpack.c.l.b16 %v234
      %v240 = vpack.c.b16 %v239, %v239
      %vm241 = vsmask.f32 7424
      %v242 = vshrl.u32 %v202, 16
      %v244 = vshll.u32 %v202, 16
      %v246 = vrot.slane %v244, 1
      %v247 = vor.u32 %v242, %v246
      %v249 = vshll.u32 %v240, 16
      %v251 = vrot.slane %v249, 1
      %v252 = vsel %vm241, %v247, %v251
      %v253 = vshrl.u32 %v240, 16
      %v255 = vor.u32 %v253, %v251
      %v258 = vunpack.c.l.b16 %v236
      %v259 = vunpack.c.l.b16 %v237
      %v260 = vpack.c.b16 %v259, %v258
      %v263 = vsel %vm171, %v252, 0
      %v266 = vsel %vm171, %v255, 0
      %268 = vmatpush.bf16.msra.mxu0 0
      %269 = vmatpush.bf16.msra.mxu0 0
      %270 = vmatpush.bf16.msra.mxu0 0
      %271 = vmatpush.bf16.msra.mxu0 0
      %272 = vmatpush.bf16.msra.mxu0 0
      %273 = vmatpush.bf16.msra.mxu0 0
      %274 = vmatpush.bf16.msra.mxu0 0
      %275 = vmatpush.bf16.msra.mxu0 %v260
      %276 = vmatmul.bf16.gmra.mxu0 %v263
      %v277 = vpop.f32.mrf.mxu0
      %v278 = vadd.f32 0.0, %v277
      %v279 = vpop.f32.mrf.mxu0
      %v280 = vadd.f32 0.0, %v279
      %281 = vmatmul.bf16.gmra.mxu0 %v266
      %v282 = vpop.f32.mrf.mxu0
      %v283 = vadd.f32 0.0, %v282
      %v284 = vpop.f32.mrf.mxu0
      %285 = vdwg.mxu0
      %v286 = vadd.f32 %v226, %v278
      %v287 = vadd.f32 %v228, %v280
      %v288 = vadd.f32 %v231, %v283
      %v289 = vld [vmem:[%s150 + $0x8] sm:$0x7]
      %s290 = scalar_lea.vmem %s1, 24
      %v291 = vld [vmem:[%s290] sm:$0xf]
      %v292 = vld [vmem:[%s290 + $0x4] sm:$0xf]
      %v294 = vunpack.c.l.b16 %v289
      %v295 = vpack.c.b16 %v294, %v294
      %v296 = vshrl.u32 %v163, 16
      %v298 = vshll.u32 %v163, 16
      %v300 = vrot.slane %v298, 1
      %v301 = vor.u32 %v296, %v300
      %v303 = vshll.u32 %v295, 16
      %v305 = vrot.slane %v303, 1
      %v306 = vsel %vm241, %v301, %v305
      %v307 = vshrl.u32 %v295, 16
      %v309 = vor.u32 %v307, %v305
      %v312 = vunpack.c.l.b16 %v291
      %v313 = vunpack.c.l.b16 %v292
      %v314 = vpack.c.b16 %v313, %v312
      %v317 = vsel %vm171, %v306, 0
      %v320 = vsel %vm171, %v309, 0
      %322 = vmatpush.bf16.msra.mxu0 0
      %323 = vmatpush.bf16.msra.mxu0 0
      %324 = vmatpush.bf16.msra.mxu0 0
      %325 = vmatpush.bf16.msra.mxu0 0
      %326 = vmatpush.bf16.msra.mxu0 0
      %327 = vmatpush.bf16.msra.mxu0 0
      %328 = vmatpush.bf16.msra.mxu0 0
      %329 = vmatpush.bf16.msra.mxu0 %v314
      %330 = vmatmul.bf16.gmra.mxu0 %v317
      %v331 = vpop.f32.mrf.mxu0
      %v332 = vadd.f32 0.0, %v331
      %v333 = vpop.f32.mrf.mxu0
      %v334 = vadd.f32 0.0, %v333
      %335 = vmatmul.bf16.gmra.mxu0 %v320
      %v336 = vpop.f32.mrf.mxu0
      %v337 = vadd.f32 0.0, %v336
      %v338 = vpop.f32.mrf.mxu0
      %339 = vdwg.mxu0
      %v340 = vadd.f32 %v286, %v332
      %v341 = vadd.f32 %v287, %v334
      %v342 = vadd.f32 %v288, %v337
      %s343 = scalar_lea.vmem %s138, 32
      %v344 = vld [vmem:[%s343] sm:$0xf]
      %v345 = vld [vmem:[%s343 + $0x4] sm:$0xf]
      %v346 = vld [vmem:[%s343 + $0x8] sm:$0x3]
      %s347 = scalar_lea.vmem %s1, 32
      %v348 = vld [vmem:[%s347] sm:$0xf]
      %v349 = vld [vmem:[%s347 + $0x4] sm:$0xf]
      %v353 = vunpack.c.l.b16 %v344
      %v354 = vunpack.c.l.b16 %v345
      %v355 = vunpack.c.l.b16 %v346
      %v356 = vpack.c.b16 %v354, %v353
      %v357 = vpack.c.b16 %v355, %v355
      %v360 = vunpack.c.l.b16 %v348
      %v361 = vunpack.c.l.b16 %v349
      %v362 = vpack.c.b16 %v361, %v360
      %v365 = vsel %vm171, %v356, 0
      %v368 = vsel %vm171, %v357, 0
      %370 = vmatpush.bf16.msra.mxu0 0
      %371 = vmatpush.bf16.msra.mxu0 0
      %372 = vmatpush.bf16.msra.mxu0 0
      %373 = vmatpush.bf16.msra.mxu0 0
      %374 = vmatpush.bf16.msra.mxu0 0
      %375 = vmatpush.bf16.msra.mxu0 0
      %376 = vmatpush.bf16.msra.mxu0 0
      %377 = vmatpush.bf16.msra.mxu0 %v362
      %378 = vmatmul.bf16.gmra.mxu0 %v365
      %v379 = vpop.f32.mrf.mxu0
      %v380 = vadd.f32 0.0, %v379
      %v381 = vpop.f32.mrf.mxu0
      %v382 = vadd.f32 0.0, %v381
      %383 = vmatmul.bf16.gmra.mxu0 %v368
      %v384 = vpop.f32.mrf.mxu0
      %v385 = vadd.f32 0.0, %v384
      %v386 = vpop.f32.mrf.mxu0
      %387 = vdwg.mxu0
      %v388 = vadd.f32 %v340, %v380
      %v389 = vadd.f32 %v341, %v382
      %v390 = vadd.f32 %v342, %v385
      %s391 = scalar_lea.vmem %s138, 48
      %v392 = vld [vmem:[%s391] sm:$0xf]
      %v393 = vld [vmem:[%s391 + $0x4] sm:$0xf]
      %v394 = vld [vmem:[%s391 + $0x8] sm:$0x3]
      %s395 = scalar_lea.vmem %s1, 40
      %v396 = vld [vmem:[%s395] sm:$0xf]
      %v397 = vld [vmem:[%s395 + $0x4] sm:$0xf]
      %v401 = vunpack.c.l.b16 %v392
      %v402 = vunpack.c.l.b16 %v393
      %v403 = vunpack.c.l.b16 %v394
      %v404 = vpack.c.b16 %v402, %v401
      %v405 = vpack.c.b16 %v403, %v403
      %v408 = vunpack.c.l.b16 %v396
      %v409 = vunpack.c.l.b16 %v397
      %v410 = vpack.c.b16 %v409, %v408
      %v413 = vsel %vm171, %v404, 0
      %v416 = vsel %vm171, %v405, 0
      %418 = vmatpush.bf16.msra.mxu0 0
      %419 = vmatpush.bf16.msra.mxu0 0
      %420 = vmatpush.bf16.msra.mxu0 0
      %421 = vmatpush.bf16.msra.mxu0 0
      %422 = vmatpush.bf16.msra.mxu0 0
      %423 = vmatpush.bf16.msra.mxu0 0
      %424 = vmatpush.bf16.msra.mxu0 0
      %425 = vmatpush.bf16.msra.mxu0 %v410
      %426 = vmatmul.bf16.gmra.mxu0 %v413
      %v427 = vpop.f32.mrf.mxu0
      %v428 = vadd.f32 0.0, %v427
      %v429 = vpop.f32.mrf.mxu0
      %v430 = vadd.f32 0.0, %v429
      %431 = vmatmul.bf16.gmra.mxu0 %v416
      %v432 = vpop.f32.mrf.mxu0
      %v433 = vadd.f32 0.0, %v432
      %v434 = vpop.f32.mrf.mxu0
      %435 = vdwg.mxu0
      %v436 = vadd.f32 %v388, %v428
      %v437 = vadd.f32 %v389, %v430
      %v438 = vadd.f32 %v390, %v433
      %v439 = vld [vmem:[%s343 + $0x8] sm:$0x7]
      %s440 = scalar_lea.vmem %s1, 48
      %v441 = vld [vmem:[%s440] sm:$0xf]
      %v442 = vld [vmem:[%s440 + $0x4] sm:$0xf]
      %v444 = vunpack.c.l.b16 %v439
      %v445 = vpack.c.b16 %v444, %v444
      %v446 = vshrl.u32 %v356, 16
      %v448 = vshll.u32 %v356, 16
      %v450 = vrot.slane %v448, 1
      %v451 = vor.u32 %v446, %v450
      %v453 = vshll.u32 %v445, 16
      %v455 = vrot.slane %v453, 1
      %v456 = vsel %vm241, %v451, %v455
      %v457 = vshrl.u32 %v445, 16
      %v459 = vor.u32 %v457, %v455
      %v462 = vunpack.c.l.b16 %v441
      %v463 = vunpack.c.l.b16 %v442
      %v464 = vpack.c.b16 %v463, %v462
      %v467 = vsel %vm171, %v456, 0
      %v470 = vsel %vm171, %v459, 0
      %472 = vmatpush.bf16.msra.mxu0 0
      %473 = vmatpush.bf16.msra.mxu0 0
      %474 = vmatpush.bf16.msra.mxu0 0
      %475 = vmatpush.bf16.msra.mxu0 0
      %476 = vmatpush.bf16.msra.mxu0 0
      %477 = vmatpush.bf16.msra.mxu0 0
      %478 = vmatpush.bf16.msra.mxu0 0
      %479 = vmatpush.bf16.msra.mxu0 %v464
      %480 = vmatmul.bf16.gmra.mxu0 %v467
      %v481 = vpop.f32.mrf.mxu0
      %v482 = vadd.f32 0.0, %v481
      %v483 = vpop.f32.mrf.mxu0
      %v484 = vadd.f32 0.0, %v483
      %485 = vmatmul.bf16.gmra.mxu0 %v470
      %v486 = vpop.f32.mrf.mxu0
      %v487 = vadd.f32 0.0, %v486
      %v488 = vpop.f32.mrf.mxu0
      %489 = vdwg.mxu0
      %v490 = vadd.f32 %v436, %v482
      %v491 = vadd.f32 %v437, %v484
      %v492 = vadd.f32 %v438, %v487
      %v493 = vld [vmem:[%s391 + $0x8] sm:$0x7]
      %s494 = scalar_lea.vmem %s1, 56
      %v495 = vld [vmem:[%s494] sm:$0xf]
      %v496 = vld [vmem:[%s494 + $0x4] sm:$0xf]
      %v498 = vunpack.c.l.b16 %v493
      %v499 = vpack.c.b16 %v498, %v498
      %v500 = vshrl.u32 %v404, 16
      %v502 = vshll.u32 %v404, 16
      %v504 = vrot.slane %v502, 1
      %v505 = vor.u32 %v500, %v504
      %v507 = vshll.u32 %v499, 16
      %v509 = vrot.slane %v507, 1
      %v510 = vsel %vm241, %v505, %v509
      %v511 = vshrl.u32 %v499, 16
      %v513 = vor.u32 %v511, %v509
      %v516 = vunpack.c.l.b16 %v495
      %v517 = vunpack.c.l.b16 %v496
      %v518 = vpack.c.b16 %v517, %v516
      %v521 = vsel %vm171, %v510, 0
      %v524 = vsel %vm171, %v513, 0
      %526 = vmatpush.bf16.msra.mxu0 0
      %527 = vmatpush.bf16.msra.mxu0 0
      %528 = vmatpush.bf16.msra.mxu0 0
      %529 = vmatpush.bf16.msra.mxu0 0
      %530 = vmatpush.bf16.msra.mxu0 0
      %531 = vmatpush.bf16.msra.mxu0 0
      %532 = vmatpush.bf16.msra.mxu0 0
      %533 = vmatpush.bf16.msra.mxu0 %v518
      %534 = vmatmul.bf16.gmra.mxu0 %v521
      %v535 = vpop.f32.mrf.mxu0
      %v536 = vadd.f32 0.0, %v535
      %v537 = vpop.f32.mrf.mxu0
      %v538 = vadd.f32 0.0, %v537
      %539 = vmatmul.bf16.gmra.mxu0 %v524
      %v540 = vpop.f32.mrf.mxu0
      %v541 = vadd.f32 0.0, %v540
      %v542 = vpop.f32.mrf.mxu0
      %543 = vdwg.mxu0
      %v544 = vadd.f32 %v490, %v536
      %v545 = vadd.f32 %v491, %v538
      %v546 = vadd.f32 %v492, %v541
      %v547 = vld [vmem:[%s138] sm:$0xc]
      %v548 = vld [vmem:[%s138 + $0x4] sm:$0xf]
      %v549 = vld [vmem:[%s138 + $0x8] sm:$0xf]
      %v550 = vld [vmem:[%s138 + $0xc] sm:$0x1]
      %s551 = scalar_lea.vmem %s1, 64
      %v552 = vld [vmem:[%s551] sm:$0xf]
      %v553 = vld [vmem:[%s551 + $0x4] sm:$0xf]
      %v558 = vunpack.c.l.b16 %v547
      %v559 = vunpack.c.l.b16 %v548
      %v560 = vunpack.c.l.b16 %v549
      %v561 = vunpack.c.l.b16 %v550
      %v562 = vpack.c.b16 %v559, %v558
      %v563 = vpack.c.b16 %v561, %v560
      %vm564 = vsmask.f32 5376
      %v566 = vshrl.u32 %v562, 16
      %v568 = vrot.slane %v566, 2
      %v569 = vshll.u32 %v562, 16
      %v571 = vrot.slane %v569, 3
      %v572 = vor.u32 %v568, %v571
      %v574 = vshrl.u32 %v563, 16
      %v576 = vrot.slane %v574, 2
      %v577 = vshll.u32 %v563, 16
      %v579 = vrot.slane %v577, 3
      %v580 = vor.u32 %v576, %v579
      %v581 = vsel %vm564, %v572, %v580
      %v584 = vunpack.c.l.b16 %v552
      %v585 = vunpack.c.l.b16 %v553
      %v586 = vpack.c.b16 %v585, %v584
      %v589 = vsel %vm171, %v581, 0
      %v592 = vsel %vm171, %v580, 0
      %594 = vmatpush.bf16.msra.mxu0 0
      %595 = vmatpush.bf16.msra.mxu0 0
      %596 = vmatpush.bf16.msra.mxu0 0
      %597 = vmatpush.bf16.msra.mxu0 0
      %598 = vmatpush.bf16.msra.mxu0 0
      %599 = vmatpush.bf16.msra.mxu0 0
      %600 = vmatpush.bf16.msra.mxu0 0
      %601 = vmatpush.bf16.msra.mxu0 %v586
      %602 = vmatmul.bf16.gmra.mxu0 %v589
      %v603 = vpop.f32.mrf.mxu0
      %v604 = vadd.f32 0.0, %v603
      %v605 = vpop.f32.mrf.mxu0
      %v606 = vadd.f32 0.0, %v605
      %607 = vmatmul.bf16.gmra.mxu0 %v592
      %v608 = vpop.f32.mrf.mxu0
      %v609 = vadd.f32 0.0, %v608
      %v610 = vpop.f32.mrf.mxu0
      %611 = vdwg.mxu0
      %v612 = vadd.f32 %v544, %v604
      %v613 = vadd.f32 %v545, %v606
      %v614 = vadd.f32 %v546, %v609
      %v615 = vld [vmem:[%s150] sm:$0xc]
      %v616 = vld [vmem:[%s150 + $0x4] sm:$0xf]
      %v617 = vld [vmem:[%s150 + $0x8] sm:$0xf]
      %v618 = vld [vmem:[%s150 + $0xc] sm:$0x1]
      %s619 = scalar_lea.vmem %s1, 72
      %v620 = vld [vmem:[%s619] sm:$0xf]
      %v621 = vld [vmem:[%s619 + $0x4] sm:$0xf]
      %v626 = vunpack.c.l.b16 %v615
      %v627 = vunpack.c.l.b16 %v616
      %v628 = vunpack.c.l.b16 %v617
      %v629 = vunpack.c.l.b16 %v618
      %v630 = vpack.c.b16 %v627, %v626
      %v631 = vpack.c.b16 %v629, %v628
      %v633 = vshrl.u32 %v630, 16
      %v635 = vrot.slane %v633, 2
      %v636 = vshll.u32 %v630, 16
      %v638 = vrot.slane %v636, 3
      %v639 = vor.u32 %v635, %v638
      %v641 = vshrl.u32 %v631, 16
      %v643 = vrot.slane %v641, 2
      %v644 = vshll.u32 %v631, 16
      %v646 = vrot.slane %v644, 3
      %v647 = vor.u32 %v643, %v646
      %v648 = vsel %vm564, %v639, %v647
      %v651 = vunpack.c.l.b16 %v620
      %v652 = vunpack.c.l.b16 %v621
      %v653 = vpack.c.b16 %v652, %v651
      %v656 = vsel %vm171, %v648, 0
      %v659 = vsel %vm171, %v647, 0
      %661 = vmatpush.bf16.msra.mxu0 0
      %662 = vmatpush.bf16.msra.mxu0 0
      %663 = vmatpush.bf16.msra.mxu0 0
      %664 = vmatpush.bf16.msra.mxu0 0
      %665 = vmatpush.bf16.msra.mxu0 0
      %666 = vmatpush.bf16.msra.mxu0 0
      %667 = vmatpush.bf16.msra.mxu0 0
      %668 = vmatpush.bf16.msra.mxu0 %v653
      %669 = vmatmul.bf16.gmra.mxu0 %v656
      %v670 = vpop.f32.mrf.mxu0
      %v671 = vadd.f32 0.0, %v670
      %v672 = vpop.f32.mrf.mxu0
      %v673 = vadd.f32 0.0, %v672
      %674 = vmatmul.bf16.gmra.mxu0 %v659
      %v675 = vpop.f32.mrf.mxu0
      %v676 = vadd.f32 0.0, %v675
      %v677 = vpop.f32.mrf.mxu0
      %678 = vdwg.mxu0
      %v679 = vadd.f32 %v612, %v671
      %v680 = vadd.f32 %v613, %v673
      %v681 = vadd.f32 %v614, %v676
      %v682 = vld [vmem:[%s138] sm:$0x8]
      %s683 = scalar_lea.vmem %s1, 80
      %v684 = vld [vmem:[%s683] sm:$0xf]
      %v685 = vld [vmem:[%s683 + $0x4] sm:$0xf]
      %v687 = vunpack.c.l.b16 %v682
      %v688 = vpack.c.b16 %v559, %v687
      %vm689 = vcmask 1044480
      %v690 = vrot.slane %v688, 3
      %v691 = vrot.slane %v563, 3
      %v692 = vsel %vm689, %v690, %v691
      %v695 = vunpack.c.l.b16 %v684
      %v696 = vunpack.c.l.b16 %v685
      %v697 = vpack.c.b16 %v696, %v695
      %v700 = vsel %vm171, %v692, 0
      %v703 = vsel %vm171, %v691, 0
      %705 = vmatpush.bf16.msra.mxu0 0
      %706 = vmatpush.bf16.msra.mxu0 0
      %707 = vmatpush.bf16.msra.mxu0 0
      %708 = vmatpush.bf16.msra.mxu0 0
      %709 = vmatpush.bf16.msra.mxu0 0
      %710 = vmatpush.bf16.msra.mxu0 0
      %711 = vmatpush.bf16.msra.mxu0 0
      %712 = vmatpush.bf16.msra.mxu0 %v697
      %713 = vmatmul.bf16.gmra.mxu0 %v700
      %v714 = vpop.f32.mrf.mxu0
      %v715 = vadd.f32 0.0, %v714
      %v716 = vpop.f32.mrf.mxu0
      %v717 = vadd.f32 0.0, %v716
      %718 = vmatmul.bf16.gmra.mxu0 %v703
      %v719 = vpop.f32.mrf.mxu0
      %v720 = vadd.f32 0.0, %v719
      %v721 = vpop.f32.mrf.mxu0
      %722 = vdwg.mxu0
      %v723 = vadd.f32 %v679, %v715
      %v724 = vadd.f32 %v680, %v717
      %v725 = vadd.f32 %v681, %v720
      %v726 = vld [vmem:[%s150] sm:$0x8]
      %s727 = scalar_lea.vmem %s1, 88
      %v728 = vld [vmem:[%s727] sm:$0xf]
      %v729 = vld [vmem:[%s727 + $0x4] sm:$0xf]
      %v731 = vunpack.c.l.b16 %v726
      %v732 = vpack.c.b16 %v627, %v731
      %v733 = vrot.slane %v732, 3
      %v734 = vrot.slane %v631, 3
      %v735 = vsel %vm689, %v733, %v734
      %v738 = vunpack.c.l.b16 %v728
      %v739 = vunpack.c.l.b16 %v729
      %v740 = vpack.c.b16 %v739, %v738
      %v743 = vsel %vm171, %v735, 0
      %v746 = vsel %vm171, %v734, 0
      %748 = vmatpush.bf16.msra.mxu0 0
      %749 = vmatpush.bf16.msra.mxu0 0
      %750 = vmatpush.bf16.msra.mxu0 0
      %751 = vmatpush.bf16.msra.mxu0 0
      %752 = vmatpush.bf16.msra.mxu0 0
      %753 = vmatpush.bf16.msra.mxu0 0
      %754 = vmatpush.bf16.msra.mxu0 0
      %755 = vmatpush.bf16.msra.mxu0 %v740
      %756 = vmatmul.bf16.gmra.mxu0 %v743
      %v757 = vpop.f32.mrf.mxu0
      %v758 = vadd.f32 0.0, %v757
      %v759 = vpop.f32.mrf.mxu0
      %v760 = vadd.f32 0.0, %v759
      %761 = vmatmul.bf16.gmra.mxu0 %v746
      %v762 = vpop.f32.mrf.mxu0
      %v763 = vadd.f32 0.0, %v762
      %v764 = vpop.f32.mrf.mxu0
      %765 = vdwg.mxu0
      %v766 = vadd.f32 %v723, %v758
      %v767 = vadd.f32 %v724, %v760
      %v768 = vadd.f32 %v725, %v763
      %v769 = vld [vmem:[%s343] sm:$0xc]
      %v770 = vld [vmem:[%s343 + $0x4] sm:$0xf]
      %v771 = vld [vmem:[%s343 + $0x8] sm:$0xf]
      %v772 = vld [vmem:[%s343 + $0xc] sm:$0x1]
      %s773 = scalar_lea.vmem %s1, 96
      %v774 = vld [vmem:[%s773] sm:$0xf]
      %v775 = vld [vmem:[%s773 + $0x4] sm:$0xf]
      %v780 = vunpack.c.l.b16 %v769
      %v781 = vunpack.c.l.b16 %v770
      %v782 = vunpack.c.l.b16 %v771
      %v783 = vunpack.c.l.b16 %v772
      %v784 = vpack.c.b16 %v781, %v780
      %v785 = vpack.c.b16 %v783, %v782
      %v787 = vshrl.u32 %v784, 16
      %v789 = vrot.slane %v787, 2
      %v790 = vshll.u32 %v784, 16
      %v792 = vrot.slane %v790, 3
      %v793 = vor.u32 %v789, %v792
      %v795 = vshrl.u32 %v785, 16
      %v797 = vrot.slane %v795, 2
      %v798 = vshll.u32 %v785, 16
      %v800 = vrot.slane %v798, 3
      %v801 = vor.u32 %v797, %v800
      %v802 = vsel %vm564, %v793, %v801
      %v805 = vunpack.c.l.b16 %v774
      %v806 = vunpack.c.l.b16 %v775
      %v807 = vpack.c.b16 %v806, %v805
      %v810 = vsel %vm171, %v802, 0
      %v813 = vsel %vm171, %v801, 0
      %815 = vmatpush.bf16.msra.mxu0 0
      %816 = vmatpush.bf16.msra.mxu0 0
      %817 = vmatpush.bf16.msra.mxu0 0
      %818 = vmatpush.bf16.msra.mxu0 0
      %819 = vmatpush.bf16.msra.mxu0 0
      %820 = vmatpush.bf16.msra.mxu0 0
      %821 = vmatpush.bf16.msra.mxu0 0
      %822 = vmatpush.bf16.msra.mxu0 %v807
      %823 = vmatmul.bf16.gmra.mxu0 %v810
      %v824 = vpop.f32.mrf.mxu0
      %v825 = vadd.f32 0.0, %v824
      %v826 = vpop.f32.mrf.mxu0
      %v827 = vadd.f32 0.0, %v826
      %828 = vmatmul.bf16.gmra.mxu0 %v813
      %v829 = vpop.f32.mrf.mxu0
      %v830 = vadd.f32 0.0, %v829
      %v831 = vpop.f32.mrf.mxu0
      %832 = vdwg.mxu0
      %v833 = vadd.f32 %v766, %v825
      %v834 = vadd.f32 %v767, %v827
      %v835 = vadd.f32 %v768, %v830
      %v836 = vld [vmem:[%s391] sm:$0xc]
      %v837 = vld [vmem:[%s391 + $0x4] sm:$0xf]
      %v838 = vld [vmem:[%s391 + $0x8] sm:$0xf]
      %v839 = vld [vmem:[%s391 + $0xc] sm:$0x1]
      %s840 = scalar_lea.vmem %s1, 104
      %v841 = vld [vmem:[%s840] sm:$0xf]
      %v842 = vld [vmem:[%s840 + $0x4] sm:$0xf]
      %v847 = vunpack.c.l.b16 %v836
      %v848 = vunpack.c.l.b16 %v837
      %v849 = vunpack.c.l.b16 %v838
      %v850 = vunpack.c.l.b16 %v839
      %v851 = vpack.c.b16 %v848, %v847
      %v852 = vpack.c.b16 %v850, %v849
      %v854 = vshrl.u32 %v851, 16
      %v856 = vrot.slane %v854, 2
      %v857 = vshll.u32 %v851, 16
      %v859 = vrot.slane %v857, 3
      %v860 = vor.u32 %v856, %v859
      %v862 = vshrl.u32 %v852, 16
      %v864 = vrot.slane %v862, 2
      %v865 = vshll.u32 %v852, 16
      %v867 = vrot.slane %v865, 3
      %v868 = vor.u32 %v864, %v867
      %v869 = vsel %vm564, %v860, %v868
      %v872 = vunpack.c.l.b16 %v841
      %v873 = vunpack.c.l.b16 %v842
      %v874 = vpack.c.b16 %v873, %v872
      %v877 = vsel %vm171, %v869, 0
      %v880 = vsel %vm171, %v868, 0
      %882 = vmatpush.bf16.msra.mxu0 0
      %883 = vmatpush.bf16.msra.mxu0 0
      %884 = vmatpush.bf16.msra.mxu0 0
      %885 = vmatpush.bf16.msra.mxu0 0
      %886 = vmatpush.bf16.msra.mxu0 0
      %887 = vmatpush.bf16.msra.mxu0 0
      %888 = vmatpush.bf16.msra.mxu0 0
      %889 = vmatpush.bf16.msra.mxu0 %v874
      %890 = vmatmul.bf16.gmra.mxu0 %v877
      %v891 = vpop.f32.mrf.mxu0
      %v892 = vadd.f32 0.0, %v891
      %v893 = vpop.f32.mrf.mxu0
      %v894 = vadd.f32 0.0, %v893
      %895 = vmatmul.bf16.gmra.mxu0 %v880
      %v896 = vpop.f32.mrf.mxu0
      %v897 = vadd.f32 0.0, %v896
      %v898 = vpop.f32.mrf.mxu0
      %899 = vdwg.mxu0
      %v900 = vadd.f32 %v833, %v892
      %v901 = vadd.f32 %v834, %v894
      %v902 = vadd.f32 %v835, %v897
      %v903 = vld [vmem:[%s343] sm:$0x8]
      %s904 = scalar_lea.vmem %s1, 112
      %v905 = vld [vmem:[%s904] sm:$0xf]
      %v906 = vld [vmem:[%s904 + $0x4] sm:$0xf]
      %v908 = vunpack.c.l.b16 %v903
      %v909 = vpack.c.b16 %v781, %v908
      %v910 = vrot.slane %v909, 3
      %v911 = vrot.slane %v785, 3
      %v912 = vsel %vm689, %v910, %v911
      %v915 = vunpack.c.l.b16 %v905
      %v916 = vunpack.c.l.b16 %v906
      %v917 = vpack.c.b16 %v916, %v915
      %v920 = vsel %vm171, %v912, 0
      %v923 = vsel %vm171, %v911, 0
      %925 = vmatpush.bf16.msra.mxu0 0
      %926 = vmatpush.bf16.msra.mxu0 0
      %927 = vmatpush.bf16.msra.mxu0 0
      %928 = vmatpush.bf16.msra.mxu0 0
      %929 = vmatpush.bf16.msra.mxu0 0
      %930 = vmatpush.bf16.msra.mxu0 0
      %931 = vmatpush.bf16.msra.mxu0 0
      %932 = vmatpush.bf16.msra.mxu0 %v917
      %933 = vmatmul.bf16.gmra.mxu0 %v920
      %v934 = vpop.f32.mrf.mxu0
      %v935 = vadd.f32 0.0, %v934
      %v936 = vpop.f32.mrf.mxu0
      %v937 = vadd.f32 0.0, %v936
      %938 = vmatmul.bf16.gmra.mxu0 %v923
      %v939 = vpop.f32.mrf.mxu0
      %v940 = vadd.f32 0.0, %v939
      %v941 = vpop.f32.mrf.mxu0
      %942 = vdwg.mxu0
      %v943 = vadd.f32 %v900, %v935
      %v944 = vadd.f32 %v901, %v937
      %v945 = vadd.f32 %v902, %v940
      %v946 = vld [vmem:[%s391] sm:$0x8]
      %s947 = scalar_lea.vmem %s1, 120
      %v948 = vld [vmem:[%s947] sm:$0xf]
      %v949 = vld [vmem:[%s947 + $0x4] sm:$0xf]
      %v951 = vunpack.c.l.b16 %v946
      %v952 = vpack.c.b16 %v848, %v951
      %v953 = vrot.slane %v952, 3
      %v954 = vrot.slane %v852, 3
      %v955 = vsel %vm689, %v953, %v954
      %v958 = vunpack.c.l.b16 %v948
      %v959 = vunpack.c.l.b16 %v949
      %v960 = vpack.c.b16 %v959, %v958
      %v963 = vsel %vm171, %v955, 0
      %v966 = vsel %vm171, %v954, 0
      %968 = vmatpush.bf16.msra.mxu0 0
      %969 = vmatpush.bf16.msra.mxu0 0
      %970 = vmatpush.bf16.msra.mxu0 0
      %971 = vmatpush.bf16.msra.mxu0 0
      %972 = vmatpush.bf16.msra.mxu0 0
      %973 = vmatpush.bf16.msra.mxu0 0
      %974 = vmatpush.bf16.msra.mxu0 0
      %975 = vmatpush.bf16.msra.mxu0 %v960
      %976 = vmatmul.bf16.gmra.mxu0 %v963
      %v977 = vpop.f32.mrf.mxu0
      %v978 = vadd.f32 0.0, %v977
      %v979 = vpop.f32.mrf.mxu0
      %v980 = vadd.f32 0.0, %v979
      %981 = vmatmul.bf16.gmra.mxu0 %v966
      %v982 = vpop.f32.mrf.mxu0
      %v983 = vadd.f32 0.0, %v982
      %v984 = vpop.f32.mrf.mxu0
      %985 = vdwg.mxu0
      %v986 = vadd.f32 %v943, %v978
      %v987 = vadd.f32 %v944, %v980
      %v988 = vadd.f32 %v945, %v983
      %v989 = vlaneseq
      %v990 = vand.u32 %v989, 127
      %vm991 = vcmp.lt.s32.totalorder %v990, 0
      %v992 = vsub.s32 0, %v990
      %v993 = vsel %vm991, %v992, %v990
      %v994 = vand.u32 %v993, 65535
      %v995 = vshrl.u32 %v993, 16
      %v997 = vmul.u32 %v994, 52429
      %v998 = vmul.u32 %v994, 52428
      %v999 = vmul.u32 %v995, 52429
      %v1000 = vmul.u32 %v995, 52428
      %v1001 = vshll.u32 %v998, 16
      %v1002 = vshrl.u32 %v998, 16
      %v1003 = vshll.u32 %v999, 16
      %v1004 = vshrl.u32 %v999, 16
      %vm1005 = vc.u32 %v997, %v1001
      %v1006 = vsel %vm1005, 1, 0
      %v1007 = vadd.s32 %v997, %v1001
      %v1008 = vadd.s32 %v1000, %v1006
      %vm1009 = vc.u32 %v1007, %v1003
      %v1010 = vsel %vm1009, 1, 0
      %v1011 = vadd.s32 %v1007, %v1003
      %v1012 = vadd.s32 %v1008, %v1010
      %v1013 = vadd.s32 %v1012, %v1002
      %v1014 = vadd.s32 %v1013, %v1004
      %v1015 = vshrl.u32 %v1014, 2
      %v1016 = vmul.u32 %v1015, 5
      %v1017 = vsub.s32 %v993, %v1016
      %v1018 = vsub.s32 0, %v1017
      %v1019 = vsel %vm991, %v1018, %v1017
      %vm1020 = vcmp.ne.s32.totalorder %v1019, 0
      %vm1021 = vcmp.lt.s32.totalorder %v1019, 0
      %vm1022 = vmand %vm1021, %vm1020
      %v1023 = vadd.s32 %v1019, 5
      %v1024 = vsel %vm1022, %v1023, %v1019
      %vm1025 = vcmp.lt.s32.totalorder %v1024, 4
      %v1026 = vsel %vm1025, 1, 0
      %v1027 = vcvt.s32.f32 %v1026
      %vm1028 = vcmask 162816
      %v1030 = vsel %vm1028, %v1027, 0
      %vm1032 = vcmask 1043456
      %v1034 = vsel %vm1032, %v988, 0
      %1036 = vmatpush.msra.mxu0 0.0
      %1037 = vmatpush.msra.mxu0 0.0
      %1038 = vmatpush.msra.mxu0 0.0
      %1039 = vmatpush.msra.mxu0 0.0
      %1040 = vmatpush.msra.mxu0 0.0
      %1041 = vmatpush.msra.mxu0 0.0
      %1042 = vmatpush.msra.mxu0 0.0
      %1043 = vmatpush.msra.mxu0 0.0
      %1044 = vmatpush.msra.mxu0 0.0
      %1045 = vmatpush.msra.mxu0 0.0
      %1046 = vmatpush.msra.mxu0 0.0
      %1047 = vmatpush.msra.mxu0 0.0
      %1048 = vmatpush.msra.mxu0 0.0
      %1049 = vmatpush.msra.mxu0 %v1034
      %1050 = vmatpush.msra.mxu0 %v987
      %1051 = vmatpush.msra.mxu0 %v986
      %1052 = vmatmul.f32.gmra.mxu0 %v1030
      %v1053 = vpop.f32.mrf.mxu0
      %v1054 = vadd.f32 0.0, %v1053
      %1055 = vdwg.mxu0
      %v1056 = vmul.f32 %v1054, 0.0625
      %v1057 = vmul.f32 %v986, %v986
      %v1058 = vmul.f32 %v987, %v987
      %v1059 = vmul.f32 %v988, %v988
      %v1061 = vsel %vm1032, %v1059, 0
      %1063 = vmatpush.msra.mxu0 0.0
      %1064 = vmatpush.msra.mxu0 0.0
      %1065 = vmatpush.msra.mxu0 0.0
      %1066 = vmatpush.msra.mxu0 0.0
      %1067 = vmatpush.msra.mxu0 0.0
      %1068 = vmatpush.msra.mxu0 0.0
      %1069 = vmatpush.msra.mxu0 0.0
      %1070 = vmatpush.msra.mxu0 0.0
      %1071 = vmatpush.msra.mxu0 0.0
      %1072 = vmatpush.msra.mxu0 0.0
      %1073 = vmatpush.msra.mxu0 0.0
      %1074 = vmatpush.msra.mxu0 0.0
      %1075 = vmatpush.msra.mxu0 0.0
      %1076 = vmatpush.msra.mxu0 %v1061
      %1077 = vmatpush.msra.mxu0 %v1058
      %1078 = vmatpush.msra.mxu0 %v1057
      %1079 = vmatmul.f32.gmra.mxu0 %v1030
      %v1080 = vpop.f32.mrf.mxu0
      %v1081 = vadd.f32 0.0, %v1080
      %1082 = vdwg.mxu0
      %v1083 = vmul.f32 %v1081, 0.0625
      %v1084 = vmul.f32 %v1056, %v1056
      %v1085 = vsub.f32 %v1083, %v1084
      %v1086 = vmax.f32 %v1085, 0.0
      %v1087 = vperm.slane %v1056, 0
      %v1088 = vsub.f32 %v986, %v1087
      %v1089 = vsub.f32 %v987, %v1087
      %v1090 = vsub.f32 %v988, %v1087
      %v1091 = vadd.f32 %v1086, 1e-05
      %v1092 = vrsqrt.pop %v1091
      %v1093 = vmul.f32 %v1092, %v1091
      %v1094 = vmul.f32 %v1093, %v1092
      %v1095 = vmul.f32 0.5, %v1094
      %v1096 = vsub.f32 1.5, %v1095
      %v1097 = vmul.f32 %v1092, %v1096
      %vm1098 = vweird.f32 %v1091
      %vm1099 = vweird.f32 %v1092
      %vm1100 = vmor %vm1098, %vm1099
      %v1101 = vsel %vm1100, %v1092, %v1097
      %v1102 = vperm.slane %v1101, 0
      %v1103 = vmul.f32 %v1088, %v1102
      %v1104 = vmul.f32 %v1089, %v1102
      %v1105 = vmul.f32 %v1090, %v1102
      %vm1106 = vcmp.gt.f32.partialorder %v1103, 0.0
      %vm1107 = vcmp.gt.f32.partialorder %v1104, 0.0
      %vm1108 = vcmp.gt.f32.partialorder %v1105, 0.0
      %v1109 = vmul.f32 %v1103, 0.2
      %v1110 = vmul.f32 %v1104, 0.2
      %v1111 = vmul.f32 %v1105, 0.2
      %v1112 = vsel %vm1106, %v1103, %v1109
      %v1113 = vsel %vm1107, %v1104, %v1110
      %v1114 = vsel %vm1108, %v1105, %v1111
      %v1115 = vpack.c.bf16 %v1112, %v1112
      %v1116 = vpack.c.bf16 %v1113, %v1113
      %v1117 = vpack.c.bf16 %v1114, %v1114
      %vm1118 = vcmask 257024
      %1119 = vst.msk [vmem:[%s143] sm:$0xf] %vm1118, %v1115
      %1120 = vst.msk [vmem:[%s143 + $0x4] sm:$0xf] %vm1118, %v1116
      %vm1121 = vcmask 254976
      %1122 = vst.msk [vmem:[%s143 + $0x8] sm:$0x3] %vm1121, %v1117
      %p1123 = scmp.lt.s32.totalorder %s13, 1
      %s1124 = scalar_select %p1123, %s13, 1
      %s1125 = smul.addr %s1124, 3
      %s1126 = smul.addr %s1125, 4
      %s1127 = scalar_lea.vmem %s2, %s1126
      // Predicated region
      $region29: #{discriminator_forward.7} parent=27 // pred_check
        %p1128 = pneg %p78
      $region30: #{discriminator_forward.7} parent=27 // pred_check_branch
        %1130 = sbr.rel (%p1128) target = $region32
      $region31: #{discriminator_forward.7} parent=27 // pred_region
        _
      $region32: #{discriminator_forward.7} parent=27 // pred_fallthru
        _
    $region28: #{discriminator_forward.7} parent=5 // pred_fallthru
      _
    %p1131 = scmp.le.s32.totalorder 2, %s8
    // Predicated region
    $region33: #{discriminator_forward.7} parent=5 // pred_check
      %p1132 = pneg %p1131
    $region34: #{discriminator_forward.7} parent=5 // pred_check_branch
      %1134 = sbr.rel (%p1132) target = $region36
    $region35: #{discriminator_forward.7} parent=5 // pred_region
      %s1135 = ssub.s32 %s8, 2
      // Predicated region
      $region37: #{discriminator_forward.7} parent=35 // pred_check
        %p1136 = pneg %p84
      $region38: #{discriminator_forward.7} parent=35 // pred_check_branch
        %1138 = sbr.rel (%p1136) target = $region40
      $region39: #{discriminator_forward.7} parent=35 // pred_region
        %p1139 = scmp.lt.s32.totalorder %s14, 1
        %s1140 = scalar_select %p1139, %s14, 1
        %s1141 = smul.addr %s1140, 3
        %s1142 = smul.addr %s1141, 4
        %s1143 = scalar_lea.vmem %s2, %s1142
      $region40: #{discriminator_forward.7} parent=35 // pred_fallthru
        _
    $region36: #{discriminator_forward.7} parent=5 // pred_fallthru
      _
  $region6: #{discriminator_forward.7} parent=0 // loop_footer
    %s12 = sadd.s32 1, %s8
  $region7: #{discriminator_forward.7} parent=0 // loop_footer_branch
    %7 = sbr.rel target = $region3
  $region8: #{discriminator_forward.7} parent=0 // loop_exit
    _

// kernel: discriminator_forward.8
$region0: #{discriminator_forward.8}
  #allocation0 [shape = 'u32[]', space=smem, size = 0x4, offset = 0x4, fixed_abs, tag = 'smem constant byte address 0x4 - core index']
  #allocation1 [shape = 'u32[72,128]{1,0:T(1,128)}', space=vmem, size = 0x9000, scoped, tag = 'internal scratch']
  %s0 = inlined_call_operand.vmem [shape: bf16[2,1,42,32], index: 0, kind: input, shape index: {}]
  %s1 = inlined_call_operand.vmem [shape: bf16[16,32,64], index: 1, kind: input, shape index: {}]
  %s2 = inlined_call_operand.vmem [shape: bf16[2,18,64], index: 2, kind: output, shape index: {}]
  %s3 = sld [smem:[#allocation0]]
  $region41: #{discriminator_forward.8} parent=0
    _
  %s5 = ssub.s32 1, %s3
  %s6 = scalar_select 0, %s5, %s3
  loop: start=0, step=1, limit=4
  $region2: #{discriminator_forward.8} parent=0 // loop_pre_header
    _
  $region3: #{discriminator_forward.8} parent=0 // loop_header
    %s8 = sphi 0, %s12
    %p9 = scmp.ge.s32.totalorder %s8, 4
    %s18 = sphi 0, %s20
    %s21 = sphi 0, %s18
    %s22 = sphi 0, %s21
    %s38 = sphi 0, %s22
    %s42 = sphi 0, %s42
    %s44 = sphi 0, %s42
    %s45 = sphi 0, %s44
    %s59 = sphi 0, %s45
    %s65 = sphi 0, %s67
    %s68 = sphi 0, %s65
    %s69 = sphi 0, %s68
    %s85 = sphi 0, %s69
  $region4: #{discriminator_forward.8} parent=0 // loop_header_branch
    %11 = sbr.rel (%p9) target = $region8
  $region5: #{discriminator_forward.8} parent=0 // loop_body
    %s13 = ssub.s32 %s8, 1
    %s14 = ssub.s32 %s8, 2
    %s15 = sadd.s32 %s8, 1
    %s16 = ssub.s32 %s8, %s15
    %p17 = scmp.eq.s32.totalorder %s16, 0
    %s19 = sadd.s32 %s18, 1
    %s20 = scalar_select %p17, %s18, %s19
    %p23 = pneg %p17
    %p24 = scmp.eq.s32.totalorder %s8, 1
    %p25 = por %p23, %p24
    %p26 = scmp.ne.s32.totalorder %s18, %s21
    %p27 = scmp.eq.s32.totalorder %s8, 0
    %p28 = por %p26, %p27
    %p29 = scmp.ne.s32.totalorder %s18, %s21
    %p30 = scmp.eq.s32.totalorder %s13, 1
    %p31 = por %p29, %p30
    %p32 = scmp.ne.s32.totalorder %s21, %s22
    %p33 = scmp.eq.s32.totalorder %s13, 0
    %p34 = por %p32, %p33
    %p35 = scmp.ne.s32.totalorder %s21, %s22
    %p36 = scmp.eq.s32.totalorder %s14, 1
    %p37 = por %p35, %p36
    %p39 = scmp.ne.s32.totalorder %s22, %s38
    %p40 = scmp.eq.s32.totalorder %s14, 0
    %p41 = por %p39, %p40
    %s43 = sadd.s32 %s42, 1
    %p46 = scmp.eq.s32.totalorder %s8, 1
    %p47 = scmp.ne.s32.totalorder %s42, %s44
    %p48 = scmp.eq.s32.totalorder %s8, 0
    %p49 = por %p47, %p48
    %p50 = scmp.ne.s32.totalorder %s42, %s44
    %p51 = scmp.eq.s32.totalorder %s13, 1
    %p52 = por %p50, %p51
    %p53 = scmp.ne.s32.totalorder %s44, %s45
    %p54 = scmp.eq.s32.totalorder %s13, 0
    %p55 = por %p53, %p54
    %p56 = scmp.ne.s32.totalorder %s44, %s45
    %p57 = scmp.eq.s32.totalorder %s14, 1
    %p58 = por %p56, %p57
    %p60 = scmp.ne.s32.totalorder %s45, %s59
    %p61 = scmp.eq.s32.totalorder %s14, 0
    %p62 = por %p60, %p61
    %s63 = ssub.s32 %s8, %s15
    %p64 = scmp.eq.s32.totalorder %s63, 0
    %s66 = sadd.s32 %s65, 1
    %s67 = scalar_select %p64, %s65, %s66
    %p70 = pneg %p64
    %p71 = scmp.eq.s32.totalorder %s8, 1
    %p72 = por %p70, %p71
    %p73 = scmp.ne.s32.totalorder %s65, %s68
    %p74 = scmp.eq.s32.totalorder %s8, 0
    %p75 = por %p73, %p74
    %p76 = scmp.ne.s32.totalorder %s65, %s68
    %p77 = scmp.eq.s32.totalorder %s13, 1
    %p78 = por %p76, %p77
    %p79 = scmp.ne.s32.totalorder %s68, %s69
    %p80 = scmp.eq.s32.totalorder %s13, 0
    %p81 = por %p79, %p80
    %p82 = scmp.ne.s32.totalorder %s68, %s69
    %p83 = scmp.eq.s32.totalorder %s14, 1
    %p84 = por %p82, %p83
    %p86 = scmp.ne.s32.totalorder %s69, %s85
    %p87 = scmp.eq.s32.totalorder %s14, 0
    %p88 = por %p86, %p87
    %p89 = scmp.le.s32.totalorder 1, %s8
    %p90 = scmp.lt.s32.totalorder %s8, 3
    %p91 = pnand %p89, %p90
    %p92 = pneg %p91
    // Predicated region
    $region9: #{discriminator_forward.8} parent=5 // pred_check
      _
    $region10: #{discriminator_forward.8} parent=5 // pred_check_branch
      %94 = sbr.rel (%p91) target = $region12
    $region11: #{discriminator_forward.8} parent=5 // pred_region
      %s95 = ssub.s32 %s8, 1
      // Predicated region
      $region13: #{discriminator_forward.8} parent=11 // pred_check
        %p96 = pneg %p55
      $region14: #{discriminator_forward.8} parent=11 // pred_check_branch
        %98 = sbr.rel (%p96) target = $region16
      $region15: #{discriminator_forward.8} parent=11 // pred_region
        _
      $region16: #{discriminator_forward.8} parent=11 // pred_fallthru
        _
    $region12: #{discriminator_forward.8} parent=5 // pred_fallthru
      _
    %p99 = scmp.lt.s32.totalorder %s8, 2
    // Predicated region
    $region17: #{discriminator_forward.8} parent=5 // pred_check
      %p100 = pneg %p99
    $region18: #{discriminator_forward.8} parent=5 // pred_check_branch
      %102 = sbr.rel (%p100) target = $region20
    $region19: #{discriminator_forward.8} parent=5 // pred_region
      // Predicated region
      $region21: #{discriminator_forward.8} parent=19 // pred_check
        %p103 = pneg %p28
      $region22: #{discriminator_forward.8} parent=19 // pred_check_branch
        %105 = sbr.rel (%p103) target = $region24
      $region23: #{discriminator_forward.8} parent=19 // pred_region
        %p106 = scmp.lt.s32.totalorder %s8, 1
        %s107 = scalar_select %p106, %s8, 1
        %s108 = smul.addr %s107, 6
        %s109 = smul.addr %s108, 4
        %s110 = scalar_lea.vmem %s0, %s109
      $region24: #{discriminator_forward.8} parent=19 // pred_fallthru
        _
    $region20: #{discriminator_forward.8} parent=5 // pred_fallthru
      _
    %p111 = scmp.le.s32.totalorder 1, %s8
    %p112 = scmp.lt.s32.totalorder %s8, 3
    %p113 = pnand %p111, %p112
    %p114 = pneg %p113
    // Predicated region
    $region25: #{discriminator_forward.8} parent=5 // pred_check
      _
    $region26: #{discriminator_forward.8} parent=5 // pred_check_branch
      %116 = sbr.rel (%p113) target = $region28
    $region27: #{discriminator_forward.8} parent=5 // pred_region
      %s117 = ssub.s32 %s8, 1
      %p118 = scmp.lt.s32.totalorder %s13, 1
      %s119 = scalar_select %p118, %s13, 1
      %s120 = smul.addr %s119, 6
      %s121 = smul.addr %s120, 4
      %s122 = scalar_lea.vmem %s0, %s121
      %p123 = pneg %p34
      %p124 = pneg %p31
      %p125 = pneg %p55
      %p126 = pneg %p52
      %p127 = pneg %p81
      %p128 = pneg %p78
      %p129 = scmp.lt.s32.totalorder %s13, 1
      %s130 = scalar_select %p129, %s13, 1
      %s131 = smul.addr %s130, 3
      %s132 = smul.addr %s131, 4
      %s133 = scalar_lea.vmem %s2, %s132
      %p134 = scmp.lt.s32.totalorder %s13, 1
      %s135 = scalar_select %p134, %s13, 1
      %s136 = smul.addr %s135, 6
      %s137 = smul.addr %s136, 4
      %s138 = scalar_lea.vmem %s0, %s137
      %p139 = scmp.lt.s32.totalorder %s13, 1
      %s140 = scalar_select %p139, %s13, 1
      %s141 = smul.addr %s140, 3
      %s142 = smul.addr %s141, 4
      %s143 = scalar_lea.vmem %s2, %s142
      %v145 = vld [vmem:[%s138] sm:$0xf]
      %v146 = vld [vmem:[%s138 + $0x4] sm:$0xf]
      %v147 = vld [vmem:[%s138 + $0x8] sm:$0x1]
      %v148 = vld [vmem:[%s1] sm:$0xf]
      %v149 = vld [vmem:[%s1 + $0x4] sm:$0xf]
      %v150 = vld [vmem:[%s1 + $0x8] sm:$0xf]
      %v151 = vld [vmem:[%s1 + $0xc] sm:$0xf]
      %v152 = vld [vmem:[%s138 + $0x8] sm:$0x3]
      %s153 = scalar_lea.vmem %s1, 16
      %v154 = vld [vmem:[%s153] sm:$0xf]
      %v155 = vld [vmem:[%s153 + $0x4] sm:$0xf]
      %v156 = vld [vmem:[%s153 + $0x8] sm:$0xf]
      %v157 = vld [vmem:[%s153 + $0xc] sm:$0xf]
      %v161 = vunpack.c.l.b16 %v145
      %v162 = vunpack.c.l.b16 %v146
      %v163 = vunpack.c.l.b16 %v152
      %v164 = vpack.c.b16 %v162, %v161
      %v165 = vpack.c.b16 %v163, %v163
      %vm166 = vsmask.f32 7424
      %v168 = vshrl.u32 %v164, 16
      %v170 = vshll.u32 %v164, 16
      %v172 = vrot.slane %v170, 1
      %v173 = vor.u32 %v168, %v172
      %v175 = vshll.u32 %v165, 16
      %v177 = vrot.slane %v175, 1
      %v178 = vsel %vm166, %v173, %v177
      %v179 = vshrl.u32 %v165, 16
      %v181 = vor.u32 %v179, %v177
      %v186 = vunpack.c.l.b16 %v154
      %v187 = vunpack.c.l.b16 %v155
      %v188 = vunpack.c.l.b16 %v156
      %v189 = vunpack.c.l.b16 %v157
      %v190 = vpack.c.b16 %v187, %v186
      %v191 = vpack.c.b16 %v189, %v188
      %vm194 = vcmask 261120
      %v196 = vsel %vm194, %v178, 0
      %v199 = vsel %vm194, %v181, 0
      %201 = vmatpush.bf16.msra.mxu0 0
      %202 = vmatpush.bf16.msra.mxu0 0
      %203 = vmatpush.bf16.msra.mxu0 0
      %204 = vmatpush.bf16.msra.mxu0 0
      %205 = vmatpush.bf16.msra.mxu0 0
      %206 = vmatpush.bf16.msra.mxu0 0
      %207 = vmatpush.bf16.msra.mxu0 %v191
      %208 = vmatpush.bf16.msra.mxu0 %v190
      %209 = vmatmul.bf16.gmra.mxu0 %v196
      %v210 = vpop.f32.mrf.mxu0
      %v211 = vadd.f32 0.0, %v210
      %v212 = vpop.f32.mrf.mxu0
      %v213 = vadd.f32 0.0, %v212
      %214 = vmatmul.bf16.gmra.mxu0 %v199
      %v215 = vpop.f32.mrf.mxu0
      %v216 = vadd.f32 0.0, %v215
      %v217 = vpop.f32.mrf.mxu0
      %218 = vdwg.mxu0
      %v220 = vunpack.c.l.b16 %v147
      %v221 = vpack.c.b16 %v220, %v220
      %v226 = vunpack.c.l.b16 %v148
      %v227 = vunpack.c.l.b16 %v149
      %v228 = vunpack.c.l.b16 %v150
      %v229 = vunpack.c.l.b16 %v151
      %v230 = vpack.c.b16 %v227, %v226
      %v231 = vpack.c.b16 %v229, %v228
      %v234 = vsel %vm194, %v164, 0
      %v237 = vsel %vm194, %v221, 0
      %239 = vmatpush.bf16.msra.mxu0 0
      %240 = vmatpush.bf16.msra.mxu0 0
      %241 = vmatpush.bf16.msra.mxu0 0
      %242 = vmatpush.bf16.msra.mxu0 0
      %243 = vmatpush.bf16.msra.mxu0 0
      %244 = vmatpush.bf16.msra.mxu0 0
      %245 = vmatpush.bf16.msra.mxu0 %v231
      %246 = vmatpush.bf16.msra.mxu0 %v230
      %247 = vmatmul.bf16.gmra.mxu0 %v234
      %v248 = vpop.f32.mrf.mxu0
      %v249 = vadd.f32 %v211, %v248
      %v250 = vpop.f32.mrf.mxu0
      %v251 = vadd.f32 %v213, %v250
      %252 = vmatmul.bf16.gmra.mxu0 %v237
      %v253 = vpop.f32.mrf.mxu0
      %v254 = vadd.f32 %v216, %v253
      %v255 = vpop.f32.mrf.mxu0
      %256 = vdwg.mxu0
      %v257 = vld [vmem:[%s138] sm:$0xe]
      %s258 = scalar_lea.vmem %s1, 32
      %v259 = vld [vmem:[%s258] sm:$0xf]
      %v260 = vld [vmem:[%s258 + $0x4] sm:$0xf]
      %v261 = vld [vmem:[%s258 + $0x8] sm:$0xf]
      %v262 = vld [vmem:[%s258 + $0xc] sm:$0xf]
      %v264 = vunpack.c.l.b16 %v257
      %v265 = vpack.c.b16 %v162, %v264
      %vm266 = vcmask 1046528
      %v267 = vrot.slane %v265, 1
      %v268 = vrot.slane %v165, 1
      %v269 = vsel %vm266, %v267, %v268
      %v274 = vunpack.c.l.b16 %v259
      %v275 = vunpack.c.l.b16 %v260
      %v276 = vunpack.c.l.b16 %v261
      %v277 = vunpack.c.l.b16 %v262
      %v278 = vpack.c.b16 %v275, %v274
      %v279 = vpack.c.b16 %v277, %v276
      %v283 = vsel %vm194, %v269, 0
      %v286 = vsel %vm194, %v268, 0
      %288 = vmatpush.bf16.msra.mxu0 0
      %289 = vmatpush.bf16.msra.mxu0 0
      %290 = vmatpush.bf16.msra.mxu0 0
      %291 = vmatpush.bf16.msra.mxu0 0
      %292 = vmatpush.bf16.msra.mxu0 0
      %293 = vmatpush.bf16.msra.mxu0 0
      %294 = vmatpush.bf16.msra.mxu0 %v279
      %295 = vmatpush.bf16.msra.mxu0 %v278
      %296 = vmatmul.bf16.gmra.mxu0 %v283
      %v297 = vpop.f32.mrf.mxu0
      %v298 = vadd.f32 0.0, %v297
      %v299 = vpop.f32.mrf.mxu0
      %v300 = vadd.f32 0.0, %v299
      %301 = vmatmul.bf16.gmra.mxu0 %v286
      %v302 = vpop.f32.mrf.mxu0
      %v303 = vadd.f32 0.0, %v302
      %v304 = vpop.f32.mrf.mxu0
      %305 = vdwg.mxu0
      %v306 = vadd.f32 %v249, %v298
      %v307 = vadd.f32 %v251, %v300
      %v308 = vadd.f32 %v254, %v303
      %v309 = vld [vmem:[%s138 + $0x8] sm:$0x7]
      %s310 = scalar_lea.vmem %s1, 48
      %v311 = vld [vmem:[%s310] sm:$0xf]
      %v312 = vld [vmem:[%s310 + $0x4] sm:$0xf]
      %v313 = vld [vmem:[%s310 + $0x8] sm:$0xf]
      %v314 = vld [vmem:[%s310 + $0xc] sm:$0xf]
      %v316 = vunpack.c.l.b16 %v309
      %v317 = vpack.c.b16 %v316, %v316
      %vm318 = vsmask.f32 6400
      %v320 = vshrl.u32 %v265, 16
      %v322 = vrot.slane %v320, 1
      %v323 = vshll.u32 %v265, 16
      %v325 = vrot.slane %v323, 2
      %v326 = vor.u32 %v322, %v325
      %v328 = vshrl.u32 %v317, 16
      %v330 = vrot.slane %v328, 1
      %v331 = vshll.u32 %v317, 16
      %v333 = vrot.slane %v331, 2
      %v334 = vor.u32 %v330, %v333
      %v335 = vsel %vm318, %v326, %v334
      %v340 = vunpack.c.l.b16 %v311
      %v341 = vunpack.c.l.b16 %v312
      %v342 = vunpack.c.l.b16 %v313
      %v343 = vunpack.c.l.b16 %v314
      %v344 = vpack.c.b16 %v341, %v340
      %v345 = vpack.c.b16 %v343, %v342
      %v349 = vsel %vm194, %v335, 0
      %v352 = vsel %vm194, %v334, 0
      %354 = vmatpush.bf16.msra.mxu0 0
      %355 = vmatpush.bf16.msra.mxu0 0
      %356 = vmatpush.bf16.msra.mxu0 0
      %357 = vmatpush.bf16.msra.mxu0 0
      %358 = vmatpush.bf16.msra.mxu0 0
      %359 = vmatpush.bf16.msra.mxu0 0
      %360 = vmatpush.bf16.msra.mxu0 %v345
      %361 = vmatpush.bf16.msra.mxu0 %v344
      %362 = vmatmul.bf16.gmra.mxu0 %v349
      %v363 = vpop.f32.mrf.mxu0
      %v364 = vadd.f32 0.0, %v363
      %v365 = vpop.f32.mrf.mxu0
      %v366 = vadd.f32 0.0, %v365
      %367 = vmatmul.bf16.gmra.mxu0 %v352
      %v368 = vpop.f32.mrf.mxu0
      %v369 = vadd.f32 0.0, %v368
      %v370 = vpop.f32.mrf.mxu0
      %371 = vdwg.mxu0
      %v372 = vadd.f32 %v306, %v364
      %v373 = vadd.f32 %v307, %v366
      %v374 = vadd.f32 %v308, %v369
      %v375 = vld [vmem:[%s138] sm:$0x8]
      %v376 = vld [vmem:[%s138 + $0x8] sm:$0xf]
      %s377 = scalar_lea.vmem %s1, 64
      %v378 = vld [vmem:[%s377] sm:$0xf]
      %v379 = vld [vmem:[%s377 + $0x4] sm:$0xf]
      %v380 = vld [vmem:[%s377 + $0x8] sm:$0xf]
      %v381 = vld [vmem:[%s377 + $0xc] sm:$0xf]
      %v384 = vunpack.c.l.b16 %v375
      %v385 = vunpack.c.l.b16 %v376
      %v386 = vpack.c.b16 %v162, %v384
      %v387 = vpack.c.b16 %v385, %v385
      %vm388 = vcmask 1044480
      %v389 = vrot.slane %v386, 3
      %v390 = vrot.slane %v387, 3
      %v391 = vsel %vm388, %v389, %v390
      %v396 = vunpack.c.l.b16 %v378
      %v397 = vunpack.c.l.b16 %v379
      %v398 = vunpack.c.l.b16 %v380
      %v399 = vunpack.c.l.b16 %v381
      %v400 = vpack.c.b16 %v397, %v396
      %v401 = vpack.c.b16 %v399, %v398
      %v405 = vsel %vm194, %v391, 0
      %v408 = vsel %vm194, %v390, 0
      %410 = vmatpush.bf16.msra.mxu0 0
      %411 = vmatpush.bf16.msra.mxu0 0
      %412 = vmatpush.bf16.msra.mxu0 0
      %413 = vmatpush.bf16.msra.mxu0 0
      %414 = vmatpush.bf16.msra.mxu0 0
      %415 = vmatpush.bf16.msra.mxu0 0
      %416 = vmatpush.bf16.msra.mxu0 %v401
      %417 = vmatpush.bf16.msra.mxu0 %v400
      %418 = vmatmul.bf16.gmra.mxu0 %v405
      %v419 = vpop.f32.mrf.mxu0
      %v420 = vadd.f32 0.0, %v419
      %v421 = vpop.f32.mrf.mxu0
      %v422 = vadd.f32 0.0, %v421
      %423 = vmatmul.bf16.gmra.mxu0 %v408
      %v424 = vpop.f32.mrf.mxu0
      %v425 = vadd.f32 0.0, %v424
      %v426 = vpop.f32.mrf.mxu0
      %427 = vdwg.mxu0
      %v428 = vadd.f32 %v372, %v420
      %v429 = vadd.f32 %v373, %v422
      %v430 = vadd.f32 %v374, %v425
      %v431 = vld [vmem:[%s138] sm:$0x8]
      %v432 = vld [vmem:[%s138 + $0x4] sm:$0xf]
      %v433 = vld [vmem:[%s138 + $0x8] sm:$0xf]
      %v434 = vld [vmem:[%s138 + $0xc] sm:$0x1]
      %s435 = scalar_lea.vmem %s1, 80
      %v436 = vld [vmem:[%s435] sm:$0xf]
      %v437 = vld [vmem:[%s435 + $0x4] sm:$0xf]
      %v438 = vld [vmem:[%s435 + $0x8] sm:$0xf]
      %v439 = vld [vmem:[%s435 + $0xc] sm:$0xf]
      %v444 = vunpack.c.l.b16 %v431
      %v445 = vunpack.c.l.b16 %v432
      %v446 = vunpack.c.l.b16 %v433
      %v447 = vunpack.c.l.b16 %v434
      %v448 = vpack.c.b16 %v445, %v444
      %v449 = vpack.c.b16 %v447, %v446
      %vm450 = vsmask.f32 4352
      %v452 = vshrl.u32 %v448, 16
      %v454 = vrot.slane %v452, 3
      %v455 = vshll.u32 %v448, 16
      %v457 = vrot.slane %v455, 4
      %v458 = vor.u32 %v454, %v457
      %v460 = vshrl.u32 %v449, 16
      %v462 = vrot.slane %v460, 3
      %v463 = vshll.u32 %v449, 16
      %v465 = vrot.slane %v463, 4
      %v466 = vor.u32 %v462, %v465
      %v467 = vsel %vm450, %v458, %v466
      %v472 = vunpack.c.l.b16 %v436
      %v473 = vunpack.c.l.b16 %v437
      %v474 = vunpack.c.l.b16 %v438
      %v475 = vunpack.c.l.b16 %v439
      %v476 = vpack.c.b16 %v473, %v472
      %v477 = vpack.c.b16 %v475, %v474
      %v481 = vsel %vm194, %v467, 0
      %v484 = vsel %vm194, %v466, 0
      %486 = vmatpush.bf16.msra.mxu0 0
      %487 = vmatpush.bf16.msra.mxu0 0
      %488 = vmatpush.bf16.msra.mxu0 0
      %489 = vmatpush.bf16.msra.mxu0 0
      %490 = vmatpush.bf16.msra.mxu0 0
      %491 = vmatpush.bf16.msra.mxu0 0
      %492 = vmatpush.bf16.msra.mxu0 %v477
      %493 = vmatpush.bf16.msra.mxu0 %v476
      %494 = vmatmul.bf16.gmra.mxu0 %v481
      %v495 = vpop.f32.mrf.mxu0
      %v496 = vadd.f32 0.0, %v495
      %v497 = vpop.f32.mrf.mxu0
      %v498 = vadd.f32 0.0, %v497
      %499 = vmatmul.bf16.gmra.mxu0 %v484
      %v500 = vpop.f32.mrf.mxu0
      %v501 = vadd.f32 0.0, %v500
      %v502 = vpop.f32.mrf.mxu0
      %503 = vdwg.mxu0
      %v504 = vadd.f32 %v428, %v496
      %v505 = vadd.f32 %v429, %v498
      %v506 = vadd.f32 %v430, %v501
      %s507 = scalar_lea.vmem %s1, 96
      %v508 = vld [vmem:[%s507] sm:$0xf]
      %v509 = vld [vmem:[%s507 + $0x4] sm:$0xf]
      %v510 = vld [vmem:[%s507 + $0x8] sm:$0xf]
      %v511 = vld [vmem:[%s507 + $0xc] sm:$0xf]
      %v512 = vpack.c.b16 %v446, %v445
      %v513 = vpack.c.b16 %v447, %v447
      %v518 = vunpack.c.l.b16 %v508
      %v519 = vunpack.c.l.b16 %v509
      %v520 = vunpack.c.l.b16 %v510
      %v521 = vunpack.c.l.b16 %v511
      %v522 = vpack.c.b16 %v519, %v518
      %v523 = vpack.c.b16 %v521, %v520
      %v527 = vsel %vm194, %v512, 0
      %v530 = vsel %vm194, %v513, 0
      %532 = vmatpush.bf16.msra.mxu0 0
      %533 = vmatpush.bf16.msra.mxu0 0
      %534 = vmatpush.bf16.msra.mxu0 0
      %535 = vmatpush.bf16.msra.mxu0 0
      %536 = vmatpush.bf16.msra.mxu0 0
      %537 = vmatpush.bf16.msra.mxu0 0
      %538 = vmatpush.bf16.msra.mxu0 %v523
      %539 = vmatpush.bf16.msra.mxu0 %v522
      %540 = vmatmul.bf16.gmra.mxu0 %v527
      %v541 = vpop.f32.mrf.mxu0
      %v542 = vadd.f32 0.0, %v541
      %v543 = vpop.f32.mrf.mxu0
      %v544 = vadd.f32 0.0, %v543
      %545 = vmatmul.bf16.gmra.mxu0 %v530
      %v546 = vpop.f32.mrf.mxu0
      %v547 = vadd.f32 0.0, %v546
      %v548 = vpop.f32.mrf.mxu0
      %549 = vdwg.mxu0
      %v550 = vadd.f32 %v504, %v542
      %v551 = vadd.f32 %v505, %v544
      %v552 = vadd.f32 %v506, %v547
      %v553 = vld [vmem:[%s138 + $0xc] sm:$0x3]
      %s554 = scalar_lea.vmem %s1, 112
      %v555 = vld [vmem:[%s554] sm:$0xf]
      %v556 = vld [vmem:[%s554 + $0x4] sm:$0xf]
      %v557 = vld [vmem:[%s554 + $0x8] sm:$0xf]
      %v558 = vld [vmem:[%s554 + $0xc] sm:$0xf]
      %v560 = vunpack.c.l.b16 %v553
      %v561 = vpack.c.b16 %v560, %v560
      %v562 = vshrl.u32 %v512, 16
      %v564 = vshll.u32 %v512, 16
      %v566 = vrot.slane %v564, 1
      %v567 = vor.u32 %v562, %v566
      %v569 = vshll.u32 %v561, 16
      %v571 = vrot.slane %v569, 1
      %v572 = vsel %vm166, %v567, %v571
      %v573 = vshrl.u32 %v561, 16
      %v575 = vor.u32 %v573, %v571
      %v580 = vunpack.c.l.b16 %v555
      %v581 = vunpack.c.l.b16 %v556
      %v582 = vunpack.c.l.b16 %v557
      %v583 = vunpack.c.l.b16 %v558
      %v584 = vpack.c.b16 %v581, %v580
      %v585 = vpack.c.b16 %v583, %v582
      %v589 = vsel %vm194, %v572, 0
      %v592 = vsel %vm194, %v575, 0
      %594 = vmatpush.bf16.msra.mxu0 0
      %595 = vmatpush.bf16.msra.mxu0 0
      %596 = vmatpush.bf16.msra.mxu0 0
      %597 = vmatpush.bf16.msra.mxu0 0
      %598 = vmatpush.bf16.msra.mxu0 0
      %599 = vmatpush.bf16.msra.mxu0 0
      %600 = vmatpush.bf16.msra.mxu0 %v585
      %601 = vmatpush.bf16.msra.mxu0 %v584
      %602 = vmatmul.bf16.gmra.mxu0 %v589
      %v603 = vpop.f32.mrf.mxu0
      %v604 = vadd.f32 0.0, %v603
      %v605 = vpop.f32.mrf.mxu0
      %v606 = vadd.f32 0.0, %v605
      %607 = vmatmul.bf16.gmra.mxu0 %v592
      %v608 = vpop.f32.mrf.mxu0
      %v609 = vadd.f32 0.0, %v608
      %v610 = vpop.f32.mrf.mxu0
      %611 = vdwg.mxu0
      %v612 = vadd.f32 %v550, %v604
      %v613 = vadd.f32 %v551, %v606
      %v614 = vadd.f32 %v552, %v609
      %v615 = vld [vmem:[%s138 + $0x4] sm:$0xc]
      %v616 = vld [vmem:[%s138 + $0xc] sm:$0x7]
      %s617 = scalar_lea.vmem %s1, 128
      %v618 = vld [vmem:[%s617] sm:$0xf]
      %v619 = vld [vmem:[%s617 + $0x4] sm:$0xf]
      %v620 = vld [vmem:[%s617 + $0x8] sm:$0xf]
      %v621 = vld [vmem:[%s617 + $0xc] sm:$0xf]
      %v624 = vunpack.c.l.b16 %v615
      %v625 = vunpack.c.l.b16 %v616
      %v626 = vpack.c.b16 %v446, %v624
      %v627 = vpack.c.b16 %v625, %v625
      %vm628 = vcmask 1045504
      %v629 = vrot.slane %v626, 2
      %v630 = vrot.slane %v627, 2
      %v631 = vsel %vm628, %v629, %v630
      %v636 = vunpack.c.l.b16 %v618
      %v637 = vunpack.c.l.b16 %v619
      %v638 = vunpack.c.l.b16 %v620
      %v639 = vunpack.c.l.b16 %v621
      %v640 = vpack.c.b16 %v637, %v636
      %v641 = vpack.c.b16 %v639, %v638
      %v645 = vsel %vm194, %v631, 0
      %v648 = vsel %vm194, %v630, 0
      %650 = vmatpush.bf16.msra.mxu0 0
      %651 = vmatpush.bf16.msra.mxu0 0
      %652 = vmatpush.bf16.msra.mxu0 0
      %653 = vmatpush.bf16.msra.mxu0 0
      %654 = vmatpush.bf16.msra.mxu0 0
      %655 = vmatpush.bf16.msra.mxu0 0
      %656 = vmatpush.bf16.msra.mxu0 %v641
      %657 = vmatpush.bf16.msra.mxu0 %v640
      %658 = vmatmul.bf16.gmra.mxu0 %v645
      %v659 = vpop.f32.mrf.mxu0
      %v660 = vadd.f32 0.0, %v659
      %v661 = vpop.f32.mrf.mxu0
      %v662 = vadd.f32 0.0, %v661
      %663 = vmatmul.bf16.gmra.mxu0 %v648
      %v664 = vpop.f32.mrf.mxu0
      %v665 = vadd.f32 0.0, %v664
      %v666 = vpop.f32.mrf.mxu0
      %667 = vdwg.mxu0
      %v668 = vadd.f32 %v612, %v660
      %v669 = vadd.f32 %v613, %v662
      %v670 = vadd.f32 %v614, %v665
      %v671 = vld [vmem:[%s138 + $0xc] sm:$0xf]
      %s672 = scalar_lea.vmem %s1, 144
      %v673 = vld [vmem:[%s672] sm:$0xf]
      %v674 = vld [vmem:[%s672 + $0x4] sm:$0xf]
      %v675 = vld [vmem:[%s672 + $0x8] sm:$0xf]
      %v676 = vld [vmem:[%s672 + $0xc] sm:$0xf]
      %v678 = vunpack.c.l.b16 %v671
      %v679 = vpack.c.b16 %v678, %v678
      %vm680 = vsmask.f32 5376
      %v682 = vshrl.u32 %v626, 16
      %v684 = vrot.slane %v682, 2
      %v685 = vshll.u32 %v626, 16
      %v687 = vrot.slane %v685, 3
      %v688 = vor.u32 %v684, %v687
      %v690 = vshrl.u32 %v679, 16
      %v692 = vrot.slane %v690, 2
      %v693 = vshll.u32 %v679, 16
      %v695 = vrot.slane %v693, 3
      %v696 = vor.u32 %v692, %v695
      %v697 = vsel %vm680, %v688, %v696
      %v702 = vunpack.c.l.b16 %v673
      %v703 = vunpack.c.l.b16 %v674
      %v704 = vunpack.c.l.b16 %v675
      %v705 = vunpack.c.l.b16 %v676
      %v706 = vpack.c.b16 %v703, %v702
      %v707 = vpack.c.b16 %v705, %v704
      %v711 = vsel %vm194, %v697, 0
      %v714 = vsel %vm194, %v696, 0
      %716 = vmatpush.bf16.msra.mxu0 0
      %717 = vmatpush.bf16.msra.mxu0 0
      %718 = vmatpush.bf16.msra.mxu0 0
      %719 = vmatpush.bf16.msra.mxu0 0
      %720 = vmatpush.bf16.msra.mxu0 0
      %721 = vmatpush.bf16.msra.mxu0 0
      %722 = vmatpush.bf16.msra.mxu0 %v707
      %723 = vmatpush.bf16.msra.mxu0 %v706
      %724 = vmatmul.bf16.gmra.mxu0 %v711
      %v725 = vpop.f32.mrf.mxu0
      %v726 = vadd.f32 0.0, %v725
      %v727 = vpop.f32.mrf.mxu0
      %v728 = vadd.f32 0.0, %v727
      %729 = vmatmul.bf16.gmra.mxu0 %v714
      %v730 = vpop.f32.mrf.mxu0
      %v731 = vadd.f32 0.0, %v730
      %v732 = vpop.f32.mrf.mxu0
      %733 = vdwg.mxu0
      %v734 = vadd.f32 %v668, %v726
      %v735 = vadd.f32 %v669, %v728
      %v736 = vadd.f32 %v670, %v731
      %v737 = vld [vmem:[%s138 + $0x4] sm:$0x8]
      %s738 = scalar_lea.vmem %s1, 160
      %v739 = vld [vmem:[%s738] sm:$0xf]
      %v740 = vld [vmem:[%s738 + $0x4] sm:$0xf]
      %v741 = vld [vmem:[%s738 + $0x8] sm:$0xf]
      %v742 = vld [vmem:[%s738 + $0xc] sm:$0xf]
      %v744 = vunpack.c.l.b16 %v737
      %v745 = vpack.c.b16 %v446, %v744
      %v746 = vrot.slane %v745, 3
      %v747 = vrot.slane %v679, 3
      %v748 = vsel %vm388, %v746, %v747
      %v753 = vunpack.c.l.b16 %v739
      %v754 = vunpack.c.l.b16 %v740
      %v755 = vunpack.c.l.b16 %v741
      %v756 = vunpack.c.l.b16 %v742
      %v757 = vpack.c.b16 %v754, %v753
      %v758 = vpack.c.b16 %v756, %v755
      %v762 = vsel %vm194, %v748, 0
      %v765 = vsel %vm194, %v747, 0
      %767 = vmatpush.bf16.msra.mxu0 0
      %768 = vmatpush.bf16.msra.mxu0 0
      %769 = vmatpush.bf16.msra.mxu0 0
      %770 = vmatpush.bf16.msra.mxu0 0
      %771 = vmatpush.bf16.msra.mxu0 0
      %772 = vmatpush.bf16.msra.mxu0 0
      %773 = vmatpush.bf16.msra.mxu0 %v758
      %774 = vmatpush.bf16.msra.mxu0 %v757
      %775 = vmatmul.bf16.gmra.mxu0 %v762
      %v776 = vpop.f32.mrf.mxu0
      %v777 = vadd.f32 0.0, %v776
      %v778 = vpop.f32.mrf.mxu0
      %v779 = vadd.f32 0.0, %v778
      %780 = vmatmul.bf16.gmra.mxu0 %v765
      %v781 = vpop.f32.mrf.mxu0
      %v782 = vadd.f32 0.0, %v781
      %v783 = vpop.f32.mrf.mxu0
      %784 = vdwg.mxu0
      %v785 = vadd.f32 %v734, %v777
      %v786 = vadd.f32 %v735, %v779
      %v787 = vadd.f32 %v736, %v782
      %v788 = vld [vmem:[%s138 + $0x4] sm:$0x8]
      %v789 = vld [vmem:[%s138 + $0x8] sm:$0xf]
      %v790 = vld [vmem:[%s138 + $0xc] sm:$0xf]
      %v791 = vld [vmem:[%s138 + $0x10] sm:$0x1]
      %s792 = scalar_lea.vmem %s1, 176
      %v793 = vld [vmem:[%s792] sm:$0xf]
      %v794 = vld [vmem:[%s792 + $0x4] sm:$0xf]
      %v795 = vld [vmem:[%s792 + $0x8] sm:$0xf]
      %v796 = vld [vmem:[%s792 + $0xc] sm:$0xf]
      %v801 = vunpack.c.l.b16 %v788
      %v802 = vunpack.c.l.b16 %v789
      %v803 = vunpack.c.l.b16 %v790
      %v804 = vunpack.c.l.b16 %v791
      %v805 = vpack.c.b16 %v802, %v801
      %v806 = vpack.c.b16 %v804, %v803
      %v808 = vshrl.u32 %v805, 16
      %v810 = vrot.slane %v808, 3
      %v811 = vshll.u32 %v805, 16
      %v813 = vrot.slane %v811, 4
      %v814 = vor.u32 %v810, %v813
      %v816 = vshrl.u32 %v806, 16
      %v818 = vrot.slane %v816, 3
      %v819 = vshll.u32 %v806, 16
      %v821 = vrot.slane %v819, 4
      %v822 = vor.u32 %v818, %v821
      %v823 = vsel %vm450, %v814, %v822
      %v828 = vunpack.c.l.b16 %v793
      %v829 = vunpack.c.l.b16 %v794
      %v830 = vunpack.c.l.b16 %v795
      %v831 = vunpack.c.l.b16 %v796
      %v832 = vpack.c.b16 %v829, %v828
      %v833 = vpack.c.b16 %v831, %v830
      %v837 = vsel %vm194, %v823, 0
      %v840 = vsel %vm194, %v822, 0
      %842 = vmatpush.bf16.msra.mxu0 0
      %843 = vmatpush.bf16.msra.mxu0 0
      %844 = vmatpush.bf16.msra.mxu0 0
      %845 = vmatpush.bf16.msra.mxu0 0
      %846 = vmatpush.bf16.msra.mxu0 0
      %847 = vmatpush.bf16.msra.mxu0 0
      %848 = vmatpush.bf16.msra.mxu0 %v833
      %849 = vmatpush.bf16.msra.mxu0 %v832
      %850 = vmatmul.bf16.gmra.mxu0 %v837
      %v851 = vpop.f32.mrf.mxu0
      %v852 = vadd.f32 0.0, %v851
      %v853 = vpop.f32.mrf.mxu0
      %v854 = vadd.f32 0.0, %v853
      %855 = vmatmul.bf16.gmra.mxu0 %v840
      %v856 = vpop.f32.mrf.mxu0
      %v857 = vadd.f32 0.0, %v856
      %v858 = vpop.f32.mrf.mxu0
      %859 = vdwg.mxu0
      %v860 = vadd.f32 %v785, %v852
      %v861 = vadd.f32 %v786, %v854
      %v862 = vadd.f32 %v787, %v857
      %v863 = vld [vmem:[%s138 + $0x8] sm:$0xe]
      %v864 = vld [vmem:[%s138 + $0x10] sm:$0x3]
      %s865 = scalar_lea.vmem %s1, 192
      %v866 = vld [vmem:[%s865] sm:$0xf]
      %v867 = vld [vmem:[%s865 + $0x4] sm:$0xf]
      %v868 = vld [vmem:[%s865 + $0x8] sm:$0xf]
      %v869 = vld [vmem:[%s865 + $0xc] sm:$0xf]
      %v872 = vunpack.c.l.b16 %v863
      %v873 = vunpack.c.l.b16 %v864
      %v874 = vpack.c.b16 %v803, %v872
      %v875 = vpack.c.b16 %v873, %v873
      %v876 = vrot.slane %v874, 1
      %v877 = vrot.slane %v875, 1
      %v878 = vsel %vm266, %v876, %v877
      %v883 = vunpack.c.l.b16 %v866
      %v884 = vunpack.c.l.b16 %v867
      %v885 = vunpack.c.l.b16 %v868
      %v886 = vunpack.c.l.b16 %v869
      %v887 = vpack.c.b16 %v884, %v883
      %v888 = vpack.c.b16 %v886, %v885
      %v892 = vsel %vm194, %v878, 0
      %v895 = vsel %vm194, %v877, 0
      %897 = vmatpush.bf16.msra.mxu0 0
      %898 = vmatpush.bf16.msra.mxu0 0
      %899 = vmatpush.bf16.msra.mxu0 0
      %900 = vmatpush.bf16.msra.mxu0 0
      %901 = vmatpush.bf16.msra.mxu0 0
      %902 = vmatpush.bf16.msra.mxu0 0
      %903 = vmatpush.bf16.msra.mxu0 %v888
      %904 = vmatpush.bf16.msra.mxu0 %v887
      %905 = vmatmul.bf16.gmra.mxu0 %v892
      %v906 = vpop.f32.mrf.mxu0
      %v907 = vadd.f32 0.0, %v906
      %v908 = vpop.f32.mrf.mxu0
      %v909 = vadd.f32 0.0, %v908
      %910 = vmatmul.bf16.gmra.mxu0 %v895
      %v911 = vpop.f32.mrf.mxu0
      %v912 = vadd.f32 0.0, %v911
      %v913 = vpop.f32.mrf.mxu0
      %914 = vdwg.mxu0
      %v915 = vadd.f32 %v860, %v907
      %v916 = vadd.f32 %v861, %v909
      %v917 = vadd.f32 %v862, %v912
      %v918 = vld [vmem:[%s138 + $0x10] sm:$0x7]
      %s919 = scalar_lea.vmem %s1, 208
      %v920 = vld [vmem:[%s919] sm:$0xf]
      %v921 = vld [vmem:[%s919 + $0x4] sm:$0xf]
      %v922 = vld [vmem:[%s919 + $0x8] sm:$0xf]
      %v923 = vld [vmem:[%s919 + $0xc] sm:$0xf]
      %v925 = vunpack.c.l.b16 %v918
      %v926 = vpack.c.b16 %v925, %v925
      %v928 = vshrl.u32 %v874, 16
      %v930 = vrot.slane %v928, 1
      %v931 = vshll.u32 %v874, 16
      %v933 = vrot.slane %v931, 2
      %v934 = vor.u32 %v930, %v933
      %v936 = vshrl.u32 %v926, 16
      %v938 = vrot.slane %v936, 1
      %v939 = vshll.u32 %v926, 16
      %v941 = vrot.slane %v939, 2
      %v942 = vor.u32 %v938, %v941
      %v943 = vsel %vm318, %v934, %v942
      %v948 = vunpack.c.l.b16 %v920
      %v949 = vunpack.c.l.b16 %v921
      %v950 = vunpack.c.l.b16 %v922
      %v951 = vunpack.c.l.b16 %v923
      %v952 = vpack.c.b16 %v949, %v948
      %v953 = vpack.c.b16 %v951, %v950
      %v957 = vsel %vm194, %v943, 0
      %v960 = vsel %vm194, %v942, 0
      %962 = vmatpush.bf16.msra.mxu0 0
      %963 = vmatpush.bf16.msra.mxu0 0
      %964 = vmatpush.bf16.msra.mxu0 0
      %965 = vmatpush.bf16.msra.mxu0 0
      %966 = vmatpush.bf16.msra.mxu0 0
      %967 = vmatpush.bf16.msra.mxu0 0
      %968 = vmatpush.bf16.msra.mxu0 %v953
      %969 = vmatpush.bf16.msra.mxu0 %v952
      %970 = vmatmul.bf16.gmra.mxu0 %v957
      %v971 = vpop.f32.mrf.mxu0
      %v972 = vadd.f32 0.0, %v971
      %v973 = vpop.f32.mrf.mxu0
      %v974 = vadd.f32 0.0, %v973
      %975 = vmatmul.bf16.gmra.mxu0 %v960
      %v976 = vpop.f32.mrf.mxu0
      %v977 = vadd.f32 0.0, %v976
      %v978 = vpop.f32.mrf.mxu0
      %979 = vdwg.mxu0
      %v980 = vadd.f32 %v915, %v972
      %v981 = vadd.f32 %v916, %v974
      %v982 = vadd.f32 %v917, %v977
      %v983 = vld [vmem:[%s138 + $0x8] sm:$0xc]
      %s984 = scalar_lea.vmem %s1, 224
      %v985 = vld [vmem:[%s984] sm:$0xf]
      %v986 = vld [vmem:[%s984 + $0x4] sm:$0xf]
      %v987 = vld [vmem:[%s984 + $0x8] sm:$0xf]
      %v988 = vld [vmem:[%s984 + $0xc] sm:$0xf]
      %v990 = vunpack.c.l.b16 %v983
      %v991 = vpack.c.b16 %v803, %v990
      %v992 = vrot.slane %v991, 2
      %v993 = vrot.slane %v926, 2
      %v994 = vsel %vm628, %v992, %v993
      %v999 = vunpack.c.l.b16 %v985
      %v1000 = vunpack.c.l.b16 %v986
      %v1001 = vunpack.c.l.b16 %v987
      %v1002 = vunpack.c.l.b16 %v988
      %v1003 = vpack.c.b16 %v1000, %v999
      %v1004 = vpack.c.b16 %v1002, %v1001
      %v1008 = vsel %vm194, %v994, 0
      %v1011 = vsel %vm194, %v993, 0
      %1013 = vmatpush.bf16.msra.mxu0 0
      %1014 = vmatpush.bf16.msra.mxu0 0
      %1015 = vmatpush.bf16.msra.mxu0 0
      %1016 = vmatpush.bf16.msra.mxu0 0
      %1017 = vmatpush.bf16.msra.mxu0 0
      %1018 = vmatpush.bf16.msra.mxu0 0
      %1019 = vmatpush.bf16.msra.mxu0 %v1004
      %1020 = vmatpush.bf16.msra.mxu0 %v1003
      %1021 = vmatmul.bf16.gmra.mxu0 %v1008
      %v1022 = vpop.f32.mrf.mxu0
      %v1023 = vadd.f32 0.0, %v1022
      %v1024 = vpop.f32.mrf.mxu0
      %v1025 = vadd.f32 0.0, %v1024
      %1026 = vmatmul.bf16.gmra.mxu0 %v1011
      %v1027 = vpop.f32.mrf.mxu0
      %v1028 = vadd.f32 0.0, %v1027
      %v1029 = vpop.f32.mrf.mxu0
      %1030 = vdwg.mxu0
      %v1031 = vadd.f32 %v980, %v1023
      %v1032 = vadd.f32 %v981, %v1025
      %v1033 = vadd.f32 %v982, %v1028
      %v1034 = vld [vmem:[%s138 + $0x10] sm:$0xf]
      %s1035 = scalar_lea.vmem %s1, 240
      %v1036 = vld [vmem:[%s1035] sm:$0xf]
      %v1037 = vld [vmem:[%s1035 + $0x4] sm:$0xf]
      %v1038 = vld [vmem:[%s1035 + $0x8] sm:$0xf]
      %v1039 = vld [vmem:[%s1035 + $0xc] sm:$0xf]
      %v1041 = vunpack.c.l.b16 %v1034
      %v1042 = vpack.c.b16 %v1041, %v1041
      %v1044 = vshrl.u32 %v991, 16
      %v1046 = vrot.slane %v1044, 2
      %v1047 = vshll.u32 %v991, 16
      %v1049 = vrot.slane %v1047, 3
      %v1050 = vor.u32 %v1046, %v1049
      %v1052 = vshrl.u32 %v1042, 16
      %v1054 = vrot.slane %v1052, 2
      %v1055 = vshll.u32 %v1042, 16
      %v1057 = vrot.slane %v1055, 3
      %v1058 = vor.u32 %v1054, %v1057
      %v1059 = vsel %vm680, %v1050, %v1058
      %v1064 = vunpack.c.l.b16 %v1036
      %v1065 = vunpack.c.l.b16 %v1037
      %v1066 = vunpack.c.l.b16 %v1038
      %v1067 = vunpack.c.l.b16 %v1039
      %v1068 = vpack.c.b16 %v1065, %v1064
      %v1069 = vpack.c.b16 %v1067, %v1066
      %v1073 = vsel %vm194, %v1059, 0
      %v1076 = vsel %vm194, %v1058, 0
      %1078 = vmatpush.bf16.msra.mxu0 0
      %1079 = vmatpush.bf16.msra.mxu0 0
      %1080 = vmatpush.bf16.msra.mxu0 0
      %1081 = vmatpush.bf16.msra.mxu0 0
      %1082 = vmatpush.bf16.msra.mxu0 0
      %1083 = vmatpush.bf16.msra.mxu0 0
      %1084 = vmatpush.bf16.msra.mxu0 %v1069
      %1085 = vmatpush.bf16.msra.mxu0 %v1068
      %1086 = vmatmul.bf16.gmra.mxu0 %v1073
      %v1087 = vpop.f32.mrf.mxu0
      %v1088 = vadd.f32 0.0, %v1087
      %v1089 = vpop.f32.mrf.mxu0
      %v1090 = vadd.f32 0.0, %v1089
      %1091 = vmatmul.bf16.gmra.mxu0 %v1076
      %v1092 = vpop.f32.mrf.mxu0
      %v1093 = vadd.f32 0.0, %v1092
      %v1094 = vpop.f32.mrf.mxu0
      %1095 = vdwg.mxu0
      %v1096 = vadd.f32 %v1031, %v1088
      %v1097 = vadd.f32 %v1032, %v1090
      %v1098 = vadd.f32 %v1033, %v1093
      %v1099 = vlaneseq
      %v1100 = vand.u32 %v1099, 127
      %vm1101 = vcmp.lt.s32.totalorder %v1100, 0
      %v1102 = vsub.s32 0, %v1100
      %v1103 = vsel %vm1101, %v1102, %v1100
      %v1104 = vand.u32 %v1103, 65535
      %v1105 = vshrl.u32 %v1103, 16
      %v1107 = vmul.u32 %v1104, 43691
      %v1108 = vmul.u32 %v1104, 43690
      %v1109 = vmul.u32 %v1105, 43691
      %v1110 = vmul.u32 %v1105, 43690
      %v1111 = vshll.u32 %v1108, 16
      %v1112 = vshrl.u32 %v1108, 16
      %v1113 = vshll.u32 %v1109, 16
      %v1114 = vshrl.u32 %v1109, 16
      %vm1115 = vc.u32 %v1107, %v1111
      %v1116 = vsel %vm1115, 1, 0
      %v1117 = vadd.s32 %v1107, %v1111
      %v1118 = vadd.s32 %v1110, %v1116
      %vm1119 = vc.u32 %v1117, %v1113
      %v1120 = vsel %vm1119, 1, 0
      %v1121 = vadd.s32 %v1117, %v1113
      %v1122 = vadd.s32 %v1118, %v1120
      %v1123 = vadd.s32 %v1122, %v1112
      %v1124 = vadd.s32 %v1123, %v1114
      %v1125 = vshrl.u32 %v1124, 2
      %v1126 = vmul.u32 %v1125, 6
      %v1127 = vsub.s32 %v1103, %v1126
      %v1128 = vsub.s32 0, %v1127
      %v1129 = vsel %vm1101, %v1128, %v1127
      %vm1130 = vcmp.ne.s32.totalorder %v1129, 0
      %vm1131 = vcmp.lt.s32.totalorder %v1129, 0
      %vm1132 = vmand %vm1131, %vm1130
      %v1133 = vadd.s32 %v1129, 6
      %v1134 = vsel %vm1132, %v1133, %v1129
      %vm1135 = vcmp.lt.s32.totalorder %v1134, 3
      %v1136 = vsel %vm1135, 1, 0
      %v1137 = vcvt.s32.f32 %v1136
      %vm1138 = vcmask 146432
      %v1140 = vsel %vm1138, %v1137, 0
      %vm1142 = vcmask 1041408
      %v1144 = vsel %vm1142, %v1098, 0
      %1146 = vmatpush.msra.mxu0 0.0
      %1147 = vmatpush.msra.mxu0 0.0
      %1148 = vmatpush.msra.mxu0 0.0
      %1149 = vmatpush.msra.mxu0 0.0
      %1150 = vmatpush.msra.mxu0 0.0
      %1151 = vmatpush.msra.mxu0 0.0
      %1152 = vmatpush.msra.mxu0 0.0
      %1153 = vmatpush.msra.mxu0 0.0
      %1154 = vmatpush.msra.mxu0 0.0
      %1155 = vmatpush.msra.mxu0 0.0
      %1156 = vmatpush.msra.mxu0 0.0
      %1157 = vmatpush.msra.mxu0 0.0
      %1158 = vmatpush.msra.mxu0 0.0
      %1159 = vmatpush.msra.mxu0 %v1144
      %1160 = vmatpush.msra.mxu0 %v1097
      %1161 = vmatpush.msra.mxu0 %v1096
      %1162 = vmatmul.f32.gmra.mxu0 %v1140
      %v1163 = vpop.f32.mrf.mxu0
      %v1164 = vadd.f32 0.0, %v1163
      %1165 = vdwg.mxu0
      %v1166 = vmul.f32 %v1164, 0.11111111
      %v1167 = vmul.f32 %v1096, %v1096
      %v1168 = vmul.f32 %v1097, %v1097
      %v1169 = vmul.f32 %v1098, %v1098
      %v1171 = vsel %vm1142, %v1169, 0
      %1173 = vmatpush.msra.mxu0 0.0
      %1174 = vmatpush.msra.mxu0 0.0
      %1175 = vmatpush.msra.mxu0 0.0
      %1176 = vmatpush.msra.mxu0 0.0
      %1177 = vmatpush.msra.mxu0 0.0
      %1178 = vmatpush.msra.mxu0 0.0
      %1179 = vmatpush.msra.mxu0 0.0
      %1180 = vmatpush.msra.mxu0 0.0
      %1181 = vmatpush.msra.mxu0 0.0
      %1182 = vmatpush.msra.mxu0 0.0
      %1183 = vmatpush.msra.mxu0 0.0
      %1184 = vmatpush.msra.mxu0 0.0
      %1185 = vmatpush.msra.mxu0 0.0
      %1186 = vmatpush.msra.mxu0 %v1171
      %1187 = vmatpush.msra.mxu0 %v1168
      %1188 = vmatpush.msra.mxu0 %v1167
      %1189 = vmatmul.f32.gmra.mxu0 %v1140
      %v1190 = vpop.f32.mrf.mxu0
      %v1191 = vadd.f32 0.0, %v1190
      %1192 = vdwg.mxu0
      %v1193 = vmul.f32 %v1191, 0.11111111
      %v1194 = vmul.f32 %v1166, %v1166
      %v1195 = vsub.f32 %v1193, %v1194
      %v1196 = vmax.f32 %v1195, 0.0
      %v1197 = vperm.slane %v1166, 0
      %v1198 = vsub.f32 %v1096, %v1197
      %v1199 = vsub.f32 %v1097, %v1197
      %v1200 = vsub.f32 %v1098, %v1197
      %v1201 = vadd.f32 %v1196, 1e-05
      %v1202 = vrsqrt.pop %v1201
      %v1203 = vmul.f32 %v1202, %v1201
      %v1204 = vmul.f32 %v1203, %v1202
      %v1205 = vmul.f32 0.5, %v1204
      %v1206 = vsub.f32 1.5, %v1205
      %v1207 = vmul.f32 %v1202, %v1206
      %vm1208 = vweird.f32 %v1201
      %vm1209 = vweird.f32 %v1202
      %vm1210 = vmor %vm1208, %vm1209
      %v1211 = vsel %vm1210, %v1202, %v1207
      %v1212 = vperm.slane %v1211, 0
      %v1213 = vmul.f32 %v1198, %v1212
      %v1214 = vmul.f32 %v1199, %v1212
      %v1215 = vmul.f32 %v1200, %v1212
      %vm1216 = vcmp.gt.f32.partialorder %v1213, 0.0
      %vm1217 = vcmp.gt.f32.partialorder %v1214, 0.0
      %vm1218 = vcmp.gt.f32.partialorder %v1215, 0.0
      %v1219 = vmul.f32 %v1213, 0.2
      %v1220 = vmul.f32 %v1214, 0.2
      %v1221 = vmul.f32 %v1215, 0.2
      %v1222 = vsel %vm1216, %v1213, %v1219
      %v1223 = vsel %vm1217, %v1214, %v1220
      %v1224 = vsel %vm1218, %v1215, %v1221
      %v1225 = vpack.c.bf16 %v1222, %v1222
      %v1226 = vpack.c.bf16 %v1223, %v1223
      %v1227 = vpack.c.bf16 %v1224, %v1224
      %vm1228 = vcmask 519168
      %1229 = vst.msk [vmem:[%s143] sm:$0xf] %vm1228, %v1225
      %1230 = vst.msk [vmem:[%s143 + $0x4] sm:$0xf] %vm1228, %v1226
      %vm1231 = vcmask 516096
      %1232 = vst.msk [vmem:[%s143 + $0x8] sm:$0x1] %vm1231, %v1227
      %p1233 = scmp.lt.s32.totalorder %s13, 1
      %s1234 = scalar_select %p1233, %s13, 1
      %s1235 = smul.addr %s1234, 3
      %s1236 = smul.addr %s1235, 4
      %s1237 = scalar_lea.vmem %s2, %s1236
      // Predicated region
      $region29: #{discriminator_forward.8} parent=27 // pred_check
        %p1238 = pneg %p78
      $region30: #{discriminator_forward.8} parent=27 // pred_check_branch
        %1240 = sbr.rel (%p1238) target = $region32
      $region31: #{discriminator_forward.8} parent=27 // pred_region
        _
      $region32: #{discriminator_forward.8} parent=27 // pred_fallthru
        _
    $region28: #{discriminator_forward.8} parent=5 // pred_fallthru
      _
    %p1241 = scmp.le.s32.totalorder 2, %s8
    // Predicated region
    $region33: #{discriminator_forward.8} parent=5 // pred_check
      %p1242 = pneg %p1241
    $region34: #{discriminator_forward.8} parent=5 // pred_check_branch
      %1244 = sbr.rel (%p1242) target = $region36
    $region35: #{discriminator_forward.8} parent=5 // pred_region
      %s1245 = ssub.s32 %s8, 2
      // Predicated region
      $region37: #{discriminator_forward.8} parent=35 // pred_check
        %p1246 = pneg %p84
      $region38: #{discriminator_forward.8} parent=35 // pred_check_branch
        %1248 = sbr.rel (%p1246) target = $region40
      $region39: #{discriminator_forward.8} parent=35 // pred_region
        %p1249 = scmp.lt.s32.totalorder %s14, 1
        %s1250 = scalar_select %p1249, %s14, 1
        %s1251 = smul.addr %s1250, 3
        %s1252 = smul.addr %s1251, 4
        %s1253 = scalar_lea.vmem %s2, %s1252
      $region40: #{discriminator_forward.8} parent=35 // pred_fallthru
        _
    $region36: #{discriminator_forward.8} parent=5 // pred_fallthru
      _
  $region6: #{discriminator_forward.8} parent=0 // loop_footer
    %s12 = sadd.s32 1, %s8
  $region7: #{discriminator_forward.8} parent=0 // loop_footer_branch
    %7 = sbr.rel target = $region3
  $region8: #{discriminator_forward.8} parent=0 // loop_exit
    _

// kernel: discriminator_forward.9
$region0: #{discriminator_forward.9}
  #allocation0 [shape = 'u32[]', space=smem, size = 0x4, offset = 0x4, fixed_abs, tag = 'smem constant byte address 0x4 - core index']
  #allocation1 [shape = 'u32[72,128]{1,0:T(1,128)}', space=vmem, size = 0x9000, scoped, tag = 'internal scratch']
  %s0 = inlined_call_operand.vmem [shape: bf16[2,1,30,64], index: 0, kind: input, shape index: {}]
  %s1 = inlined_call_operand.vmem [shape: bf16[16,64,128], index: 1, kind: input, shape index: {}]
  %s2 = inlined_call_operand.vmem [shape: f32[1,128], index: 2, kind: input, shape index: {}]
  %s3 = inlined_call_operand.vmem [shape: bf16[2,10,128], index: 3, kind: output, shape index: {}]
  %s4 = sld [smem:[#allocation0]]
  $region45: #{discriminator_forward.9} parent=0
    _
  %s6 = ssub.s32 1, %s4
  %s7 = scalar_select 0, %s6, %s4
  loop: start=0, step=1, limit=4
  $region2: #{discriminator_forward.9} parent=0 // loop_pre_header
    _
  $region3: #{discriminator_forward.9} parent=0 // loop_header
    %s9 = sphi 0, %s13
    %p10 = scmp.ge.s32.totalorder %s9, 4
    %s19 = sphi 0, %s21
    %s22 = sphi 0, %s19
    %s23 = sphi 0, %s22
    %s39 = sphi 0, %s23
    %s43 = sphi 0, %s43
    %s45 = sphi 0, %s43
    %s46 = sphi 0, %s45
    %s60 = sphi 0, %s46
    %s64 = sphi 0, %s64
    %s66 = sphi 0, %s64
    %s67 = sphi 0, %s66
    %s81 = sphi 0, %s67
    %s87 = sphi 0, %s89
    %s90 = sphi 0, %s87
    %s91 = sphi 0, %s90
    %s107 = sphi 0, %s91
  $region4: #{discriminator_forward.9} parent=0 // loop_header_branch
    %12 = sbr.rel (%p10) target = $region8
  $region5: #{discriminator_forward.9} parent=0 // loop_body
    %s14 = ssub.s32 %s9, 1
    %s15 = ssub.s32 %s9, 2
    %s16 = sadd.s32 %s9, 1
    %s17 = ssub.s32 %s9, %s16
    %p18 = scmp.eq.s32.totalorder %s17, 0
    %s20 = sadd.s32 %s19, 1
    %s21 = scalar_select %p18, %s19, %s20
    %p24 = pneg %p18
    %p25 = scmp.eq.s32.totalorder %s9, 1
    %p26 = por %p24, %p25
    %p27 = scmp.ne.s32.totalorder %s19, %s22
    %p28 = scmp.eq.s32.totalorder %s9, 0
    %p29 = por %p27, %p28
    %p30 = scmp.ne.s32.totalorder %s19, %s22
    %p31 = scmp.eq.s32.totalorder %s14, 1
    %p32 = por %p30, %p31
    %p33 = scmp.ne.s32.totalorder %s22, %s23
    %p34 = scmp.eq.s32.totalorder %s14, 0
    %p35 = por %p33, %p34
    %p36 = scmp.ne.s32.totalorder %s22, %s23
    %p37 = scmp.eq.s32.totalorder %s15, 1
    %p38 = por %p36, %p37
    %p40 = scmp.ne.s32.totalorder %s23, %s39
    %p41 = scmp.eq.s32.totalorder %s15, 0
    %p42 = por %p40, %p41
    %s44 = sadd.s32 %s43, 1
    %p47 = scmp.eq.s32.totalorder %s9, 1
    %p48 = scmp.ne.s32.totalorder %s43, %s45
    %p49 = scmp.eq.s32.totalorder %s9, 0
    %p50 = por %p48, %p49
    %p51 = scmp.ne.s32.totalorder %s43, %s45
    %p52 = scmp.eq.s32.totalorder %s14, 1
    %p53 = por %p51, %p52
    %p54 = scmp.ne.s32.totalorder %s45, %s46
    %p55 = scmp.eq.s32.totalorder %s14, 0
    %p56 = por %p54, %p55
    %p57 = scmp.ne.s32.totalorder %s45, %s46
    %p58 = scmp.eq.s32.totalorder %s15, 1
    %p59 = por %p57, %p58
    %p61 = scmp.ne.s32.totalorder %s46, %s60
    %p62 = scmp.eq.s32.totalorder %s15, 0
    %p63 = por %p61, %p62
    %s65 = sadd.s32 %s64, 1
    %p68 = scmp.eq.s32.totalorder %s9, 1
    %p69 = scmp.ne.s32.totalorder %s64, %s66
    %p70 = scmp.eq.s32.totalorder %s9, 0
    %p71 = por %p69, %p70
    %p72 = scmp.ne.s32.totalorder %s64, %s66
    %p73 = scmp.eq.s32.totalorder %s14, 1
    %p74 = por %p72, %p73
    %p75 = scmp.ne.s32.totalorder %s66, %s67
    %p76 = scmp.eq.s32.totalorder %s14, 0
    %p77 = por %p75, %p76
    %p78 = scmp.ne.s32.totalorder %s66, %s67
    %p79 = scmp.eq.s32.totalorder %s15, 1
    %p80 = por %p78, %p79
    %p82 = scmp.ne.s32.totalorder %s67, %s81
    %p83 = scmp.eq.s32.totalorder %s15, 0
    %p84 = por %p82, %p83
    %s85 = ssub.s32 %s9, %s16
    %p86 = scmp.eq.s32.totalorder %s85, 0
    %s88 = sadd.s32 %s87, 1
    %s89 = scalar_select %p86, %s87, %s88
    %p92 = pneg %p86
    %p93 = scmp.eq.s32.totalorder %s9, 1
    %p94 = por %p92, %p93
    %p95 = scmp.ne.s32.totalorder %s87, %s90
    %p96 = scmp.eq.s32.totalorder %s9, 0
    %p97 = por %p95, %p96
    %p98 = scmp.ne.s32.totalorder %s87, %s90
    %p99 = scmp.eq.s32.totalorder %s14, 1
    %p100 = por %p98, %p99
    %p101 = scmp.ne.s32.totalorder %s90, %s91
    %p102 = scmp.eq.s32.totalorder %s14, 0
    %p103 = por %p101, %p102
    %p104 = scmp.ne.s32.totalorder %s90, %s91
    %p105 = scmp.eq.s32.totalorder %s15, 1
    %p106 = por %p104, %p105
    %p108 = scmp.ne.s32.totalorder %s91, %s107
    %p109 = scmp.eq.s32.totalorder %s15, 0
    %p110 = por %p108, %p109
    %p111 = scmp.le.s32.totalorder 1, %s9
    %p112 = scmp.lt.s32.totalorder %s9, 3
    %p113 = pnand %p111, %p112
    %p114 = pneg %p113
    // Predicated region
    $region9: #{discriminator_forward.9} parent=5 // pred_check
      _
    $region10: #{discriminator_forward.9} parent=5 // pred_check_branch
      %116 = sbr.rel (%p113) target = $region12
    $region11: #{discriminator_forward.9} parent=5 // pred_region
      %s117 = ssub.s32 %s9, 1
      // Predicated region
      $region13: #{discriminator_forward.9} parent=11 // pred_check
        %p118 = pneg %p56
      $region14: #{discriminator_forward.9} parent=11 // pred_check_branch
        %120 = sbr.rel (%p118) target = $region16
      $region15: #{discriminator_forward.9} parent=11 // pred_region
        _
      $region16: #{discriminator_forward.9} parent=11 // pred_fallthru
        _
      // Predicated region
      $region17: #{discriminator_forward.9} parent=11 // pred_check
        %p121 = pneg %p77
      $region18: #{discriminator_forward.9} parent=11 // pred_check_branch
        %123 = sbr.rel (%p121) target = $region20
      $region19: #{discriminator_forward.9} parent=11 // pred_region
        _
      $region20: #{discriminator_forward.9} parent=11 // pred_fallthru
        _
    $region12: #{discriminator_forward.9} parent=5 // pred_fallthru
      _
    %p124 = scmp.lt.s32.totalorder %s9, 2
    // Predicated region
    $region21: #{discriminator_forward.9} parent=5 // pred_check
      %p125 = pneg %p124
    $region22: #{discriminator_forward.9} parent=5 // pred_check_branch
      %127 = sbr.rel (%p125) target = $region24
    $region23: #{discriminator_forward.9} parent=5 // pred_region
      // Predicated region
      $region25: #{discriminator_forward.9} parent=23 // pred_check
        %p128 = pneg %p29
      $region26: #{discriminator_forward.9} parent=23 // pred_check_branch
        %130 = sbr.rel (%p128) target = $region28
      $region27: #{discriminator_forward.9} parent=23 // pred_region
        %p131 = scmp.lt.s32.totalorder %s9, 1
        %s132 = scalar_select %p131, %s9, 1
        %s133 = smul.addr %s132, 4
        %s134 = smul.addr %s133, 4
        %s135 = scalar_lea.vmem %s0, %s134
      $region28: #{discriminator_forward.9} parent=23 // pred_fallthru
        _
    $region24: #{discriminator_forward.9} parent=5 // pred_fallthru
      _
    %p136 = scmp.le.s32.totalorder 1, %s9
    %p137 = scmp.lt.s32.totalorder %s9, 3
    %p138 = pnand %p136, %p137
    %p139 = pneg %p138
    // Predicated region
    $region29: #{discriminator_forward.9} parent=5 // pred_check
      _
    $region30: #{discriminator_forward.9} parent=5 // pred_check_branch
      %141 = sbr.rel (%p138) target = $region32
    $region31: #{discriminator_forward.9} parent=5 // pred_region
      %s142 = ssub.s32 %s9, 1
      %p143 = scmp.lt.s32.totalorder %s14, 1
      %s144 = scalar_select %p143, %s14, 1
      %s145 = smul.addr %s144, 4
      %s146 = smul.addr %s145, 4
      %s147 = scalar_lea.vmem %s0, %s146
      %p148 = pneg %p35
      %p149 = pneg %p32
      %p150 = pneg %p56
      %p151 = pneg %p53
      %p152 = pneg %p77
      %p153 = pneg %p74
      %p154 = pneg %p103
      %p155 = pneg %p100
      %p156 = scmp.lt.s32.totalorder %s14, 1
      %s157 = scalar_select %p156, %s14, 1
      %s158 = smul.addr %s157, 2
      %s159 = smul.addr %s158, 4
      %s160 = scalar_lea.vmem %s3, %s159
      %p161 = scmp.lt.s32.totalorder %s14, 1
      %s162 = scalar_select %p161, %s14, 1
      %s163 = smul.addr %s162, 4
      %s164 = smul.addr %s163, 4
      %s165 = scalar_lea.vmem %s0, %s164
      %p166 = scmp.lt.s32.totalorder %s14, 1
      %s167 = scalar_select %p166, %s14, 1
      %s168 = smul.addr %s167, 2
      %s169 = smul.addr %s168, 4
      %s170 = scalar_lea.vmem %s3, %s169
      %v172 = vld [vmem:[%s165] sm:$0xf]
      %v173 = vld [vmem:[%s165 + $0x4] sm:$0x1]
      %v174 = vld [vmem:[%s1] sm:$0xf]
      %v175 = vld [vmem:[%s1 + $0x4] sm:$0xf]
      %v176 = vld [vmem:[%s1 + $0x8] sm:$0xf]
      %v177 = vld [vmem:[%s1 + $0xc] sm:$0xf]
      %v178 = vld [vmem:[%s1 + $0x10] sm:$0xf]
      %v179 = vld [vmem:[%s1 + $0x14] sm:$0xf]
      %v180 = vld [vmem:[%s1 + $0x18] sm:$0xf]
      %v181 = vld [vmem:[%s1 + $0x1c] sm:$0xf]
      %v182 = vld [vmem:[%s165 + $0x4] sm:$0x3]
      %s183 = scalar_lea.vmem %s1, 32
      %v184 = vld [vmem:[%s183] sm:$0xf]
      %v185 = vld [vmem:[%s183 + $0x4] sm:$0xf]
      %v186 = vld [vmem:[%s183 + $0x8] sm:$0xf]
      %v187 = vld [vmem:[%s183 + $0xc] sm:$0xf]
      %v188 = vld [vmem:[%s183 + $0x10] sm:$0xf]
      %v189 = vld [vmem:[%s183 + $0x14] sm:$0xf]
      %v190 = vld [vmem:[%s183 + $0x18] sm:$0xf]
      %v191 = vld [vmem:[%s183 + $0x1c] sm:$0xf]
      %v194 = vunpack.c.l.b16 %v172
      %v195 = vunpack.c.l.b16 %v182
      %v196 = vpack.c.b16 %v195, %v194
      %v198 = vshrl.u32 %v196, 16
      %v200 = vshll.u32 %v196, 16
      %v202 = vrot.slane %v200, 1
      %v203 = vor.u32 %v198, %v202
      %v212 = vunpack.c.l.b16 %v184
      %v213 = vunpack.c.l.b16 %v185
      %v214 = vunpack.c.l.b16 %v186
      %v215 = vunpack.c.l.b16 %v187
      %v216 = vunpack.c.l.b16 %v188
      %v217 = vunpack.c.l.b16 %v189
      %v218 = vunpack.c.l.b16 %v190
      %v219 = vunpack.c.l.b16 %v191
      %v220 = vpack.c.b16 %v213, %v212
      %v221 = vpack.c.b16 %v215, %v214
      %v222 = vpack.c.b16 %v217, %v216
      %v223 = vpack.c.b16 %v219, %v218
      %vm228 = vcmask 523264
      %v230 = vsel %vm228, %v203, 0
      %232 = vmatpush.bf16.msra.mxu0 0
      %233 = vmatpush.bf16.msra.mxu0 0
      %234 = vmatpush.bf16.msra.mxu0 0
      %235 = vmatpush.bf16.msra.mxu0 0
      %236 = vmatpush.bf16.msra.mxu0 %v223
      %237 = vmatpush.bf16.msra.mxu0 %v222
      %238 = vmatpush.bf16.msra.mxu0 %v221
      %239 = vmatpush.bf16.msra.mxu0 %v220
      %240 = vmatmul.bf16.gmra.mxu0 %v230
      %v241 = vpop.f32.mrf.mxu0
      %v242 = vadd.f32 0.0, %v241
      %v243 = vpop.f32.mrf.mxu0
      %v244 = vadd.f32 0.0, %v243
      %245 = vdwg.mxu0
      %v247 = vunpack.c.l.b16 %v173
      %v248 = vpack.c.b16 %v247, %v194
      %v257 = vunpack.c.l.b16 %v174
      %v258 = vunpack.c.l.b16 %v175
      %v259 = vunpack.c.l.b16 %v176
      %v260 = vunpack.c.l.b16 %v177
      %v261 = vunpack.c.l.b16 %v178
      %v262 = vunpack.c.l.b16 %v179
      %v263 = vunpack.c.l.b16 %v180
      %v264 = vunpack.c.l.b16 %v181
      %v265 = vpack.c.b16 %v258, %v257
      %v266 = vpack.c.b16 %v260, %v259
      %v267 = vpack.c.b16 %v262, %v261
      %v268 = vpack.c.b16 %v264, %v263
      %v274 = vsel %vm228, %v248, 0
      %276 = vmatpush.bf16.msra.mxu0 0
      %277 = vmatpush.bf16.msra.mxu0 0
      %278 = vmatpush.bf16.msra.mxu0 0
      %279 = vmatpush.bf16.msra.mxu0 0
      %280 = vmatpush.bf16.msra.mxu0 %v268
      %281 = vmatpush.bf16.msra.mxu0 %v267
      %282 = vmatpush.bf16.msra.mxu0 %v266
      %283 = vmatpush.bf16.msra.mxu0 %v265
      %284 = vmatmul.bf16.gmra.mxu0 %v274
      %v285 = vpop.f32.mrf.mxu0
      %v286 = vadd.f32 %v242, %v285
      %v287 = vpop.f32.mrf.mxu0
      %v288 = vadd.f32 %v244, %v287
      %289 = vdwg.mxu0
      %v290 = vld [vmem:[%s165] sm:$0xe]
      %s291 = scalar_lea.vmem %s1, 64
      %v292 = vld [vmem:[%s291] sm:$0xf]
      %v293 = vld [vmem:[%s291 + $0x4] sm:$0xf]
      %v294 = vld [vmem:[%s291 + $0x8] sm:$0xf]
      %v295 = vld [vmem:[%s291 + $0xc] sm:$0xf]
      %v296 = vld [vmem:[%s291 + $0x10] sm:$0xf]
      %v297 = vld [vmem:[%s291 + $0x14] sm:$0xf]
      %v298 = vld [vmem:[%s291 + $0x18] sm:$0xf]
      %v299 = vld [vmem:[%s291 + $0x1c] sm:$0xf]
      %v301 = vunpack.c.l.b16 %v290
      %v302 = vpack.c.b16 %v195, %v301
      %v303 = vrot.slane %v302, 1
      %v312 = vunpack.c.l.b16 %v292
      %v313 = vunpack.c.l.b16 %v293
      %v314 = vunpack.c.l.b16 %v294
      %v315 = vunpack.c.l.b16 %v295
      %v316 = vunpack.c.l.b16 %v296
      %v317 = vunpack.c.l.b16 %v297
      %v318 = vunpack.c.l.b16 %v298
      %v319 = vunpack.c.l.b16 %v299
      %v320 = vpack.c.b16 %v313, %v312
      %v321 = vpack.c.b16 %v315, %v314
      %v322 = vpack.c.b16 %v317, %v316
      %v323 = vpack.c.b16 %v319, %v318
      %v329 = vsel %vm228, %v303, 0
      %331 = vmatpush.bf16.msra.mxu0 0
      %332 = vmatpush.bf16.msra.mxu0 0
      %333 = vmatpush.bf16.msra.mxu0 0
      %334 = vmatpush.bf16.msra.mxu0 0
      %335 = vmatpush.bf16.msra.mxu0 %v323
      %336 = vmatpush.bf16.msra.mxu0 %v322
      %337 = vmatpush.bf16.msra.mxu0 %v321
      %338 = vmatpush.bf16.msra.mxu0 %v320
      %339 = vmatmul.bf16.gmra.mxu0 %v329
      %v340 = vpop.f32.mrf.mxu0
      %v341 = vadd.f32 0.0, %v340
      %v342 = vpop.f32.mrf.mxu0
      %v343 = vadd.f32 0.0, %v342
      %344 = vdwg.mxu0
      %v345 = vadd.f32 %v286, %v341
      %v346 = vadd.f32 %v288, %v343
      %v347 = vld [vmem:[%s165 + $0x4] sm:$0x7]
      %s348 = scalar_lea.vmem %s1, 96
      %v349 = vld [vmem:[%s348] sm:$0xf]
      %v350 = vld [vmem:[%s348 + $0x4] sm:$0xf]
      %v351 = vld [vmem:[%s348 + $0x8] sm:$0xf]
      %v352 = vld [vmem:[%s348 + $0xc] sm:$0xf]
      %v353 = vld [vmem:[%s348 + $0x10] sm:$0xf]
      %v354 = vld [vmem:[%s348 + $0x14] sm:$0xf]
      %v355 = vld [vmem:[%s348 + $0x18] sm:$0xf]
      %v356 = vld [vmem:[%s348 + $0x1c] sm:$0xf]
      %v358 = vunpack.c.l.b16 %v347
      %v359 = vpack.c.b16 %v358, %v301
      %v361 = vshrl.u32 %v359, 16
      %v363 = vrot.slane %v361, 1
      %v364 = vshll.u32 %v359, 16
      %v366 = vrot.slane %v364, 2
      %v367 = vor.u32 %v363, %v366
      %v376 = vunpack.c.l.b16 %v349
      %v377 = vunpack.c.l.b16 %v350
      %v378 = vunpack.c.l.b16 %v351
      %v379 = vunpack.c.l.b16 %v352
      %v380 = vunpack.c.l.b16 %v353
      %v381 = vunpack.c.l.b16 %v354
      %v382 = vunpack.c.l.b16 %v355
      %v383 = vunpack.c.l.b16 %v356
      %v384 = vpack.c.b16 %v377, %v376
      %v385 = vpack.c.b16 %v379, %v378
      %v386 = vpack.c.b16 %v381, %v380
      %v387 = vpack.c.b16 %v383, %v382
      %v393 = vsel %vm228, %v367, 0
      %395 = vmatpush.bf16.msra.mxu0 0
      %396 = vmatpush.bf16.msra.mxu0 0
      %397 = vmatpush.bf16.msra.mxu0 0
      %398 = vmatpush.bf16.msra.mxu0 0
      %399 = vmatpush.bf16.msra.mxu0 %v387
      %400 = vmatpush.bf16.msra.mxu0 %v386
      %401 = vmatpush.bf16.msra.mxu0 %v385
      %402 = vmatpush.bf16.msra.mxu0 %v384
      %403 = vmatmul.bf16.gmra.mxu0 %v393
      %v404 = vpop.f32.mrf.mxu0
      %v405 = vadd.f32 0.0, %v404
      %v406 = vpop.f32.mrf.mxu0
      %v407 = vadd.f32 0.0, %v406
      %408 = vdwg.mxu0
      %v409 = vadd.f32 %v345, %v405
      %v410 = vadd.f32 %v346, %v407
      %v411 = vld [vmem:[%s165] sm:$0xc]
      %v412 = vld [vmem:[%s165 + $0x4] sm:$0xf]
      %s413 = scalar_lea.vmem %s1, 128
      %v414 = vld [vmem:[%s413] sm:$0xf]
      %v415 = vld [vmem:[%s413 + $0x4] sm:$0xf]
      %v416 = vld [vmem:[%s413 + $0x8] sm:$0xf]
      %v417 = vld [vmem:[%s413 + $0xc] sm:$0xf]
      %v418 = vld [vmem:[%s413 + $0x10] sm:$0xf]
      %v419 = vld [vmem:[%s413 + $0x14] sm:$0xf]
      %v420 = vld [vmem:[%s413 + $0x18] sm:$0xf]
      %v421 = vld [vmem:[%s413 + $0x1c] sm:$0xf]
      %v424 = vunpack.c.l.b16 %v411
      %v425 = vunpack.c.l.b16 %v412
      %v426 = vpack.c.b16 %v425, %v424
      %v428 = vshrl.u32 %v426, 16
      %v430 = vrot.slane %v428, 2
      %v431 = vshll.u32 %v426, 16
      %v433 = vrot.slane %v431, 3
      %v434 = vor.u32 %v430, %v433
      %v443 = vunpack.c.l.b16 %v414
      %v444 = vunpack.c.l.b16 %v415
      %v445 = vunpack.c.l.b16 %v416
      %v446 = vunpack.c.l.b16 %v417
      %v447 = vunpack.c.l.b16 %v418
      %v448 = vunpack.c.l.b16 %v419
      %v449 = vunpack.c.l.b16 %v420
      %v450 = vunpack.c.l.b16 %v421
      %v451 = vpack.c.b16 %v444, %v443
      %v452 = vpack.c.b16 %v446, %v445
      %v453 = vpack.c.b16 %v448, %v447
      %v454 = vpack.c.b16 %v450, %v449
      %v460 = vsel %vm228, %v434, 0
      %462 = vmatpush.bf16.msra.mxu0 0
      %463 = vmatpush.bf16.msra.mxu0 0
      %464 = vmatpush.bf16.msra.mxu0 0
      %465 = vmatpush.bf16.msra.mxu0 0
      %466 = vmatpush.bf16.msra.mxu0 %v454
      %467 = vmatpush.bf16.msra.mxu0 %v453
      %468 = vmatpush.bf16.msra.mxu0 %v452
      %469 = vmatpush.bf16.msra.mxu0 %v451
      %470 = vmatmul.bf16.gmra.mxu0 %v460
      %v471 = vpop.f32.mrf.mxu0
      %v472 = vadd.f32 0.0, %v471
      %v473 = vpop.f32.mrf.mxu0
      %v474 = vadd.f32 0.0, %v473
      %475 = vdwg.mxu0
      %v476 = vadd.f32 %v409, %v472
      %v477 = vadd.f32 %v410, %v474
      %v478 = vld [vmem:[%s165] sm:$0x8]
      %s479 = scalar_lea.vmem %s1, 160
      %v480 = vld [vmem:[%s479] sm:$0xf]
      %v481 = vld [vmem:[%s479 + $0x4] sm:$0xf]
      %v482 = vld [vmem:[%s479 + $0x8] sm:$0xf]
      %v483 = vld [vmem:[%s479 + $0xc] sm:$0xf]
      %v484 = vld [vmem:[%s479 + $0x10] sm:$0xf]
      %v485 = vld [vmem:[%s479 + $0x14] sm:$0xf]
      %v486 = vld [vmem:[%s479 + $0x18] sm:$0xf]
      %v487 = vld [vmem:[%s479 + $0x1c] sm:$0xf]
      %v489 = vunpack.c.l.b16 %v478
      %v490 = vpack.c.b16 %v425, %v489
      %v491 = vrot.slane %v490, 3
      %v500 = vunpack.c.l.b16 %v480
      %v501 = vunpack.c.l.b16 %v481
      %v502 = vunpack.c.l.b16 %v482
      %v503 = vunpack.c.l.b16 %v483
      %v504 = vunpack.c.l.b16 %v484
      %v505 = vunpack.c.l.b16 %v485
      %v506 = vunpack.c.l.b16 %v486
      %v507 = vunpack.c.l.b16 %v487
      %v508 = vpack.c.b16 %v501, %v500
      %v509 = vpack.c.b16 %v503, %v502
      %v510 = vpack.c.b16 %v505, %v504
      %v511 = vpack.c.b16 %v507, %v506
      %v517 = vsel %vm228, %v491, 0
      %519 = vmatpush.bf16.msra.mxu0 0
      %520 = vmatpush.bf16.msra.mxu0 0
      %521 = vmatpush.bf16.msra.mxu0 0
      %522 = vmatpush.bf16.msra.mxu0 0
      %523 = vmatpush.bf16.msra.mxu0 %v511
      %524 = vmatpush.bf16.msra.mxu0 %v510
      %525 = vmatpush.bf16.msra.mxu0 %v509
      %526 = vmatpush.bf16.msra.mxu0 %v508
      %527 = vmatmul.bf16.gmra.mxu0 %v517
      %v528 = vpop.f32.mrf.mxu0
      %v529 = vadd.f32 0.0, %v528
      %v530 = vpop.f32.mrf.mxu0
      %v531 = vadd.f32 0.0, %v530
      %532 = vdwg.mxu0
      %v533 = vadd.f32 %v476, %v529
      %v534 = vadd.f32 %v477, %v531
      %v535 = vld [vmem:[%s165] sm:$0x8]
      %v536 = vld [vmem:[%s165 + $0x4] sm:$0xf]
      %v537 = vld [vmem:[%s165 + $0x8] sm:$0x1]
      %s538 = scalar_lea.vmem %s1, 192
      %v539 = vld [vmem:[%s538] sm:$0xf]
      %v540 = vld [vmem:[%s538 + $0x4] sm:$0xf]
      %v541 = vld [vmem:[%s538 + $0x8] sm:$0xf]
      %v542 = vld [vmem:[%s538 + $0xc] sm:$0xf]
      %v543 = vld [vmem:[%s538 + $0x10] sm:$0xf]
      %v544 = vld [vmem:[%s538 + $0x14] sm:$0xf]
      %v545 = vld [vmem:[%s538 + $0x18] sm:$0xf]
      %v546 = vld [vmem:[%s538 + $0x1c] sm:$0xf]
      %v550 = vunpack.c.l.b16 %v535
      %v551 = vunpack.c.l.b16 %v536
      %v552 = vunpack.c.l.b16 %v537
      %v553 = vpack.c.b16 %v551, %v550
      %v554 = vpack.c.b16 %v552, %v552
      %vm555 = vsmask.f32 4352
      %v557 = vshrl.u32 %v553, 16
      %v559 = vrot.slane %v557, 3
      %v560 = vshll.u32 %v553, 16
      %v562 = vrot.slane %v560, 4
      %v563 = vor.u32 %v559, %v562
      %v565 = vshll.u32 %v554, 16
      %v567 = vrot.slane %v565, 4
      %v568 = vsel %vm555, %v563, %v567
      %v577 = vunpack.c.l.b16 %v539
      %v578 = vunpack.c.l.b16 %v540
      %v579 = vunpack.c.l.b16 %v541
      %v580 = vunpack.c.l.b16 %v542
      %v581 = vunpack.c.l.b16 %v543
      %v582 = vunpack.c.l.b16 %v544
      %v583 = vunpack.c.l.b16 %v545
      %v584 = vunpack.c.l.b16 %v546
      %v585 = vpack.c.b16 %v578, %v577
      %v586 = vpack.c.b16 %v580, %v579
      %v587 = vpack.c.b16 %v582, %v581
      %v588 = vpack.c.b16 %v584, %v583
      %v594 = vsel %vm228, %v568, 0
      %596 = vmatpush.bf16.msra.mxu0 0
      %597 = vmatpush.bf16.msra.mxu0 0
      %598 = vmatpush.bf16.msra.mxu0 0
      %599 = vmatpush.bf16.msra.mxu0 0
      %600 = vmatpush.bf16.msra.mxu0 %v588
      %601 = vmatpush.bf16.msra.mxu0 %v587
      %602 = vmatpush.bf16.msra.mxu0 %v586
      %603 = vmatpush.bf16.msra.mxu0 %v585
      %604 = vmatmul.bf16.gmra.mxu0 %v594
      %v605 = vpop.f32.mrf.mxu0
      %v606 = vadd.f32 0.0, %v605
      %v607 = vpop.f32.mrf.mxu0
      %v608 = vadd.f32 0.0, %v607
      %609 = vdwg.mxu0
      %v610 = vadd.f32 %v533, %v606
      %v611 = vadd.f32 %v534, %v608
      %s612 = scalar_lea.vmem %s1, 224
      %v613 = vld [vmem:[%s612] sm:$0xf]
      %v614 = vld [vmem:[%s612 + $0x4] sm:$0xf]
      %v615 = vld [vmem:[%s612 + $0x8] sm:$0xf]
      %v616 = vld [vmem:[%s612 + $0xc] sm:$0xf]
      %v617 = vld [vmem:[%s612 + $0x10] sm:$0xf]
      %v618 = vld [vmem:[%s612 + $0x14] sm:$0xf]
      %v619 = vld [vmem:[%s612 + $0x18] sm:$0xf]
      %v620 = vld [vmem:[%s612 + $0x1c] sm:$0xf]
      %v621 = vpack.c.b16 %v552, %v551
      %v630 = vunpack.c.l.b16 %v613
      %v631 = vunpack.c.l.b16 %v614
      %v632 = vunpack.c.l.b16 %v615
      %v633 = vunpack.c.l.b16 %v616
      %v634 = vunpack.c.l.b16 %v617
      %v635 = vunpack.c.l.b16 %v618
      %v636 = vunpack.c.l.b16 %v619
      %v637 = vunpack.c.l.b16 %v620
      %v638 = vpack.c.b16 %v631, %v630
      %v639 = vpack.c.b16 %v633, %v632
      %v640 = vpack.c.b16 %v635, %v634
      %v641 = vpack.c.b16 %v637, %v636
      %v647 = vsel %vm228, %v621, 0
      %649 = vmatpush.bf16.msra.mxu0 0
      %650 = vmatpush.bf16.msra.mxu0 0
      %651 = vmatpush.bf16.msra.mxu0 0
      %652 = vmatpush.bf16.msra.mxu0 0
      %653 = vmatpush.bf16.msra.mxu0 %v641
      %654 = vmatpush.bf16.msra.mxu0 %v640
      %655 = vmatpush.bf16.msra.mxu0 %v639
      %656 = vmatpush.bf16.msra.mxu0 %v638
      %657 = vmatmul.bf16.gmra.mxu0 %v647
      %v658 = vpop.f32.mrf.mxu0
      %v659 = vadd.f32 0.0, %v658
      %v660 = vpop.f32.mrf.mxu0
      %v661 = vadd.f32 0.0, %v660
      %662 = vdwg.mxu0
      %v663 = vadd.f32 %v610, %v659
      %v664 = vadd.f32 %v611, %v661
      %v665 = vld [vmem:[%s165 + $0x4] sm:$0xe]
      %v666 = vld [vmem:[%s165 + $0x8] sm:$0x3]
      %s667 = scalar_lea.vmem %s1, 256
      %v668 = vld [vmem:[%s667] sm:$0xf]
      %v669 = vld [vmem:[%s667 + $0x4] sm:$0xf]
      %v670 = vld [vmem:[%s667 + $0x8] sm:$0xf]
      %v671 = vld [vmem:[%s667 + $0xc] sm:$0xf]
      %v672 = vld [vmem:[%s667 + $0x10] sm:$0xf]
      %v673 = vld [vmem:[%s667 + $0x14] sm:$0xf]
      %v674 = vld [vmem:[%s667 + $0x18] sm:$0xf]
      %v675 = vld [vmem:[%s667 + $0x1c] sm:$0xf]
      %v678 = vunpack.c.l.b16 %v665
      %v679 = vunpack.c.l.b16 %v666
      %v680 = vpack.c.b16 %v679, %v678
      %v681 = vrot.slane %v680, 1
      %v690 = vunpack.c.l.b16 %v668
      %v691 = vunpack.c.l.b16 %v669
      %v692 = vunpack.c.l.b16 %v670
      %v693 = vunpack.c.l.b16 %v671
      %v694 = vunpack.c.l.b16 %v672
      %v695 = vunpack.c.l.b16 %v673
      %v696 = vunpack.c.l.b16 %v674
      %v697 = vunpack.c.l.b16 %v675
      %v698 = vpack.c.b16 %v691, %v690
      %v699 = vpack.c.b16 %v693, %v692
      %v700 = vpack.c.b16 %v695, %v694
      %v701 = vpack.c.b16 %v697, %v696
      %v707 = vsel %vm228, %v681, 0
      %709 = vmatpush.bf16.msra.mxu0 0
      %710 = vmatpush.bf16.msra.mxu0 0
      %711 = vmatpush.bf16.msra.mxu0 0
      %712 = vmatpush.bf16.msra.mxu0 0
      %713 = vmatpush.bf16.msra.mxu0 %v701
      %714 = vmatpush.bf16.msra.mxu0 %v700
      %715 = vmatpush.bf16.msra.mxu0 %v699
      %716 = vmatpush.bf16.msra.mxu0 %v698
      %717 = vmatmul.bf16.gmra.mxu0 %v707
      %v718 = vpop.f32.mrf.mxu0
      %v719 = vadd.f32 0.0, %v718
      %v720 = vpop.f32.mrf.mxu0
      %v721 = vadd.f32 0.0, %v720
      %722 = vdwg.mxu0
      %v723 = vadd.f32 %v663, %v719
      %v724 = vadd.f32 %v664, %v721
      %v725 = vld [vmem:[%s165 + $0x8] sm:$0x7]
      %s726 = scalar_lea.vmem %s1, 288
      %v727 = vld [vmem:[%s726] sm:$0xf]
      %v728 = vld [vmem:[%s726 + $0x4] sm:$0xf]
      %v729 = vld [vmem:[%s726 + $0x8] sm:$0xf]
      %v730 = vld [vmem:[%s726 + $0xc] sm:$0xf]
      %v731 = vld [vmem:[%s726 + $0x10] sm:$0xf]
      %v732 = vld [vmem:[%s726 + $0x14] sm:$0xf]
      %v733 = vld [vmem:[%s726 + $0x18] sm:$0xf]
      %v734 = vld [vmem:[%s726 + $0x1c] sm:$0xf]
      %v736 = vunpack.c.l.b16 %v725
      %v737 = vpack.c.b16 %v736, %v678
      %v739 = vshrl.u32 %v737, 16
      %v741 = vrot.slane %v739, 1
      %v742 = vshll.u32 %v737, 16
      %v744 = vrot.slane %v742, 2
      %v745 = vor.u32 %v741, %v744
      %v754 = vunpack.c.l.b16 %v727
      %v755 = vunpack.c.l.b16 %v728
      %v756 = vunpack.c.l.b16 %v729
      %v757 = vunpack.c.l.b16 %v730
      %v758 = vunpack.c.l.b16 %v731
      %v759 = vunpack.c.l.b16 %v732
      %v760 = vunpack.c.l.b16 %v733
      %v761 = vunpack.c.l.b16 %v734
      %v762 = vpack.c.b16 %v755, %v754
      %v763 = vpack.c.b16 %v757, %v756
      %v764 = vpack.c.b16 %v759, %v758
      %v765 = vpack.c.b16 %v761, %v760
      %v771 = vsel %vm228, %v745, 0
      %773 = vmatpush.bf16.msra.mxu0 0
      %774 = vmatpush.bf16.msra.mxu0 0
      %775 = vmatpush.bf16.msra.mxu0 0
      %776 = vmatpush.bf16.msra.mxu0 0
      %777 = vmatpush.bf16.msra.mxu0 %v765
      %778 = vmatpush.bf16.msra.mxu0 %v764
      %779 = vmatpush.bf16.msra.mxu0 %v763
      %780 = vmatpush.bf16.msra.mxu0 %v762
      %781 = vmatmul.bf16.gmra.mxu0 %v771
      %v782 = vpop.f32.mrf.mxu0
      %v783 = vadd.f32 0.0, %v782
      %v784 = vpop.f32.mrf.mxu0
      %v785 = vadd.f32 0.0, %v784
      %786 = vdwg.mxu0
      %v787 = vadd.f32 %v723, %v783
      %v788 = vadd.f32 %v724, %v785
      %v789 = vld [vmem:[%s165 + $0x4] sm:$0xc]
      %s790 = scalar_lea.vmem %s1, 320
      %v791 = vld [vmem:[%s790] sm:$0xf]
      %v792 = vld [vmem:[%s790 + $0x4] sm:$0xf]
      %v793 = vld [vmem:[%s790 + $0x8] sm:$0xf]
      %v794 = vld [vmem:[%s790 + $0xc] sm:$0xf]
      %v795 = vld [vmem:[%s790 + $0x10] sm:$0xf]
      %v796 = vld [vmem:[%s790 + $0x14] sm:$0xf]
      %v797 = vld [vmem:[%s790 + $0x18] sm:$0xf]
      %v798 = vld [vmem:[%s790 + $0x1c] sm:$0xf]
      %v800 = vunpack.c.l.b16 %v789
      %v801 = vpack.c.b16 %v736, %v800
      %v802 = vrot.slane %v801, 2
      %v811 = vunpack.c.l.b16 %v791
      %v812 = vunpack.c.l.b16 %v792
      %v813 = vunpack.c.l.b16 %v793
      %v814 = vunpack.c.l.b16 %v794
      %v815 = vunpack.c.l.b16 %v795
      %v816 = vunpack.c.l.b16 %v796
      %v817 = vunpack.c.l.b16 %v797
      %v818 = vunpack.c.l.b16 %v798
      %v819 = vpack.c.b16 %v812, %v811
      %v820 = vpack.c.b16 %v814, %v813
      %v821 = vpack.c.b16 %v816, %v815
      %v822 = vpack.c.b16 %v818, %v817
      %v828 = vsel %vm228, %v802, 0
      %830 = vmatpush.bf16.msra.mxu0 0
      %831 = vmatpush.bf16.msra.mxu0 0
      %832 = vmatpush.bf16.msra.mxu0 0
      %833 = vmatpush.bf16.msra.mxu0 0
      %834 = vmatpush.bf16.msra.mxu0 %v822
      %835 = vmatpush.bf16.msra.mxu0 %v821
      %836 = vmatpush.bf16.msra.mxu0 %v820
      %837 = vmatpush.bf16.msra.mxu0 %v819
      %838 = vmatmul.bf16.gmra.mxu0 %v828
      %v839 = vpop.f32.mrf.mxu0
      %v840 = vadd.f32 0.0, %v839
      %v841 = vpop.f32.mrf.mxu0
      %v842 = vadd.f32 0.0, %v841
      %843 = vdwg.mxu0
      %v844 = vadd.f32 %v787, %v840
      %v845 = vadd.f32 %v788, %v842
      %v846 = vld [vmem:[%s165 + $0x8] sm:$0xf]
      %s847 = scalar_lea.vmem %s1, 352
      %v848 = vld [vmem:[%s847] sm:$0xf]
      %v849 = vld [vmem:[%s847 + $0x4] sm:$0xf]
      %v850 = vld [vmem:[%s847 + $0x8] sm:$0xf]
      %v851 = vld [vmem:[%s847 + $0xc] sm:$0xf]
      %v852 = vld [vmem:[%s847 + $0x10] sm:$0xf]
      %v853 = vld [vmem:[%s847 + $0x14] sm:$0xf]
      %v854 = vld [vmem:[%s847 + $0x18] sm:$0xf]
      %v855 = vld [vmem:[%s847 + $0x1c] sm:$0xf]
      %v857 = vunpack.c.l.b16 %v846
      %v858 = vpack.c.b16 %v857, %v800
      %v860 = vshrl.u32 %v858, 16
      %v862 = vrot.slane %v860, 2
      %v863 = vshll.u32 %v858, 16
      %v865 = vrot.slane %v863, 3
      %v866 = vor.u32 %v862, %v865
      %v875 = vunpack.c.l.b16 %v848
      %v876 = vunpack.c.l.b16 %v849
      %v877 = vunpack.c.l.b16 %v850
      %v878 = vunpack.c.l.b16 %v851
      %v879 = vunpack.c.l.b16 %v852
      %v880 = vunpack.c.l.b16 %v853
      %v881 = vunpack.c.l.b16 %v854
      %v882 = vunpack.c.l.b16 %v855
      %v883 = vpack.c.b16 %v876, %v875
      %v884 = vpack.c.b16 %v878, %v877
      %v885 = vpack.c.b16 %v880, %v879
      %v886 = vpack.c.b16 %v882, %v881
      %v892 = vsel %vm228, %v866, 0
      %894 = vmatpush.bf16.msra.mxu0 0
      %895 = vmatpush.bf16.msra.mxu0 0
      %896 = vmatpush.bf16.msra.mxu0 0
      %897 = vmatpush.bf16.msra.mxu0 0
      %898 = vmatpush.bf16.msra.mxu0 %v886
      %899 = vmatpush.bf16.msra.mxu0 %v885
      %900 = vmatpush.bf16.msra.mxu0 %v884
      %901 = vmatpush.bf16.msra.mxu0 %v883
      %902 = vmatmul.bf16.gmra.mxu0 %v892
      %v903 = vpop.f32.mrf.mxu0
      %v904 = vadd.f32 0.0, %v903
      %v905 = vpop.f32.mrf.mxu0
      %v906 = vadd.f32 0.0, %v905
      %907 = vdwg.mxu0
      %v908 = vadd.f32 %v844, %v904
      %v909 = vadd.f32 %v845, %v906
      %v910 = vld [vmem:[%s165 + $0x4] sm:$0x8]
      %v911 = vld [vmem:[%s165 + $0x8] sm:$0xf]
      %v912 = vld [vmem:[%s165 + $0xc] sm:$0x1]
      %s913 = scalar_lea.vmem %s1, 384
      %v914 = vld [vmem:[%s913] sm:$0xf]
      %v915 = vld [vmem:[%s913 + $0x4] sm:$0xf]
      %v916 = vld [vmem:[%s913 + $0x8] sm:$0xf]
      %v917 = vld [vmem:[%s913 + $0xc] sm:$0xf]
      %v918 = vld [vmem:[%s913 + $0x10] sm:$0xf]
      %v919 = vld [vmem:[%s913 + $0x14] sm:$0xf]
      %v920 = vld [vmem:[%s913 + $0x18] sm:$0xf]
      %v921 = vld [vmem:[%s913 + $0x1c] sm:$0xf]
      %v925 = vunpack.c.l.b16 %v910
      %v926 = vunpack.c.l.b16 %v911
      %v927 = vunpack.c.l.b16 %v912
      %v928 = vpack.c.b16 %v926, %v925
      %v929 = vpack.c.b16 %v927, %v927
      %v931 = vshrl.u32 %v928, 16
      %v933 = vrot.slane %v931, 3
      %v934 = vshll.u32 %v928, 16
      %v936 = vrot.slane %v934, 4
      %v937 = vor.u32 %v933, %v936
      %v939 = vshll.u32 %v929, 16
      %v941 = vrot.slane %v939, 4
      %v942 = vsel %vm555, %v937, %v941
      %v951 = vunpack.c.l.b16 %v914
      %v952 = vunpack.c.l.b16 %v915
      %v953 = vunpack.c.l.b16 %v916
      %v954 = vunpack.c.l.b16 %v917
      %v955 = vunpack.c.l.b16 %v918
      %v956 = vunpack.c.l.b16 %v919
      %v957 = vunpack.c.l.b16 %v920
      %v958 = vunpack.c.l.b16 %v921
      %v959 = vpack.c.b16 %v952, %v951
      %v960 = vpack.c.b16 %v954, %v953
      %v961 = vpack.c.b16 %v956, %v955
      %v962 = vpack.c.b16 %v958, %v957
      %v968 = vsel %vm228, %v942, 0
      %970 = vmatpush.bf16.msra.mxu0 0
      %971 = vmatpush.bf16.msra.mxu0 0
      %972 = vmatpush.bf16.msra.mxu0 0
      %973 = vmatpush.bf16.msra.mxu0 0
      %974 = vmatpush.bf16.msra.mxu0 %v962
      %975 = vmatpush.bf16.msra.mxu0 %v961
      %976 = vmatpush.bf16.msra.mxu0 %v960
      %977 = vmatpush.bf16.msra.mxu0 %v959
      %978 = vmatmul.bf16.gmra.mxu0 %v968
      %v979 = vpop.f32.mrf.mxu0
      %v980 = vadd.f32 0.0, %v979
      %v981 = vpop.f32.mrf.mxu0
      %v982 = vadd.f32 0.0, %v981
      %983 = vdwg.mxu0
      %v984 = vadd.f32 %v908, %v980
      %v985 = vadd.f32 %v909, %v982
      %s986 = scalar_lea.vmem %s1, 416
      %v987 = vld [vmem:[%s986] sm:$0xf]
      %v988 = vld [vmem:[%s986 + $0x4] sm:$0xf]
      %v989 = vld [vmem:[%s986 + $0x8] sm:$0xf]
      %v990 = vld [vmem:[%s986 + $0xc] sm:$0xf]
      %v991 = vld [vmem:[%s986 + $0x10] sm:$0xf]
      %v992 = vld [vmem:[%s986 + $0x14] sm:$0xf]
      %v993 = vld [vmem:[%s986 + $0x18] sm:$0xf]
      %v994 = vld [vmem:[%s986 + $0x1c] sm:$0xf]
      %v995 = vpack.c.b16 %v927, %v926
      %v1004 = vunpack.c.l.b16 %v987
      %v1005 = vunpack.c.l.b16 %v988
      %v1006 = vunpack.c.l.b16 %v989
      %v1007 = vunpack.c.l.b16 %v990
      %v1008 = vunpack.c.l.b16 %v991
      %v1009 = vunpack.c.l.b16 %v992
      %v1010 = vunpack.c.l.b16 %v993
      %v1011 = vunpack.c.l.b16 %v994
      %v1012 = vpack.c.b16 %v1005, %v1004
      %v1013 = vpack.c.b16 %v1007, %v1006
      %v1014 = vpack.c.b16 %v1009, %v1008
      %v1015 = vpack.c.b16 %v1011, %v1010
      %v1021 = vsel %vm228, %v995, 0
      %1023 = vmatpush.bf16.msra.mxu0 0
      %1024 = vmatpush.bf16.msra.mxu0 0
      %1025 = vmatpush.bf16.msra.mxu0 0
      %1026 = vmatpush.bf16.msra.mxu0 0
      %1027 = vmatpush.bf16.msra.mxu0 %v1015
      %1028 = vmatpush.bf16.msra.mxu0 %v1014
      %1029 = vmatpush.bf16.msra.mxu0 %v1013
      %1030 = vmatpush.bf16.msra.mxu0 %v1012
      %1031 = vmatmul.bf16.gmra.mxu0 %v1021
      %v1032 = vpop.f32.mrf.mxu0
      %v1033 = vadd.f32 0.0, %v1032
      %v1034 = vpop.f32.mrf.mxu0
      %v1035 = vadd.f32 0.0, %v1034
      %1036 = vdwg.mxu0
      %v1037 = vadd.f32 %v984, %v1033
      %v1038 = vadd.f32 %v985, %v1035
      %v1039 = vld [vmem:[%s165 + $0xc] sm:$0x3]
      %s1040 = scalar_lea.vmem %s1, 448
      %v1041 = vld [vmem:[%s1040] sm:$0xf]
      %v1042 = vld [vmem:[%s1040 + $0x4] sm:$0xf]
      %v1043 = vld [vmem:[%s1040 + $0x8] sm:$0xf]
      %v1044 = vld [vmem:[%s1040 + $0xc] sm:$0xf]
      %v1045 = vld [vmem:[%s1040 + $0x10] sm:$0xf]
      %v1046 = vld [vmem:[%s1040 + $0x14] sm:$0xf]
      %v1047 = vld [vmem:[%s1040 + $0x18] sm:$0xf]
      %v1048 = vld [vmem:[%s1040 + $0x1c] sm:$0xf]
      %v1050 = vunpack.c.l.b16 %v1039
      %v1051 = vpack.c.b16 %v1050, %v926
      %v1053 = vshrl.u32 %v1051, 16
      %v1055 = vshll.u32 %v1051, 16
      %v1057 = vrot.slane %v1055, 1
      %v1058 = vor.u32 %v1053, %v1057
      %v1067 = vunpack.c.l.b16 %v1041
      %v1068 = vunpack.c.l.b16 %v1042
      %v1069 = vunpack.c.l.b16 %v1043
      %v1070 = vunpack.c.l.b16 %v1044
      %v1071 = vunpack.c.l.b16 %v1045
      %v1072 = vunpack.c.l.b16 %v1046
      %v1073 = vunpack.c.l.b16 %v1047
      %v1074 = vunpack.c.l.b16 %v1048
      %v1075 = vpack.c.b16 %v1068, %v1067
      %v1076 = vpack.c.b16 %v1070, %v1069
      %v1077 = vpack.c.b16 %v1072, %v1071
      %v1078 = vpack.c.b16 %v1074, %v1073
      %v1084 = vsel %vm228, %v1058, 0
      %1086 = vmatpush.bf16.msra.mxu0 0
      %1087 = vmatpush.bf16.msra.mxu0 0
      %1088 = vmatpush.bf16.msra.mxu0 0
      %1089 = vmatpush.bf16.msra.mxu0 0
      %1090 = vmatpush.bf16.msra.mxu0 %v1078
      %1091 = vmatpush.bf16.msra.mxu0 %v1077
      %1092 = vmatpush.bf16.msra.mxu0 %v1076
      %1093 = vmatpush.bf16.msra.mxu0 %v1075
      %1094 = vmatmul.bf16.gmra.mxu0 %v1084
      %v1095 = vpop.f32.mrf.mxu0
      %v1096 = vadd.f32 0.0, %v1095
      %v1097 = vpop.f32.mrf.mxu0
      %v1098 = vadd.f32 0.0, %v1097
      %1099 = vdwg.mxu0
      %v1100 = vadd.f32 %v1037, %v1096
      %v1101 = vadd.f32 %v1038, %v1098
      %v1102 = vld [vmem:[%s165 + $0x8] sm:$0xe]
      %s1103 = scalar_lea.vmem %s1, 480
      %v1104 = vld [vmem:[%s1103] sm:$0xf]
      %v1105 = vld [vmem:[%s1103 + $0x4] sm:$0xf]
      %v1106 = vld [vmem:[%s1103 + $0x8] sm:$0xf]
      %v1107 = vld [vmem:[%s1103 + $0xc] sm:$0xf]
      %v1108 = vld [vmem:[%s1103 + $0x10] sm:$0xf]
      %v1109 = vld [vmem:[%s1103 + $0x14] sm:$0xf]
      %v1110 = vld [vmem:[%s1103 + $0x18] sm:$0xf]
      %v1111 = vld [vmem:[%s1103 + $0x1c] sm:$0xf]
      %v1113 = vunpack.c.l.b16 %v1102
      %v1114 = vpack.c.b16 %v1050, %v1113
      %v1115 = vrot.slane %v1114, 1
      %v1124 = vunpack.c.l.b16 %v1104
      %v1125 = vunpack.c.l.b16 %v1105
      %v1126 = vunpack.c.l.b16 %v1106
      %v1127 = vunpack.c.l.b16 %v1107
      %v1128 = vunpack.c.l.b16 %v1108
      %v1129 = vunpack.c.l.b16 %v1109
      %v1130 = vunpack.c.l.b16 %v1110
      %v1131 = vunpack.c.l.b16 %v1111
      %v1132 = vpack.c.b16 %v1125, %v1124
      %v1133 = vpack.c.b16 %v1127, %v1126
      %v1134 = vpack.c.b16 %v1129, %v1128
      %v1135 = vpack.c.b16 %v1131, %v1130
      %v1141 = vsel %vm228, %v1115, 0
      %1143 = vmatpush.bf16.msra.mxu0 0
      %1144 = vmatpush.bf16.msra.mxu0 0
      %1145 = vmatpush.bf16.msra.mxu0 0
      %1146 = vmatpush.bf16.msra.mxu0 0
      %1147 = vmatpush.bf16.msra.mxu0 %v1135
      %1148 = vmatpush.bf16.msra.mxu0 %v1134
      %1149 = vmatpush.bf16.msra.mxu0 %v1133
      %1150 = vmatpush.bf16.msra.mxu0 %v1132
      %1151 = vmatmul.bf16.gmra.mxu0 %v1141
      %v1152 = vpop.f32.mrf.mxu0
      %v1153 = vadd.f32 0.0, %v1152
      %v1154 = vpop.f32.mrf.mxu0
      %v1155 = vadd.f32 0.0, %v1154
      %1156 = vdwg.mxu0
      %v1157 = vadd.f32 %v1100, %v1153
      %v1158 = vadd.f32 %v1101, %v1155
      %v1159 = vld [vmem:[%s2] sm:$0x1]
      %v1161 = vperm.slane %v1159, 0
      %v1163 = vadd.f32 %v1157, %v1161
      %v1164 = vadd.f32 %v1158, %v1161
      %v1165 = vpack.c.bf16 %v1163, %v1163
      %v1166 = vpack.c.bf16 %v1164, %v1164
      %1167 = vst [vmem:[%s170] sm:$0xf] %v1165
      %1168 = vst [vmem:[%s170 + $0x4] sm:$0x1] %v1166
      %p1169 = scmp.lt.s32.totalorder %s14, 1
      %s1170 = scalar_select %p1169, %s14, 1
      %s1171 = smul.addr %s1170, 2
      %s1172 = smul.addr %s1171, 4
      %s1173 = scalar_lea.vmem %s3, %s1172
      // Predicated region
      $region33: #{discriminator_forward.9} parent=31 // pred_check
        %p1174 = pneg %p100
      $region34: #{discriminator_forward.9} parent=31 // pred_check_branch
        %1176 = sbr.rel (%p1174) target = $region36
      $region35: #{discriminator_forward.9} parent=31 // pred_region
        _
      $region36: #{discriminator_forward.9} parent=31 // pred_fallthru
        _
    $region32: #{discriminator_forward.9} parent=5 // pred_fallthru
      _
    %p1177 = scmp.le.s32.totalorder 2, %s9
    // Predicated region
    $region37: #{discriminator_forward.9} parent=5 // pred_check
      %p1178 = pneg %p1177
    $region38: #{discriminator_forward.9} parent=5 // pred_check_branch
      %1180 = sbr.rel (%p1178) target = $region40
    $region39: #{discriminator_forward.9} parent=5 // pred_region
      %s1181 = ssub.s32 %s9, 2
      // Predicated region
      $region41: #{discriminator_forward.9} parent=39 // pred_check
        %p1182 = pneg %p106
      $region42: #{discriminator_forward.9} parent=39 // pred_check_branch
        %1184 = sbr.rel (%p1182) target = $region44
      $region43: #{discriminator_forward.9} parent=39 // pred_region
        %p1185 = scmp.lt.s32.totalorder %s15, 1
        %s1186 = scalar_select %p1185, %s15, 1
        %s1187 = smul.addr %s1186, 2
        %s1188 = smul.addr %s1187, 4
        %s1189 = scalar_lea.vmem %s3, %s1188
      $region44: #{discriminator_forward.9} parent=39 // pred_fallthru
        _
    $region40: #{discriminator_forward.9} parent=5 // pred_fallthru
      _
  $region6: #{discriminator_forward.9} parent=0 // loop_footer
    %s13 = sadd.s32 1, %s9
  $region7: #{discriminator_forward.9} parent=0 // loop_footer_branch
    %8 = sbr.rel target = $region3
  $region8: #{discriminator_forward.9} parent=0 // loop_exit
    _

</llo_original>
